<compile_context>
chip_gen: v6e
topology: v6e:2x2x1
jax: 0.10.0
libtpu: 0.0.40
codegen_flags: <defaults>
</compile_context>

<pallas_src>
import jax
import jax.numpy as jnp
from jax.experimental import pallas as pl
from jax.experimental.pallas import tpu as pltpu

OC, IC, H, W = 128, 128, 28, 28
KH, KW = 3, 3
WROW = W + 2                      # row stride of the flattened padded input (30)
N_OUT = 896                       # lane-dense output width: 7*128 >= 27*30+27+1
XW = 1024                         # flattened input width: 8*128 >= N_OUT + 62
K_TAPS = KH * KW                  # 9
K_TOTAL = K_TAPS * IC             # 1152 = folded contraction depth
OFFSETS = tuple(kh * WROW + kw for kh in range(KH) for kw in range(KW))


# ----------------------------- Pallas kernel --------------------------------
def conv_fold_kernel(w_ref, x_ref, o_ref, xs_ref):
    """w_ref: (OC, 9*IC), x_ref: (IC, XW), o_ref: (OC, N_OUT), xs_ref scratch."""
    # Materialize the 9 shifted tap windows ONCE into the (1152, 896) scratch.
    # Sublane starts are multiples of 128 (aligned); lane shifts are static.
    for t, off in enumerate(OFFSETS):
        xs_ref[t * IC:(t + 1) * IC, :] = x_ref[:, off:off + N_OUT]
    # Single K=1152 MXU matmul; reduction stays inside the MXU (no acc chain).
    o_ref[...] = jnp.dot(w_ref[...], xs_ref[...],
                         preferred_element_type=jnp.float32).astype(o_ref.dtype)


def conv_via_pallas(w_stack, x_flat):
    flops = 2 * OC * K_TOTAL * N_OUT                       # ~2.6e8
    bytes_accessed = 4 * (OC * K_TOTAL + IC * XW + OC * N_OUT)
    return pl.pallas_call(
        conv_fold_kernel,
        out_shape=jax.ShapeDtypeStruct((OC, N_OUT), jnp.float32),
        grid=(1,),
        in_specs=[
            pl.BlockSpec((OC, K_TOTAL), lambda i: (0, 0)),
            pl.BlockSpec((IC, XW), lambda i: (0, 0)),
        ],
        out_specs=pl.BlockSpec((OC, N_OUT), lambda i: (0, 0)),
        scratch_shapes=[pltpu.VMEM((K_TOTAL, N_OUT), jnp.float32)],
        compiler_params=pltpu.CompilerParams(
            dimension_semantics=("arbitrary",),
            vmem_limit_bytes=32 * 1024 * 1024),
        cost_estimate=pl.CostEstimate(flops=flops, transcendentals=0,
                                      bytes_accessed=bytes_accessed),
    )(w_stack, x_flat)


# ------------------------------- wrapper -------------------------------------
@jax.jit
def kernel_manual_2_forward(x, w0, w1):
    """x: (1,128,28,28) f32, w0: (128,32,3,3,2) f32, w1: (128,3,2) f32."""
    # Effective 3x3 conv weight (no repeated tensor materialized):
    # w1 reshaped to (g, u, kw, m) with ic = 4*g + u.
    w1_g = w1.reshape(IC // 4, 4, KW, 2)
    w_eff = jnp.einsum('ogjkm,gukm->ogujk', w0, w1_g)          # (oc, g, u, kh, kw)
    w_eff = w_eff.reshape(OC, IC, KH, KW)                      # (oc, ic, kh, kw)
    # Fold the 9 taps into the contraction dim, tap-major: (OC, 9*IC).
    w_stack = jnp.transpose(w_eff, (0, 2, 3, 1)).reshape(OC, K_TOTAL)

    # Flattened zero-padded input: x_flat[ic, r*30 + c] = x_padded[ic, r, c].
    xp = jnp.pad(x[0], ((0, 0), (1, 1), (1, 1)))               # (128, 30, 30)
    x_flat = xp.reshape(IC, (H + 2) * WROW)                    # (128, 900)
    x_flat = jnp.pad(x_flat, ((0, 0), (0, XW - (H + 2) * WROW)))   # (128, 1024)

    y_flat = conv_via_pallas(w_stack, x_flat)                  # (128, 896)
    # Valid outputs sit at flat positions i*30 + j for i<28, j<28.
    y = y_flat[:, :H * WROW].reshape(OC, H, WROW)[:, :, :W]
    return y.reshape(1, OC, H, W)


# --------------------- pure-JAX mirror of the torch ops ----------------------
def torch_reference(x, w0, w1):
    t3 = x.reshape(3584, 28)
    t3p = jnp.pad(t3, ((0, 0), (1, 1)))
    u = jnp.stack([t3p[:, ki:ki + 28] for ki in range(3)], axis=1)   # (3584,3,28)
    t3r = u.reshape(128, 28, 3, 28)
    t4 = jnp.einsum('jlin,jik->jlink', t3r, w1)                      # (128,28,3,28,2)
    t5 = t4.reshape(32, 4, 28, 3, 28, 2).sum(axis=1)                 # (32,28,3,28,2)
    t6in = t5.reshape(32, 28, 168)
    t6p = jnp.pad(t6in, ((0, 0), (1, 1), (0, 0)))
    u2 = jnp.stack([t6p[:, j:j + 28, :] for j in range(3)], axis=1)  # (32,3,28,168)
    t6 = u2.reshape(32, 3, 28, 3, 28, 2)
    t7 = jnp.einsum('ljpkom,iljkm->ipo', t6, w0)                     # (128,28,28)
    return t7.reshape(1, 128, 28, 28)


# --------------------------------- main ---------------------------------------
if __name__ == "__main__":
    key = jax.random.PRNGKey(0)
    kx, k0, k1 = jax.random.split(key, 3)

    # Input shape is fixed by the module's hard-coded reshapes (3584 = 128*28).
    x = jax.random.normal(kx, (1, 128, 28, 28), dtype=jnp.float32)
    # Deterministic parameter init (torch.randn equivalents).
    w0 = jax.random.normal(k0, (128, 32, 3, 3, 2), dtype=jnp.float32)
    w1 = jax.random.normal(k1, (128, 3, 2), dtype=jnp.float32)

    y = kernel_manual_2_forward(x, w0, w1)
    y = jax.block_until_ready(y)

    y_ref = torch_reference(x, w0, w1)
    assert y.shape == (1, 128, 28, 28), y.shape
    assert jnp.allclose(y, y_ref, rtol=1e-4, atol=1e-3), (
        float(jnp.max(jnp.abs(y - y_ref))))

    print("KERNEL_OK")
</pallas_src>

<mosaic_0001>
module attributes {stable_mosaic.version = 11 : i64} {
  func.func @conv_fold_kernel(%arg0: i32, %arg1: memref<128x1152xf32, #tpu.memory_space<vmem>>, %arg2: memref<128x1024xf32, #tpu.memory_space<vmem>>, %arg3: memref<128x896xf32, #tpu.memory_space<vmem>>, %arg4: memref<1152x896xf32, #tpu.memory_space<vmem>>) attributes {dimension_semantics = [#tpu.dimension_semantics<arbitrary>], iteration_bounds = array<i64: 1>, scalar_prefetch = 0 : i64, scratch_operands = 1 : i64, tpu.core_type = #tpu.core_type<tc>, window_params = [{pipeline_mode = #tpu.pipeline_mode<synchronous>, transform_indices = @transform_0, window_bounds = array<i64: 128, 1152>}, {pipeline_mode = #tpu.pipeline_mode<synchronous>, transform_indices = @transform_1, window_bounds = array<i64: 128, 1024>}, {pipeline_mode = #tpu.pipeline_mode<synchronous>, transform_indices = @transform_2, window_bounds = array<i64: 128, 896>}]} {
    %c0 = arith.constant 0 : index
    %c0_0 = arith.constant 0 : index
    %0 = vector.load %arg2[%c0, %c0_0] : memref<128x1024xf32, #tpu.memory_space<vmem>>, vector<128x896xf32>
    %c0_1 = arith.constant 0 : index
    %c0_2 = arith.constant 0 : index
    %1 = vector.load %arg4[%c0_1, %c0_2] : memref<1152x896xf32, #tpu.memory_space<vmem>>, vector<128x896xf32>
    tpu.vector_store %arg4[%c0_1, %c0_2], %0 {strides = array<i32>} : memref<1152x896xf32, #tpu.memory_space<vmem>>, vector<128x896xf32>,
    %c0_3 = arith.constant 0 : index
    %c1 = arith.constant 1 : index
    %2 = vector.load %arg2[%c0_3, %c1] : memref<128x1024xf32, #tpu.memory_space<vmem>>, vector<128x896xf32>
    %c128 = arith.constant 128 : index
    %c0_4 = arith.constant 0 : index
    %3 = vector.load %arg4[%c128, %c0_4] : memref<1152x896xf32, #tpu.memory_space<vmem>>, vector<128x896xf32>
    tpu.vector_store %arg4[%c128, %c0_4], %2 {strides = array<i32>} : memref<1152x896xf32, #tpu.memory_space<vmem>>, vector<128x896xf32>,
    %c0_5 = arith.constant 0 : index
    %c2 = arith.constant 2 : index
    %4 = vector.load %arg2[%c0_5, %c2] : memref<128x1024xf32, #tpu.memory_space<vmem>>, vector<128x896xf32>
    %c256 = arith.constant 256 : index
    %c0_6 = arith.constant 0 : index
    %5 = vector.load %arg4[%c256, %c0_6] : memref<1152x896xf32, #tpu.memory_space<vmem>>, vector<128x896xf32>
    tpu.vector_store %arg4[%c256, %c0_6], %4 {strides = array<i32>} : memref<1152x896xf32, #tpu.memory_space<vmem>>, vector<128x896xf32>,
    %c0_7 = arith.constant 0 : index
    %c30 = arith.constant 30 : index
    %6 = vector.load %arg2[%c0_7, %c30] : memref<128x1024xf32, #tpu.memory_space<vmem>>, vector<128x896xf32>
    %c384 = arith.constant 384 : index
    %c0_8 = arith.constant 0 : index
    %7 = vector.load %arg4[%c384, %c0_8] : memref<1152x896xf32, #tpu.memory_space<vmem>>, vector<128x896xf32>
    tpu.vector_store %arg4[%c384, %c0_8], %6 {strides = array<i32>} : memref<1152x896xf32, #tpu.memory_space<vmem>>, vector<128x896xf32>,
    %c0_9 = arith.constant 0 : index
    %c31 = arith.constant 31 : index
    %8 = vector.load %arg2[%c0_9, %c31] : memref<128x1024xf32, #tpu.memory_space<vmem>>, vector<128x896xf32>
    %c512 = arith.constant 512 : index
    %c0_10 = arith.constant 0 : index
    %9 = vector.load %arg4[%c512, %c0_10] : memref<1152x896xf32, #tpu.memory_space<vmem>>, vector<128x896xf32>
    tpu.vector_store %arg4[%c512, %c0_10], %8 {strides = array<i32>} : memref<1152x896xf32, #tpu.memory_space<vmem>>, vector<128x896xf32>,
    %c0_11 = arith.constant 0 : index
    %c32 = arith.constant 32 : index
    %10 = vector.load %arg2[%c0_11, %c32] : memref<128x1024xf32, #tpu.memory_space<vmem>>, vector<128x896xf32>
    %c640 = arith.constant 640 : index
    %c0_12 = arith.constant 0 : index
    %11 = vector.load %arg4[%c640, %c0_12] : memref<1152x896xf32, #tpu.memory_space<vmem>>, vector<128x896xf32>
    tpu.vector_store %arg4[%c640, %c0_12], %10 {strides = array<i32>} : memref<1152x896xf32, #tpu.memory_space<vmem>>, vector<128x896xf32>,
    %c0_13 = arith.constant 0 : index
    %c60 = arith.constant 60 : index
    %12 = vector.load %arg2[%c0_13, %c60] : memref<128x1024xf32, #tpu.memory_space<vmem>>, vector<128x896xf32>
    %c768 = arith.constant 768 : index
    %c0_14 = arith.constant 0 : index
    %13 = vector.load %arg4[%c768, %c0_14] : memref<1152x896xf32, #tpu.memory_space<vmem>>, vector<128x896xf32>
    tpu.vector_store %arg4[%c768, %c0_14], %12 {strides = array<i32>} : memref<1152x896xf32, #tpu.memory_space<vmem>>, vector<128x896xf32>,
    %c0_15 = arith.constant 0 : index
    %c61 = arith.constant 61 : index
    %14 = vector.load %arg2[%c0_15, %c61] : memref<128x1024xf32, #tpu.memory_space<vmem>>, vector<128x896xf32>
    %c896 = arith.constant 896 : index
    %c0_16 = arith.constant 0 : index
    %15 = vector.load %arg4[%c896, %c0_16] : memref<1152x896xf32, #tpu.memory_space<vmem>>, vector<128x896xf32>
    tpu.vector_store %arg4[%c896, %c0_16], %14 {strides = array<i32>} : memref<1152x896xf32, #tpu.memory_space<vmem>>, vector<128x896xf32>,
    %c0_17 = arith.constant 0 : index
    %c62 = arith.constant 62 : index
    %16 = vector.load %arg2[%c0_17, %c62] : memref<128x1024xf32, #tpu.memory_space<vmem>>, vector<128x896xf32>
    %c1024 = arith.constant 1024 : index
    %c0_18 = arith.constant 0 : index
    %17 = vector.load %arg4[%c1024, %c0_18] : memref<1152x896xf32, #tpu.memory_space<vmem>>, vector<128x896xf32>
    tpu.vector_store %arg4[%c1024, %c0_18], %16 {strides = array<i32>} : memref<1152x896xf32, #tpu.memory_space<vmem>>, vector<128x896xf32>,
    %c0_19 = arith.constant 0 : index
    %c0_20 = arith.constant 0 : index
    %18 = vector.load %arg1[%c0_19, %c0_20] : memref<128x1152xf32, #tpu.memory_space<vmem>>, vector<128x1152xf32>
    %c0_21 = arith.constant 0 : index
    %c0_22 = arith.constant 0 : index
    %19 = vector.load %arg4[%c0_21, %c0_22] : memref<1152x896xf32, #tpu.memory_space<vmem>>, vector<1152x896xf32>
    %cst = arith.constant dense<0.000000e+00> : vector<128x896xf32>
    %20 = tpu.matmul %18, %19, %cst {dimension_numbers = #tpu.dot_dimension_numbers<[1], [0], [0], [1], [0, 0, 1, 1], [], []>} : vector<128x1152xf32>, vector<1152x896xf32>, vector<128x896xf32> -> vector<128x896xf32>
    %c0_23 = arith.constant 0 : index
    %c0_24 = arith.constant 0 : index
    %21 = vector.load %arg3[%c0_23, %c0_24] : memref<128x896xf32, #tpu.memory_space<vmem>>, vector<128x896xf32>
    tpu.vector_store %arg3[%c0_23, %c0_24], %20 {strides = array<i32>} : memref<128x896xf32, #tpu.memory_space<vmem>>, vector<128x896xf32>,
    return
  }
  func.func @transform_0(%arg0: i32) -> (i32, i32) {
    %c0_i32 = arith.constant 0 : i32
    %c0_i32_0 = arith.constant 0 : i32
    %c0_i32_1 = arith.constant 0 : i32
    return %c0_i32, %c0_i32_0 : i32, i32
  }
  func.func @transform_1(%arg0: i32) -> (i32, i32) {
    %c0_i32 = arith.constant 0 : i32
    %c0_i32_0 = arith.constant 0 : i32
    %c0_i32_1 = arith.constant 0 : i32
    return %c0_i32, %c0_i32_0 : i32, i32
  }
  func.func @transform_2(%arg0: i32) -> (i32, i32) {
    %c0_i32 = arith.constant 0 : i32
    %c0_i32_0 = arith.constant 0 : i32
    %c0_i32_1 = arith.constant 0 : i32
    return %c0_i32, %c0_i32_0 : i32, i32
  }
}

</mosaic_0001>

<llo_original>
// kernel: kernel_manual_2_forward.1
$region0: #{kernel_manual_2_forward.1}
  #allocation0 [shape = 'u32[]', space=smem, size = 0x4, offset = 0x4, fixed_abs, tag = 'smem constant byte address 0x4 - core index']
  #allocation1 [shape = 'u32[144,128]{1,0:T(1,128)}', space=vmem, size = 0x12000, scoped, tag = 'internal scratch']
  #allocation2 [shape = 'f32[1152,896]{1,0:T(8,128)}', space=vmem, size = 0x3f0000, scoped, tag = 'scratch operand']
  %s0 = inlined_call_operand.vmem [shape: f32[128,1152], index: 0, kind: input, shape index: {}]
  %s1 = inlined_call_operand.vmem [shape: f32[128,1024], index: 1, kind: input, shape index: {}]
  %s2 = inlined_call_operand.vmem [shape: f32[128,896], index: 2, kind: output, shape index: {}]
  %s3 = sld [smem:[#allocation0]]
  $region18: #{kernel_manual_2_forward.1} parent=0
    _
  %s5 = ssub.s32 1, %s3
  %s6 = scalar_select 0, %s5, %s3
  // Predicated region
  $region2: #{kernel_manual_2_forward.1} parent=0 // pred_check
    _
  $region3: #{kernel_manual_2_forward.1} parent=0 // pred_check_branch
    %8 = sbr.rel (0) target = $region5
  $region4: #{kernel_manual_2_forward.1} parent=0 // pred_region
    _
  $region5: #{kernel_manual_2_forward.1} parent=0 // pred_fallthru
    _
  // Predicated region
  $region6: #{kernel_manual_2_forward.1} parent=0 // pred_check
    _
  $region7: #{kernel_manual_2_forward.1} parent=0 // pred_check_branch
    %10 = sbr.rel (0) target = $region9
  $region8: #{kernel_manual_2_forward.1} parent=0 // pred_region
    _
  $region9: #{kernel_manual_2_forward.1} parent=0 // pred_fallthru
    _
  %v11 = vld [vmem:[%s1] sm:$0xff]
  %v12 = vld [vmem:[%s1 + $0x8] sm:$0xff]
  %v13 = vld [vmem:[%s1 + $0x10] sm:$0xff]
  %v14 = vld [vmem:[%s1 + $0x18] sm:$0xff]
  %v15 = vld [vmem:[%s1 + $0x20] sm:$0xff]
  %v16 = vld [vmem:[%s1 + $0x28] sm:$0xff]
  %v17 = vld [vmem:[%s1 + $0x30] sm:$0xff]
  %v18 = vld [vmem:[%s1 + $0x40] sm:$0xff]
  %v19 = vld [vmem:[%s1 + $0x48] sm:$0xff]
  %v20 = vld [vmem:[%s1 + $0x50] sm:$0xff]
  %v21 = vld [vmem:[%s1 + $0x58] sm:$0xff]
  %v22 = vld [vmem:[%s1 + $0x60] sm:$0xff]
  %v23 = vld [vmem:[%s1 + $0x68] sm:$0xff]
  %v24 = vld [vmem:[%s1 + $0x70] sm:$0xff]
  %v25 = vld [vmem:[%s1 + $0x80] sm:$0xff]
  %v26 = vld [vmem:[%s1 + $0x88] sm:$0xff]
  %v27 = vld [vmem:[%s1 + $0x90] sm:$0xff]
  %v28 = vld [vmem:[%s1 + $0x98] sm:$0xff]
  %v29 = vld [vmem:[%s1 + $0xa0] sm:$0xff]
  %v30 = vld [vmem:[%s1 + $0xa8] sm:$0xff]
  %v31 = vld [vmem:[%s1 + $0xb0] sm:$0xff]
  %v32 = vld [vmem:[%s1 + $0xc0] sm:$0xff]
  %v33 = vld [vmem:[%s1 + $0xc8] sm:$0xff]
  %v34 = vld [vmem:[%s1 + $0xd0] sm:$0xff]
  %v35 = vld [vmem:[%s1 + $0xd8] sm:$0xff]
  %v36 = vld [vmem:[%s1 + $0xe0] sm:$0xff]
  %v37 = vld [vmem:[%s1 + $0xe8] sm:$0xff]
  %v38 = vld [vmem:[%s1 + $0xf0] sm:$0xff]
  %v39 = vld [vmem:[%s1 + $0x100] sm:$0xff]
  %v40 = vld [vmem:[%s1 + $0x108] sm:$0xff]
  %v41 = vld [vmem:[%s1 + $0x110] sm:$0xff]
  %v42 = vld [vmem:[%s1 + $0x118] sm:$0xff]
  %v43 = vld [vmem:[%s1 + $0x120] sm:$0xff]
  %v44 = vld [vmem:[%s1 + $0x128] sm:$0xff]
  %v45 = vld [vmem:[%s1 + $0x130] sm:$0xff]
  %v46 = vld [vmem:[%s1 + $0x140] sm:$0xff]
  %v47 = vld [vmem:[%s1 + $0x148] sm:$0xff]
  %v48 = vld [vmem:[%s1 + $0x150] sm:$0xff]
  %v49 = vld [vmem:[%s1 + $0x158] sm:$0xff]
  %v50 = vld [vmem:[%s1 + $0x160] sm:$0xff]
  %v51 = vld [vmem:[%s1 + $0x168] sm:$0xff]
  %v52 = vld [vmem:[%s1 + $0x170] sm:$0xff]
  %v53 = vld [vmem:[%s1 + $0x180] sm:$0xff]
  %v54 = vld [vmem:[%s1 + $0x188] sm:$0xff]
  %v55 = vld [vmem:[%s1 + $0x190] sm:$0xff]
  %v56 = vld [vmem:[%s1 + $0x198] sm:$0xff]
  %v57 = vld [vmem:[%s1 + $0x1a0] sm:$0xff]
  %v58 = vld [vmem:[%s1 + $0x1a8] sm:$0xff]
  %v59 = vld [vmem:[%s1 + $0x1b0] sm:$0xff]
  %v60 = vld [vmem:[%s1 + $0x1c0] sm:$0xff]
  %v61 = vld [vmem:[%s1 + $0x1c8] sm:$0xff]
  %v62 = vld [vmem:[%s1 + $0x1d0] sm:$0xff]
  %v63 = vld [vmem:[%s1 + $0x1d8] sm:$0xff]
  %v64 = vld [vmem:[%s1 + $0x1e0] sm:$0xff]
  %v65 = vld [vmem:[%s1 + $0x1e8] sm:$0xff]
  %v66 = vld [vmem:[%s1 + $0x1f0] sm:$0xff]
  %v67 = vld [vmem:[%s1 + $0x200] sm:$0xff]
  %v68 = vld [vmem:[%s1 + $0x208] sm:$0xff]
  %v69 = vld [vmem:[%s1 + $0x210] sm:$0xff]
  %v70 = vld [vmem:[%s1 + $0x218] sm:$0xff]
  %v71 = vld [vmem:[%s1 + $0x220] sm:$0xff]
  %v72 = vld [vmem:[%s1 + $0x228] sm:$0xff]
  %v73 = vld [vmem:[%s1 + $0x230] sm:$0xff]
  %v74 = vld [vmem:[%s1 + $0x240] sm:$0xff]
  %v75 = vld [vmem:[%s1 + $0x248] sm:$0xff]
  %v76 = vld [vmem:[%s1 + $0x250] sm:$0xff]
  %v77 = vld [vmem:[%s1 + $0x258] sm:$0xff]
  %v78 = vld [vmem:[%s1 + $0x260] sm:$0xff]
  %v79 = vld [vmem:[%s1 + $0x268] sm:$0xff]
  %v80 = vld [vmem:[%s1 + $0x270] sm:$0xff]
  %v81 = vld [vmem:[%s1 + $0x280] sm:$0xff]
  %v82 = vld [vmem:[%s1 + $0x288] sm:$0xff]
  %v83 = vld [vmem:[%s1 + $0x290] sm:$0xff]
  %v84 = vld [vmem:[%s1 + $0x298] sm:$0xff]
  %v85 = vld [vmem:[%s1 + $0x2a0] sm:$0xff]
  %v86 = vld [vmem:[%s1 + $0x2a8] sm:$0xff]
  %v87 = vld [vmem:[%s1 + $0x2b0] sm:$0xff]
  %v88 = vld [vmem:[%s1 + $0x2c0] sm:$0xff]
  %v89 = vld [vmem:[%s1 + $0x2c8] sm:$0xff]
  %v90 = vld [vmem:[%s1 + $0x2d0] sm:$0xff]
  %v91 = vld [vmem:[%s1 + $0x2d8] sm:$0xff]
  %v92 = vld [vmem:[%s1 + $0x2e0] sm:$0xff]
  %v93 = vld [vmem:[%s1 + $0x2e8] sm:$0xff]
  %v94 = vld [vmem:[%s1 + $0x2f0] sm:$0xff]
  %v95 = vld [vmem:[%s1 + $0x300] sm:$0xff]
  %v96 = vld [vmem:[%s1 + $0x308] sm:$0xff]
  %v97 = vld [vmem:[%s1 + $0x310] sm:$0xff]
  %v98 = vld [vmem:[%s1 + $0x318] sm:$0xff]
  %v99 = vld [vmem:[%s1 + $0x320] sm:$0xff]
  %v100 = vld [vmem:[%s1 + $0x328] sm:$0xff]
  %v101 = vld [vmem:[%s1 + $0x330] sm:$0xff]
  %v102 = vld [vmem:[%s1 + $0x340] sm:$0xff]
  %v103 = vld [vmem:[%s1 + $0x348] sm:$0xff]
  %v104 = vld [vmem:[%s1 + $0x350] sm:$0xff]
  %v105 = vld [vmem:[%s1 + $0x358] sm:$0xff]
  %v106 = vld [vmem:[%s1 + $0x360] sm:$0xff]
  %v107 = vld [vmem:[%s1 + $0x368] sm:$0xff]
  %v108 = vld [vmem:[%s1 + $0x370] sm:$0xff]
  %v109 = vld [vmem:[%s1 + $0x380] sm:$0xff]
  %v110 = vld [vmem:[%s1 + $0x388] sm:$0xff]
  %v111 = vld [vmem:[%s1 + $0x390] sm:$0xff]
  %v112 = vld [vmem:[%s1 + $0x398] sm:$0xff]
  %v113 = vld [vmem:[%s1 + $0x3a0] sm:$0xff]
  %v114 = vld [vmem:[%s1 + $0x3a8] sm:$0xff]
  %v115 = vld [vmem:[%s1 + $0x3b0] sm:$0xff]
  %v116 = vld [vmem:[%s1 + $0x3c0] sm:$0xff]
  %v117 = vld [vmem:[%s1 + $0x3c8] sm:$0xff]
  %v118 = vld [vmem:[%s1 + $0x3d0] sm:$0xff]
  %v119 = vld [vmem:[%s1 + $0x3d8] sm:$0xff]
  %v120 = vld [vmem:[%s1 + $0x3e0] sm:$0xff]
  %v121 = vld [vmem:[%s1 + $0x3e8] sm:$0xff]
  %v122 = vld [vmem:[%s1 + $0x3f0] sm:$0xff]
  %123 = vst [vmem:[#allocation2] sm:$0xff] %v11
  %124 = vst [vmem:[#allocation2 + $0x8] sm:$0xff] %v12
  %125 = vst [vmem:[#allocation2 + $0x10] sm:$0xff] %v13
  %126 = vst [vmem:[#allocation2 + $0x18] sm:$0xff] %v14
  %127 = vst [vmem:[#allocation2 + $0x20] sm:$0xff] %v15
  %128 = vst [vmem:[#allocation2 + $0x28] sm:$0xff] %v16
  %129 = vst [vmem:[#allocation2 + $0x30] sm:$0xff] %v17
  %130 = vst [vmem:[#allocation2 + $0x38] sm:$0xff] %v18
  %131 = vst [vmem:[#allocation2 + $0x40] sm:$0xff] %v19
  %132 = vst [vmem:[#allocation2 + $0x48] sm:$0xff] %v20
  %133 = vst [vmem:[#allocation2 + $0x50] sm:$0xff] %v21
  %134 = vst [vmem:[#allocation2 + $0x58] sm:$0xff] %v22
  %135 = vst [vmem:[#allocation2 + $0x60] sm:$0xff] %v23
  %136 = vst [vmem:[#allocation2 + $0x68] sm:$0xff] %v24
  %137 = vst [vmem:[#allocation2 + $0x70] sm:$0xff] %v25
  %138 = vst [vmem:[#allocation2 + $0x78] sm:$0xff] %v26
  %139 = vst [vmem:[#allocation2 + $0x80] sm:$0xff] %v27
  %140 = vst [vmem:[#allocation2 + $0x88] sm:$0xff] %v28
  %141 = vst [vmem:[#allocation2 + $0x90] sm:$0xff] %v29
  %142 = vst [vmem:[#allocation2 + $0x98] sm:$0xff] %v30
  %143 = vst [vmem:[#allocation2 + $0xa0] sm:$0xff] %v31
  %144 = vst [vmem:[#allocation2 + $0xa8] sm:$0xff] %v32
  %145 = vst [vmem:[#allocation2 + $0xb0] sm:$0xff] %v33
  %146 = vst [vmem:[#allocation2 + $0xb8] sm:$0xff] %v34
  %147 = vst [vmem:[#allocation2 + $0xc0] sm:$0xff] %v35
  %148 = vst [vmem:[#allocation2 + $0xc8] sm:$0xff] %v36
  %149 = vst [vmem:[#allocation2 + $0xd0] sm:$0xff] %v37
  %150 = vst [vmem:[#allocation2 + $0xd8] sm:$0xff] %v38
  %151 = vst [vmem:[#allocation2 + $0xe0] sm:$0xff] %v39
  %152 = vst [vmem:[#allocation2 + $0xe8] sm:$0xff] %v40
  %153 = vst [vmem:[#allocation2 + $0xf0] sm:$0xff] %v41
  %154 = vst [vmem:[#allocation2 + $0xf8] sm:$0xff] %v42
  %155 = vst [vmem:[#allocation2 + $0x100] sm:$0xff] %v43
  %156 = vst [vmem:[#allocation2 + $0x108] sm:$0xff] %v44
  %157 = vst [vmem:[#allocation2 + $0x110] sm:$0xff] %v45
  %158 = vst [vmem:[#allocation2 + $0x118] sm:$0xff] %v46
  %159 = vst [vmem:[#allocation2 + $0x120] sm:$0xff] %v47
  %160 = vst [vmem:[#allocation2 + $0x128] sm:$0xff] %v48
  %161 = vst [vmem:[#allocation2 + $0x130] sm:$0xff] %v49
  %162 = vst [vmem:[#allocation2 + $0x138] sm:$0xff] %v50
  %163 = vst [vmem:[#allocation2 + $0x140] sm:$0xff] %v51
  %164 = vst [vmem:[#allocation2 + $0x148] sm:$0xff] %v52
  %165 = vst [vmem:[#allocation2 + $0x150] sm:$0xff] %v53
  %166 = vst [vmem:[#allocation2 + $0x158] sm:$0xff] %v54
  %167 = vst [vmem:[#allocation2 + $0x160] sm:$0xff] %v55
  %168 = vst [vmem:[#allocation2 + $0x168] sm:$0xff] %v56
  %169 = vst [vmem:[#allocation2 + $0x170] sm:$0xff] %v57
  %170 = vst [vmem:[#allocation2 + $0x178] sm:$0xff] %v58
  %171 = vst [vmem:[#allocation2 + $0x180] sm:$0xff] %v59
  %172 = vst [vmem:[#allocation2 + $0x188] sm:$0xff] %v60
  %173 = vst [vmem:[#allocation2 + $0x190] sm:$0xff] %v61
  %174 = vst [vmem:[#allocation2 + $0x198] sm:$0xff] %v62
  %175 = vst [vmem:[#allocation2 + $0x1a0] sm:$0xff] %v63
  %176 = vst [vmem:[#allocation2 + $0x1a8] sm:$0xff] %v64
  %177 = vst [vmem:[#allocation2 + $0x1b0] sm:$0xff] %v65
  %178 = vst [vmem:[#allocation2 + $0x1b8] sm:$0xff] %v66
  %179 = vst [vmem:[#allocation2 + $0x1c0] sm:$0xff] %v67
  %180 = vst [vmem:[#allocation2 + $0x1c8] sm:$0xff] %v68
  %181 = vst [vmem:[#allocation2 + $0x1d0] sm:$0xff] %v69
  %182 = vst [vmem:[#allocation2 + $0x1d8] sm:$0xff] %v70
  %183 = vst [vmem:[#allocation2 + $0x1e0] sm:$0xff] %v71
  %184 = vst [vmem:[#allocation2 + $0x1e8] sm:$0xff] %v72
  %185 = vst [vmem:[#allocation2 + $0x1f0] sm:$0xff] %v73
  %186 = vst [vmem:[#allocation2 + $0x1f8] sm:$0xff] %v74
  %187 = vst [vmem:[#allocation2 + $0x200] sm:$0xff] %v75
  %188 = vst [vmem:[#allocation2 + $0x208] sm:$0xff] %v76
  %189 = vst [vmem:[#allocation2 + $0x210] sm:$0xff] %v77
  %190 = vst [vmem:[#allocation2 + $0x218] sm:$0xff] %v78
  %191 = vst [vmem:[#allocation2 + $0x220] sm:$0xff] %v79
  %192 = vst [vmem:[#allocation2 + $0x228] sm:$0xff] %v80
  %193 = vst [vmem:[#allocation2 + $0x230] sm:$0xff] %v81
  %194 = vst [vmem:[#allocation2 + $0x238] sm:$0xff] %v82
  %195 = vst [vmem:[#allocation2 + $0x240] sm:$0xff] %v83
  %196 = vst [vmem:[#allocation2 + $0x248] sm:$0xff] %v84
  %197 = vst [vmem:[#allocation2 + $0x250] sm:$0xff] %v85
  %198 = vst [vmem:[#allocation2 + $0x258] sm:$0xff] %v86
  %199 = vst [vmem:[#allocation2 + $0x260] sm:$0xff] %v87
  %200 = vst [vmem:[#allocation2 + $0x268] sm:$0xff] %v88
  %201 = vst [vmem:[#allocation2 + $0x270] sm:$0xff] %v89
  %202 = vst [vmem:[#allocation2 + $0x278] sm:$0xff] %v90
  %203 = vst [vmem:[#allocation2 + $0x280] sm:$0xff] %v91
  %204 = vst [vmem:[#allocation2 + $0x288] sm:$0xff] %v92
  %205 = vst [vmem:[#allocation2 + $0x290] sm:$0xff] %v93
  %206 = vst [vmem:[#allocation2 + $0x298] sm:$0xff] %v94
  %207 = vst [vmem:[#allocation2 + $0x2a0] sm:$0xff] %v95
  %208 = vst [vmem:[#allocation2 + $0x2a8] sm:$0xff] %v96
  %209 = vst [vmem:[#allocation2 + $0x2b0] sm:$0xff] %v97
  %210 = vst [vmem:[#allocation2 + $0x2b8] sm:$0xff] %v98
  %211 = vst [vmem:[#allocation2 + $0x2c0] sm:$0xff] %v99
  %212 = vst [vmem:[#allocation2 + $0x2c8] sm:$0xff] %v100
  %213 = vst [vmem:[#allocation2 + $0x2d0] sm:$0xff] %v101
  %214 = vst [vmem:[#allocation2 + $0x2d8] sm:$0xff] %v102
  %215 = vst [vmem:[#allocation2 + $0x2e0] sm:$0xff] %v103
  %216 = vst [vmem:[#allocation2 + $0x2e8] sm:$0xff] %v104
  %217 = vst [vmem:[#allocation2 + $0x2f0] sm:$0xff] %v105
  %218 = vst [vmem:[#allocation2 + $0x2f8] sm:$0xff] %v106
  %219 = vst [vmem:[#allocation2 + $0x300] sm:$0xff] %v107
  %220 = vst [vmem:[#allocation2 + $0x308] sm:$0xff] %v108
  %221 = vst [vmem:[#allocation2 + $0x310] sm:$0xff] %v109
  %222 = vst [vmem:[#allocation2 + $0x318] sm:$0xff] %v110
  %223 = vst [vmem:[#allocation2 + $0x320] sm:$0xff] %v111
  %224 = vst [vmem:[#allocation2 + $0x328] sm:$0xff] %v112
  %225 = vst [vmem:[#allocation2 + $0x330] sm:$0xff] %v113
  %226 = vst [vmem:[#allocation2 + $0x338] sm:$0xff] %v114
  %227 = vst [vmem:[#allocation2 + $0x340] sm:$0xff] %v115
  %228 = vst [vmem:[#allocation2 + $0x348] sm:$0xff] %v116
  %229 = vst [vmem:[#allocation2 + $0x350] sm:$0xff] %v117
  %230 = vst [vmem:[#allocation2 + $0x358] sm:$0xff] %v118
  %231 = vst [vmem:[#allocation2 + $0x360] sm:$0xff] %v119
  %232 = vst [vmem:[#allocation2 + $0x368] sm:$0xff] %v120
  %233 = vst [vmem:[#allocation2 + $0x370] sm:$0xff] %v121
  %234 = vst [vmem:[#allocation2 + $0x378] sm:$0xff] %v122
  %v235 = vld [vmem:[%s1] sm:$0xff]
  %v236 = vld [vmem:[%s1 + $0x8] sm:$0xff]
  %v237 = vld [vmem:[%s1 + $0x10] sm:$0xff]
  %v238 = vld [vmem:[%s1 + $0x18] sm:$0xff]
  %v239 = vld [vmem:[%s1 + $0x20] sm:$0xff]
  %v240 = vld [vmem:[%s1 + $0x28] sm:$0xff]
  %v241 = vld [vmem:[%s1 + $0x30] sm:$0xff]
  %v242 = vld [vmem:[%s1 + $0x38] sm:$0xff]
  %v243 = vld [vmem:[%s1 + $0x40] sm:$0xff]
  %v244 = vld [vmem:[%s1 + $0x48] sm:$0xff]
  %v245 = vld [vmem:[%s1 + $0x50] sm:$0xff]
  %v246 = vld [vmem:[%s1 + $0x58] sm:$0xff]
  %v247 = vld [vmem:[%s1 + $0x60] sm:$0xff]
  %v248 = vld [vmem:[%s1 + $0x68] sm:$0xff]
  %v249 = vld [vmem:[%s1 + $0x70] sm:$0xff]
  %v250 = vld [vmem:[%s1 + $0x78] sm:$0xff]
  %v251 = vld [vmem:[%s1 + $0x80] sm:$0xff]
  %v252 = vld [vmem:[%s1 + $0x88] sm:$0xff]
  %v253 = vld [vmem:[%s1 + $0x90] sm:$0xff]
  %v254 = vld [vmem:[%s1 + $0x98] sm:$0xff]
  %v255 = vld [vmem:[%s1 + $0xa0] sm:$0xff]
  %v256 = vld [vmem:[%s1 + $0xa8] sm:$0xff]
  %v257 = vld [vmem:[%s1 + $0xb0] sm:$0xff]
  %v258 = vld [vmem:[%s1 + $0xb8] sm:$0xff]
  %v259 = vld [vmem:[%s1 + $0xc0] sm:$0xff]
  %v260 = vld [vmem:[%s1 + $0xc8] sm:$0xff]
  %v261 = vld [vmem:[%s1 + $0xd0] sm:$0xff]
  %v262 = vld [vmem:[%s1 + $0xd8] sm:$0xff]
  %v263 = vld [vmem:[%s1 + $0xe0] sm:$0xff]
  %v264 = vld [vmem:[%s1 + $0xe8] sm:$0xff]
  %v265 = vld [vmem:[%s1 + $0xf0] sm:$0xff]
  %v266 = vld [vmem:[%s1 + $0xf8] sm:$0xff]
  %v267 = vld [vmem:[%s1 + $0x100] sm:$0xff]
  %v268 = vld [vmem:[%s1 + $0x108] sm:$0xff]
  %v269 = vld [vmem:[%s1 + $0x110] sm:$0xff]
  %v270 = vld [vmem:[%s1 + $0x118] sm:$0xff]
  %v271 = vld [vmem:[%s1 + $0x120] sm:$0xff]
  %v272 = vld [vmem:[%s1 + $0x128] sm:$0xff]
  %v273 = vld [vmem:[%s1 + $0x130] sm:$0xff]
  %v274 = vld [vmem:[%s1 + $0x138] sm:$0xff]
  %v275 = vld [vmem:[%s1 + $0x140] sm:$0xff]
  %v276 = vld [vmem:[%s1 + $0x148] sm:$0xff]
  %v277 = vld [vmem:[%s1 + $0x150] sm:$0xff]
  %v278 = vld [vmem:[%s1 + $0x158] sm:$0xff]
  %v279 = vld [vmem:[%s1 + $0x160] sm:$0xff]
  %v280 = vld [vmem:[%s1 + $0x168] sm:$0xff]
  %v281 = vld [vmem:[%s1 + $0x170] sm:$0xff]
  %v282 = vld [vmem:[%s1 + $0x178] sm:$0xff]
  %v283 = vld [vmem:[%s1 + $0x180] sm:$0xff]
  %v284 = vld [vmem:[%s1 + $0x188] sm:$0xff]
  %v285 = vld [vmem:[%s1 + $0x190] sm:$0xff]
  %v286 = vld [vmem:[%s1 + $0x198] sm:$0xff]
  %v287 = vld [vmem:[%s1 + $0x1a0] sm:$0xff]
  %v288 = vld [vmem:[%s1 + $0x1a8] sm:$0xff]
  %v289 = vld [vmem:[%s1 + $0x1b0] sm:$0xff]
  %v290 = vld [vmem:[%s1 + $0x1b8] sm:$0xff]
  %v291 = vld [vmem:[%s1 + $0x1c0] sm:$0xff]
  %v292 = vld [vmem:[%s1 + $0x1c8] sm:$0xff]
  %v293 = vld [vmem:[%s1 + $0x1d0] sm:$0xff]
  %v294 = vld [vmem:[%s1 + $0x1d8] sm:$0xff]
  %v295 = vld [vmem:[%s1 + $0x1e0] sm:$0xff]
  %v296 = vld [vmem:[%s1 + $0x1e8] sm:$0xff]
  %v297 = vld [vmem:[%s1 + $0x1f0] sm:$0xff]
  %v298 = vld [vmem:[%s1 + $0x1f8] sm:$0xff]
  %v299 = vld [vmem:[%s1 + $0x200] sm:$0xff]
  %v300 = vld [vmem:[%s1 + $0x208] sm:$0xff]
  %v301 = vld [vmem:[%s1 + $0x210] sm:$0xff]
  %v302 = vld [vmem:[%s1 + $0x218] sm:$0xff]
  %v303 = vld [vmem:[%s1 + $0x220] sm:$0xff]
  %v304 = vld [vmem:[%s1 + $0x228] sm:$0xff]
  %v305 = vld [vmem:[%s1 + $0x230] sm:$0xff]
  %v306 = vld [vmem:[%s1 + $0x238] sm:$0xff]
  %v307 = vld [vmem:[%s1 + $0x240] sm:$0xff]
  %v308 = vld [vmem:[%s1 + $0x248] sm:$0xff]
  %v309 = vld [vmem:[%s1 + $0x250] sm:$0xff]
  %v310 = vld [vmem:[%s1 + $0x258] sm:$0xff]
  %v311 = vld [vmem:[%s1 + $0x260] sm:$0xff]
  %v312 = vld [vmem:[%s1 + $0x268] sm:$0xff]
  %v313 = vld [vmem:[%s1 + $0x270] sm:$0xff]
  %v314 = vld [vmem:[%s1 + $0x278] sm:$0xff]
  %v315 = vld [vmem:[%s1 + $0x280] sm:$0xff]
  %v316 = vld [vmem:[%s1 + $0x288] sm:$0xff]
  %v317 = vld [vmem:[%s1 + $0x290] sm:$0xff]
  %v318 = vld [vmem:[%s1 + $0x298] sm:$0xff]
  %v319 = vld [vmem:[%s1 + $0x2a0] sm:$0xff]
  %v320 = vld [vmem:[%s1 + $0x2a8] sm:$0xff]
  %v321 = vld [vmem:[%s1 + $0x2b0] sm:$0xff]
  %v322 = vld [vmem:[%s1 + $0x2b8] sm:$0xff]
  %v323 = vld [vmem:[%s1 + $0x2c0] sm:$0xff]
  %v324 = vld [vmem:[%s1 + $0x2c8] sm:$0xff]
  %v325 = vld [vmem:[%s1 + $0x2d0] sm:$0xff]
  %v326 = vld [vmem:[%s1 + $0x2d8] sm:$0xff]
  %v327 = vld [vmem:[%s1 + $0x2e0] sm:$0xff]
  %v328 = vld [vmem:[%s1 + $0x2e8] sm:$0xff]
  %v329 = vld [vmem:[%s1 + $0x2f0] sm:$0xff]
  %v330 = vld [vmem:[%s1 + $0x2f8] sm:$0xff]
  %v331 = vld [vmem:[%s1 + $0x300] sm:$0xff]
  %v332 = vld [vmem:[%s1 + $0x308] sm:$0xff]
  %v333 = vld [vmem:[%s1 + $0x310] sm:$0xff]
  %v334 = vld [vmem:[%s1 + $0x318] sm:$0xff]
  %v335 = vld [vmem:[%s1 + $0x320] sm:$0xff]
  %v336 = vld [vmem:[%s1 + $0x328] sm:$0xff]
  %v337 = vld [vmem:[%s1 + $0x330] sm:$0xff]
  %v338 = vld [vmem:[%s1 + $0x338] sm:$0xff]
  %v339 = vld [vmem:[%s1 + $0x340] sm:$0xff]
  %v340 = vld [vmem:[%s1 + $0x348] sm:$0xff]
  %v341 = vld [vmem:[%s1 + $0x350] sm:$0xff]
  %v342 = vld [vmem:[%s1 + $0x358] sm:$0xff]
  %v343 = vld [vmem:[%s1 + $0x360] sm:$0xff]
  %v344 = vld [vmem:[%s1 + $0x368] sm:$0xff]
  %v345 = vld [vmem:[%s1 + $0x370] sm:$0xff]
  %v346 = vld [vmem:[%s1 + $0x378] sm:$0xff]
  %v347 = vld [vmem:[%s1 + $0x380] sm:$0xff]
  %v348 = vld [vmem:[%s1 + $0x388] sm:$0xff]
  %v349 = vld [vmem:[%s1 + $0x390] sm:$0xff]
  %v350 = vld [vmem:[%s1 + $0x398] sm:$0xff]
  %v351 = vld [vmem:[%s1 + $0x3a0] sm:$0xff]
  %v352 = vld [vmem:[%s1 + $0x3a8] sm:$0xff]
  %v353 = vld [vmem:[%s1 + $0x3b0] sm:$0xff]
  %v354 = vld [vmem:[%s1 + $0x3b8] sm:$0xff]
  %v355 = vld [vmem:[%s1 + $0x3c0] sm:$0xff]
  %v356 = vld [vmem:[%s1 + $0x3c8] sm:$0xff]
  %v357 = vld [vmem:[%s1 + $0x3d0] sm:$0xff]
  %v358 = vld [vmem:[%s1 + $0x3d8] sm:$0xff]
  %v359 = vld [vmem:[%s1 + $0x3e0] sm:$0xff]
  %v360 = vld [vmem:[%s1 + $0x3e8] sm:$0xff]
  %v361 = vld [vmem:[%s1 + $0x3f0] sm:$0xff]
  %v362 = vld [vmem:[%s1 + $0x3f8] sm:$0xff]
  %491 = vrot.lane.b32.xlu0 %v235, 127
  %v492 = vpop.permute.xlu0 %491
  %493 = vrot.lane.b32.xlu0 %v236, 127
  %v494 = vpop.permute.xlu0 %493
  %495 = vrot.lane.b32.xlu0 %v237, 127
  %v496 = vpop.permute.xlu0 %495
  %497 = vrot.lane.b32.xlu0 %v238, 127
  %v498 = vpop.permute.xlu0 %497
  %499 = vrot.lane.b32.xlu0 %v239, 127
  %v500 = vpop.permute.xlu0 %499
  %501 = vrot.lane.b32.xlu0 %v240, 127
  %v502 = vpop.permute.xlu0 %501
  %503 = vrot.lane.b32.xlu0 %v241, 127
  %v504 = vpop.permute.xlu0 %503
  %505 = vrot.lane.b32.xlu0 %v242, 127
  %v506 = vpop.permute.xlu0 %505
  %507 = vrot.lane.b32.xlu0 %v243, 127
  %v508 = vpop.permute.xlu0 %507
  %509 = vrot.lane.b32.xlu0 %v244, 127
  %v510 = vpop.permute.xlu0 %509
  %511 = vrot.lane.b32.xlu0 %v245, 127
  %v512 = vpop.permute.xlu0 %511
  %513 = vrot.lane.b32.xlu0 %v246, 127
  %v514 = vpop.permute.xlu0 %513
  %515 = vrot.lane.b32.xlu0 %v247, 127
  %v516 = vpop.permute.xlu0 %515
  %517 = vrot.lane.b32.xlu0 %v248, 127
  %v518 = vpop.permute.xlu0 %517
  %519 = vrot.lane.b32.xlu0 %v249, 127
  %v520 = vpop.permute.xlu0 %519
  %521 = vrot.lane.b32.xlu0 %v250, 127
  %v522 = vpop.permute.xlu0 %521
  %523 = vrot.lane.b32.xlu0 %v251, 127
  %v524 = vpop.permute.xlu0 %523
  %525 = vrot.lane.b32.xlu0 %v252, 127
  %v526 = vpop.permute.xlu0 %525
  %527 = vrot.lane.b32.xlu0 %v253, 127
  %v528 = vpop.permute.xlu0 %527
  %529 = vrot.lane.b32.xlu0 %v254, 127
  %v530 = vpop.permute.xlu0 %529
  %531 = vrot.lane.b32.xlu0 %v255, 127
  %v532 = vpop.permute.xlu0 %531
  %533 = vrot.lane.b32.xlu0 %v256, 127
  %v534 = vpop.permute.xlu0 %533
  %535 = vrot.lane.b32.xlu0 %v257, 127
  %v536 = vpop.permute.xlu0 %535
  %537 = vrot.lane.b32.xlu0 %v258, 127
  %v538 = vpop.permute.xlu0 %537
  %539 = vrot.lane.b32.xlu0 %v259, 127
  %v540 = vpop.permute.xlu0 %539
  %541 = vrot.lane.b32.xlu0 %v260, 127
  %v542 = vpop.permute.xlu0 %541
  %543 = vrot.lane.b32.xlu0 %v261, 127
  %v544 = vpop.permute.xlu0 %543
  %545 = vrot.lane.b32.xlu0 %v262, 127
  %v546 = vpop.permute.xlu0 %545
  %547 = vrot.lane.b32.xlu0 %v263, 127
  %v548 = vpop.permute.xlu0 %547
  %549 = vrot.lane.b32.xlu0 %v264, 127
  %v550 = vpop.permute.xlu0 %549
  %551 = vrot.lane.b32.xlu0 %v265, 127
  %v552 = vpop.permute.xlu0 %551
  %553 = vrot.lane.b32.xlu0 %v266, 127
  %v554 = vpop.permute.xlu0 %553
  %555 = vrot.lane.b32.xlu0 %v267, 127
  %v556 = vpop.permute.xlu0 %555
  %557 = vrot.lane.b32.xlu0 %v268, 127
  %v558 = vpop.permute.xlu0 %557
  %559 = vrot.lane.b32.xlu0 %v269, 127
  %v560 = vpop.permute.xlu0 %559
  %561 = vrot.lane.b32.xlu0 %v270, 127
  %v562 = vpop.permute.xlu0 %561
  %563 = vrot.lane.b32.xlu0 %v271, 127
  %v564 = vpop.permute.xlu0 %563
  %565 = vrot.lane.b32.xlu0 %v272, 127
  %v566 = vpop.permute.xlu0 %565
  %567 = vrot.lane.b32.xlu0 %v273, 127
  %v568 = vpop.permute.xlu0 %567
  %569 = vrot.lane.b32.xlu0 %v274, 127
  %v570 = vpop.permute.xlu0 %569
  %571 = vrot.lane.b32.xlu0 %v275, 127
  %v572 = vpop.permute.xlu0 %571
  %573 = vrot.lane.b32.xlu0 %v276, 127
  %v574 = vpop.permute.xlu0 %573
  %575 = vrot.lane.b32.xlu0 %v277, 127
  %v576 = vpop.permute.xlu0 %575
  %577 = vrot.lane.b32.xlu0 %v278, 127
  %v578 = vpop.permute.xlu0 %577
  %579 = vrot.lane.b32.xlu0 %v279, 127
  %v580 = vpop.permute.xlu0 %579
  %581 = vrot.lane.b32.xlu0 %v280, 127
  %v582 = vpop.permute.xlu0 %581
  %583 = vrot.lane.b32.xlu0 %v281, 127
  %v584 = vpop.permute.xlu0 %583
  %585 = vrot.lane.b32.xlu0 %v282, 127
  %v586 = vpop.permute.xlu0 %585
  %587 = vrot.lane.b32.xlu0 %v283, 127
  %v588 = vpop.permute.xlu0 %587
  %589 = vrot.lane.b32.xlu0 %v284, 127
  %v590 = vpop.permute.xlu0 %589
  %591 = vrot.lane.b32.xlu0 %v285, 127
  %v592 = vpop.permute.xlu0 %591
  %593 = vrot.lane.b32.xlu0 %v286, 127
  %v594 = vpop.permute.xlu0 %593
  %595 = vrot.lane.b32.xlu0 %v287, 127
  %v596 = vpop.permute.xlu0 %595
  %597 = vrot.lane.b32.xlu0 %v288, 127
  %v598 = vpop.permute.xlu0 %597
  %599 = vrot.lane.b32.xlu0 %v289, 127
  %v600 = vpop.permute.xlu0 %599
  %601 = vrot.lane.b32.xlu0 %v290, 127
  %v602 = vpop.permute.xlu0 %601
  %603 = vrot.lane.b32.xlu0 %v291, 127
  %v604 = vpop.permute.xlu0 %603
  %605 = vrot.lane.b32.xlu0 %v292, 127
  %v606 = vpop.permute.xlu0 %605
  %607 = vrot.lane.b32.xlu0 %v293, 127
  %v608 = vpop.permute.xlu0 %607
  %609 = vrot.lane.b32.xlu0 %v294, 127
  %v610 = vpop.permute.xlu0 %609
  %611 = vrot.lane.b32.xlu0 %v295, 127
  %v612 = vpop.permute.xlu0 %611
  %613 = vrot.lane.b32.xlu0 %v296, 127
  %v614 = vpop.permute.xlu0 %613
  %615 = vrot.lane.b32.xlu0 %v297, 127
  %v616 = vpop.permute.xlu0 %615
  %617 = vrot.lane.b32.xlu0 %v298, 127
  %v618 = vpop.permute.xlu0 %617
  %619 = vrot.lane.b32.xlu0 %v299, 127
  %v620 = vpop.permute.xlu0 %619
  %621 = vrot.lane.b32.xlu0 %v300, 127
  %v622 = vpop.permute.xlu0 %621
  %623 = vrot.lane.b32.xlu0 %v301, 127
  %v624 = vpop.permute.xlu0 %623
  %625 = vrot.lane.b32.xlu0 %v302, 127
  %v626 = vpop.permute.xlu0 %625
  %627 = vrot.lane.b32.xlu0 %v303, 127
  %v628 = vpop.permute.xlu0 %627
  %629 = vrot.lane.b32.xlu0 %v304, 127
  %v630 = vpop.permute.xlu0 %629
  %631 = vrot.lane.b32.xlu0 %v305, 127
  %v632 = vpop.permute.xlu0 %631
  %633 = vrot.lane.b32.xlu0 %v306, 127
  %v634 = vpop.permute.xlu0 %633
  %635 = vrot.lane.b32.xlu0 %v307, 127
  %v636 = vpop.permute.xlu0 %635
  %637 = vrot.lane.b32.xlu0 %v308, 127
  %v638 = vpop.permute.xlu0 %637
  %639 = vrot.lane.b32.xlu0 %v309, 127
  %v640 = vpop.permute.xlu0 %639
  %641 = vrot.lane.b32.xlu0 %v310, 127
  %v642 = vpop.permute.xlu0 %641
  %643 = vrot.lane.b32.xlu0 %v311, 127
  %v644 = vpop.permute.xlu0 %643
  %645 = vrot.lane.b32.xlu0 %v312, 127
  %v646 = vpop.permute.xlu0 %645
  %647 = vrot.lane.b32.xlu0 %v313, 127
  %v648 = vpop.permute.xlu0 %647
  %649 = vrot.lane.b32.xlu0 %v314, 127
  %v650 = vpop.permute.xlu0 %649
  %651 = vrot.lane.b32.xlu0 %v315, 127
  %v652 = vpop.permute.xlu0 %651
  %653 = vrot.lane.b32.xlu0 %v316, 127
  %v654 = vpop.permute.xlu0 %653
  %655 = vrot.lane.b32.xlu0 %v317, 127
  %v656 = vpop.permute.xlu0 %655
  %657 = vrot.lane.b32.xlu0 %v318, 127
  %v658 = vpop.permute.xlu0 %657
  %659 = vrot.lane.b32.xlu0 %v319, 127
  %v660 = vpop.permute.xlu0 %659
  %661 = vrot.lane.b32.xlu0 %v320, 127
  %v662 = vpop.permute.xlu0 %661
  %663 = vrot.lane.b32.xlu0 %v321, 127
  %v664 = vpop.permute.xlu0 %663
  %665 = vrot.lane.b32.xlu0 %v322, 127
  %v666 = vpop.permute.xlu0 %665
  %667 = vrot.lane.b32.xlu0 %v323, 127
  %v668 = vpop.permute.xlu0 %667
  %669 = vrot.lane.b32.xlu0 %v324, 127
  %v670 = vpop.permute.xlu0 %669
  %671 = vrot.lane.b32.xlu0 %v325, 127
  %v672 = vpop.permute.xlu0 %671
  %673 = vrot.lane.b32.xlu0 %v326, 127
  %v674 = vpop.permute.xlu0 %673
  %675 = vrot.lane.b32.xlu0 %v327, 127
  %v676 = vpop.permute.xlu0 %675
  %677 = vrot.lane.b32.xlu0 %v328, 127
  %v678 = vpop.permute.xlu0 %677
  %679 = vrot.lane.b32.xlu0 %v329, 127
  %v680 = vpop.permute.xlu0 %679
  %681 = vrot.lane.b32.xlu0 %v330, 127
  %v682 = vpop.permute.xlu0 %681
  %683 = vrot.lane.b32.xlu0 %v331, 127
  %v684 = vpop.permute.xlu0 %683
  %685 = vrot.lane.b32.xlu0 %v332, 127
  %v686 = vpop.permute.xlu0 %685
  %687 = vrot.lane.b32.xlu0 %v333, 127
  %v688 = vpop.permute.xlu0 %687
  %689 = vrot.lane.b32.xlu0 %v334, 127
  %v690 = vpop.permute.xlu0 %689
  %691 = vrot.lane.b32.xlu0 %v335, 127
  %v692 = vpop.permute.xlu0 %691
  %693 = vrot.lane.b32.xlu0 %v336, 127
  %v694 = vpop.permute.xlu0 %693
  %695 = vrot.lane.b32.xlu0 %v337, 127
  %v696 = vpop.permute.xlu0 %695
  %697 = vrot.lane.b32.xlu0 %v338, 127
  %v698 = vpop.permute.xlu0 %697
  %699 = vrot.lane.b32.xlu0 %v339, 127
  %v700 = vpop.permute.xlu0 %699
  %701 = vrot.lane.b32.xlu0 %v340, 127
  %v702 = vpop.permute.xlu0 %701
  %703 = vrot.lane.b32.xlu0 %v341, 127
  %v704 = vpop.permute.xlu0 %703
  %705 = vrot.lane.b32.xlu0 %v342, 127
  %v706 = vpop.permute.xlu0 %705
  %707 = vrot.lane.b32.xlu0 %v343, 127
  %v708 = vpop.permute.xlu0 %707
  %709 = vrot.lane.b32.xlu0 %v344, 127
  %v710 = vpop.permute.xlu0 %709
  %711 = vrot.lane.b32.xlu0 %v345, 127
  %v712 = vpop.permute.xlu0 %711
  %713 = vrot.lane.b32.xlu0 %v346, 127
  %v714 = vpop.permute.xlu0 %713
  %715 = vrot.lane.b32.xlu0 %v347, 127
  %v716 = vpop.permute.xlu0 %715
  %717 = vrot.lane.b32.xlu0 %v348, 127
  %v718 = vpop.permute.xlu0 %717
  %719 = vrot.lane.b32.xlu0 %v349, 127
  %v720 = vpop.permute.xlu0 %719
  %721 = vrot.lane.b32.xlu0 %v350, 127
  %v722 = vpop.permute.xlu0 %721
  %723 = vrot.lane.b32.xlu0 %v351, 127
  %v724 = vpop.permute.xlu0 %723
  %725 = vrot.lane.b32.xlu0 %v352, 127
  %v726 = vpop.permute.xlu0 %725
  %727 = vrot.lane.b32.xlu0 %v353, 127
  %v728 = vpop.permute.xlu0 %727
  %729 = vrot.lane.b32.xlu0 %v354, 127
  %v730 = vpop.permute.xlu0 %729
  %731 = vrot.lane.b32.xlu0 %v355, 127
  %v732 = vpop.permute.xlu0 %731
  %733 = vrot.lane.b32.xlu0 %v356, 127
  %v734 = vpop.permute.xlu0 %733
  %735 = vrot.lane.b32.xlu0 %v357, 127
  %v736 = vpop.permute.xlu0 %735
  %737 = vrot.lane.b32.xlu0 %v358, 127
  %v738 = vpop.permute.xlu0 %737
  %739 = vrot.lane.b32.xlu0 %v359, 127
  %v740 = vpop.permute.xlu0 %739
  %741 = vrot.lane.b32.xlu0 %v360, 127
  %v742 = vpop.permute.xlu0 %741
  %743 = vrot.lane.b32.xlu0 %v361, 127
  %v744 = vpop.permute.xlu0 %743
  %745 = vrot.lane.b32.xlu0 %v362, 127
  %v746 = vpop.permute.xlu0 %745
  %vm747 = vcmask 1039360
  %v748 = vsel %vm747, %v492, %v494
  %v749 = vsel %vm747, %v494, %v496
  %v750 = vsel %vm747, %v496, %v498
  %v751 = vsel %vm747, %v498, %v500
  %v752 = vsel %vm747, %v500, %v502
  %v753 = vsel %vm747, %v502, %v504
  %v754 = vsel %vm747, %v504, %v506
  %v755 = vsel %vm747, %v508, %v510
  %v756 = vsel %vm747, %v510, %v512
  %v757 = vsel %vm747, %v512, %v514
  %v758 = vsel %vm747, %v514, %v516
  %v759 = vsel %vm747, %v516, %v518
  %v760 = vsel %vm747, %v518, %v520
  %v761 = vsel %vm747, %v520, %v522
  %v762 = vsel %vm747, %v524, %v526
  %v763 = vsel %vm747, %v526, %v528
  %v764 = vsel %vm747, %v528, %v530
  %v765 = vsel %vm747, %v530, %v532
  %v766 = vsel %vm747, %v532, %v534
  %v767 = vsel %vm747, %v534, %v536
  %v768 = vsel %vm747, %v536, %v538
  %v769 = vsel %vm747, %v540, %v542
  %v770 = vsel %vm747, %v542, %v544
  %v771 = vsel %vm747, %v544, %v546
  %v772 = vsel %vm747, %v546, %v548
  %v773 = vsel %vm747, %v548, %v550
  %v774 = vsel %vm747, %v550, %v552
  %v775 = vsel %vm747, %v552, %v554
  %v776 = vsel %vm747, %v556, %v558
  %v777 = vsel %vm747, %v558, %v560
  %v778 = vsel %vm747, %v560, %v562
  %v779 = vsel %vm747, %v562, %v564
  %v780 = vsel %vm747, %v564, %v566
  %v781 = vsel %vm747, %v566, %v568
  %v782 = vsel %vm747, %v568, %v570
  %v783 = vsel %vm747, %v572, %v574
  %v784 = vsel %vm747, %v574, %v576
  %v785 = vsel %vm747, %v576, %v578
  %v786 = vsel %vm747, %v578, %v580
  %v787 = vsel %vm747, %v580, %v582
  %v788 = vsel %vm747, %v582, %v584
  %v789 = vsel %vm747, %v584, %v586
  %v790 = vsel %vm747, %v588, %v590
  %v791 = vsel %vm747, %v590, %v592
  %v792 = vsel %vm747, %v592, %v594
  %v793 = vsel %vm747, %v594, %v596
  %v794 = vsel %vm747, %v596, %v598
  %v795 = vsel %vm747, %v598, %v600
  %v796 = vsel %vm747, %v600, %v602
  %v797 = vsel %vm747, %v604, %v606
  %v798 = vsel %vm747, %v606, %v608
  %v799 = vsel %vm747, %v608, %v610
  %v800 = vsel %vm747, %v610, %v612
  %v801 = vsel %vm747, %v612, %v614
  %v802 = vsel %vm747, %v614, %v616
  %v803 = vsel %vm747, %v616, %v618
  %v804 = vsel %vm747, %v620, %v622
  %v805 = vsel %vm747, %v622, %v624
  %v806 = vsel %vm747, %v624, %v626
  %v807 = vsel %vm747, %v626, %v628
  %v808 = vsel %vm747, %v628, %v630
  %v809 = vsel %vm747, %v630, %v632
  %v810 = vsel %vm747, %v632, %v634
  %v811 = vsel %vm747, %v636, %v638
  %v812 = vsel %vm747, %v638, %v640
  %v813 = vsel %vm747, %v640, %v642
  %v814 = vsel %vm747, %v642, %v644
  %v815 = vsel %vm747, %v644, %v646
  %v816 = vsel %vm747, %v646, %v648
  %v817 = vsel %vm747, %v648, %v650
  %v818 = vsel %vm747, %v652, %v654
  %v819 = vsel %vm747, %v654, %v656
  %v820 = vsel %vm747, %v656, %v658
  %v821 = vsel %vm747, %v658, %v660
  %v822 = vsel %vm747, %v660, %v662
  %v823 = vsel %vm747, %v662, %v664
  %v824 = vsel %vm747, %v664, %v666
  %v825 = vsel %vm747, %v668, %v670
  %v826 = vsel %vm747, %v670, %v672
  %v827 = vsel %vm747, %v672, %v674
  %v828 = vsel %vm747, %v674, %v676
  %v829 = vsel %vm747, %v676, %v678
  %v830 = vsel %vm747, %v678, %v680
  %v831 = vsel %vm747, %v680, %v682
  %v832 = vsel %vm747, %v684, %v686
  %v833 = vsel %vm747, %v686, %v688
  %v834 = vsel %vm747, %v688, %v690
  %v835 = vsel %vm747, %v690, %v692
  %v836 = vsel %vm747, %v692, %v694
  %v837 = vsel %vm747, %v694, %v696
  %v838 = vsel %vm747, %v696, %v698
  %v839 = vsel %vm747, %v700, %v702
  %v840 = vsel %vm747, %v702, %v704
  %v841 = vsel %vm747, %v704, %v706
  %v842 = vsel %vm747, %v706, %v708
  %v843 = vsel %vm747, %v708, %v710
  %v844 = vsel %vm747, %v710, %v712
  %v845 = vsel %vm747, %v712, %v714
  %v846 = vsel %vm747, %v716, %v718
  %v847 = vsel %vm747, %v718, %v720
  %v848 = vsel %vm747, %v720, %v722
  %v849 = vsel %vm747, %v722, %v724
  %v850 = vsel %vm747, %v724, %v726
  %v851 = vsel %vm747, %v726, %v728
  %v852 = vsel %vm747, %v728, %v730
  %v853 = vsel %vm747, %v732, %v734
  %v854 = vsel %vm747, %v734, %v736
  %v855 = vsel %vm747, %v736, %v738
  %v856 = vsel %vm747, %v738, %v740
  %v857 = vsel %vm747, %v740, %v742
  %v858 = vsel %vm747, %v742, %v744
  %v859 = vsel %vm747, %v744, %v746
  %972 = vst [vmem:[#allocation2 + $0x380] sm:$0xff] %v748
  %973 = vst [vmem:[#allocation2 + $0x388] sm:$0xff] %v749
  %974 = vst [vmem:[#allocation2 + $0x390] sm:$0xff] %v750
  %975 = vst [vmem:[#allocation2 + $0x398] sm:$0xff] %v751
  %976 = vst [vmem:[#allocation2 + $0x3a0] sm:$0xff] %v752
  %977 = vst [vmem:[#allocation2 + $0x3a8] sm:$0xff] %v753
  %978 = vst [vmem:[#allocation2 + $0x3b0] sm:$0xff] %v754
  %979 = vst [vmem:[#allocation2 + $0x3b8] sm:$0xff] %v755
  %980 = vst [vmem:[#allocation2 + $0x3c0] sm:$0xff] %v756
  %981 = vst [vmem:[#allocation2 + $0x3c8] sm:$0xff] %v757
  %982 = vst [vmem:[#allocation2 + $0x3d0] sm:$0xff] %v758
  %983 = vst [vmem:[#allocation2 + $0x3d8] sm:$0xff] %v759
  %984 = vst [vmem:[#allocation2 + $0x3e0] sm:$0xff] %v760
  %985 = vst [vmem:[#allocation2 + $0x3e8] sm:$0xff] %v761
  %986 = vst [vmem:[#allocation2 + $0x3f0] sm:$0xff] %v762
  %987 = vst [vmem:[#allocation2 + $0x3f8] sm:$0xff] %v763
  %988 = vst [vmem:[#allocation2 + $0x400] sm:$0xff] %v764
  %989 = vst [vmem:[#allocation2 + $0x408] sm:$0xff] %v765
  %990 = vst [vmem:[#allocation2 + $0x410] sm:$0xff] %v766
  %991 = vst [vmem:[#allocation2 + $0x418] sm:$0xff] %v767
  %992 = vst [vmem:[#allocation2 + $0x420] sm:$0xff] %v768
  %993 = vst [vmem:[#allocation2 + $0x428] sm:$0xff] %v769
  %994 = vst [vmem:[#allocation2 + $0x430] sm:$0xff] %v770
  %995 = vst [vmem:[#allocation2 + $0x438] sm:$0xff] %v771
  %996 = vst [vmem:[#allocation2 + $0x440] sm:$0xff] %v772
  %997 = vst [vmem:[#allocation2 + $0x448] sm:$0xff] %v773
  %998 = vst [vmem:[#allocation2 + $0x450] sm:$0xff] %v774
  %999 = vst [vmem:[#allocation2 + $0x458] sm:$0xff] %v775
  %1000 = vst [vmem:[#allocation2 + $0x460] sm:$0xff] %v776
  %1001 = vst [vmem:[#allocation2 + $0x468] sm:$0xff] %v777
  %1002 = vst [vmem:[#allocation2 + $0x470] sm:$0xff] %v778
  %1003 = vst [vmem:[#allocation2 + $0x478] sm:$0xff] %v779
  %1004 = vst [vmem:[#allocation2 + $0x480] sm:$0xff] %v780
  %1005 = vst [vmem:[#allocation2 + $0x488] sm:$0xff] %v781
  %1006 = vst [vmem:[#allocation2 + $0x490] sm:$0xff] %v782
  %1007 = vst [vmem:[#allocation2 + $0x498] sm:$0xff] %v783
  %1008 = vst [vmem:[#allocation2 + $0x4a0] sm:$0xff] %v784
  %1009 = vst [vmem:[#allocation2 + $0x4a8] sm:$0xff] %v785
  %1010 = vst [vmem:[#allocation2 + $0x4b0] sm:$0xff] %v786
  %1011 = vst [vmem:[#allocation2 + $0x4b8] sm:$0xff] %v787
  %1012 = vst [vmem:[#allocation2 + $0x4c0] sm:$0xff] %v788
  %1013 = vst [vmem:[#allocation2 + $0x4c8] sm:$0xff] %v789
  %1014 = vst [vmem:[#allocation2 + $0x4d0] sm:$0xff] %v790
  %1015 = vst [vmem:[#allocation2 + $0x4d8] sm:$0xff] %v791
  %1016 = vst [vmem:[#allocation2 + $0x4e0] sm:$0xff] %v792
  %1017 = vst [vmem:[#allocation2 + $0x4e8] sm:$0xff] %v793
  %1018 = vst [vmem:[#allocation2 + $0x4f0] sm:$0xff] %v794
  %1019 = vst [vmem:[#allocation2 + $0x4f8] sm:$0xff] %v795
  %1020 = vst [vmem:[#allocation2 + $0x500] sm:$0xff] %v796
  %1021 = vst [vmem:[#allocation2 + $0x508] sm:$0xff] %v797
  %1022 = vst [vmem:[#allocation2 + $0x510] sm:$0xff] %v798
  %1023 = vst [vmem:[#allocation2 + $0x518] sm:$0xff] %v799
  %1024 = vst [vmem:[#allocation2 + $0x520] sm:$0xff] %v800
  %1025 = vst [vmem:[#allocation2 + $0x528] sm:$0xff] %v801
  %1026 = vst [vmem:[#allocation2 + $0x530] sm:$0xff] %v802
  %1027 = vst [vmem:[#allocation2 + $0x538] sm:$0xff] %v803
  %1028 = vst [vmem:[#allocation2 + $0x540] sm:$0xff] %v804
  %1029 = vst [vmem:[#allocation2 + $0x548] sm:$0xff] %v805
  %1030 = vst [vmem:[#allocation2 + $0x550] sm:$0xff] %v806
  %1031 = vst [vmem:[#allocation2 + $0x558] sm:$0xff] %v807
  %1032 = vst [vmem:[#allocation2 + $0x560] sm:$0xff] %v808
  %1033 = vst [vmem:[#allocation2 + $0x568] sm:$0xff] %v809
  %1034 = vst [vmem:[#allocation2 + $0x570] sm:$0xff] %v810
  %1035 = vst [vmem:[#allocation2 + $0x578] sm:$0xff] %v811
  %1036 = vst [vmem:[#allocation2 + $0x580] sm:$0xff] %v812
  %1037 = vst [vmem:[#allocation2 + $0x588] sm:$0xff] %v813
  %1038 = vst [vmem:[#allocation2 + $0x590] sm:$0xff] %v814
  %1039 = vst [vmem:[#allocation2 + $0x598] sm:$0xff] %v815
  %1040 = vst [vmem:[#allocation2 + $0x5a0] sm:$0xff] %v816
  %1041 = vst [vmem:[#allocation2 + $0x5a8] sm:$0xff] %v817
  %1042 = vst [vmem:[#allocation2 + $0x5b0] sm:$0xff] %v818
  %1043 = vst [vmem:[#allocation2 + $0x5b8] sm:$0xff] %v819
  %1044 = vst [vmem:[#allocation2 + $0x5c0] sm:$0xff] %v820
  %1045 = vst [vmem:[#allocation2 + $0x5c8] sm:$0xff] %v821
  %1046 = vst [vmem:[#allocation2 + $0x5d0] sm:$0xff] %v822
  %1047 = vst [vmem:[#allocation2 + $0x5d8] sm:$0xff] %v823
  %1048 = vst [vmem:[#allocation2 + $0x5e0] sm:$0xff] %v824
  %1049 = vst [vmem:[#allocation2 + $0x5e8] sm:$0xff] %v825
  %1050 = vst [vmem:[#allocation2 + $0x5f0] sm:$0xff] %v826
  %1051 = vst [vmem:[#allocation2 + $0x5f8] sm:$0xff] %v827
  %1052 = vst [vmem:[#allocation2 + $0x600] sm:$0xff] %v828
  %1053 = vst [vmem:[#allocation2 + $0x608] sm:$0xff] %v829
  %1054 = vst [vmem:[#allocation2 + $0x610] sm:$0xff] %v830
  %1055 = vst [vmem:[#allocation2 + $0x618] sm:$0xff] %v831
  %1056 = vst [vmem:[#allocation2 + $0x620] sm:$0xff] %v832
  %1057 = vst [vmem:[#allocation2 + $0x628] sm:$0xff] %v833
  %1058 = vst [vmem:[#allocation2 + $0x630] sm:$0xff] %v834
  %1059 = vst [vmem:[#allocation2 + $0x638] sm:$0xff] %v835
  %1060 = vst [vmem:[#allocation2 + $0x640] sm:$0xff] %v836
  %1061 = vst [vmem:[#allocation2 + $0x648] sm:$0xff] %v837
  %1062 = vst [vmem:[#allocation2 + $0x650] sm:$0xff] %v838
  %1063 = vst [vmem:[#allocation2 + $0x658] sm:$0xff] %v839
  %1064 = vst [vmem:[#allocation2 + $0x660] sm:$0xff] %v840
  %1065 = vst [vmem:[#allocation2 + $0x668] sm:$0xff] %v841
  %1066 = vst [vmem:[#allocation2 + $0x670] sm:$0xff] %v842
  %1067 = vst [vmem:[#allocation2 + $0x678] sm:$0xff] %v843
  %1068 = vst [vmem:[#allocation2 + $0x680] sm:$0xff] %v844
  %1069 = vst [vmem:[#allocation2 + $0x688] sm:$0xff] %v845
  %1070 = vst [vmem:[#allocation2 + $0x690] sm:$0xff] %v846
  %1071 = vst [vmem:[#allocation2 + $0x698] sm:$0xff] %v847
  %1072 = vst [vmem:[#allocation2 + $0x6a0] sm:$0xff] %v848
  %1073 = vst [vmem:[#allocation2 + $0x6a8] sm:$0xff] %v849
  %1074 = vst [vmem:[#allocation2 + $0x6b0] sm:$0xff] %v850
  %1075 = vst [vmem:[#allocation2 + $0x6b8] sm:$0xff] %v851
  %1076 = vst [vmem:[#allocation2 + $0x6c0] sm:$0xff] %v852
  %1077 = vst [vmem:[#allocation2 + $0x6c8] sm:$0xff] %v853
  %1078 = vst [vmem:[#allocation2 + $0x6d0] sm:$0xff] %v854
  %1079 = vst [vmem:[#allocation2 + $0x6d8] sm:$0xff] %v855
  %1080 = vst [vmem:[#allocation2 + $0x6e0] sm:$0xff] %v856
  %1081 = vst [vmem:[#allocation2 + $0x6e8] sm:$0xff] %v857
  %1082 = vst [vmem:[#allocation2 + $0x6f0] sm:$0xff] %v858
  %1083 = vst [vmem:[#allocation2 + $0x6f8] sm:$0xff] %v859
  %v1084 = vld [vmem:[%s1] sm:$0xff]
  %v1085 = vld [vmem:[%s1 + $0x8] sm:$0xff]
  %v1086 = vld [vmem:[%s1 + $0x10] sm:$0xff]
  %v1087 = vld [vmem:[%s1 + $0x18] sm:$0xff]
  %v1088 = vld [vmem:[%s1 + $0x20] sm:$0xff]
  %v1089 = vld [vmem:[%s1 + $0x28] sm:$0xff]
  %v1090 = vld [vmem:[%s1 + $0x30] sm:$0xff]
  %v1091 = vld [vmem:[%s1 + $0x38] sm:$0xff]
  %v1092 = vld [vmem:[%s1 + $0x40] sm:$0xff]
  %v1093 = vld [vmem:[%s1 + $0x48] sm:$0xff]
  %v1094 = vld [vmem:[%s1 + $0x50] sm:$0xff]
  %v1095 = vld [vmem:[%s1 + $0x58] sm:$0xff]
  %v1096 = vld [vmem:[%s1 + $0x60] sm:$0xff]
  %v1097 = vld [vmem:[%s1 + $0x68] sm:$0xff]
  %v1098 = vld [vmem:[%s1 + $0x70] sm:$0xff]
  %v1099 = vld [vmem:[%s1 + $0x78] sm:$0xff]
  %v1100 = vld [vmem:[%s1 + $0x80] sm:$0xff]
  %v1101 = vld [vmem:[%s1 + $0x88] sm:$0xff]
  %v1102 = vld [vmem:[%s1 + $0x90] sm:$0xff]
  %v1103 = vld [vmem:[%s1 + $0x98] sm:$0xff]
  %v1104 = vld [vmem:[%s1 + $0xa0] sm:$0xff]
  %v1105 = vld [vmem:[%s1 + $0xa8] sm:$0xff]
  %v1106 = vld [vmem:[%s1 + $0xb0] sm:$0xff]
  %v1107 = vld [vmem:[%s1 + $0xb8] sm:$0xff]
  %v1108 = vld [vmem:[%s1 + $0xc0] sm:$0xff]
  %v1109 = vld [vmem:[%s1 + $0xc8] sm:$0xff]
  %v1110 = vld [vmem:[%s1 + $0xd0] sm:$0xff]
  %v1111 = vld [vmem:[%s1 + $0xd8] sm:$0xff]
  %v1112 = vld [vmem:[%s1 + $0xe0] sm:$0xff]
  %v1113 = vld [vmem:[%s1 + $0xe8] sm:$0xff]
  %v1114 = vld [vmem:[%s1 + $0xf0] sm:$0xff]
  %v1115 = vld [vmem:[%s1 + $0xf8] sm:$0xff]
  %v1116 = vld [vmem:[%s1 + $0x100] sm:$0xff]
  %v1117 = vld [vmem:[%s1 + $0x108] sm:$0xff]
  %v1118 = vld [vmem:[%s1 + $0x110] sm:$0xff]
  %v1119 = vld [vmem:[%s1 + $0x118] sm:$0xff]
  %v1120 = vld [vmem:[%s1 + $0x120] sm:$0xff]
  %v1121 = vld [vmem:[%s1 + $0x128] sm:$0xff]
  %v1122 = vld [vmem:[%s1 + $0x130] sm:$0xff]
  %v1123 = vld [vmem:[%s1 + $0x138] sm:$0xff]
  %v1124 = vld [vmem:[%s1 + $0x140] sm:$0xff]
  %v1125 = vld [vmem:[%s1 + $0x148] sm:$0xff]
  %v1126 = vld [vmem:[%s1 + $0x150] sm:$0xff]
  %v1127 = vld [vmem:[%s1 + $0x158] sm:$0xff]
  %v1128 = vld [vmem:[%s1 + $0x160] sm:$0xff]
  %v1129 = vld [vmem:[%s1 + $0x168] sm:$0xff]
  %v1130 = vld [vmem:[%s1 + $0x170] sm:$0xff]
  %v1131 = vld [vmem:[%s1 + $0x178] sm:$0xff]
  %v1132 = vld [vmem:[%s1 + $0x180] sm:$0xff]
  %v1133 = vld [vmem:[%s1 + $0x188] sm:$0xff]
  %v1134 = vld [vmem:[%s1 + $0x190] sm:$0xff]
  %v1135 = vld [vmem:[%s1 + $0x198] sm:$0xff]
  %v1136 = vld [vmem:[%s1 + $0x1a0] sm:$0xff]
  %v1137 = vld [vmem:[%s1 + $0x1a8] sm:$0xff]
  %v1138 = vld [vmem:[%s1 + $0x1b0] sm:$0xff]
  %v1139 = vld [vmem:[%s1 + $0x1b8] sm:$0xff]
  %v1140 = vld [vmem:[%s1 + $0x1c0] sm:$0xff]
  %v1141 = vld [vmem:[%s1 + $0x1c8] sm:$0xff]
  %v1142 = vld [vmem:[%s1 + $0x1d0] sm:$0xff]
  %v1143 = vld [vmem:[%s1 + $0x1d8] sm:$0xff]
  %v1144 = vld [vmem:[%s1 + $0x1e0] sm:$0xff]
  %v1145 = vld [vmem:[%s1 + $0x1e8] sm:$0xff]
  %v1146 = vld [vmem:[%s1 + $0x1f0] sm:$0xff]
  %v1147 = vld [vmem:[%s1 + $0x1f8] sm:$0xff]
  %v1148 = vld [vmem:[%s1 + $0x200] sm:$0xff]
  %v1149 = vld [vmem:[%s1 + $0x208] sm:$0xff]
  %v1150 = vld [vmem:[%s1 + $0x210] sm:$0xff]
  %v1151 = vld [vmem:[%s1 + $0x218] sm:$0xff]
  %v1152 = vld [vmem:[%s1 + $0x220] sm:$0xff]
  %v1153 = vld [vmem:[%s1 + $0x228] sm:$0xff]
  %v1154 = vld [vmem:[%s1 + $0x230] sm:$0xff]
  %v1155 = vld [vmem:[%s1 + $0x238] sm:$0xff]
  %v1156 = vld [vmem:[%s1 + $0x240] sm:$0xff]
  %v1157 = vld [vmem:[%s1 + $0x248] sm:$0xff]
  %v1158 = vld [vmem:[%s1 + $0x250] sm:$0xff]
  %v1159 = vld [vmem:[%s1 + $0x258] sm:$0xff]
  %v1160 = vld [vmem:[%s1 + $0x260] sm:$0xff]
  %v1161 = vld [vmem:[%s1 + $0x268] sm:$0xff]
  %v1162 = vld [vmem:[%s1 + $0x270] sm:$0xff]
  %v1163 = vld [vmem:[%s1 + $0x278] sm:$0xff]
  %v1164 = vld [vmem:[%s1 + $0x280] sm:$0xff]
  %v1165 = vld [vmem:[%s1 + $0x288] sm:$0xff]
  %v1166 = vld [vmem:[%s1 + $0x290] sm:$0xff]
  %v1167 = vld [vmem:[%s1 + $0x298] sm:$0xff]
  %v1168 = vld [vmem:[%s1 + $0x2a0] sm:$0xff]
  %v1169 = vld [vmem:[%s1 + $0x2a8] sm:$0xff]
  %v1170 = vld [vmem:[%s1 + $0x2b0] sm:$0xff]
  %v1171 = vld [vmem:[%s1 + $0x2b8] sm:$0xff]
  %v1172 = vld [vmem:[%s1 + $0x2c0] sm:$0xff]
  %v1173 = vld [vmem:[%s1 + $0x2c8] sm:$0xff]
  %v1174 = vld [vmem:[%s1 + $0x2d0] sm:$0xff]
  %v1175 = vld [vmem:[%s1 + $0x2d8] sm:$0xff]
  %v1176 = vld [vmem:[%s1 + $0x2e0] sm:$0xff]
  %v1177 = vld [vmem:[%s1 + $0x2e8] sm:$0xff]
  %v1178 = vld [vmem:[%s1 + $0x2f0] sm:$0xff]
  %v1179 = vld [vmem:[%s1 + $0x2f8] sm:$0xff]
  %v1180 = vld [vmem:[%s1 + $0x300] sm:$0xff]
  %v1181 = vld [vmem:[%s1 + $0x308] sm:$0xff]
  %v1182 = vld [vmem:[%s1 + $0x310] sm:$0xff]
  %v1183 = vld [vmem:[%s1 + $0x318] sm:$0xff]
  %v1184 = vld [vmem:[%s1 + $0x320] sm:$0xff]
  %v1185 = vld [vmem:[%s1 + $0x328] sm:$0xff]
  %v1186 = vld [vmem:[%s1 + $0x330] sm:$0xff]
  %v1187 = vld [vmem:[%s1 + $0x338] sm:$0xff]
  %v1188 = vld [vmem:[%s1 + $0x340] sm:$0xff]
  %v1189 = vld [vmem:[%s1 + $0x348] sm:$0xff]
  %v1190 = vld [vmem:[%s1 + $0x350] sm:$0xff]
  %v1191 = vld [vmem:[%s1 + $0x358] sm:$0xff]
  %v1192 = vld [vmem:[%s1 + $0x360] sm:$0xff]
  %v1193 = vld [vmem:[%s1 + $0x368] sm:$0xff]
  %v1194 = vld [vmem:[%s1 + $0x370] sm:$0xff]
  %v1195 = vld [vmem:[%s1 + $0x378] sm:$0xff]
  %v1196 = vld [vmem:[%s1 + $0x380] sm:$0xff]
  %v1197 = vld [vmem:[%s1 + $0x388] sm:$0xff]
  %v1198 = vld [vmem:[%s1 + $0x390] sm:$0xff]
  %v1199 = vld [vmem:[%s1 + $0x398] sm:$0xff]
  %v1200 = vld [vmem:[%s1 + $0x3a0] sm:$0xff]
  %v1201 = vld [vmem:[%s1 + $0x3a8] sm:$0xff]
  %v1202 = vld [vmem:[%s1 + $0x3b0] sm:$0xff]
  %v1203 = vld [vmem:[%s1 + $0x3b8] sm:$0xff]
  %v1204 = vld [vmem:[%s1 + $0x3c0] sm:$0xff]
  %v1205 = vld [vmem:[%s1 + $0x3c8] sm:$0xff]
  %v1206 = vld [vmem:[%s1 + $0x3d0] sm:$0xff]
  %v1207 = vld [vmem:[%s1 + $0x3d8] sm:$0xff]
  %v1208 = vld [vmem:[%s1 + $0x3e0] sm:$0xff]
  %v1209 = vld [vmem:[%s1 + $0x3e8] sm:$0xff]
  %v1210 = vld [vmem:[%s1 + $0x3f0] sm:$0xff]
  %v1211 = vld [vmem:[%s1 + $0x3f8] sm:$0xff]
  %1340 = vrot.lane.b32.xlu0 %v1084, 126
  %v1341 = vpop.permute.xlu0 %1340
  %1342 = vrot.lane.b32.xlu0 %v1085, 126
  %v1343 = vpop.permute.xlu0 %1342
  %1344 = vrot.lane.b32.xlu0 %v1086, 126
  %v1345 = vpop.permute.xlu0 %1344
  %1346 = vrot.lane.b32.xlu0 %v1087, 126
  %v1347 = vpop.permute.xlu0 %1346
  %1348 = vrot.lane.b32.xlu0 %v1088, 126
  %v1349 = vpop.permute.xlu0 %1348
  %1350 = vrot.lane.b32.xlu0 %v1089, 126
  %v1351 = vpop.permute.xlu0 %1350
  %1352 = vrot.lane.b32.xlu0 %v1090, 126
  %v1353 = vpop.permute.xlu0 %1352
  %1354 = vrot.lane.b32.xlu0 %v1091, 126
  %v1355 = vpop.permute.xlu0 %1354
  %1356 = vrot.lane.b32.xlu0 %v1092, 126
  %v1357 = vpop.permute.xlu0 %1356
  %1358 = vrot.lane.b32.xlu0 %v1093, 126
  %v1359 = vpop.permute.xlu0 %1358
  %1360 = vrot.lane.b32.xlu0 %v1094, 126
  %v1361 = vpop.permute.xlu0 %1360
  %1362 = vrot.lane.b32.xlu0 %v1095, 126
  %v1363 = vpop.permute.xlu0 %1362
  %1364 = vrot.lane.b32.xlu0 %v1096, 126
  %v1365 = vpop.permute.xlu0 %1364
  %1366 = vrot.lane.b32.xlu0 %v1097, 126
  %v1367 = vpop.permute.xlu0 %1366
  %1368 = vrot.lane.b32.xlu0 %v1098, 126
  %v1369 = vpop.permute.xlu0 %1368
  %1370 = vrot.lane.b32.xlu0 %v1099, 126
  %v1371 = vpop.permute.xlu0 %1370
  %1372 = vrot.lane.b32.xlu0 %v1100, 126
  %v1373 = vpop.permute.xlu0 %1372
  %1374 = vrot.lane.b32.xlu0 %v1101, 126
  %v1375 = vpop.permute.xlu0 %1374
  %1376 = vrot.lane.b32.xlu0 %v1102, 126
  %v1377 = vpop.permute.xlu0 %1376
  %1378 = vrot.lane.b32.xlu0 %v1103, 126
  %v1379 = vpop.permute.xlu0 %1378
  %1380 = vrot.lane.b32.xlu0 %v1104, 126
  %v1381 = vpop.permute.xlu0 %1380
  %1382 = vrot.lane.b32.xlu0 %v1105, 126
  %v1383 = vpop.permute.xlu0 %1382
  %1384 = vrot.lane.b32.xlu0 %v1106, 126
  %v1385 = vpop.permute.xlu0 %1384
  %1386 = vrot.lane.b32.xlu0 %v1107, 126
  %v1387 = vpop.permute.xlu0 %1386
  %1388 = vrot.lane.b32.xlu0 %v1108, 126
  %v1389 = vpop.permute.xlu0 %1388
  %1390 = vrot.lane.b32.xlu0 %v1109, 126
  %v1391 = vpop.permute.xlu0 %1390
  %1392 = vrot.lane.b32.xlu0 %v1110, 126
  %v1393 = vpop.permute.xlu0 %1392
  %1394 = vrot.lane.b32.xlu0 %v1111, 126
  %v1395 = vpop.permute.xlu0 %1394
  %1396 = vrot.lane.b32.xlu0 %v1112, 126
  %v1397 = vpop.permute.xlu0 %1396
  %1398 = vrot.lane.b32.xlu0 %v1113, 126
  %v1399 = vpop.permute.xlu0 %1398
  %1400 = vrot.lane.b32.xlu0 %v1114, 126
  %v1401 = vpop.permute.xlu0 %1400
  %1402 = vrot.lane.b32.xlu0 %v1115, 126
  %v1403 = vpop.permute.xlu0 %1402
  %1404 = vrot.lane.b32.xlu0 %v1116, 126
  %v1405 = vpop.permute.xlu0 %1404
  %1406 = vrot.lane.b32.xlu0 %v1117, 126
  %v1407 = vpop.permute.xlu0 %1406
  %1408 = vrot.lane.b32.xlu0 %v1118, 126
  %v1409 = vpop.permute.xlu0 %1408
  %1410 = vrot.lane.b32.xlu0 %v1119, 126
  %v1411 = vpop.permute.xlu0 %1410
  %1412 = vrot.lane.b32.xlu0 %v1120, 126
  %v1413 = vpop.permute.xlu0 %1412
  %1414 = vrot.lane.b32.xlu0 %v1121, 126
  %v1415 = vpop.permute.xlu0 %1414
  %1416 = vrot.lane.b32.xlu0 %v1122, 126
  %v1417 = vpop.permute.xlu0 %1416
  %1418 = vrot.lane.b32.xlu0 %v1123, 126
  %v1419 = vpop.permute.xlu0 %1418
  %1420 = vrot.lane.b32.xlu0 %v1124, 126
  %v1421 = vpop.permute.xlu0 %1420
  %1422 = vrot.lane.b32.xlu0 %v1125, 126
  %v1423 = vpop.permute.xlu0 %1422
  %1424 = vrot.lane.b32.xlu0 %v1126, 126
  %v1425 = vpop.permute.xlu0 %1424
  %1426 = vrot.lane.b32.xlu0 %v1127, 126
  %v1427 = vpop.permute.xlu0 %1426
  %1428 = vrot.lane.b32.xlu0 %v1128, 126
  %v1429 = vpop.permute.xlu0 %1428
  %1430 = vrot.lane.b32.xlu0 %v1129, 126
  %v1431 = vpop.permute.xlu0 %1430
  %1432 = vrot.lane.b32.xlu0 %v1130, 126
  %v1433 = vpop.permute.xlu0 %1432
  %1434 = vrot.lane.b32.xlu0 %v1131, 126
  %v1435 = vpop.permute.xlu0 %1434
  %1436 = vrot.lane.b32.xlu0 %v1132, 126
  %v1437 = vpop.permute.xlu0 %1436
  %1438 = vrot.lane.b32.xlu0 %v1133, 126
  %v1439 = vpop.permute.xlu0 %1438
  %1440 = vrot.lane.b32.xlu0 %v1134, 126
  %v1441 = vpop.permute.xlu0 %1440
  %1442 = vrot.lane.b32.xlu0 %v1135, 126
  %v1443 = vpop.permute.xlu0 %1442
  %1444 = vrot.lane.b32.xlu0 %v1136, 126
  %v1445 = vpop.permute.xlu0 %1444
  %1446 = vrot.lane.b32.xlu0 %v1137, 126
  %v1447 = vpop.permute.xlu0 %1446
  %1448 = vrot.lane.b32.xlu0 %v1138, 126
  %v1449 = vpop.permute.xlu0 %1448
  %1450 = vrot.lane.b32.xlu0 %v1139, 126
  %v1451 = vpop.permute.xlu0 %1450
  %1452 = vrot.lane.b32.xlu0 %v1140, 126
  %v1453 = vpop.permute.xlu0 %1452
  %1454 = vrot.lane.b32.xlu0 %v1141, 126
  %v1455 = vpop.permute.xlu0 %1454
  %1456 = vrot.lane.b32.xlu0 %v1142, 126
  %v1457 = vpop.permute.xlu0 %1456
  %1458 = vrot.lane.b32.xlu0 %v1143, 126
  %v1459 = vpop.permute.xlu0 %1458
  %1460 = vrot.lane.b32.xlu0 %v1144, 126
  %v1461 = vpop.permute.xlu0 %1460
  %1462 = vrot.lane.b32.xlu0 %v1145, 126
  %v1463 = vpop.permute.xlu0 %1462
  %1464 = vrot.lane.b32.xlu0 %v1146, 126
  %v1465 = vpop.permute.xlu0 %1464
  %1466 = vrot.lane.b32.xlu0 %v1147, 126
  %v1467 = vpop.permute.xlu0 %1466
  %1468 = vrot.lane.b32.xlu0 %v1148, 126
  %v1469 = vpop.permute.xlu0 %1468
  %1470 = vrot.lane.b32.xlu0 %v1149, 126
  %v1471 = vpop.permute.xlu0 %1470
  %1472 = vrot.lane.b32.xlu0 %v1150, 126
  %v1473 = vpop.permute.xlu0 %1472
  %1474 = vrot.lane.b32.xlu0 %v1151, 126
  %v1475 = vpop.permute.xlu0 %1474
  %1476 = vrot.lane.b32.xlu0 %v1152, 126
  %v1477 = vpop.permute.xlu0 %1476
  %1478 = vrot.lane.b32.xlu0 %v1153, 126
  %v1479 = vpop.permute.xlu0 %1478
  %1480 = vrot.lane.b32.xlu0 %v1154, 126
  %v1481 = vpop.permute.xlu0 %1480
  %1482 = vrot.lane.b32.xlu0 %v1155, 126
  %v1483 = vpop.permute.xlu0 %1482
  %1484 = vrot.lane.b32.xlu0 %v1156, 126
  %v1485 = vpop.permute.xlu0 %1484
  %1486 = vrot.lane.b32.xlu0 %v1157, 126
  %v1487 = vpop.permute.xlu0 %1486
  %1488 = vrot.lane.b32.xlu0 %v1158, 126
  %v1489 = vpop.permute.xlu0 %1488
  %1490 = vrot.lane.b32.xlu0 %v1159, 126
  %v1491 = vpop.permute.xlu0 %1490
  %1492 = vrot.lane.b32.xlu0 %v1160, 126
  %v1493 = vpop.permute.xlu0 %1492
  %1494 = vrot.lane.b32.xlu0 %v1161, 126
  %v1495 = vpop.permute.xlu0 %1494
  %1496 = vrot.lane.b32.xlu0 %v1162, 126
  %v1497 = vpop.permute.xlu0 %1496
  %1498 = vrot.lane.b32.xlu0 %v1163, 126
  %v1499 = vpop.permute.xlu0 %1498
  %1500 = vrot.lane.b32.xlu0 %v1164, 126
  %v1501 = vpop.permute.xlu0 %1500
  %1502 = vrot.lane.b32.xlu0 %v1165, 126
  %v1503 = vpop.permute.xlu0 %1502
  %1504 = vrot.lane.b32.xlu0 %v1166, 126
  %v1505 = vpop.permute.xlu0 %1504
  %1506 = vrot.lane.b32.xlu0 %v1167, 126
  %v1507 = vpop.permute.xlu0 %1506
  %1508 = vrot.lane.b32.xlu0 %v1168, 126
  %v1509 = vpop.permute.xlu0 %1508
  %1510 = vrot.lane.b32.xlu0 %v1169, 126
  %v1511 = vpop.permute.xlu0 %1510
  %1512 = vrot.lane.b32.xlu0 %v1170, 126
  %v1513 = vpop.permute.xlu0 %1512
  %1514 = vrot.lane.b32.xlu0 %v1171, 126
  %v1515 = vpop.permute.xlu0 %1514
  %1516 = vrot.lane.b32.xlu0 %v1172, 126
  %v1517 = vpop.permute.xlu0 %1516
  %1518 = vrot.lane.b32.xlu0 %v1173, 126
  %v1519 = vpop.permute.xlu0 %1518
  %1520 = vrot.lane.b32.xlu0 %v1174, 126
  %v1521 = vpop.permute.xlu0 %1520
  %1522 = vrot.lane.b32.xlu0 %v1175, 126
  %v1523 = vpop.permute.xlu0 %1522
  %1524 = vrot.lane.b32.xlu0 %v1176, 126
  %v1525 = vpop.permute.xlu0 %1524
  %1526 = vrot.lane.b32.xlu0 %v1177, 126
  %v1527 = vpop.permute.xlu0 %1526
  %1528 = vrot.lane.b32.xlu0 %v1178, 126
  %v1529 = vpop.permute.xlu0 %1528
  %1530 = vrot.lane.b32.xlu0 %v1179, 126
  %v1531 = vpop.permute.xlu0 %1530
  %1532 = vrot.lane.b32.xlu0 %v1180, 126
  %v1533 = vpop.permute.xlu0 %1532
  %1534 = vrot.lane.b32.xlu0 %v1181, 126
  %v1535 = vpop.permute.xlu0 %1534
  %1536 = vrot.lane.b32.xlu0 %v1182, 126
  %v1537 = vpop.permute.xlu0 %1536
  %1538 = vrot.lane.b32.xlu0 %v1183, 126
  %v1539 = vpop.permute.xlu0 %1538
  %1540 = vrot.lane.b32.xlu0 %v1184, 126
  %v1541 = vpop.permute.xlu0 %1540
  %1542 = vrot.lane.b32.xlu0 %v1185, 126
  %v1543 = vpop.permute.xlu0 %1542
  %1544 = vrot.lane.b32.xlu0 %v1186, 126
  %v1545 = vpop.permute.xlu0 %1544
  %1546 = vrot.lane.b32.xlu0 %v1187, 126
  %v1547 = vpop.permute.xlu0 %1546
  %1548 = vrot.lane.b32.xlu0 %v1188, 126
  %v1549 = vpop.permute.xlu0 %1548
  %1550 = vrot.lane.b32.xlu0 %v1189, 126
  %v1551 = vpop.permute.xlu0 %1550
  %1552 = vrot.lane.b32.xlu0 %v1190, 126
  %v1553 = vpop.permute.xlu0 %1552
  %1554 = vrot.lane.b32.xlu0 %v1191, 126
  %v1555 = vpop.permute.xlu0 %1554
  %1556 = vrot.lane.b32.xlu0 %v1192, 126
  %v1557 = vpop.permute.xlu0 %1556
  %1558 = vrot.lane.b32.xlu0 %v1193, 126
  %v1559 = vpop.permute.xlu0 %1558
  %1560 = vrot.lane.b32.xlu0 %v1194, 126
  %v1561 = vpop.permute.xlu0 %1560
  %1562 = vrot.lane.b32.xlu0 %v1195, 126
  %v1563 = vpop.permute.xlu0 %1562
  %1564 = vrot.lane.b32.xlu0 %v1196, 126
  %v1565 = vpop.permute.xlu0 %1564
  %1566 = vrot.lane.b32.xlu0 %v1197, 126
  %v1567 = vpop.permute.xlu0 %1566
  %1568 = vrot.lane.b32.xlu0 %v1198, 126
  %v1569 = vpop.permute.xlu0 %1568
  %1570 = vrot.lane.b32.xlu0 %v1199, 126
  %v1571 = vpop.permute.xlu0 %1570
  %1572 = vrot.lane.b32.xlu0 %v1200, 126
  %v1573 = vpop.permute.xlu0 %1572
  %1574 = vrot.lane.b32.xlu0 %v1201, 126
  %v1575 = vpop.permute.xlu0 %1574
  %1576 = vrot.lane.b32.xlu0 %v1202, 126
  %v1577 = vpop.permute.xlu0 %1576
  %1578 = vrot.lane.b32.xlu0 %v1203, 126
  %v1579 = vpop.permute.xlu0 %1578
  %1580 = vrot.lane.b32.xlu0 %v1204, 126
  %v1581 = vpop.permute.xlu0 %1580
  %1582 = vrot.lane.b32.xlu0 %v1205, 126
  %v1583 = vpop.permute.xlu0 %1582
  %1584 = vrot.lane.b32.xlu0 %v1206, 126
  %v1585 = vpop.permute.xlu0 %1584
  %1586 = vrot.lane.b32.xlu0 %v1207, 126
  %v1587 = vpop.permute.xlu0 %1586
  %1588 = vrot.lane.b32.xlu0 %v1208, 126
  %v1589 = vpop.permute.xlu0 %1588
  %1590 = vrot.lane.b32.xlu0 %v1209, 126
  %v1591 = vpop.permute.xlu0 %1590
  %1592 = vrot.lane.b32.xlu0 %v1210, 126
  %v1593 = vpop.permute.xlu0 %1592
  %1594 = vrot.lane.b32.xlu0 %v1211, 126
  %v1595 = vpop.permute.xlu0 %1594
  %vm1596 = vcmask 1031168
  %v1597 = vsel %vm1596, %v1341, %v1343
  %v1598 = vsel %vm1596, %v1343, %v1345
  %v1599 = vsel %vm1596, %v1345, %v1347
  %v1600 = vsel %vm1596, %v1347, %v1349
  %v1601 = vsel %vm1596, %v1349, %v1351
  %v1602 = vsel %vm1596, %v1351, %v1353
  %v1603 = vsel %vm1596, %v1353, %v1355
  %v1604 = vsel %vm1596, %v1357, %v1359
  %v1605 = vsel %vm1596, %v1359, %v1361
  %v1606 = vsel %vm1596, %v1361, %v1363
  %v1607 = vsel %vm1596, %v1363, %v1365
  %v1608 = vsel %vm1596, %v1365, %v1367
  %v1609 = vsel %vm1596, %v1367, %v1369
  %v1610 = vsel %vm1596, %v1369, %v1371
  %v1611 = vsel %vm1596, %v1373, %v1375
  %v1612 = vsel %vm1596, %v1375, %v1377
  %v1613 = vsel %vm1596, %v1377, %v1379
  %v1614 = vsel %vm1596, %v1379, %v1381
  %v1615 = vsel %vm1596, %v1381, %v1383
  %v1616 = vsel %vm1596, %v1383, %v1385
  %v1617 = vsel %vm1596, %v1385, %v1387
  %v1618 = vsel %vm1596, %v1389, %v1391
  %v1619 = vsel %vm1596, %v1391, %v1393
  %v1620 = vsel %vm1596, %v1393, %v1395
  %v1621 = vsel %vm1596, %v1395, %v1397
  %v1622 = vsel %vm1596, %v1397, %v1399
  %v1623 = vsel %vm1596, %v1399, %v1401
  %v1624 = vsel %vm1596, %v1401, %v1403
  %v1625 = vsel %vm1596, %v1405, %v1407
  %v1626 = vsel %vm1596, %v1407, %v1409
  %v1627 = vsel %vm1596, %v1409, %v1411
  %v1628 = vsel %vm1596, %v1411, %v1413
  %v1629 = vsel %vm1596, %v1413, %v1415
  %v1630 = vsel %vm1596, %v1415, %v1417
  %v1631 = vsel %vm1596, %v1417, %v1419
  %v1632 = vsel %vm1596, %v1421, %v1423
  %v1633 = vsel %vm1596, %v1423, %v1425
  %v1634 = vsel %vm1596, %v1425, %v1427
  %v1635 = vsel %vm1596, %v1427, %v1429
  %v1636 = vsel %vm1596, %v1429, %v1431
  %v1637 = vsel %vm1596, %v1431, %v1433
  %v1638 = vsel %vm1596, %v1433, %v1435
  %v1639 = vsel %vm1596, %v1437, %v1439
  %v1640 = vsel %vm1596, %v1439, %v1441
  %v1641 = vsel %vm1596, %v1441, %v1443
  %v1642 = vsel %vm1596, %v1443, %v1445
  %v1643 = vsel %vm1596, %v1445, %v1447
  %v1644 = vsel %vm1596, %v1447, %v1449
  %v1645 = vsel %vm1596, %v1449, %v1451
  %v1646 = vsel %vm1596, %v1453, %v1455
  %v1647 = vsel %vm1596, %v1455, %v1457
  %v1648 = vsel %vm1596, %v1457, %v1459
  %v1649 = vsel %vm1596, %v1459, %v1461
  %v1650 = vsel %vm1596, %v1461, %v1463
  %v1651 = vsel %vm1596, %v1463, %v1465
  %v1652 = vsel %vm1596, %v1465, %v1467
  %v1653 = vsel %vm1596, %v1469, %v1471
  %v1654 = vsel %vm1596, %v1471, %v1473
  %v1655 = vsel %vm1596, %v1473, %v1475
  %v1656 = vsel %vm1596, %v1475, %v1477
  %v1657 = vsel %vm1596, %v1477, %v1479
  %v1658 = vsel %vm1596, %v1479, %v1481
  %v1659 = vsel %vm1596, %v1481, %v1483
  %v1660 = vsel %vm1596, %v1485, %v1487
  %v1661 = vsel %vm1596, %v1487, %v1489
  %v1662 = vsel %vm1596, %v1489, %v1491
  %v1663 = vsel %vm1596, %v1491, %v1493
  %v1664 = vsel %vm1596, %v1493, %v1495
  %v1665 = vsel %vm1596, %v1495, %v1497
  %v1666 = vsel %vm1596, %v1497, %v1499
  %v1667 = vsel %vm1596, %v1501, %v1503
  %v1668 = vsel %vm1596, %v1503, %v1505
  %v1669 = vsel %vm1596, %v1505, %v1507
  %v1670 = vsel %vm1596, %v1507, %v1509
  %v1671 = vsel %vm1596, %v1509, %v1511
  %v1672 = vsel %vm1596, %v1511, %v1513
  %v1673 = vsel %vm1596, %v1513, %v1515
  %v1674 = vsel %vm1596, %v1517, %v1519
  %v1675 = vsel %vm1596, %v1519, %v1521
  %v1676 = vsel %vm1596, %v1521, %v1523
  %v1677 = vsel %vm1596, %v1523, %v1525
  %v1678 = vsel %vm1596, %v1525, %v1527
  %v1679 = vsel %vm1596, %v1527, %v1529
  %v1680 = vsel %vm1596, %v1529, %v1531
  %v1681 = vsel %vm1596, %v1533, %v1535
  %v1682 = vsel %vm1596, %v1535, %v1537
  %v1683 = vsel %vm1596, %v1537, %v1539
  %v1684 = vsel %vm1596, %v1539, %v1541
  %v1685 = vsel %vm1596, %v1541, %v1543
  %v1686 = vsel %vm1596, %v1543, %v1545
  %v1687 = vsel %vm1596, %v1545, %v1547
  %v1688 = vsel %vm1596, %v1549, %v1551
  %v1689 = vsel %vm1596, %v1551, %v1553
  %v1690 = vsel %vm1596, %v1553, %v1555
  %v1691 = vsel %vm1596, %v1555, %v1557
  %v1692 = vsel %vm1596, %v1557, %v1559
  %v1693 = vsel %vm1596, %v1559, %v1561
  %v1694 = vsel %vm1596, %v1561, %v1563
  %v1695 = vsel %vm1596, %v1565, %v1567
  %v1696 = vsel %vm1596, %v1567, %v1569
  %v1697 = vsel %vm1596, %v1569, %v1571
  %v1698 = vsel %vm1596, %v1571, %v1573
  %v1699 = vsel %vm1596, %v1573, %v1575
  %v1700 = vsel %vm1596, %v1575, %v1577
  %v1701 = vsel %vm1596, %v1577, %v1579
  %v1702 = vsel %vm1596, %v1581, %v1583
  %v1703 = vsel %vm1596, %v1583, %v1585
  %v1704 = vsel %vm1596, %v1585, %v1587
  %v1705 = vsel %vm1596, %v1587, %v1589
  %v1706 = vsel %vm1596, %v1589, %v1591
  %v1707 = vsel %vm1596, %v1591, %v1593
  %v1708 = vsel %vm1596, %v1593, %v1595
  %1821 = vst [vmem:[#allocation2 + $0x700] sm:$0xff] %v1597
  %1822 = vst [vmem:[#allocation2 + $0x708] sm:$0xff] %v1598
  %1823 = vst [vmem:[#allocation2 + $0x710] sm:$0xff] %v1599
  %1824 = vst [vmem:[#allocation2 + $0x718] sm:$0xff] %v1600
  %1825 = vst [vmem:[#allocation2 + $0x720] sm:$0xff] %v1601
  %1826 = vst [vmem:[#allocation2 + $0x728] sm:$0xff] %v1602
  %1827 = vst [vmem:[#allocation2 + $0x730] sm:$0xff] %v1603
  %1828 = vst [vmem:[#allocation2 + $0x738] sm:$0xff] %v1604
  %1829 = vst [vmem:[#allocation2 + $0x740] sm:$0xff] %v1605
  %1830 = vst [vmem:[#allocation2 + $0x748] sm:$0xff] %v1606
  %1831 = vst [vmem:[#allocation2 + $0x750] sm:$0xff] %v1607
  %1832 = vst [vmem:[#allocation2 + $0x758] sm:$0xff] %v1608
  %1833 = vst [vmem:[#allocation2 + $0x760] sm:$0xff] %v1609
  %1834 = vst [vmem:[#allocation2 + $0x768] sm:$0xff] %v1610
  %1835 = vst [vmem:[#allocation2 + $0x770] sm:$0xff] %v1611
  %1836 = vst [vmem:[#allocation2 + $0x778] sm:$0xff] %v1612
  %1837 = vst [vmem:[#allocation2 + $0x780] sm:$0xff] %v1613
  %1838 = vst [vmem:[#allocation2 + $0x788] sm:$0xff] %v1614
  %1839 = vst [vmem:[#allocation2 + $0x790] sm:$0xff] %v1615
  %1840 = vst [vmem:[#allocation2 + $0x798] sm:$0xff] %v1616
  %1841 = vst [vmem:[#allocation2 + $0x7a0] sm:$0xff] %v1617
  %1842 = vst [vmem:[#allocation2 + $0x7a8] sm:$0xff] %v1618
  %1843 = vst [vmem:[#allocation2 + $0x7b0] sm:$0xff] %v1619
  %1844 = vst [vmem:[#allocation2 + $0x7b8] sm:$0xff] %v1620
  %1845 = vst [vmem:[#allocation2 + $0x7c0] sm:$0xff] %v1621
  %1846 = vst [vmem:[#allocation2 + $0x7c8] sm:$0xff] %v1622
  %1847 = vst [vmem:[#allocation2 + $0x7d0] sm:$0xff] %v1623
  %1848 = vst [vmem:[#allocation2 + $0x7d8] sm:$0xff] %v1624
  %1849 = vst [vmem:[#allocation2 + $0x7e0] sm:$0xff] %v1625
  %1850 = vst [vmem:[#allocation2 + $0x7e8] sm:$0xff] %v1626
  %1851 = vst [vmem:[#allocation2 + $0x7f0] sm:$0xff] %v1627
  %1852 = vst [vmem:[#allocation2 + $0x7f8] sm:$0xff] %v1628
  %1853 = vst [vmem:[#allocation2 + $0x800] sm:$0xff] %v1629
  %1854 = vst [vmem:[#allocation2 + $0x808] sm:$0xff] %v1630
  %1855 = vst [vmem:[#allocation2 + $0x810] sm:$0xff] %v1631
  %1856 = vst [vmem:[#allocation2 + $0x818] sm:$0xff] %v1632
  %1857 = vst [vmem:[#allocation2 + $0x820] sm:$0xff] %v1633
  %1858 = vst [vmem:[#allocation2 + $0x828] sm:$0xff] %v1634
  %1859 = vst [vmem:[#allocation2 + $0x830] sm:$0xff] %v1635
  %1860 = vst [vmem:[#allocation2 + $0x838] sm:$0xff] %v1636
  %1861 = vst [vmem:[#allocation2 + $0x840] sm:$0xff] %v1637
  %1862 = vst [vmem:[#allocation2 + $0x848] sm:$0xff] %v1638
  %1863 = vst [vmem:[#allocation2 + $0x850] sm:$0xff] %v1639
  %1864 = vst [vmem:[#allocation2 + $0x858] sm:$0xff] %v1640
  %1865 = vst [vmem:[#allocation2 + $0x860] sm:$0xff] %v1641
  %1866 = vst [vmem:[#allocation2 + $0x868] sm:$0xff] %v1642
  %1867 = vst [vmem:[#allocation2 + $0x870] sm:$0xff] %v1643
  %1868 = vst [vmem:[#allocation2 + $0x878] sm:$0xff] %v1644
  %1869 = vst [vmem:[#allocation2 + $0x880] sm:$0xff] %v1645
  %1870 = vst [vmem:[#allocation2 + $0x888] sm:$0xff] %v1646
  %1871 = vst [vmem:[#allocation2 + $0x890] sm:$0xff] %v1647
  %1872 = vst [vmem:[#allocation2 + $0x898] sm:$0xff] %v1648
  %1873 = vst [vmem:[#allocation2 + $0x8a0] sm:$0xff] %v1649
  %1874 = vst [vmem:[#allocation2 + $0x8a8] sm:$0xff] %v1650
  %1875 = vst [vmem:[#allocation2 + $0x8b0] sm:$0xff] %v1651
  %1876 = vst [vmem:[#allocation2 + $0x8b8] sm:$0xff] %v1652
  %1877 = vst [vmem:[#allocation2 + $0x8c0] sm:$0xff] %v1653
  %1878 = vst [vmem:[#allocation2 + $0x8c8] sm:$0xff] %v1654
  %1879 = vst [vmem:[#allocation2 + $0x8d0] sm:$0xff] %v1655
  %1880 = vst [vmem:[#allocation2 + $0x8d8] sm:$0xff] %v1656
  %1881 = vst [vmem:[#allocation2 + $0x8e0] sm:$0xff] %v1657
  %1882 = vst [vmem:[#allocation2 + $0x8e8] sm:$0xff] %v1658
  %1883 = vst [vmem:[#allocation2 + $0x8f0] sm:$0xff] %v1659
  %1884 = vst [vmem:[#allocation2 + $0x8f8] sm:$0xff] %v1660
  %1885 = vst [vmem:[#allocation2 + $0x900] sm:$0xff] %v1661
  %1886 = vst [vmem:[#allocation2 + $0x908] sm:$0xff] %v1662
  %1887 = vst [vmem:[#allocation2 + $0x910] sm:$0xff] %v1663
  %1888 = vst [vmem:[#allocation2 + $0x918] sm:$0xff] %v1664
  %1889 = vst [vmem:[#allocation2 + $0x920] sm:$0xff] %v1665
  %1890 = vst [vmem:[#allocation2 + $0x928] sm:$0xff] %v1666
  %1891 = vst [vmem:[#allocation2 + $0x930] sm:$0xff] %v1667
  %1892 = vst [vmem:[#allocation2 + $0x938] sm:$0xff] %v1668
  %1893 = vst [vmem:[#allocation2 + $0x940] sm:$0xff] %v1669
  %1894 = vst [vmem:[#allocation2 + $0x948] sm:$0xff] %v1670
  %1895 = vst [vmem:[#allocation2 + $0x950] sm:$0xff] %v1671
  %1896 = vst [vmem:[#allocation2 + $0x958] sm:$0xff] %v1672
  %1897 = vst [vmem:[#allocation2 + $0x960] sm:$0xff] %v1673
  %1898 = vst [vmem:[#allocation2 + $0x968] sm:$0xff] %v1674
  %1899 = vst [vmem:[#allocation2 + $0x970] sm:$0xff] %v1675
  %1900 = vst [vmem:[#allocation2 + $0x978] sm:$0xff] %v1676
  %1901 = vst [vmem:[#allocation2 + $0x980] sm:$0xff] %v1677
  %1902 = vst [vmem:[#allocation2 + $0x988] sm:$0xff] %v1678
  %1903 = vst [vmem:[#allocation2 + $0x990] sm:$0xff] %v1679
  %1904 = vst [vmem:[#allocation2 + $0x998] sm:$0xff] %v1680
  %1905 = vst [vmem:[#allocation2 + $0x9a0] sm:$0xff] %v1681
  %1906 = vst [vmem:[#allocation2 + $0x9a8] sm:$0xff] %v1682
  %1907 = vst [vmem:[#allocation2 + $0x9b0] sm:$0xff] %v1683
  %1908 = vst [vmem:[#allocation2 + $0x9b8] sm:$0xff] %v1684
  %1909 = vst [vmem:[#allocation2 + $0x9c0] sm:$0xff] %v1685
  %1910 = vst [vmem:[#allocation2 + $0x9c8] sm:$0xff] %v1686
  %1911 = vst [vmem:[#allocation2 + $0x9d0] sm:$0xff] %v1687
  %1912 = vst [vmem:[#allocation2 + $0x9d8] sm:$0xff] %v1688
  %1913 = vst [vmem:[#allocation2 + $0x9e0] sm:$0xff] %v1689
  %1914 = vst [vmem:[#allocation2 + $0x9e8] sm:$0xff] %v1690
  %1915 = vst [vmem:[#allocation2 + $0x9f0] sm:$0xff] %v1691
  %1916 = vst [vmem:[#allocation2 + $0x9f8] sm:$0xff] %v1692
  %1917 = vst [vmem:[#allocation2 + $0xa00] sm:$0xff] %v1693
  %1918 = vst [vmem:[#allocation2 + $0xa08] sm:$0xff] %v1694
  %1919 = vst [vmem:[#allocation2 + $0xa10] sm:$0xff] %v1695
  %1920 = vst [vmem:[#allocation2 + $0xa18] sm:$0xff] %v1696
  %1921 = vst [vmem:[#allocation2 + $0xa20] sm:$0xff] %v1697
  %1922 = vst [vmem:[#allocation2 + $0xa28] sm:$0xff] %v1698
  %1923 = vst [vmem:[#allocation2 + $0xa30] sm:$0xff] %v1699
  %1924 = vst [vmem:[#allocation2 + $0xa38] sm:$0xff] %v1700
  %1925 = vst [vmem:[#allocation2 + $0xa40] sm:$0xff] %v1701
  %1926 = vst [vmem:[#allocation2 + $0xa48] sm:$0xff] %v1702
  %1927 = vst [vmem:[#allocation2 + $0xa50] sm:$0xff] %v1703
  %1928 = vst [vmem:[#allocation2 + $0xa58] sm:$0xff] %v1704
  %1929 = vst [vmem:[#allocation2 + $0xa60] sm:$0xff] %v1705
  %1930 = vst [vmem:[#allocation2 + $0xa68] sm:$0xff] %v1706
  %1931 = vst [vmem:[#allocation2 + $0xa70] sm:$0xff] %v1707
  %1932 = vst [vmem:[#allocation2 + $0xa78] sm:$0xff] %v1708
  %v1933 = vld [vmem:[%s1] sm:$0xff]
  %v1934 = vld [vmem:[%s1 + $0x8] sm:$0xff]
  %v1935 = vld [vmem:[%s1 + $0x10] sm:$0xff]
  %v1936 = vld [vmem:[%s1 + $0x18] sm:$0xff]
  %v1937 = vld [vmem:[%s1 + $0x20] sm:$0xff]
  %v1938 = vld [vmem:[%s1 + $0x28] sm:$0xff]
  %v1939 = vld [vmem:[%s1 + $0x30] sm:$0xff]
  %v1940 = vld [vmem:[%s1 + $0x38] sm:$0xff]
  %v1941 = vld [vmem:[%s1 + $0x40] sm:$0xff]
  %v1942 = vld [vmem:[%s1 + $0x48] sm:$0xff]
  %v1943 = vld [vmem:[%s1 + $0x50] sm:$0xff]
  %v1944 = vld [vmem:[%s1 + $0x58] sm:$0xff]
  %v1945 = vld [vmem:[%s1 + $0x60] sm:$0xff]
  %v1946 = vld [vmem:[%s1 + $0x68] sm:$0xff]
  %v1947 = vld [vmem:[%s1 + $0x70] sm:$0xff]
  %v1948 = vld [vmem:[%s1 + $0x78] sm:$0xff]
  %v1949 = vld [vmem:[%s1 + $0x80] sm:$0xff]
  %v1950 = vld [vmem:[%s1 + $0x88] sm:$0xff]
  %v1951 = vld [vmem:[%s1 + $0x90] sm:$0xff]
  %v1952 = vld [vmem:[%s1 + $0x98] sm:$0xff]
  %v1953 = vld [vmem:[%s1 + $0xa0] sm:$0xff]
  %v1954 = vld [vmem:[%s1 + $0xa8] sm:$0xff]
  %v1955 = vld [vmem:[%s1 + $0xb0] sm:$0xff]
  %v1956 = vld [vmem:[%s1 + $0xb8] sm:$0xff]
  %v1957 = vld [vmem:[%s1 + $0xc0] sm:$0xff]
  %v1958 = vld [vmem:[%s1 + $0xc8] sm:$0xff]
  %v1959 = vld [vmem:[%s1 + $0xd0] sm:$0xff]
  %v1960 = vld [vmem:[%s1 + $0xd8] sm:$0xff]
  %v1961 = vld [vmem:[%s1 + $0xe0] sm:$0xff]
  %v1962 = vld [vmem:[%s1 + $0xe8] sm:$0xff]
  %v1963 = vld [vmem:[%s1 + $0xf0] sm:$0xff]
  %v1964 = vld [vmem:[%s1 + $0xf8] sm:$0xff]
  %v1965 = vld [vmem:[%s1 + $0x100] sm:$0xff]
  %v1966 = vld [vmem:[%s1 + $0x108] sm:$0xff]
  %v1967 = vld [vmem:[%s1 + $0x110] sm:$0xff]
  %v1968 = vld [vmem:[%s1 + $0x118] sm:$0xff]
  %v1969 = vld [vmem:[%s1 + $0x120] sm:$0xff]
  %v1970 = vld [vmem:[%s1 + $0x128] sm:$0xff]
  %v1971 = vld [vmem:[%s1 + $0x130] sm:$0xff]
  %v1972 = vld [vmem:[%s1 + $0x138] sm:$0xff]
  %v1973 = vld [vmem:[%s1 + $0x140] sm:$0xff]
  %v1974 = vld [vmem:[%s1 + $0x148] sm:$0xff]
  %v1975 = vld [vmem:[%s1 + $0x150] sm:$0xff]
  %v1976 = vld [vmem:[%s1 + $0x158] sm:$0xff]
  %v1977 = vld [vmem:[%s1 + $0x160] sm:$0xff]
  %v1978 = vld [vmem:[%s1 + $0x168] sm:$0xff]
  %v1979 = vld [vmem:[%s1 + $0x170] sm:$0xff]
  %v1980 = vld [vmem:[%s1 + $0x178] sm:$0xff]
  %v1981 = vld [vmem:[%s1 + $0x180] sm:$0xff]
  %v1982 = vld [vmem:[%s1 + $0x188] sm:$0xff]
  %v1983 = vld [vmem:[%s1 + $0x190] sm:$0xff]
  %v1984 = vld [vmem:[%s1 + $0x198] sm:$0xff]
  %v1985 = vld [vmem:[%s1 + $0x1a0] sm:$0xff]
  %v1986 = vld [vmem:[%s1 + $0x1a8] sm:$0xff]
  %v1987 = vld [vmem:[%s1 + $0x1b0] sm:$0xff]
  %v1988 = vld [vmem:[%s1 + $0x1b8] sm:$0xff]
  %v1989 = vld [vmem:[%s1 + $0x1c0] sm:$0xff]
  %v1990 = vld [vmem:[%s1 + $0x1c8] sm:$0xff]
  %v1991 = vld [vmem:[%s1 + $0x1d0] sm:$0xff]
  %v1992 = vld [vmem:[%s1 + $0x1d8] sm:$0xff]
  %v1993 = vld [vmem:[%s1 + $0x1e0] sm:$0xff]
  %v1994 = vld [vmem:[%s1 + $0x1e8] sm:$0xff]
  %v1995 = vld [vmem:[%s1 + $0x1f0] sm:$0xff]
  %v1996 = vld [vmem:[%s1 + $0x1f8] sm:$0xff]
  %v1997 = vld [vmem:[%s1 + $0x200] sm:$0xff]
  %v1998 = vld [vmem:[%s1 + $0x208] sm:$0xff]
  %v1999 = vld [vmem:[%s1 + $0x210] sm:$0xff]
  %v2000 = vld [vmem:[%s1 + $0x218] sm:$0xff]
  %v2001 = vld [vmem:[%s1 + $0x220] sm:$0xff]
  %v2002 = vld [vmem:[%s1 + $0x228] sm:$0xff]
  %v2003 = vld [vmem:[%s1 + $0x230] sm:$0xff]
  %v2004 = vld [vmem:[%s1 + $0x238] sm:$0xff]
  %v2005 = vld [vmem:[%s1 + $0x240] sm:$0xff]
  %v2006 = vld [vmem:[%s1 + $0x248] sm:$0xff]
  %v2007 = vld [vmem:[%s1 + $0x250] sm:$0xff]
  %v2008 = vld [vmem:[%s1 + $0x258] sm:$0xff]
  %v2009 = vld [vmem:[%s1 + $0x260] sm:$0xff]
  %v2010 = vld [vmem:[%s1 + $0x268] sm:$0xff]
  %v2011 = vld [vmem:[%s1 + $0x270] sm:$0xff]
  %v2012 = vld [vmem:[%s1 + $0x278] sm:$0xff]
  %v2013 = vld [vmem:[%s1 + $0x280] sm:$0xff]
  %v2014 = vld [vmem:[%s1 + $0x288] sm:$0xff]
  %v2015 = vld [vmem:[%s1 + $0x290] sm:$0xff]
  %v2016 = vld [vmem:[%s1 + $0x298] sm:$0xff]
  %v2017 = vld [vmem:[%s1 + $0x2a0] sm:$0xff]
  %v2018 = vld [vmem:[%s1 + $0x2a8] sm:$0xff]
  %v2019 = vld [vmem:[%s1 + $0x2b0] sm:$0xff]
  %v2020 = vld [vmem:[%s1 + $0x2b8] sm:$0xff]
  %v2021 = vld [vmem:[%s1 + $0x2c0] sm:$0xff]
  %v2022 = vld [vmem:[%s1 + $0x2c8] sm:$0xff]
  %v2023 = vld [vmem:[%s1 + $0x2d0] sm:$0xff]
  %v2024 = vld [vmem:[%s1 + $0x2d8] sm:$0xff]
  %v2025 = vld [vmem:[%s1 + $0x2e0] sm:$0xff]
  %v2026 = vld [vmem:[%s1 + $0x2e8] sm:$0xff]
  %v2027 = vld [vmem:[%s1 + $0x2f0] sm:$0xff]
  %v2028 = vld [vmem:[%s1 + $0x2f8] sm:$0xff]
  %v2029 = vld [vmem:[%s1 + $0x300] sm:$0xff]
  %v2030 = vld [vmem:[%s1 + $0x308] sm:$0xff]
  %v2031 = vld [vmem:[%s1 + $0x310] sm:$0xff]
  %v2032 = vld [vmem:[%s1 + $0x318] sm:$0xff]
  %v2033 = vld [vmem:[%s1 + $0x320] sm:$0xff]
  %v2034 = vld [vmem:[%s1 + $0x328] sm:$0xff]
  %v2035 = vld [vmem:[%s1 + $0x330] sm:$0xff]
  %v2036 = vld [vmem:[%s1 + $0x338] sm:$0xff]
  %v2037 = vld [vmem:[%s1 + $0x340] sm:$0xff]
  %v2038 = vld [vmem:[%s1 + $0x348] sm:$0xff]
  %v2039 = vld [vmem:[%s1 + $0x350] sm:$0xff]
  %v2040 = vld [vmem:[%s1 + $0x358] sm:$0xff]
  %v2041 = vld [vmem:[%s1 + $0x360] sm:$0xff]
  %v2042 = vld [vmem:[%s1 + $0x368] sm:$0xff]
  %v2043 = vld [vmem:[%s1 + $0x370] sm:$0xff]
  %v2044 = vld [vmem:[%s1 + $0x378] sm:$0xff]
  %v2045 = vld [vmem:[%s1 + $0x380] sm:$0xff]
  %v2046 = vld [vmem:[%s1 + $0x388] sm:$0xff]
  %v2047 = vld [vmem:[%s1 + $0x390] sm:$0xff]
  %v2048 = vld [vmem:[%s1 + $0x398] sm:$0xff]
  %v2049 = vld [vmem:[%s1 + $0x3a0] sm:$0xff]
  %v2050 = vld [vmem:[%s1 + $0x3a8] sm:$0xff]
  %v2051 = vld [vmem:[%s1 + $0x3b0] sm:$0xff]
  %v2052 = vld [vmem:[%s1 + $0x3b8] sm:$0xff]
  %v2053 = vld [vmem:[%s1 + $0x3c0] sm:$0xff]
  %v2054 = vld [vmem:[%s1 + $0x3c8] sm:$0xff]
  %v2055 = vld [vmem:[%s1 + $0x3d0] sm:$0xff]
  %v2056 = vld [vmem:[%s1 + $0x3d8] sm:$0xff]
  %v2057 = vld [vmem:[%s1 + $0x3e0] sm:$0xff]
  %v2058 = vld [vmem:[%s1 + $0x3e8] sm:$0xff]
  %v2059 = vld [vmem:[%s1 + $0x3f0] sm:$0xff]
  %v2060 = vld [vmem:[%s1 + $0x3f8] sm:$0xff]
  %2189 = vrot.lane.b32.xlu0 %v1933, 98
  %v2190 = vpop.permute.xlu0 %2189
  %2191 = vrot.lane.b32.xlu0 %v1934, 98
  %v2192 = vpop.permute.xlu0 %2191
  %2193 = vrot.lane.b32.xlu0 %v1935, 98
  %v2194 = vpop.permute.xlu0 %2193
  %2195 = vrot.lane.b32.xlu0 %v1936, 98
  %v2196 = vpop.permute.xlu0 %2195
  %2197 = vrot.lane.b32.xlu0 %v1937, 98
  %v2198 = vpop.permute.xlu0 %2197
  %2199 = vrot.lane.b32.xlu0 %v1938, 98
  %v2200 = vpop.permute.xlu0 %2199
  %2201 = vrot.lane.b32.xlu0 %v1939, 98
  %v2202 = vpop.permute.xlu0 %2201
  %2203 = vrot.lane.b32.xlu0 %v1940, 98
  %v2204 = vpop.permute.xlu0 %2203
  %2205 = vrot.lane.b32.xlu0 %v1941, 98
  %v2206 = vpop.permute.xlu0 %2205
  %2207 = vrot.lane.b32.xlu0 %v1942, 98
  %v2208 = vpop.permute.xlu0 %2207
  %2209 = vrot.lane.b32.xlu0 %v1943, 98
  %v2210 = vpop.permute.xlu0 %2209
  %2211 = vrot.lane.b32.xlu0 %v1944, 98
  %v2212 = vpop.permute.xlu0 %2211
  %2213 = vrot.lane.b32.xlu0 %v1945, 98
  %v2214 = vpop.permute.xlu0 %2213
  %2215 = vrot.lane.b32.xlu0 %v1946, 98
  %v2216 = vpop.permute.xlu0 %2215
  %2217 = vrot.lane.b32.xlu0 %v1947, 98
  %v2218 = vpop.permute.xlu0 %2217
  %2219 = vrot.lane.b32.xlu0 %v1948, 98
  %v2220 = vpop.permute.xlu0 %2219
  %2221 = vrot.lane.b32.xlu0 %v1949, 98
  %v2222 = vpop.permute.xlu0 %2221
  %2223 = vrot.lane.b32.xlu0 %v1950, 98
  %v2224 = vpop.permute.xlu0 %2223
  %2225 = vrot.lane.b32.xlu0 %v1951, 98
  %v2226 = vpop.permute.xlu0 %2225
  %2227 = vrot.lane.b32.xlu0 %v1952, 98
  %v2228 = vpop.permute.xlu0 %2227
  %2229 = vrot.lane.b32.xlu0 %v1953, 98
  %v2230 = vpop.permute.xlu0 %2229
  %2231 = vrot.lane.b32.xlu0 %v1954, 98
  %v2232 = vpop.permute.xlu0 %2231
  %2233 = vrot.lane.b32.xlu0 %v1955, 98
  %v2234 = vpop.permute.xlu0 %2233
  %2235 = vrot.lane.b32.xlu0 %v1956, 98
  %v2236 = vpop.permute.xlu0 %2235
  %2237 = vrot.lane.b32.xlu0 %v1957, 98
  %v2238 = vpop.permute.xlu0 %2237
  %2239 = vrot.lane.b32.xlu0 %v1958, 98
  %v2240 = vpop.permute.xlu0 %2239
  %2241 = vrot.lane.b32.xlu0 %v1959, 98
  %v2242 = vpop.permute.xlu0 %2241
  %2243 = vrot.lane.b32.xlu0 %v1960, 98
  %v2244 = vpop.permute.xlu0 %2243
  %2245 = vrot.lane.b32.xlu0 %v1961, 98
  %v2246 = vpop.permute.xlu0 %2245
  %2247 = vrot.lane.b32.xlu0 %v1962, 98
  %v2248 = vpop.permute.xlu0 %2247
  %2249 = vrot.lane.b32.xlu0 %v1963, 98
  %v2250 = vpop.permute.xlu0 %2249
  %2251 = vrot.lane.b32.xlu0 %v1964, 98
  %v2252 = vpop.permute.xlu0 %2251
  %2253 = vrot.lane.b32.xlu0 %v1965, 98
  %v2254 = vpop.permute.xlu0 %2253
  %2255 = vrot.lane.b32.xlu0 %v1966, 98
  %v2256 = vpop.permute.xlu0 %2255
  %2257 = vrot.lane.b32.xlu0 %v1967, 98
  %v2258 = vpop.permute.xlu0 %2257
  %2259 = vrot.lane.b32.xlu0 %v1968, 98
  %v2260 = vpop.permute.xlu0 %2259
  %2261 = vrot.lane.b32.xlu0 %v1969, 98
  %v2262 = vpop.permute.xlu0 %2261
  %2263 = vrot.lane.b32.xlu0 %v1970, 98
  %v2264 = vpop.permute.xlu0 %2263
  %2265 = vrot.lane.b32.xlu0 %v1971, 98
  %v2266 = vpop.permute.xlu0 %2265
  %2267 = vrot.lane.b32.xlu0 %v1972, 98
  %v2268 = vpop.permute.xlu0 %2267
  %2269 = vrot.lane.b32.xlu0 %v1973, 98
  %v2270 = vpop.permute.xlu0 %2269
  %2271 = vrot.lane.b32.xlu0 %v1974, 98
  %v2272 = vpop.permute.xlu0 %2271
  %2273 = vrot.lane.b32.xlu0 %v1975, 98
  %v2274 = vpop.permute.xlu0 %2273
  %2275 = vrot.lane.b32.xlu0 %v1976, 98
  %v2276 = vpop.permute.xlu0 %2275
  %2277 = vrot.lane.b32.xlu0 %v1977, 98
  %v2278 = vpop.permute.xlu0 %2277
  %2279 = vrot.lane.b32.xlu0 %v1978, 98
  %v2280 = vpop.permute.xlu0 %2279
  %2281 = vrot.lane.b32.xlu0 %v1979, 98
  %v2282 = vpop.permute.xlu0 %2281
  %2283 = vrot.lane.b32.xlu0 %v1980, 98
  %v2284 = vpop.permute.xlu0 %2283
  %2285 = vrot.lane.b32.xlu0 %v1981, 98
  %v2286 = vpop.permute.xlu0 %2285
  %2287 = vrot.lane.b32.xlu0 %v1982, 98
  %v2288 = vpop.permute.xlu0 %2287
  %2289 = vrot.lane.b32.xlu0 %v1983, 98
  %v2290 = vpop.permute.xlu0 %2289
  %2291 = vrot.lane.b32.xlu0 %v1984, 98
  %v2292 = vpop.permute.xlu0 %2291
  %2293 = vrot.lane.b32.xlu0 %v1985, 98
  %v2294 = vpop.permute.xlu0 %2293
  %2295 = vrot.lane.b32.xlu0 %v1986, 98
  %v2296 = vpop.permute.xlu0 %2295
  %2297 = vrot.lane.b32.xlu0 %v1987, 98
  %v2298 = vpop.permute.xlu0 %2297
  %2299 = vrot.lane.b32.xlu0 %v1988, 98
  %v2300 = vpop.permute.xlu0 %2299
  %2301 = vrot.lane.b32.xlu0 %v1989, 98
  %v2302 = vpop.permute.xlu0 %2301
  %2303 = vrot.lane.b32.xlu0 %v1990, 98
  %v2304 = vpop.permute.xlu0 %2303
  %2305 = vrot.lane.b32.xlu0 %v1991, 98
  %v2306 = vpop.permute.xlu0 %2305
  %2307 = vrot.lane.b32.xlu0 %v1992, 98
  %v2308 = vpop.permute.xlu0 %2307
  %2309 = vrot.lane.b32.xlu0 %v1993, 98
  %v2310 = vpop.permute.xlu0 %2309
  %2311 = vrot.lane.b32.xlu0 %v1994, 98
  %v2312 = vpop.permute.xlu0 %2311
  %2313 = vrot.lane.b32.xlu0 %v1995, 98
  %v2314 = vpop.permute.xlu0 %2313
  %2315 = vrot.lane.b32.xlu0 %v1996, 98
  %v2316 = vpop.permute.xlu0 %2315
  %2317 = vrot.lane.b32.xlu0 %v1997, 98
  %v2318 = vpop.permute.xlu0 %2317
  %2319 = vrot.lane.b32.xlu0 %v1998, 98
  %v2320 = vpop.permute.xlu0 %2319
  %2321 = vrot.lane.b32.xlu0 %v1999, 98
  %v2322 = vpop.permute.xlu0 %2321
  %2323 = vrot.lane.b32.xlu0 %v2000, 98
  %v2324 = vpop.permute.xlu0 %2323
  %2325 = vrot.lane.b32.xlu0 %v2001, 98
  %v2326 = vpop.permute.xlu0 %2325
  %2327 = vrot.lane.b32.xlu0 %v2002, 98
  %v2328 = vpop.permute.xlu0 %2327
  %2329 = vrot.lane.b32.xlu0 %v2003, 98
  %v2330 = vpop.permute.xlu0 %2329
  %2331 = vrot.lane.b32.xlu0 %v2004, 98
  %v2332 = vpop.permute.xlu0 %2331
  %2333 = vrot.lane.b32.xlu0 %v2005, 98
  %v2334 = vpop.permute.xlu0 %2333
  %2335 = vrot.lane.b32.xlu0 %v2006, 98
  %v2336 = vpop.permute.xlu0 %2335
  %2337 = vrot.lane.b32.xlu0 %v2007, 98
  %v2338 = vpop.permute.xlu0 %2337
  %2339 = vrot.lane.b32.xlu0 %v2008, 98
  %v2340 = vpop.permute.xlu0 %2339
  %2341 = vrot.lane.b32.xlu0 %v2009, 98
  %v2342 = vpop.permute.xlu0 %2341
  %2343 = vrot.lane.b32.xlu0 %v2010, 98
  %v2344 = vpop.permute.xlu0 %2343
  %2345 = vrot.lane.b32.xlu0 %v2011, 98
  %v2346 = vpop.permute.xlu0 %2345
  %2347 = vrot.lane.b32.xlu0 %v2012, 98
  %v2348 = vpop.permute.xlu0 %2347
  %2349 = vrot.lane.b32.xlu0 %v2013, 98
  %v2350 = vpop.permute.xlu0 %2349
  %2351 = vrot.lane.b32.xlu0 %v2014, 98
  %v2352 = vpop.permute.xlu0 %2351
  %2353 = vrot.lane.b32.xlu0 %v2015, 98
  %v2354 = vpop.permute.xlu0 %2353
  %2355 = vrot.lane.b32.xlu0 %v2016, 98
  %v2356 = vpop.permute.xlu0 %2355
  %2357 = vrot.lane.b32.xlu0 %v2017, 98
  %v2358 = vpop.permute.xlu0 %2357
  %2359 = vrot.lane.b32.xlu0 %v2018, 98
  %v2360 = vpop.permute.xlu0 %2359
  %2361 = vrot.lane.b32.xlu0 %v2019, 98
  %v2362 = vpop.permute.xlu0 %2361
  %2363 = vrot.lane.b32.xlu0 %v2020, 98
  %v2364 = vpop.permute.xlu0 %2363
  %2365 = vrot.lane.b32.xlu0 %v2021, 98
  %v2366 = vpop.permute.xlu0 %2365
  %2367 = vrot.lane.b32.xlu0 %v2022, 98
  %v2368 = vpop.permute.xlu0 %2367
  %2369 = vrot.lane.b32.xlu0 %v2023, 98
  %v2370 = vpop.permute.xlu0 %2369
  %2371 = vrot.lane.b32.xlu0 %v2024, 98
  %v2372 = vpop.permute.xlu0 %2371
  %2373 = vrot.lane.b32.xlu0 %v2025, 98
  %v2374 = vpop.permute.xlu0 %2373
  %2375 = vrot.lane.b32.xlu0 %v2026, 98
  %v2376 = vpop.permute.xlu0 %2375
  %2377 = vrot.lane.b32.xlu0 %v2027, 98
  %v2378 = vpop.permute.xlu0 %2377
  %2379 = vrot.lane.b32.xlu0 %v2028, 98
  %v2380 = vpop.permute.xlu0 %2379
  %2381 = vrot.lane.b32.xlu0 %v2029, 98
  %v2382 = vpop.permute.xlu0 %2381
  %2383 = vrot.lane.b32.xlu0 %v2030, 98
  %v2384 = vpop.permute.xlu0 %2383
  %2385 = vrot.lane.b32.xlu0 %v2031, 98
  %v2386 = vpop.permute.xlu0 %2385
  %2387 = vrot.lane.b32.xlu0 %v2032, 98
  %v2388 = vpop.permute.xlu0 %2387
  %2389 = vrot.lane.b32.xlu0 %v2033, 98
  %v2390 = vpop.permute.xlu0 %2389
  %2391 = vrot.lane.b32.xlu0 %v2034, 98
  %v2392 = vpop.permute.xlu0 %2391
  %2393 = vrot.lane.b32.xlu0 %v2035, 98
  %v2394 = vpop.permute.xlu0 %2393
  %2395 = vrot.lane.b32.xlu0 %v2036, 98
  %v2396 = vpop.permute.xlu0 %2395
  %2397 = vrot.lane.b32.xlu0 %v2037, 98
  %v2398 = vpop.permute.xlu0 %2397
  %2399 = vrot.lane.b32.xlu0 %v2038, 98
  %v2400 = vpop.permute.xlu0 %2399
  %2401 = vrot.lane.b32.xlu0 %v2039, 98
  %v2402 = vpop.permute.xlu0 %2401
  %2403 = vrot.lane.b32.xlu0 %v2040, 98
  %v2404 = vpop.permute.xlu0 %2403
  %2405 = vrot.lane.b32.xlu0 %v2041, 98
  %v2406 = vpop.permute.xlu0 %2405
  %2407 = vrot.lane.b32.xlu0 %v2042, 98
  %v2408 = vpop.permute.xlu0 %2407
  %2409 = vrot.lane.b32.xlu0 %v2043, 98
  %v2410 = vpop.permute.xlu0 %2409
  %2411 = vrot.lane.b32.xlu0 %v2044, 98
  %v2412 = vpop.permute.xlu0 %2411
  %2413 = vrot.lane.b32.xlu0 %v2045, 98
  %v2414 = vpop.permute.xlu0 %2413
  %2415 = vrot.lane.b32.xlu0 %v2046, 98
  %v2416 = vpop.permute.xlu0 %2415
  %2417 = vrot.lane.b32.xlu0 %v2047, 98
  %v2418 = vpop.permute.xlu0 %2417
  %2419 = vrot.lane.b32.xlu0 %v2048, 98
  %v2420 = vpop.permute.xlu0 %2419
  %2421 = vrot.lane.b32.xlu0 %v2049, 98
  %v2422 = vpop.permute.xlu0 %2421
  %2423 = vrot.lane.b32.xlu0 %v2050, 98
  %v2424 = vpop.permute.xlu0 %2423
  %2425 = vrot.lane.b32.xlu0 %v2051, 98
  %v2426 = vpop.permute.xlu0 %2425
  %2427 = vrot.lane.b32.xlu0 %v2052, 98
  %v2428 = vpop.permute.xlu0 %2427
  %2429 = vrot.lane.b32.xlu0 %v2053, 98
  %v2430 = vpop.permute.xlu0 %2429
  %2431 = vrot.lane.b32.xlu0 %v2054, 98
  %v2432 = vpop.permute.xlu0 %2431
  %2433 = vrot.lane.b32.xlu0 %v2055, 98
  %v2434 = vpop.permute.xlu0 %2433
  %2435 = vrot.lane.b32.xlu0 %v2056, 98
  %v2436 = vpop.permute.xlu0 %2435
  %2437 = vrot.lane.b32.xlu0 %v2057, 98
  %v2438 = vpop.permute.xlu0 %2437
  %2439 = vrot.lane.b32.xlu0 %v2058, 98
  %v2440 = vpop.permute.xlu0 %2439
  %2441 = vrot.lane.b32.xlu0 %v2059, 98
  %v2442 = vpop.permute.xlu0 %2441
  %2443 = vrot.lane.b32.xlu0 %v2060, 98
  %v2444 = vpop.permute.xlu0 %2443
  %vm2445 = vcmask 801792
  %v2446 = vsel %vm2445, %v2190, %v2192
  %v2447 = vsel %vm2445, %v2192, %v2194
  %v2448 = vsel %vm2445, %v2194, %v2196
  %v2449 = vsel %vm2445, %v2196, %v2198
  %v2450 = vsel %vm2445, %v2198, %v2200
  %v2451 = vsel %vm2445, %v2200, %v2202
  %v2452 = vsel %vm2445, %v2202, %v2204
  %v2453 = vsel %vm2445, %v2206, %v2208
  %v2454 = vsel %vm2445, %v2208, %v2210
  %v2455 = vsel %vm2445, %v2210, %v2212
  %v2456 = vsel %vm2445, %v2212, %v2214
  %v2457 = vsel %vm2445, %v2214, %v2216
  %v2458 = vsel %vm2445, %v2216, %v2218
  %v2459 = vsel %vm2445, %v2218, %v2220
  %v2460 = vsel %vm2445, %v2222, %v2224
  %v2461 = vsel %vm2445, %v2224, %v2226
  %v2462 = vsel %vm2445, %v2226, %v2228
  %v2463 = vsel %vm2445, %v2228, %v2230
  %v2464 = vsel %vm2445, %v2230, %v2232
  %v2465 = vsel %vm2445, %v2232, %v2234
  %v2466 = vsel %vm2445, %v2234, %v2236
  %v2467 = vsel %vm2445, %v2238, %v2240
  %v2468 = vsel %vm2445, %v2240, %v2242
  %v2469 = vsel %vm2445, %v2242, %v2244
  %v2470 = vsel %vm2445, %v2244, %v2246
  %v2471 = vsel %vm2445, %v2246, %v2248
  %v2472 = vsel %vm2445, %v2248, %v2250
  %v2473 = vsel %vm2445, %v2250, %v2252
  %v2474 = vsel %vm2445, %v2254, %v2256
  %v2475 = vsel %vm2445, %v2256, %v2258
  %v2476 = vsel %vm2445, %v2258, %v2260
  %v2477 = vsel %vm2445, %v2260, %v2262
  %v2478 = vsel %vm2445, %v2262, %v2264
  %v2479 = vsel %vm2445, %v2264, %v2266
  %v2480 = vsel %vm2445, %v2266, %v2268
  %v2481 = vsel %vm2445, %v2270, %v2272
  %v2482 = vsel %vm2445, %v2272, %v2274
  %v2483 = vsel %vm2445, %v2274, %v2276
  %v2484 = vsel %vm2445, %v2276, %v2278
  %v2485 = vsel %vm2445, %v2278, %v2280
  %v2486 = vsel %vm2445, %v2280, %v2282
  %v2487 = vsel %vm2445, %v2282, %v2284
  %v2488 = vsel %vm2445, %v2286, %v2288
  %v2489 = vsel %vm2445, %v2288, %v2290
  %v2490 = vsel %vm2445, %v2290, %v2292
  %v2491 = vsel %vm2445, %v2292, %v2294
  %v2492 = vsel %vm2445, %v2294, %v2296
  %v2493 = vsel %vm2445, %v2296, %v2298
  %v2494 = vsel %vm2445, %v2298, %v2300
  %v2495 = vsel %vm2445, %v2302, %v2304
  %v2496 = vsel %vm2445, %v2304, %v2306
  %v2497 = vsel %vm2445, %v2306, %v2308
  %v2498 = vsel %vm2445, %v2308, %v2310
  %v2499 = vsel %vm2445, %v2310, %v2312
  %v2500 = vsel %vm2445, %v2312, %v2314
  %v2501 = vsel %vm2445, %v2314, %v2316
  %v2502 = vsel %vm2445, %v2318, %v2320
  %v2503 = vsel %vm2445, %v2320, %v2322
  %v2504 = vsel %vm2445, %v2322, %v2324
  %v2505 = vsel %vm2445, %v2324, %v2326
  %v2506 = vsel %vm2445, %v2326, %v2328
  %v2507 = vsel %vm2445, %v2328, %v2330
  %v2508 = vsel %vm2445, %v2330, %v2332
  %v2509 = vsel %vm2445, %v2334, %v2336
  %v2510 = vsel %vm2445, %v2336, %v2338
  %v2511 = vsel %vm2445, %v2338, %v2340
  %v2512 = vsel %vm2445, %v2340, %v2342
  %v2513 = vsel %vm2445, %v2342, %v2344
  %v2514 = vsel %vm2445, %v2344, %v2346
  %v2515 = vsel %vm2445, %v2346, %v2348
  %v2516 = vsel %vm2445, %v2350, %v2352
  %v2517 = vsel %vm2445, %v2352, %v2354
  %v2518 = vsel %vm2445, %v2354, %v2356
  %v2519 = vsel %vm2445, %v2356, %v2358
  %v2520 = vsel %vm2445, %v2358, %v2360
  %v2521 = vsel %vm2445, %v2360, %v2362
  %v2522 = vsel %vm2445, %v2362, %v2364
  %v2523 = vsel %vm2445, %v2366, %v2368
  %v2524 = vsel %vm2445, %v2368, %v2370
  %v2525 = vsel %vm2445, %v2370, %v2372
  %v2526 = vsel %vm2445, %v2372, %v2374
  %v2527 = vsel %vm2445, %v2374, %v2376
  %v2528 = vsel %vm2445, %v2376, %v2378
  %v2529 = vsel %vm2445, %v2378, %v2380
  %v2530 = vsel %vm2445, %v2382, %v2384
  %v2531 = vsel %vm2445, %v2384, %v2386
  %v2532 = vsel %vm2445, %v2386, %v2388
  %v2533 = vsel %vm2445, %v2388, %v2390
  %v2534 = vsel %vm2445, %v2390, %v2392
  %v2535 = vsel %vm2445, %v2392, %v2394
  %v2536 = vsel %vm2445, %v2394, %v2396
  %v2537 = vsel %vm2445, %v2398, %v2400
  %v2538 = vsel %vm2445, %v2400, %v2402
  %v2539 = vsel %vm2445, %v2402, %v2404
  %v2540 = vsel %vm2445, %v2404, %v2406
  %v2541 = vsel %vm2445, %v2406, %v2408
  %v2542 = vsel %vm2445, %v2408, %v2410
  %v2543 = vsel %vm2445, %v2410, %v2412
  %v2544 = vsel %vm2445, %v2414, %v2416
  %v2545 = vsel %vm2445, %v2416, %v2418
  %v2546 = vsel %vm2445, %v2418, %v2420
  %v2547 = vsel %vm2445, %v2420, %v2422
  %v2548 = vsel %vm2445, %v2422, %v2424
  %v2549 = vsel %vm2445, %v2424, %v2426
  %v2550 = vsel %vm2445, %v2426, %v2428
  %v2551 = vsel %vm2445, %v2430, %v2432
  %v2552 = vsel %vm2445, %v2432, %v2434
  %v2553 = vsel %vm2445, %v2434, %v2436
  %v2554 = vsel %vm2445, %v2436, %v2438
  %v2555 = vsel %vm2445, %v2438, %v2440
  %v2556 = vsel %vm2445, %v2440, %v2442
  %v2557 = vsel %vm2445, %v2442, %v2444
  %2670 = vst [vmem:[#allocation2 + $0xa80] sm:$0xff] %v2446
  %2671 = vst [vmem:[#allocation2 + $0xa88] sm:$0xff] %v2447
  %2672 = vst [vmem:[#allocation2 + $0xa90] sm:$0xff] %v2448
  %2673 = vst [vmem:[#allocation2 + $0xa98] sm:$0xff] %v2449
  %2674 = vst [vmem:[#allocation2 + $0xaa0] sm:$0xff] %v2450
  %2675 = vst [vmem:[#allocation2 + $0xaa8] sm:$0xff] %v2451
  %2676 = vst [vmem:[#allocation2 + $0xab0] sm:$0xff] %v2452
  %2677 = vst [vmem:[#allocation2 + $0xab8] sm:$0xff] %v2453
  %2678 = vst [vmem:[#allocation2 + $0xac0] sm:$0xff] %v2454
  %2679 = vst [vmem:[#allocation2 + $0xac8] sm:$0xff] %v2455
  %2680 = vst [vmem:[#allocation2 + $0xad0] sm:$0xff] %v2456
  %2681 = vst [vmem:[#allocation2 + $0xad8] sm:$0xff] %v2457
  %2682 = vst [vmem:[#allocation2 + $0xae0] sm:$0xff] %v2458
  %2683 = vst [vmem:[#allocation2 + $0xae8] sm:$0xff] %v2459
  %2684 = vst [vmem:[#allocation2 + $0xaf0] sm:$0xff] %v2460
  %2685 = vst [vmem:[#allocation2 + $0xaf8] sm:$0xff] %v2461
  %2686 = vst [vmem:[#allocation2 + $0xb00] sm:$0xff] %v2462
  %2687 = vst [vmem:[#allocation2 + $0xb08] sm:$0xff] %v2463
  %2688 = vst [vmem:[#allocation2 + $0xb10] sm:$0xff] %v2464
  %2689 = vst [vmem:[#allocation2 + $0xb18] sm:$0xff] %v2465
  %2690 = vst [vmem:[#allocation2 + $0xb20] sm:$0xff] %v2466
  %2691 = vst [vmem:[#allocation2 + $0xb28] sm:$0xff] %v2467
  %2692 = vst [vmem:[#allocation2 + $0xb30] sm:$0xff] %v2468
  %2693 = vst [vmem:[#allocation2 + $0xb38] sm:$0xff] %v2469
  %2694 = vst [vmem:[#allocation2 + $0xb40] sm:$0xff] %v2470
  %2695 = vst [vmem:[#allocation2 + $0xb48] sm:$0xff] %v2471
  %2696 = vst [vmem:[#allocation2 + $0xb50] sm:$0xff] %v2472
  %2697 = vst [vmem:[#allocation2 + $0xb58] sm:$0xff] %v2473
  %2698 = vst [vmem:[#allocation2 + $0xb60] sm:$0xff] %v2474
  %2699 = vst [vmem:[#allocation2 + $0xb68] sm:$0xff] %v2475
  %2700 = vst [vmem:[#allocation2 + $0xb70] sm:$0xff] %v2476
  %2701 = vst [vmem:[#allocation2 + $0xb78] sm:$0xff] %v2477
  %2702 = vst [vmem:[#allocation2 + $0xb80] sm:$0xff] %v2478
  %2703 = vst [vmem:[#allocation2 + $0xb88] sm:$0xff] %v2479
  %2704 = vst [vmem:[#allocation2 + $0xb90] sm:$0xff] %v2480
  %2705 = vst [vmem:[#allocation2 + $0xb98] sm:$0xff] %v2481
  %2706 = vst [vmem:[#allocation2 + $0xba0] sm:$0xff] %v2482
  %2707 = vst [vmem:[#allocation2 + $0xba8] sm:$0xff] %v2483
  %2708 = vst [vmem:[#allocation2 + $0xbb0] sm:$0xff] %v2484
  %2709 = vst [vmem:[#allocation2 + $0xbb8] sm:$0xff] %v2485
  %2710 = vst [vmem:[#allocation2 + $0xbc0] sm:$0xff] %v2486
  %2711 = vst [vmem:[#allocation2 + $0xbc8] sm:$0xff] %v2487
  %2712 = vst [vmem:[#allocation2 + $0xbd0] sm:$0xff] %v2488
  %2713 = vst [vmem:[#allocation2 + $0xbd8] sm:$0xff] %v2489
  %2714 = vst [vmem:[#allocation2 + $0xbe0] sm:$0xff] %v2490
  %2715 = vst [vmem:[#allocation2 + $0xbe8] sm:$0xff] %v2491
  %2716 = vst [vmem:[#allocation2 + $0xbf0] sm:$0xff] %v2492
  %2717 = vst [vmem:[#allocation2 + $0xbf8] sm:$0xff] %v2493
  %2718 = vst [vmem:[#allocation2 + $0xc00] sm:$0xff] %v2494
  %2719 = vst [vmem:[#allocation2 + $0xc08] sm:$0xff] %v2495
  %2720 = vst [vmem:[#allocation2 + $0xc10] sm:$0xff] %v2496
  %2721 = vst [vmem:[#allocation2 + $0xc18] sm:$0xff] %v2497
  %2722 = vst [vmem:[#allocation2 + $0xc20] sm:$0xff] %v2498
  %2723 = vst [vmem:[#allocation2 + $0xc28] sm:$0xff] %v2499
  %2724 = vst [vmem:[#allocation2 + $0xc30] sm:$0xff] %v2500
  %2725 = vst [vmem:[#allocation2 + $0xc38] sm:$0xff] %v2501
  %2726 = vst [vmem:[#allocation2 + $0xc40] sm:$0xff] %v2502
  %2727 = vst [vmem:[#allocation2 + $0xc48] sm:$0xff] %v2503
  %2728 = vst [vmem:[#allocation2 + $0xc50] sm:$0xff] %v2504
  %2729 = vst [vmem:[#allocation2 + $0xc58] sm:$0xff] %v2505
  %2730 = vst [vmem:[#allocation2 + $0xc60] sm:$0xff] %v2506
  %2731 = vst [vmem:[#allocation2 + $0xc68] sm:$0xff] %v2507
  %2732 = vst [vmem:[#allocation2 + $0xc70] sm:$0xff] %v2508
  %2733 = vst [vmem:[#allocation2 + $0xc78] sm:$0xff] %v2509
  %2734 = vst [vmem:[#allocation2 + $0xc80] sm:$0xff] %v2510
  %2735 = vst [vmem:[#allocation2 + $0xc88] sm:$0xff] %v2511
  %2736 = vst [vmem:[#allocation2 + $0xc90] sm:$0xff] %v2512
  %2737 = vst [vmem:[#allocation2 + $0xc98] sm:$0xff] %v2513
  %2738 = vst [vmem:[#allocation2 + $0xca0] sm:$0xff] %v2514
  %2739 = vst [vmem:[#allocation2 + $0xca8] sm:$0xff] %v2515
  %2740 = vst [vmem:[#allocation2 + $0xcb0] sm:$0xff] %v2516
  %2741 = vst [vmem:[#allocation2 + $0xcb8] sm:$0xff] %v2517
  %2742 = vst [vmem:[#allocation2 + $0xcc0] sm:$0xff] %v2518
  %2743 = vst [vmem:[#allocation2 + $0xcc8] sm:$0xff] %v2519
  %2744 = vst [vmem:[#allocation2 + $0xcd0] sm:$0xff] %v2520
  %2745 = vst [vmem:[#allocation2 + $0xcd8] sm:$0xff] %v2521
  %2746 = vst [vmem:[#allocation2 + $0xce0] sm:$0xff] %v2522
  %2747 = vst [vmem:[#allocation2 + $0xce8] sm:$0xff] %v2523
  %2748 = vst [vmem:[#allocation2 + $0xcf0] sm:$0xff] %v2524
  %2749 = vst [vmem:[#allocation2 + $0xcf8] sm:$0xff] %v2525
  %2750 = vst [vmem:[#allocation2 + $0xd00] sm:$0xff] %v2526
  %2751 = vst [vmem:[#allocation2 + $0xd08] sm:$0xff] %v2527
  %2752 = vst [vmem:[#allocation2 + $0xd10] sm:$0xff] %v2528
  %2753 = vst [vmem:[#allocation2 + $0xd18] sm:$0xff] %v2529
  %2754 = vst [vmem:[#allocation2 + $0xd20] sm:$0xff] %v2530
  %2755 = vst [vmem:[#allocation2 + $0xd28] sm:$0xff] %v2531
  %2756 = vst [vmem:[#allocation2 + $0xd30] sm:$0xff] %v2532
  %2757 = vst [vmem:[#allocation2 + $0xd38] sm:$0xff] %v2533
  %2758 = vst [vmem:[#allocation2 + $0xd40] sm:$0xff] %v2534
  %2759 = vst [vmem:[#allocation2 + $0xd48] sm:$0xff] %v2535
  %2760 = vst [vmem:[#allocation2 + $0xd50] sm:$0xff] %v2536
  %2761 = vst [vmem:[#allocation2 + $0xd58] sm:$0xff] %v2537
  %2762 = vst [vmem:[#allocation2 + $0xd60] sm:$0xff] %v2538
  %2763 = vst [vmem:[#allocation2 + $0xd68] sm:$0xff] %v2539
  %2764 = vst [vmem:[#allocation2 + $0xd70] sm:$0xff] %v2540
  %2765 = vst [vmem:[#allocation2 + $0xd78] sm:$0xff] %v2541
  %2766 = vst [vmem:[#allocation2 + $0xd80] sm:$0xff] %v2542
  %2767 = vst [vmem:[#allocation2 + $0xd88] sm:$0xff] %v2543
  %2768 = vst [vmem:[#allocation2 + $0xd90] sm:$0xff] %v2544
  %2769 = vst [vmem:[#allocation2 + $0xd98] sm:$0xff] %v2545
  %2770 = vst [vmem:[#allocation2 + $0xda0] sm:$0xff] %v2546
  %2771 = vst [vmem:[#allocation2 + $0xda8] sm:$0xff] %v2547
  %2772 = vst [vmem:[#allocation2 + $0xdb0] sm:$0xff] %v2548
  %2773 = vst [vmem:[#allocation2 + $0xdb8] sm:$0xff] %v2549
  %2774 = vst [vmem:[#allocation2 + $0xdc0] sm:$0xff] %v2550
  %2775 = vst [vmem:[#allocation2 + $0xdc8] sm:$0xff] %v2551
  %2776 = vst [vmem:[#allocation2 + $0xdd0] sm:$0xff] %v2552
  %2777 = vst [vmem:[#allocation2 + $0xdd8] sm:$0xff] %v2553
  %2778 = vst [vmem:[#allocation2 + $0xde0] sm:$0xff] %v2554
  %2779 = vst [vmem:[#allocation2 + $0xde8] sm:$0xff] %v2555
  %2780 = vst [vmem:[#allocation2 + $0xdf0] sm:$0xff] %v2556
  %2781 = vst [vmem:[#allocation2 + $0xdf8] sm:$0xff] %v2557
  %v2782 = vld [vmem:[%s1] sm:$0xff]
  %v2783 = vld [vmem:[%s1 + $0x8] sm:$0xff]
  %v2784 = vld [vmem:[%s1 + $0x10] sm:$0xff]
  %v2785 = vld [vmem:[%s1 + $0x18] sm:$0xff]
  %v2786 = vld [vmem:[%s1 + $0x20] sm:$0xff]
  %v2787 = vld [vmem:[%s1 + $0x28] sm:$0xff]
  %v2788 = vld [vmem:[%s1 + $0x30] sm:$0xff]
  %v2789 = vld [vmem:[%s1 + $0x38] sm:$0xff]
  %v2790 = vld [vmem:[%s1 + $0x40] sm:$0xff]
  %v2791 = vld [vmem:[%s1 + $0x48] sm:$0xff]
  %v2792 = vld [vmem:[%s1 + $0x50] sm:$0xff]
  %v2793 = vld [vmem:[%s1 + $0x58] sm:$0xff]
  %v2794 = vld [vmem:[%s1 + $0x60] sm:$0xff]
  %v2795 = vld [vmem:[%s1 + $0x68] sm:$0xff]
  %v2796 = vld [vmem:[%s1 + $0x70] sm:$0xff]
  %v2797 = vld [vmem:[%s1 + $0x78] sm:$0xff]
  %v2798 = vld [vmem:[%s1 + $0x80] sm:$0xff]
  %v2799 = vld [vmem:[%s1 + $0x88] sm:$0xff]
  %v2800 = vld [vmem:[%s1 + $0x90] sm:$0xff]
  %v2801 = vld [vmem:[%s1 + $0x98] sm:$0xff]
  %v2802 = vld [vmem:[%s1 + $0xa0] sm:$0xff]
  %v2803 = vld [vmem:[%s1 + $0xa8] sm:$0xff]
  %v2804 = vld [vmem:[%s1 + $0xb0] sm:$0xff]
  %v2805 = vld [vmem:[%s1 + $0xb8] sm:$0xff]
  %v2806 = vld [vmem:[%s1 + $0xc0] sm:$0xff]
  %v2807 = vld [vmem:[%s1 + $0xc8] sm:$0xff]
  %v2808 = vld [vmem:[%s1 + $0xd0] sm:$0xff]
  %v2809 = vld [vmem:[%s1 + $0xd8] sm:$0xff]
  %v2810 = vld [vmem:[%s1 + $0xe0] sm:$0xff]
  %v2811 = vld [vmem:[%s1 + $0xe8] sm:$0xff]
  %v2812 = vld [vmem:[%s1 + $0xf0] sm:$0xff]
  %v2813 = vld [vmem:[%s1 + $0xf8] sm:$0xff]
  %v2814 = vld [vmem:[%s1 + $0x100] sm:$0xff]
  %v2815 = vld [vmem:[%s1 + $0x108] sm:$0xff]
  %v2816 = vld [vmem:[%s1 + $0x110] sm:$0xff]
  %v2817 = vld [vmem:[%s1 + $0x118] sm:$0xff]
  %v2818 = vld [vmem:[%s1 + $0x120] sm:$0xff]
  %v2819 = vld [vmem:[%s1 + $0x128] sm:$0xff]
  %v2820 = vld [vmem:[%s1 + $0x130] sm:$0xff]
  %v2821 = vld [vmem:[%s1 + $0x138] sm:$0xff]
  %v2822 = vld [vmem:[%s1 + $0x140] sm:$0xff]
  %v2823 = vld [vmem:[%s1 + $0x148] sm:$0xff]
  %v2824 = vld [vmem:[%s1 + $0x150] sm:$0xff]
  %v2825 = vld [vmem:[%s1 + $0x158] sm:$0xff]
  %v2826 = vld [vmem:[%s1 + $0x160] sm:$0xff]
  %v2827 = vld [vmem:[%s1 + $0x168] sm:$0xff]
  %v2828 = vld [vmem:[%s1 + $0x170] sm:$0xff]
  %v2829 = vld [vmem:[%s1 + $0x178] sm:$0xff]
  %v2830 = vld [vmem:[%s1 + $0x180] sm:$0xff]
  %v2831 = vld [vmem:[%s1 + $0x188] sm:$0xff]
  %v2832 = vld [vmem:[%s1 + $0x190] sm:$0xff]
  %v2833 = vld [vmem:[%s1 + $0x198] sm:$0xff]
  %v2834 = vld [vmem:[%s1 + $0x1a0] sm:$0xff]
  %v2835 = vld [vmem:[%s1 + $0x1a8] sm:$0xff]
  %v2836 = vld [vmem:[%s1 + $0x1b0] sm:$0xff]
  %v2837 = vld [vmem:[%s1 + $0x1b8] sm:$0xff]
  %v2838 = vld [vmem:[%s1 + $0x1c0] sm:$0xff]
  %v2839 = vld [vmem:[%s1 + $0x1c8] sm:$0xff]
  %v2840 = vld [vmem:[%s1 + $0x1d0] sm:$0xff]
  %v2841 = vld [vmem:[%s1 + $0x1d8] sm:$0xff]
  %v2842 = vld [vmem:[%s1 + $0x1e0] sm:$0xff]
  %v2843 = vld [vmem:[%s1 + $0x1e8] sm:$0xff]
  %v2844 = vld [vmem:[%s1 + $0x1f0] sm:$0xff]
  %v2845 = vld [vmem:[%s1 + $0x1f8] sm:$0xff]
  %v2846 = vld [vmem:[%s1 + $0x200] sm:$0xff]
  %v2847 = vld [vmem:[%s1 + $0x208] sm:$0xff]
  %v2848 = vld [vmem:[%s1 + $0x210] sm:$0xff]
  %v2849 = vld [vmem:[%s1 + $0x218] sm:$0xff]
  %v2850 = vld [vmem:[%s1 + $0x220] sm:$0xff]
  %v2851 = vld [vmem:[%s1 + $0x228] sm:$0xff]
  %v2852 = vld [vmem:[%s1 + $0x230] sm:$0xff]
  %v2853 = vld [vmem:[%s1 + $0x238] sm:$0xff]
  %v2854 = vld [vmem:[%s1 + $0x240] sm:$0xff]
  %v2855 = vld [vmem:[%s1 + $0x248] sm:$0xff]
  %v2856 = vld [vmem:[%s1 + $0x250] sm:$0xff]
  %v2857 = vld [vmem:[%s1 + $0x258] sm:$0xff]
  %v2858 = vld [vmem:[%s1 + $0x260] sm:$0xff]
  %v2859 = vld [vmem:[%s1 + $0x268] sm:$0xff]
  %v2860 = vld [vmem:[%s1 + $0x270] sm:$0xff]
  %v2861 = vld [vmem:[%s1 + $0x278] sm:$0xff]
  %v2862 = vld [vmem:[%s1 + $0x280] sm:$0xff]
  %v2863 = vld [vmem:[%s1 + $0x288] sm:$0xff]
  %v2864 = vld [vmem:[%s1 + $0x290] sm:$0xff]
  %v2865 = vld [vmem:[%s1 + $0x298] sm:$0xff]
  %v2866 = vld [vmem:[%s1 + $0x2a0] sm:$0xff]
  %v2867 = vld [vmem:[%s1 + $0x2a8] sm:$0xff]
  %v2868 = vld [vmem:[%s1 + $0x2b0] sm:$0xff]
  %v2869 = vld [vmem:[%s1 + $0x2b8] sm:$0xff]
  %v2870 = vld [vmem:[%s1 + $0x2c0] sm:$0xff]
  %v2871 = vld [vmem:[%s1 + $0x2c8] sm:$0xff]
  %v2872 = vld [vmem:[%s1 + $0x2d0] sm:$0xff]
  %v2873 = vld [vmem:[%s1 + $0x2d8] sm:$0xff]
  %v2874 = vld [vmem:[%s1 + $0x2e0] sm:$0xff]
  %v2875 = vld [vmem:[%s1 + $0x2e8] sm:$0xff]
  %v2876 = vld [vmem:[%s1 + $0x2f0] sm:$0xff]
  %v2877 = vld [vmem:[%s1 + $0x2f8] sm:$0xff]
  %v2878 = vld [vmem:[%s1 + $0x300] sm:$0xff]
  %v2879 = vld [vmem:[%s1 + $0x308] sm:$0xff]
  %v2880 = vld [vmem:[%s1 + $0x310] sm:$0xff]
  %v2881 = vld [vmem:[%s1 + $0x318] sm:$0xff]
  %v2882 = vld [vmem:[%s1 + $0x320] sm:$0xff]
  %v2883 = vld [vmem:[%s1 + $0x328] sm:$0xff]
  %v2884 = vld [vmem:[%s1 + $0x330] sm:$0xff]
  %v2885 = vld [vmem:[%s1 + $0x338] sm:$0xff]
  %v2886 = vld [vmem:[%s1 + $0x340] sm:$0xff]
  %v2887 = vld [vmem:[%s1 + $0x348] sm:$0xff]
  %v2888 = vld [vmem:[%s1 + $0x350] sm:$0xff]
  %v2889 = vld [vmem:[%s1 + $0x358] sm:$0xff]
  %v2890 = vld [vmem:[%s1 + $0x360] sm:$0xff]
  %v2891 = vld [vmem:[%s1 + $0x368] sm:$0xff]
  %v2892 = vld [vmem:[%s1 + $0x370] sm:$0xff]
  %v2893 = vld [vmem:[%s1 + $0x378] sm:$0xff]
  %v2894 = vld [vmem:[%s1 + $0x380] sm:$0xff]
  %v2895 = vld [vmem:[%s1 + $0x388] sm:$0xff]
  %v2896 = vld [vmem:[%s1 + $0x390] sm:$0xff]
  %v2897 = vld [vmem:[%s1 + $0x398] sm:$0xff]
  %v2898 = vld [vmem:[%s1 + $0x3a0] sm:$0xff]
  %v2899 = vld [vmem:[%s1 + $0x3a8] sm:$0xff]
  %v2900 = vld [vmem:[%s1 + $0x3b0] sm:$0xff]
  %v2901 = vld [vmem:[%s1 + $0x3b8] sm:$0xff]
  %v2902 = vld [vmem:[%s1 + $0x3c0] sm:$0xff]
  %v2903 = vld [vmem:[%s1 + $0x3c8] sm:$0xff]
  %v2904 = vld [vmem:[%s1 + $0x3d0] sm:$0xff]
  %v2905 = vld [vmem:[%s1 + $0x3d8] sm:$0xff]
  %v2906 = vld [vmem:[%s1 + $0x3e0] sm:$0xff]
  %v2907 = vld [vmem:[%s1 + $0x3e8] sm:$0xff]
  %v2908 = vld [vmem:[%s1 + $0x3f0] sm:$0xff]
  %v2909 = vld [vmem:[%s1 + $0x3f8] sm:$0xff]
  %3038 = vrot.lane.b32.xlu0 %v2782, 97
  %v3039 = vpop.permute.xlu0 %3038
  %3040 = vrot.lane.b32.xlu0 %v2783, 97
  %v3041 = vpop.permute.xlu0 %3040
  %3042 = vrot.lane.b32.xlu0 %v2784, 97
  %v3043 = vpop.permute.xlu0 %3042
  %3044 = vrot.lane.b32.xlu0 %v2785, 97
  %v3045 = vpop.permute.xlu0 %3044
  %3046 = vrot.lane.b32.xlu0 %v2786, 97
  %v3047 = vpop.permute.xlu0 %3046
  %3048 = vrot.lane.b32.xlu0 %v2787, 97
  %v3049 = vpop.permute.xlu0 %3048
  %3050 = vrot.lane.b32.xlu0 %v2788, 97
  %v3051 = vpop.permute.xlu0 %3050
  %3052 = vrot.lane.b32.xlu0 %v2789, 97
  %v3053 = vpop.permute.xlu0 %3052
  %3054 = vrot.lane.b32.xlu0 %v2790, 97
  %v3055 = vpop.permute.xlu0 %3054
  %3056 = vrot.lane.b32.xlu0 %v2791, 97
  %v3057 = vpop.permute.xlu0 %3056
  %3058 = vrot.lane.b32.xlu0 %v2792, 97
  %v3059 = vpop.permute.xlu0 %3058
  %3060 = vrot.lane.b32.xlu0 %v2793, 97
  %v3061 = vpop.permute.xlu0 %3060
  %3062 = vrot.lane.b32.xlu0 %v2794, 97
  %v3063 = vpop.permute.xlu0 %3062
  %3064 = vrot.lane.b32.xlu0 %v2795, 97
  %v3065 = vpop.permute.xlu0 %3064
  %3066 = vrot.lane.b32.xlu0 %v2796, 97
  %v3067 = vpop.permute.xlu0 %3066
  %3068 = vrot.lane.b32.xlu0 %v2797, 97
  %v3069 = vpop.permute.xlu0 %3068
  %3070 = vrot.lane.b32.xlu0 %v2798, 97
  %v3071 = vpop.permute.xlu0 %3070
  %3072 = vrot.lane.b32.xlu0 %v2799, 97
  %v3073 = vpop.permute.xlu0 %3072
  %3074 = vrot.lane.b32.xlu0 %v2800, 97
  %v3075 = vpop.permute.xlu0 %3074
  %3076 = vrot.lane.b32.xlu0 %v2801, 97
  %v3077 = vpop.permute.xlu0 %3076
  %3078 = vrot.lane.b32.xlu0 %v2802, 97
  %v3079 = vpop.permute.xlu0 %3078
  %3080 = vrot.lane.b32.xlu0 %v2803, 97
  %v3081 = vpop.permute.xlu0 %3080
  %3082 = vrot.lane.b32.xlu0 %v2804, 97
  %v3083 = vpop.permute.xlu0 %3082
  %3084 = vrot.lane.b32.xlu0 %v2805, 97
  %v3085 = vpop.permute.xlu0 %3084
  %3086 = vrot.lane.b32.xlu0 %v2806, 97
  %v3087 = vpop.permute.xlu0 %3086
  %3088 = vrot.lane.b32.xlu0 %v2807, 97
  %v3089 = vpop.permute.xlu0 %3088
  %3090 = vrot.lane.b32.xlu0 %v2808, 97
  %v3091 = vpop.permute.xlu0 %3090
  %3092 = vrot.lane.b32.xlu0 %v2809, 97
  %v3093 = vpop.permute.xlu0 %3092
  %3094 = vrot.lane.b32.xlu0 %v2810, 97
  %v3095 = vpop.permute.xlu0 %3094
  %3096 = vrot.lane.b32.xlu0 %v2811, 97
  %v3097 = vpop.permute.xlu0 %3096
  %3098 = vrot.lane.b32.xlu0 %v2812, 97
  %v3099 = vpop.permute.xlu0 %3098
  %3100 = vrot.lane.b32.xlu0 %v2813, 97
  %v3101 = vpop.permute.xlu0 %3100
  %3102 = vrot.lane.b32.xlu0 %v2814, 97
  %v3103 = vpop.permute.xlu0 %3102
  %3104 = vrot.lane.b32.xlu0 %v2815, 97
  %v3105 = vpop.permute.xlu0 %3104
  %3106 = vrot.lane.b32.xlu0 %v2816, 97
  %v3107 = vpop.permute.xlu0 %3106
  %3108 = vrot.lane.b32.xlu0 %v2817, 97
  %v3109 = vpop.permute.xlu0 %3108
  %3110 = vrot.lane.b32.xlu0 %v2818, 97
  %v3111 = vpop.permute.xlu0 %3110
  %3112 = vrot.lane.b32.xlu0 %v2819, 97
  %v3113 = vpop.permute.xlu0 %3112
  %3114 = vrot.lane.b32.xlu0 %v2820, 97
  %v3115 = vpop.permute.xlu0 %3114
  %3116 = vrot.lane.b32.xlu0 %v2821, 97
  %v3117 = vpop.permute.xlu0 %3116
  %3118 = vrot.lane.b32.xlu0 %v2822, 97
  %v3119 = vpop.permute.xlu0 %3118
  %3120 = vrot.lane.b32.xlu0 %v2823, 97
  %v3121 = vpop.permute.xlu0 %3120
  %3122 = vrot.lane.b32.xlu0 %v2824, 97
  %v3123 = vpop.permute.xlu0 %3122
  %3124 = vrot.lane.b32.xlu0 %v2825, 97
  %v3125 = vpop.permute.xlu0 %3124
  %3126 = vrot.lane.b32.xlu0 %v2826, 97
  %v3127 = vpop.permute.xlu0 %3126
  %3128 = vrot.lane.b32.xlu0 %v2827, 97
  %v3129 = vpop.permute.xlu0 %3128
  %3130 = vrot.lane.b32.xlu0 %v2828, 97
  %v3131 = vpop.permute.xlu0 %3130
  %3132 = vrot.lane.b32.xlu0 %v2829, 97
  %v3133 = vpop.permute.xlu0 %3132
  %3134 = vrot.lane.b32.xlu0 %v2830, 97
  %v3135 = vpop.permute.xlu0 %3134
  %3136 = vrot.lane.b32.xlu0 %v2831, 97
  %v3137 = vpop.permute.xlu0 %3136
  %3138 = vrot.lane.b32.xlu0 %v2832, 97
  %v3139 = vpop.permute.xlu0 %3138
  %3140 = vrot.lane.b32.xlu0 %v2833, 97
  %v3141 = vpop.permute.xlu0 %3140
  %3142 = vrot.lane.b32.xlu0 %v2834, 97
  %v3143 = vpop.permute.xlu0 %3142
  %3144 = vrot.lane.b32.xlu0 %v2835, 97
  %v3145 = vpop.permute.xlu0 %3144
  %3146 = vrot.lane.b32.xlu0 %v2836, 97
  %v3147 = vpop.permute.xlu0 %3146
  %3148 = vrot.lane.b32.xlu0 %v2837, 97
  %v3149 = vpop.permute.xlu0 %3148
  %3150 = vrot.lane.b32.xlu0 %v2838, 97
  %v3151 = vpop.permute.xlu0 %3150
  %3152 = vrot.lane.b32.xlu0 %v2839, 97
  %v3153 = vpop.permute.xlu0 %3152
  %3154 = vrot.lane.b32.xlu0 %v2840, 97
  %v3155 = vpop.permute.xlu0 %3154
  %3156 = vrot.lane.b32.xlu0 %v2841, 97
  %v3157 = vpop.permute.xlu0 %3156
  %3158 = vrot.lane.b32.xlu0 %v2842, 97
  %v3159 = vpop.permute.xlu0 %3158
  %3160 = vrot.lane.b32.xlu0 %v2843, 97
  %v3161 = vpop.permute.xlu0 %3160
  %3162 = vrot.lane.b32.xlu0 %v2844, 97
  %v3163 = vpop.permute.xlu0 %3162
  %3164 = vrot.lane.b32.xlu0 %v2845, 97
  %v3165 = vpop.permute.xlu0 %3164
  %3166 = vrot.lane.b32.xlu0 %v2846, 97
  %v3167 = vpop.permute.xlu0 %3166
  %3168 = vrot.lane.b32.xlu0 %v2847, 97
  %v3169 = vpop.permute.xlu0 %3168
  %3170 = vrot.lane.b32.xlu0 %v2848, 97
  %v3171 = vpop.permute.xlu0 %3170
  %3172 = vrot.lane.b32.xlu0 %v2849, 97
  %v3173 = vpop.permute.xlu0 %3172
  %3174 = vrot.lane.b32.xlu0 %v2850, 97
  %v3175 = vpop.permute.xlu0 %3174
  %3176 = vrot.lane.b32.xlu0 %v2851, 97
  %v3177 = vpop.permute.xlu0 %3176
  %3178 = vrot.lane.b32.xlu0 %v2852, 97
  %v3179 = vpop.permute.xlu0 %3178
  %3180 = vrot.lane.b32.xlu0 %v2853, 97
  %v3181 = vpop.permute.xlu0 %3180
  %3182 = vrot.lane.b32.xlu0 %v2854, 97
  %v3183 = vpop.permute.xlu0 %3182
  %3184 = vrot.lane.b32.xlu0 %v2855, 97
  %v3185 = vpop.permute.xlu0 %3184
  %3186 = vrot.lane.b32.xlu0 %v2856, 97
  %v3187 = vpop.permute.xlu0 %3186
  %3188 = vrot.lane.b32.xlu0 %v2857, 97
  %v3189 = vpop.permute.xlu0 %3188
  %3190 = vrot.lane.b32.xlu0 %v2858, 97
  %v3191 = vpop.permute.xlu0 %3190
  %3192 = vrot.lane.b32.xlu0 %v2859, 97
  %v3193 = vpop.permute.xlu0 %3192
  %3194 = vrot.lane.b32.xlu0 %v2860, 97
  %v3195 = vpop.permute.xlu0 %3194
  %3196 = vrot.lane.b32.xlu0 %v2861, 97
  %v3197 = vpop.permute.xlu0 %3196
  %3198 = vrot.lane.b32.xlu0 %v2862, 97
  %v3199 = vpop.permute.xlu0 %3198
  %3200 = vrot.lane.b32.xlu0 %v2863, 97
  %v3201 = vpop.permute.xlu0 %3200
  %3202 = vrot.lane.b32.xlu0 %v2864, 97
  %v3203 = vpop.permute.xlu0 %3202
  %3204 = vrot.lane.b32.xlu0 %v2865, 97
  %v3205 = vpop.permute.xlu0 %3204
  %3206 = vrot.lane.b32.xlu0 %v2866, 97
  %v3207 = vpop.permute.xlu0 %3206
  %3208 = vrot.lane.b32.xlu0 %v2867, 97
  %v3209 = vpop.permute.xlu0 %3208
  %3210 = vrot.lane.b32.xlu0 %v2868, 97
  %v3211 = vpop.permute.xlu0 %3210
  %3212 = vrot.lane.b32.xlu0 %v2869, 97
  %v3213 = vpop.permute.xlu0 %3212
  %3214 = vrot.lane.b32.xlu0 %v2870, 97
  %v3215 = vpop.permute.xlu0 %3214
  %3216 = vrot.lane.b32.xlu0 %v2871, 97
  %v3217 = vpop.permute.xlu0 %3216
  %3218 = vrot.lane.b32.xlu0 %v2872, 97
  %v3219 = vpop.permute.xlu0 %3218
  %3220 = vrot.lane.b32.xlu0 %v2873, 97
  %v3221 = vpop.permute.xlu0 %3220
  %3222 = vrot.lane.b32.xlu0 %v2874, 97
  %v3223 = vpop.permute.xlu0 %3222
  %3224 = vrot.lane.b32.xlu0 %v2875, 97
  %v3225 = vpop.permute.xlu0 %3224
  %3226 = vrot.lane.b32.xlu0 %v2876, 97
  %v3227 = vpop.permute.xlu0 %3226
  %3228 = vrot.lane.b32.xlu0 %v2877, 97
  %v3229 = vpop.permute.xlu0 %3228
  %3230 = vrot.lane.b32.xlu0 %v2878, 97
  %v3231 = vpop.permute.xlu0 %3230
  %3232 = vrot.lane.b32.xlu0 %v2879, 97
  %v3233 = vpop.permute.xlu0 %3232
  %3234 = vrot.lane.b32.xlu0 %v2880, 97
  %v3235 = vpop.permute.xlu0 %3234
  %3236 = vrot.lane.b32.xlu0 %v2881, 97
  %v3237 = vpop.permute.xlu0 %3236
  %3238 = vrot.lane.b32.xlu0 %v2882, 97
  %v3239 = vpop.permute.xlu0 %3238
  %3240 = vrot.lane.b32.xlu0 %v2883, 97
  %v3241 = vpop.permute.xlu0 %3240
  %3242 = vrot.lane.b32.xlu0 %v2884, 97
  %v3243 = vpop.permute.xlu0 %3242
  %3244 = vrot.lane.b32.xlu0 %v2885, 97
  %v3245 = vpop.permute.xlu0 %3244
  %3246 = vrot.lane.b32.xlu0 %v2886, 97
  %v3247 = vpop.permute.xlu0 %3246
  %3248 = vrot.lane.b32.xlu0 %v2887, 97
  %v3249 = vpop.permute.xlu0 %3248
  %3250 = vrot.lane.b32.xlu0 %v2888, 97
  %v3251 = vpop.permute.xlu0 %3250
  %3252 = vrot.lane.b32.xlu0 %v2889, 97
  %v3253 = vpop.permute.xlu0 %3252
  %3254 = vrot.lane.b32.xlu0 %v2890, 97
  %v3255 = vpop.permute.xlu0 %3254
  %3256 = vrot.lane.b32.xlu0 %v2891, 97
  %v3257 = vpop.permute.xlu0 %3256
  %3258 = vrot.lane.b32.xlu0 %v2892, 97
  %v3259 = vpop.permute.xlu0 %3258
  %3260 = vrot.lane.b32.xlu0 %v2893, 97
  %v3261 = vpop.permute.xlu0 %3260
  %3262 = vrot.lane.b32.xlu0 %v2894, 97
  %v3263 = vpop.permute.xlu0 %3262
  %3264 = vrot.lane.b32.xlu0 %v2895, 97
  %v3265 = vpop.permute.xlu0 %3264
  %3266 = vrot.lane.b32.xlu0 %v2896, 97
  %v3267 = vpop.permute.xlu0 %3266
  %3268 = vrot.lane.b32.xlu0 %v2897, 97
  %v3269 = vpop.permute.xlu0 %3268
  %3270 = vrot.lane.b32.xlu0 %v2898, 97
  %v3271 = vpop.permute.xlu0 %3270
  %3272 = vrot.lane.b32.xlu0 %v2899, 97
  %v3273 = vpop.permute.xlu0 %3272
  %3274 = vrot.lane.b32.xlu0 %v2900, 97
  %v3275 = vpop.permute.xlu0 %3274
  %3276 = vrot.lane.b32.xlu0 %v2901, 97
  %v3277 = vpop.permute.xlu0 %3276
  %3278 = vrot.lane.b32.xlu0 %v2902, 97
  %v3279 = vpop.permute.xlu0 %3278
  %3280 = vrot.lane.b32.xlu0 %v2903, 97
  %v3281 = vpop.permute.xlu0 %3280
  %3282 = vrot.lane.b32.xlu0 %v2904, 97
  %v3283 = vpop.permute.xlu0 %3282
  %3284 = vrot.lane.b32.xlu0 %v2905, 97
  %v3285 = vpop.permute.xlu0 %3284
  %3286 = vrot.lane.b32.xlu0 %v2906, 97
  %v3287 = vpop.permute.xlu0 %3286
  %3288 = vrot.lane.b32.xlu0 %v2907, 97
  %v3289 = vpop.permute.xlu0 %3288
  %3290 = vrot.lane.b32.xlu0 %v2908, 97
  %v3291 = vpop.permute.xlu0 %3290
  %3292 = vrot.lane.b32.xlu0 %v2909, 97
  %v3293 = vpop.permute.xlu0 %3292
  %vm3294 = vcmask 793600
  %v3295 = vsel %vm3294, %v3039, %v3041
  %v3296 = vsel %vm3294, %v3041, %v3043
  %v3297 = vsel %vm3294, %v3043, %v3045
  %v3298 = vsel %vm3294, %v3045, %v3047
  %v3299 = vsel %vm3294, %v3047, %v3049
  %v3300 = vsel %vm3294, %v3049, %v3051
  %v3301 = vsel %vm3294, %v3051, %v3053
  %v3302 = vsel %vm3294, %v3055, %v3057
  %v3303 = vsel %vm3294, %v3057, %v3059
  %v3304 = vsel %vm3294, %v3059, %v3061
  %v3305 = vsel %vm3294, %v3061, %v3063
  %v3306 = vsel %vm3294, %v3063, %v3065
  %v3307 = vsel %vm3294, %v3065, %v3067
  %v3308 = vsel %vm3294, %v3067, %v3069
  %v3309 = vsel %vm3294, %v3071, %v3073
  %v3310 = vsel %vm3294, %v3073, %v3075
  %v3311 = vsel %vm3294, %v3075, %v3077
  %v3312 = vsel %vm3294, %v3077, %v3079
  %v3313 = vsel %vm3294, %v3079, %v3081
  %v3314 = vsel %vm3294, %v3081, %v3083
  %v3315 = vsel %vm3294, %v3083, %v3085
  %v3316 = vsel %vm3294, %v3087, %v3089
  %v3317 = vsel %vm3294, %v3089, %v3091
  %v3318 = vsel %vm3294, %v3091, %v3093
  %v3319 = vsel %vm3294, %v3093, %v3095
  %v3320 = vsel %vm3294, %v3095, %v3097
  %v3321 = vsel %vm3294, %v3097, %v3099
  %v3322 = vsel %vm3294, %v3099, %v3101
  %v3323 = vsel %vm3294, %v3103, %v3105
  %v3324 = vsel %vm3294, %v3105, %v3107
  %v3325 = vsel %vm3294, %v3107, %v3109
  %v3326 = vsel %vm3294, %v3109, %v3111
  %v3327 = vsel %vm3294, %v3111, %v3113
  %v3328 = vsel %vm3294, %v3113, %v3115
  %v3329 = vsel %vm3294, %v3115, %v3117
  %v3330 = vsel %vm3294, %v3119, %v3121
  %v3331 = vsel %vm3294, %v3121, %v3123
  %v3332 = vsel %vm3294, %v3123, %v3125
  %v3333 = vsel %vm3294, %v3125, %v3127
  %v3334 = vsel %vm3294, %v3127, %v3129
  %v3335 = vsel %vm3294, %v3129, %v3131
  %v3336 = vsel %vm3294, %v3131, %v3133
  %v3337 = vsel %vm3294, %v3135, %v3137
  %v3338 = vsel %vm3294, %v3137, %v3139
  %v3339 = vsel %vm3294, %v3139, %v3141
  %v3340 = vsel %vm3294, %v3141, %v3143
  %v3341 = vsel %vm3294, %v3143, %v3145
  %v3342 = vsel %vm3294, %v3145, %v3147
  %v3343 = vsel %vm3294, %v3147, %v3149
  %v3344 = vsel %vm3294, %v3151, %v3153
  %v3345 = vsel %vm3294, %v3153, %v3155
  %v3346 = vsel %vm3294, %v3155, %v3157
  %v3347 = vsel %vm3294, %v3157, %v3159
  %v3348 = vsel %vm3294, %v3159, %v3161
  %v3349 = vsel %vm3294, %v3161, %v3163
  %v3350 = vsel %vm3294, %v3163, %v3165
  %v3351 = vsel %vm3294, %v3167, %v3169
  %v3352 = vsel %vm3294, %v3169, %v3171
  %v3353 = vsel %vm3294, %v3171, %v3173
  %v3354 = vsel %vm3294, %v3173, %v3175
  %v3355 = vsel %vm3294, %v3175, %v3177
  %v3356 = vsel %vm3294, %v3177, %v3179
  %v3357 = vsel %vm3294, %v3179, %v3181
  %v3358 = vsel %vm3294, %v3183, %v3185
  %v3359 = vsel %vm3294, %v3185, %v3187
  %v3360 = vsel %vm3294, %v3187, %v3189
  %v3361 = vsel %vm3294, %v3189, %v3191
  %v3362 = vsel %vm3294, %v3191, %v3193
  %v3363 = vsel %vm3294, %v3193, %v3195
  %v3364 = vsel %vm3294, %v3195, %v3197
  %v3365 = vsel %vm3294, %v3199, %v3201
  %v3366 = vsel %vm3294, %v3201, %v3203
  %v3367 = vsel %vm3294, %v3203, %v3205
  %v3368 = vsel %vm3294, %v3205, %v3207
  %v3369 = vsel %vm3294, %v3207, %v3209
  %v3370 = vsel %vm3294, %v3209, %v3211
  %v3371 = vsel %vm3294, %v3211, %v3213
  %v3372 = vsel %vm3294, %v3215, %v3217
  %v3373 = vsel %vm3294, %v3217, %v3219
  %v3374 = vsel %vm3294, %v3219, %v3221
  %v3375 = vsel %vm3294, %v3221, %v3223
  %v3376 = vsel %vm3294, %v3223, %v3225
  %v3377 = vsel %vm3294, %v3225, %v3227
  %v3378 = vsel %vm3294, %v3227, %v3229
  %v3379 = vsel %vm3294, %v3231, %v3233
  %v3380 = vsel %vm3294, %v3233, %v3235
  %v3381 = vsel %vm3294, %v3235, %v3237
  %v3382 = vsel %vm3294, %v3237, %v3239
  %v3383 = vsel %vm3294, %v3239, %v3241
  %v3384 = vsel %vm3294, %v3241, %v3243
  %v3385 = vsel %vm3294, %v3243, %v3245
  %v3386 = vsel %vm3294, %v3247, %v3249
  %v3387 = vsel %vm3294, %v3249, %v3251
  %v3388 = vsel %vm3294, %v3251, %v3253
  %v3389 = vsel %vm3294, %v3253, %v3255
  %v3390 = vsel %vm3294, %v3255, %v3257
  %v3391 = vsel %vm3294, %v3257, %v3259
  %v3392 = vsel %vm3294, %v3259, %v3261
  %v3393 = vsel %vm3294, %v3263, %v3265
  %v3394 = vsel %vm3294, %v3265, %v3267
  %v3395 = vsel %vm3294, %v3267, %v3269
  %v3396 = vsel %vm3294, %v3269, %v3271
  %v3397 = vsel %vm3294, %v3271, %v3273
  %v3398 = vsel %vm3294, %v3273, %v3275
  %v3399 = vsel %vm3294, %v3275, %v3277
  %v3400 = vsel %vm3294, %v3279, %v3281
  %v3401 = vsel %vm3294, %v3281, %v3283
  %v3402 = vsel %vm3294, %v3283, %v3285
  %v3403 = vsel %vm3294, %v3285, %v3287
  %v3404 = vsel %vm3294, %v3287, %v3289
  %v3405 = vsel %vm3294, %v3289, %v3291
  %v3406 = vsel %vm3294, %v3291, %v3293
  %3519 = vst [vmem:[#allocation2 + $0xe00] sm:$0xff] %v3295
  %3520 = vst [vmem:[#allocation2 + $0xe08] sm:$0xff] %v3296
  %3521 = vst [vmem:[#allocation2 + $0xe10] sm:$0xff] %v3297
  %3522 = vst [vmem:[#allocation2 + $0xe18] sm:$0xff] %v3298
  %3523 = vst [vmem:[#allocation2 + $0xe20] sm:$0xff] %v3299
  %3524 = vst [vmem:[#allocation2 + $0xe28] sm:$0xff] %v3300
  %3525 = vst [vmem:[#allocation2 + $0xe30] sm:$0xff] %v3301
  %3526 = vst [vmem:[#allocation2 + $0xe38] sm:$0xff] %v3302
  %3527 = vst [vmem:[#allocation2 + $0xe40] sm:$0xff] %v3303
  %3528 = vst [vmem:[#allocation2 + $0xe48] sm:$0xff] %v3304
  %3529 = vst [vmem:[#allocation2 + $0xe50] sm:$0xff] %v3305
  %3530 = vst [vmem:[#allocation2 + $0xe58] sm:$0xff] %v3306
  %3531 = vst [vmem:[#allocation2 + $0xe60] sm:$0xff] %v3307
  %3532 = vst [vmem:[#allocation2 + $0xe68] sm:$0xff] %v3308
  %3533 = vst [vmem:[#allocation2 + $0xe70] sm:$0xff] %v3309
  %3534 = vst [vmem:[#allocation2 + $0xe78] sm:$0xff] %v3310
  %3535 = vst [vmem:[#allocation2 + $0xe80] sm:$0xff] %v3311
  %3536 = vst [vmem:[#allocation2 + $0xe88] sm:$0xff] %v3312
  %3537 = vst [vmem:[#allocation2 + $0xe90] sm:$0xff] %v3313
  %3538 = vst [vmem:[#allocation2 + $0xe98] sm:$0xff] %v3314
  %3539 = vst [vmem:[#allocation2 + $0xea0] sm:$0xff] %v3315
  %3540 = vst [vmem:[#allocation2 + $0xea8] sm:$0xff] %v3316
  %3541 = vst [vmem:[#allocation2 + $0xeb0] sm:$0xff] %v3317
  %3542 = vst [vmem:[#allocation2 + $0xeb8] sm:$0xff] %v3318
  %3543 = vst [vmem:[#allocation2 + $0xec0] sm:$0xff] %v3319
  %3544 = vst [vmem:[#allocation2 + $0xec8] sm:$0xff] %v3320
  %3545 = vst [vmem:[#allocation2 + $0xed0] sm:$0xff] %v3321
  %3546 = vst [vmem:[#allocation2 + $0xed8] sm:$0xff] %v3322
  %3547 = vst [vmem:[#allocation2 + $0xee0] sm:$0xff] %v3323
  %3548 = vst [vmem:[#allocation2 + $0xee8] sm:$0xff] %v3324
  %3549 = vst [vmem:[#allocation2 + $0xef0] sm:$0xff] %v3325
  %3550 = vst [vmem:[#allocation2 + $0xef8] sm:$0xff] %v3326
  %3551 = vst [vmem:[#allocation2 + $0xf00] sm:$0xff] %v3327
  %3552 = vst [vmem:[#allocation2 + $0xf08] sm:$0xff] %v3328
  %3553 = vst [vmem:[#allocation2 + $0xf10] sm:$0xff] %v3329
  %3554 = vst [vmem:[#allocation2 + $0xf18] sm:$0xff] %v3330
  %3555 = vst [vmem:[#allocation2 + $0xf20] sm:$0xff] %v3331
  %3556 = vst [vmem:[#allocation2 + $0xf28] sm:$0xff] %v3332
  %3557 = vst [vmem:[#allocation2 + $0xf30] sm:$0xff] %v3333
  %3558 = vst [vmem:[#allocation2 + $0xf38] sm:$0xff] %v3334
  %3559 = vst [vmem:[#allocation2 + $0xf40] sm:$0xff] %v3335
  %3560 = vst [vmem:[#allocation2 + $0xf48] sm:$0xff] %v3336
  %3561 = vst [vmem:[#allocation2 + $0xf50] sm:$0xff] %v3337
  %3562 = vst [vmem:[#allocation2 + $0xf58] sm:$0xff] %v3338
  %3563 = vst [vmem:[#allocation2 + $0xf60] sm:$0xff] %v3339
  %3564 = vst [vmem:[#allocation2 + $0xf68] sm:$0xff] %v3340
  %3565 = vst [vmem:[#allocation2 + $0xf70] sm:$0xff] %v3341
  %3566 = vst [vmem:[#allocation2 + $0xf78] sm:$0xff] %v3342
  %3567 = vst [vmem:[#allocation2 + $0xf80] sm:$0xff] %v3343
  %3568 = vst [vmem:[#allocation2 + $0xf88] sm:$0xff] %v3344
  %3569 = vst [vmem:[#allocation2 + $0xf90] sm:$0xff] %v3345
  %3570 = vst [vmem:[#allocation2 + $0xf98] sm:$0xff] %v3346
  %3571 = vst [vmem:[#allocation2 + $0xfa0] sm:$0xff] %v3347
  %3572 = vst [vmem:[#allocation2 + $0xfa8] sm:$0xff] %v3348
  %3573 = vst [vmem:[#allocation2 + $0xfb0] sm:$0xff] %v3349
  %3574 = vst [vmem:[#allocation2 + $0xfb8] sm:$0xff] %v3350
  %3575 = vst [vmem:[#allocation2 + $0xfc0] sm:$0xff] %v3351
  %3576 = vst [vmem:[#allocation2 + $0xfc8] sm:$0xff] %v3352
  %3577 = vst [vmem:[#allocation2 + $0xfd0] sm:$0xff] %v3353
  %3578 = vst [vmem:[#allocation2 + $0xfd8] sm:$0xff] %v3354
  %3579 = vst [vmem:[#allocation2 + $0xfe0] sm:$0xff] %v3355
  %3580 = vst [vmem:[#allocation2 + $0xfe8] sm:$0xff] %v3356
  %3581 = vst [vmem:[#allocation2 + $0xff0] sm:$0xff] %v3357
  %3582 = vst [vmem:[#allocation2 + $0xff8] sm:$0xff] %v3358
  %3583 = vst [vmem:[#allocation2 + $0x1000] sm:$0xff] %v3359
  %3584 = vst [vmem:[#allocation2 + $0x1008] sm:$0xff] %v3360
  %3585 = vst [vmem:[#allocation2 + $0x1010] sm:$0xff] %v3361
  %3586 = vst [vmem:[#allocation2 + $0x1018] sm:$0xff] %v3362
  %3587 = vst [vmem:[#allocation2 + $0x1020] sm:$0xff] %v3363
  %3588 = vst [vmem:[#allocation2 + $0x1028] sm:$0xff] %v3364
  %3589 = vst [vmem:[#allocation2 + $0x1030] sm:$0xff] %v3365
  %3590 = vst [vmem:[#allocation2 + $0x1038] sm:$0xff] %v3366
  %3591 = vst [vmem:[#allocation2 + $0x1040] sm:$0xff] %v3367
  %3592 = vst [vmem:[#allocation2 + $0x1048] sm:$0xff] %v3368
  %3593 = vst [vmem:[#allocation2 + $0x1050] sm:$0xff] %v3369
  %3594 = vst [vmem:[#allocation2 + $0x1058] sm:$0xff] %v3370
  %3595 = vst [vmem:[#allocation2 + $0x1060] sm:$0xff] %v3371
  %3596 = vst [vmem:[#allocation2 + $0x1068] sm:$0xff] %v3372
  %3597 = vst [vmem:[#allocation2 + $0x1070] sm:$0xff] %v3373
  %3598 = vst [vmem:[#allocation2 + $0x1078] sm:$0xff] %v3374
  %3599 = vst [vmem:[#allocation2 + $0x1080] sm:$0xff] %v3375
  %3600 = vst [vmem:[#allocation2 + $0x1088] sm:$0xff] %v3376
  %3601 = vst [vmem:[#allocation2 + $0x1090] sm:$0xff] %v3377
  %3602 = vst [vmem:[#allocation2 + $0x1098] sm:$0xff] %v3378
  %3603 = vst [vmem:[#allocation2 + $0x10a0] sm:$0xff] %v3379
  %3604 = vst [vmem:[#allocation2 + $0x10a8] sm:$0xff] %v3380
  %3605 = vst [vmem:[#allocation2 + $0x10b0] sm:$0xff] %v3381
  %3606 = vst [vmem:[#allocation2 + $0x10b8] sm:$0xff] %v3382
  %3607 = vst [vmem:[#allocation2 + $0x10c0] sm:$0xff] %v3383
  %3608 = vst [vmem:[#allocation2 + $0x10c8] sm:$0xff] %v3384
  %3609 = vst [vmem:[#allocation2 + $0x10d0] sm:$0xff] %v3385
  %3610 = vst [vmem:[#allocation2 + $0x10d8] sm:$0xff] %v3386
  %3611 = vst [vmem:[#allocation2 + $0x10e0] sm:$0xff] %v3387
  %3612 = vst [vmem:[#allocation2 + $0x10e8] sm:$0xff] %v3388
  %3613 = vst [vmem:[#allocation2 + $0x10f0] sm:$0xff] %v3389
  %3614 = vst [vmem:[#allocation2 + $0x10f8] sm:$0xff] %v3390
  %3615 = vst [vmem:[#allocation2 + $0x1100] sm:$0xff] %v3391
  %3616 = vst [vmem:[#allocation2 + $0x1108] sm:$0xff] %v3392
  %3617 = vst [vmem:[#allocation2 + $0x1110] sm:$0xff] %v3393
  %3618 = vst [vmem:[#allocation2 + $0x1118] sm:$0xff] %v3394
  %3619 = vst [vmem:[#allocation2 + $0x1120] sm:$0xff] %v3395
  %3620 = vst [vmem:[#allocation2 + $0x1128] sm:$0xff] %v3396
  %3621 = vst [vmem:[#allocation2 + $0x1130] sm:$0xff] %v3397
  %3622 = vst [vmem:[#allocation2 + $0x1138] sm:$0xff] %v3398
  %3623 = vst [vmem:[#allocation2 + $0x1140] sm:$0xff] %v3399
  %3624 = vst [vmem:[#allocation2 + $0x1148] sm:$0xff] %v3400
  %3625 = vst [vmem:[#allocation2 + $0x1150] sm:$0xff] %v3401
  %3626 = vst [vmem:[#allocation2 + $0x1158] sm:$0xff] %v3402
  %3627 = vst [vmem:[#allocation2 + $0x1160] sm:$0xff] %v3403
  %3628 = vst [vmem:[#allocation2 + $0x1168] sm:$0xff] %v3404
  %3629 = vst [vmem:[#allocation2 + $0x1170] sm:$0xff] %v3405
  %3630 = vst [vmem:[#allocation2 + $0x1178] sm:$0xff] %v3406
  %v3631 = vld [vmem:[%s1] sm:$0xff]
  %v3632 = vld [vmem:[%s1 + $0x8] sm:$0xff]
  %v3633 = vld [vmem:[%s1 + $0x10] sm:$0xff]
  %v3634 = vld [vmem:[%s1 + $0x18] sm:$0xff]
  %v3635 = vld [vmem:[%s1 + $0x20] sm:$0xff]
  %v3636 = vld [vmem:[%s1 + $0x28] sm:$0xff]
  %v3637 = vld [vmem:[%s1 + $0x30] sm:$0xff]
  %v3638 = vld [vmem:[%s1 + $0x38] sm:$0xff]
  %v3639 = vld [vmem:[%s1 + $0x40] sm:$0xff]
  %v3640 = vld [vmem:[%s1 + $0x48] sm:$0xff]
  %v3641 = vld [vmem:[%s1 + $0x50] sm:$0xff]
  %v3642 = vld [vmem:[%s1 + $0x58] sm:$0xff]
  %v3643 = vld [vmem:[%s1 + $0x60] sm:$0xff]
  %v3644 = vld [vmem:[%s1 + $0x68] sm:$0xff]
  %v3645 = vld [vmem:[%s1 + $0x70] sm:$0xff]
  %v3646 = vld [vmem:[%s1 + $0x78] sm:$0xff]
  %v3647 = vld [vmem:[%s1 + $0x80] sm:$0xff]
  %v3648 = vld [vmem:[%s1 + $0x88] sm:$0xff]
  %v3649 = vld [vmem:[%s1 + $0x90] sm:$0xff]
  %v3650 = vld [vmem:[%s1 + $0x98] sm:$0xff]
  %v3651 = vld [vmem:[%s1 + $0xa0] sm:$0xff]
  %v3652 = vld [vmem:[%s1 + $0xa8] sm:$0xff]
  %v3653 = vld [vmem:[%s1 + $0xb0] sm:$0xff]
  %v3654 = vld [vmem:[%s1 + $0xb8] sm:$0xff]
  %v3655 = vld [vmem:[%s1 + $0xc0] sm:$0xff]
  %v3656 = vld [vmem:[%s1 + $0xc8] sm:$0xff]
  %v3657 = vld [vmem:[%s1 + $0xd0] sm:$0xff]
  %v3658 = vld [vmem:[%s1 + $0xd8] sm:$0xff]
  %v3659 = vld [vmem:[%s1 + $0xe0] sm:$0xff]
  %v3660 = vld [vmem:[%s1 + $0xe8] sm:$0xff]
  %v3661 = vld [vmem:[%s1 + $0xf0] sm:$0xff]
  %v3662 = vld [vmem:[%s1 + $0xf8] sm:$0xff]
  %v3663 = vld [vmem:[%s1 + $0x100] sm:$0xff]
  %v3664 = vld [vmem:[%s1 + $0x108] sm:$0xff]
  %v3665 = vld [vmem:[%s1 + $0x110] sm:$0xff]
  %v3666 = vld [vmem:[%s1 + $0x118] sm:$0xff]
  %v3667 = vld [vmem:[%s1 + $0x120] sm:$0xff]
  %v3668 = vld [vmem:[%s1 + $0x128] sm:$0xff]
  %v3669 = vld [vmem:[%s1 + $0x130] sm:$0xff]
  %v3670 = vld [vmem:[%s1 + $0x138] sm:$0xff]
  %v3671 = vld [vmem:[%s1 + $0x140] sm:$0xff]
  %v3672 = vld [vmem:[%s1 + $0x148] sm:$0xff]
  %v3673 = vld [vmem:[%s1 + $0x150] sm:$0xff]
  %v3674 = vld [vmem:[%s1 + $0x158] sm:$0xff]
  %v3675 = vld [vmem:[%s1 + $0x160] sm:$0xff]
  %v3676 = vld [vmem:[%s1 + $0x168] sm:$0xff]
  %v3677 = vld [vmem:[%s1 + $0x170] sm:$0xff]
  %v3678 = vld [vmem:[%s1 + $0x178] sm:$0xff]
  %v3679 = vld [vmem:[%s1 + $0x180] sm:$0xff]
  %v3680 = vld [vmem:[%s1 + $0x188] sm:$0xff]
  %v3681 = vld [vmem:[%s1 + $0x190] sm:$0xff]
  %v3682 = vld [vmem:[%s1 + $0x198] sm:$0xff]
  %v3683 = vld [vmem:[%s1 + $0x1a0] sm:$0xff]
  %v3684 = vld [vmem:[%s1 + $0x1a8] sm:$0xff]
  %v3685 = vld [vmem:[%s1 + $0x1b0] sm:$0xff]
  %v3686 = vld [vmem:[%s1 + $0x1b8] sm:$0xff]
  %v3687 = vld [vmem:[%s1 + $0x1c0] sm:$0xff]
  %v3688 = vld [vmem:[%s1 + $0x1c8] sm:$0xff]
  %v3689 = vld [vmem:[%s1 + $0x1d0] sm:$0xff]
  %v3690 = vld [vmem:[%s1 + $0x1d8] sm:$0xff]
  %v3691 = vld [vmem:[%s1 + $0x1e0] sm:$0xff]
  %v3692 = vld [vmem:[%s1 + $0x1e8] sm:$0xff]
  %v3693 = vld [vmem:[%s1 + $0x1f0] sm:$0xff]
  %v3694 = vld [vmem:[%s1 + $0x1f8] sm:$0xff]
  %v3695 = vld [vmem:[%s1 + $0x200] sm:$0xff]
  %v3696 = vld [vmem:[%s1 + $0x208] sm:$0xff]
  %v3697 = vld [vmem:[%s1 + $0x210] sm:$0xff]
  %v3698 = vld [vmem:[%s1 + $0x218] sm:$0xff]
  %v3699 = vld [vmem:[%s1 + $0x220] sm:$0xff]
  %v3700 = vld [vmem:[%s1 + $0x228] sm:$0xff]
  %v3701 = vld [vmem:[%s1 + $0x230] sm:$0xff]
  %v3702 = vld [vmem:[%s1 + $0x238] sm:$0xff]
  %v3703 = vld [vmem:[%s1 + $0x240] sm:$0xff]
  %v3704 = vld [vmem:[%s1 + $0x248] sm:$0xff]
  %v3705 = vld [vmem:[%s1 + $0x250] sm:$0xff]
  %v3706 = vld [vmem:[%s1 + $0x258] sm:$0xff]
  %v3707 = vld [vmem:[%s1 + $0x260] sm:$0xff]
  %v3708 = vld [vmem:[%s1 + $0x268] sm:$0xff]
  %v3709 = vld [vmem:[%s1 + $0x270] sm:$0xff]
  %v3710 = vld [vmem:[%s1 + $0x278] sm:$0xff]
  %v3711 = vld [vmem:[%s1 + $0x280] sm:$0xff]
  %v3712 = vld [vmem:[%s1 + $0x288] sm:$0xff]
  %v3713 = vld [vmem:[%s1 + $0x290] sm:$0xff]
  %v3714 = vld [vmem:[%s1 + $0x298] sm:$0xff]
  %v3715 = vld [vmem:[%s1 + $0x2a0] sm:$0xff]
  %v3716 = vld [vmem:[%s1 + $0x2a8] sm:$0xff]
  %v3717 = vld [vmem:[%s1 + $0x2b0] sm:$0xff]
  %v3718 = vld [vmem:[%s1 + $0x2b8] sm:$0xff]
  %v3719 = vld [vmem:[%s1 + $0x2c0] sm:$0xff]
  %v3720 = vld [vmem:[%s1 + $0x2c8] sm:$0xff]
  %v3721 = vld [vmem:[%s1 + $0x2d0] sm:$0xff]
  %v3722 = vld [vmem:[%s1 + $0x2d8] sm:$0xff]
  %v3723 = vld [vmem:[%s1 + $0x2e0] sm:$0xff]
  %v3724 = vld [vmem:[%s1 + $0x2e8] sm:$0xff]
  %v3725 = vld [vmem:[%s1 + $0x2f0] sm:$0xff]
  %v3726 = vld [vmem:[%s1 + $0x2f8] sm:$0xff]
  %v3727 = vld [vmem:[%s1 + $0x300] sm:$0xff]
  %v3728 = vld [vmem:[%s1 + $0x308] sm:$0xff]
  %v3729 = vld [vmem:[%s1 + $0x310] sm:$0xff]
  %v3730 = vld [vmem:[%s1 + $0x318] sm:$0xff]
  %v3731 = vld [vmem:[%s1 + $0x320] sm:$0xff]
  %v3732 = vld [vmem:[%s1 + $0x328] sm:$0xff]
  %v3733 = vld [vmem:[%s1 + $0x330] sm:$0xff]
  %v3734 = vld [vmem:[%s1 + $0x338] sm:$0xff]
  %v3735 = vld [vmem:[%s1 + $0x340] sm:$0xff]
  %v3736 = vld [vmem:[%s1 + $0x348] sm:$0xff]
  %v3737 = vld [vmem:[%s1 + $0x350] sm:$0xff]
  %v3738 = vld [vmem:[%s1 + $0x358] sm:$0xff]
  %v3739 = vld [vmem:[%s1 + $0x360] sm:$0xff]
  %v3740 = vld [vmem:[%s1 + $0x368] sm:$0xff]
  %v3741 = vld [vmem:[%s1 + $0x370] sm:$0xff]
  %v3742 = vld [vmem:[%s1 + $0x378] sm:$0xff]
  %v3743 = vld [vmem:[%s1 + $0x380] sm:$0xff]
  %v3744 = vld [vmem:[%s1 + $0x388] sm:$0xff]
  %v3745 = vld [vmem:[%s1 + $0x390] sm:$0xff]
  %v3746 = vld [vmem:[%s1 + $0x398] sm:$0xff]
  %v3747 = vld [vmem:[%s1 + $0x3a0] sm:$0xff]
  %v3748 = vld [vmem:[%s1 + $0x3a8] sm:$0xff]
  %v3749 = vld [vmem:[%s1 + $0x3b0] sm:$0xff]
  %v3750 = vld [vmem:[%s1 + $0x3b8] sm:$0xff]
  %v3751 = vld [vmem:[%s1 + $0x3c0] sm:$0xff]
  %v3752 = vld [vmem:[%s1 + $0x3c8] sm:$0xff]
  %v3753 = vld [vmem:[%s1 + $0x3d0] sm:$0xff]
  %v3754 = vld [vmem:[%s1 + $0x3d8] sm:$0xff]
  %v3755 = vld [vmem:[%s1 + $0x3e0] sm:$0xff]
  %v3756 = vld [vmem:[%s1 + $0x3e8] sm:$0xff]
  %v3757 = vld [vmem:[%s1 + $0x3f0] sm:$0xff]
  %v3758 = vld [vmem:[%s1 + $0x3f8] sm:$0xff]
  %3887 = vrot.lane.b32.xlu0 %v3631, 96
  %v3888 = vpop.permute.xlu0 %3887
  %3889 = vrot.lane.b32.xlu0 %v3632, 96
  %v3890 = vpop.permute.xlu0 %3889
  %3891 = vrot.lane.b32.xlu0 %v3633, 96
  %v3892 = vpop.permute.xlu0 %3891
  %3893 = vrot.lane.b32.xlu0 %v3634, 96
  %v3894 = vpop.permute.xlu0 %3893
  %3895 = vrot.lane.b32.xlu0 %v3635, 96
  %v3896 = vpop.permute.xlu0 %3895
  %3897 = vrot.lane.b32.xlu0 %v3636, 96
  %v3898 = vpop.permute.xlu0 %3897
  %3899 = vrot.lane.b32.xlu0 %v3637, 96
  %v3900 = vpop.permute.xlu0 %3899
  %3901 = vrot.lane.b32.xlu0 %v3638, 96
  %v3902 = vpop.permute.xlu0 %3901
  %3903 = vrot.lane.b32.xlu0 %v3639, 96
  %v3904 = vpop.permute.xlu0 %3903
  %3905 = vrot.lane.b32.xlu0 %v3640, 96
  %v3906 = vpop.permute.xlu0 %3905
  %3907 = vrot.lane.b32.xlu0 %v3641, 96
  %v3908 = vpop.permute.xlu0 %3907
  %3909 = vrot.lane.b32.xlu0 %v3642, 96
  %v3910 = vpop.permute.xlu0 %3909
  %3911 = vrot.lane.b32.xlu0 %v3643, 96
  %v3912 = vpop.permute.xlu0 %3911
  %3913 = vrot.lane.b32.xlu0 %v3644, 96
  %v3914 = vpop.permute.xlu0 %3913
  %3915 = vrot.lane.b32.xlu0 %v3645, 96
  %v3916 = vpop.permute.xlu0 %3915
  %3917 = vrot.lane.b32.xlu0 %v3646, 96
  %v3918 = vpop.permute.xlu0 %3917
  %3919 = vrot.lane.b32.xlu0 %v3647, 96
  %v3920 = vpop.permute.xlu0 %3919
  %3921 = vrot.lane.b32.xlu0 %v3648, 96
  %v3922 = vpop.permute.xlu0 %3921
  %3923 = vrot.lane.b32.xlu0 %v3649, 96
  %v3924 = vpop.permute.xlu0 %3923
  %3925 = vrot.lane.b32.xlu0 %v3650, 96
  %v3926 = vpop.permute.xlu0 %3925
  %3927 = vrot.lane.b32.xlu0 %v3651, 96
  %v3928 = vpop.permute.xlu0 %3927
  %3929 = vrot.lane.b32.xlu0 %v3652, 96
  %v3930 = vpop.permute.xlu0 %3929
  %3931 = vrot.lane.b32.xlu0 %v3653, 96
  %v3932 = vpop.permute.xlu0 %3931
  %3933 = vrot.lane.b32.xlu0 %v3654, 96
  %v3934 = vpop.permute.xlu0 %3933
  %3935 = vrot.lane.b32.xlu0 %v3655, 96
  %v3936 = vpop.permute.xlu0 %3935
  %3937 = vrot.lane.b32.xlu0 %v3656, 96
  %v3938 = vpop.permute.xlu0 %3937
  %3939 = vrot.lane.b32.xlu0 %v3657, 96
  %v3940 = vpop.permute.xlu0 %3939
  %3941 = vrot.lane.b32.xlu0 %v3658, 96
  %v3942 = vpop.permute.xlu0 %3941
  %3943 = vrot.lane.b32.xlu0 %v3659, 96
  %v3944 = vpop.permute.xlu0 %3943
  %3945 = vrot.lane.b32.xlu0 %v3660, 96
  %v3946 = vpop.permute.xlu0 %3945
  %3947 = vrot.lane.b32.xlu0 %v3661, 96
  %v3948 = vpop.permute.xlu0 %3947
  %3949 = vrot.lane.b32.xlu0 %v3662, 96
  %v3950 = vpop.permute.xlu0 %3949
  %3951 = vrot.lane.b32.xlu0 %v3663, 96
  %v3952 = vpop.permute.xlu0 %3951
  %3953 = vrot.lane.b32.xlu0 %v3664, 96
  %v3954 = vpop.permute.xlu0 %3953
  %3955 = vrot.lane.b32.xlu0 %v3665, 96
  %v3956 = vpop.permute.xlu0 %3955
  %3957 = vrot.lane.b32.xlu0 %v3666, 96
  %v3958 = vpop.permute.xlu0 %3957
  %3959 = vrot.lane.b32.xlu0 %v3667, 96
  %v3960 = vpop.permute.xlu0 %3959
  %3961 = vrot.lane.b32.xlu0 %v3668, 96
  %v3962 = vpop.permute.xlu0 %3961
  %3963 = vrot.lane.b32.xlu0 %v3669, 96
  %v3964 = vpop.permute.xlu0 %3963
  %3965 = vrot.lane.b32.xlu0 %v3670, 96
  %v3966 = vpop.permute.xlu0 %3965
  %3967 = vrot.lane.b32.xlu0 %v3671, 96
  %v3968 = vpop.permute.xlu0 %3967
  %3969 = vrot.lane.b32.xlu0 %v3672, 96
  %v3970 = vpop.permute.xlu0 %3969
  %3971 = vrot.lane.b32.xlu0 %v3673, 96
  %v3972 = vpop.permute.xlu0 %3971
  %3973 = vrot.lane.b32.xlu0 %v3674, 96
  %v3974 = vpop.permute.xlu0 %3973
  %3975 = vrot.lane.b32.xlu0 %v3675, 96
  %v3976 = vpop.permute.xlu0 %3975
  %3977 = vrot.lane.b32.xlu0 %v3676, 96
  %v3978 = vpop.permute.xlu0 %3977
  %3979 = vrot.lane.b32.xlu0 %v3677, 96
  %v3980 = vpop.permute.xlu0 %3979
  %3981 = vrot.lane.b32.xlu0 %v3678, 96
  %v3982 = vpop.permute.xlu0 %3981
  %3983 = vrot.lane.b32.xlu0 %v3679, 96
  %v3984 = vpop.permute.xlu0 %3983
  %3985 = vrot.lane.b32.xlu0 %v3680, 96
  %v3986 = vpop.permute.xlu0 %3985
  %3987 = vrot.lane.b32.xlu0 %v3681, 96
  %v3988 = vpop.permute.xlu0 %3987
  %3989 = vrot.lane.b32.xlu0 %v3682, 96
  %v3990 = vpop.permute.xlu0 %3989
  %3991 = vrot.lane.b32.xlu0 %v3683, 96
  %v3992 = vpop.permute.xlu0 %3991
  %3993 = vrot.lane.b32.xlu0 %v3684, 96
  %v3994 = vpop.permute.xlu0 %3993
  %3995 = vrot.lane.b32.xlu0 %v3685, 96
  %v3996 = vpop.permute.xlu0 %3995
  %3997 = vrot.lane.b32.xlu0 %v3686, 96
  %v3998 = vpop.permute.xlu0 %3997
  %3999 = vrot.lane.b32.xlu0 %v3687, 96
  %v4000 = vpop.permute.xlu0 %3999
  %4001 = vrot.lane.b32.xlu0 %v3688, 96
  %v4002 = vpop.permute.xlu0 %4001
  %4003 = vrot.lane.b32.xlu0 %v3689, 96
  %v4004 = vpop.permute.xlu0 %4003
  %4005 = vrot.lane.b32.xlu0 %v3690, 96
  %v4006 = vpop.permute.xlu0 %4005
  %4007 = vrot.lane.b32.xlu0 %v3691, 96
  %v4008 = vpop.permute.xlu0 %4007
  %4009 = vrot.lane.b32.xlu0 %v3692, 96
  %v4010 = vpop.permute.xlu0 %4009
  %4011 = vrot.lane.b32.xlu0 %v3693, 96
  %v4012 = vpop.permute.xlu0 %4011
  %4013 = vrot.lane.b32.xlu0 %v3694, 96
  %v4014 = vpop.permute.xlu0 %4013
  %4015 = vrot.lane.b32.xlu0 %v3695, 96
  %v4016 = vpop.permute.xlu0 %4015
  %4017 = vrot.lane.b32.xlu0 %v3696, 96
  %v4018 = vpop.permute.xlu0 %4017
  %4019 = vrot.lane.b32.xlu0 %v3697, 96
  %v4020 = vpop.permute.xlu0 %4019
  %4021 = vrot.lane.b32.xlu0 %v3698, 96
  %v4022 = vpop.permute.xlu0 %4021
  %4023 = vrot.lane.b32.xlu0 %v3699, 96
  %v4024 = vpop.permute.xlu0 %4023
  %4025 = vrot.lane.b32.xlu0 %v3700, 96
  %v4026 = vpop.permute.xlu0 %4025
  %4027 = vrot.lane.b32.xlu0 %v3701, 96
  %v4028 = vpop.permute.xlu0 %4027
  %4029 = vrot.lane.b32.xlu0 %v3702, 96
  %v4030 = vpop.permute.xlu0 %4029
  %4031 = vrot.lane.b32.xlu0 %v3703, 96
  %v4032 = vpop.permute.xlu0 %4031
  %4033 = vrot.lane.b32.xlu0 %v3704, 96
  %v4034 = vpop.permute.xlu0 %4033
  %4035 = vrot.lane.b32.xlu0 %v3705, 96
  %v4036 = vpop.permute.xlu0 %4035
  %4037 = vrot.lane.b32.xlu0 %v3706, 96
  %v4038 = vpop.permute.xlu0 %4037
  %4039 = vrot.lane.b32.xlu0 %v3707, 96
  %v4040 = vpop.permute.xlu0 %4039
  %4041 = vrot.lane.b32.xlu0 %v3708, 96
  %v4042 = vpop.permute.xlu0 %4041
  %4043 = vrot.lane.b32.xlu0 %v3709, 96
  %v4044 = vpop.permute.xlu0 %4043
  %4045 = vrot.lane.b32.xlu0 %v3710, 96
  %v4046 = vpop.permute.xlu0 %4045
  %4047 = vrot.lane.b32.xlu0 %v3711, 96
  %v4048 = vpop.permute.xlu0 %4047
  %4049 = vrot.lane.b32.xlu0 %v3712, 96
  %v4050 = vpop.permute.xlu0 %4049
  %4051 = vrot.lane.b32.xlu0 %v3713, 96
  %v4052 = vpop.permute.xlu0 %4051
  %4053 = vrot.lane.b32.xlu0 %v3714, 96
  %v4054 = vpop.permute.xlu0 %4053
  %4055 = vrot.lane.b32.xlu0 %v3715, 96
  %v4056 = vpop.permute.xlu0 %4055
  %4057 = vrot.lane.b32.xlu0 %v3716, 96
  %v4058 = vpop.permute.xlu0 %4057
  %4059 = vrot.lane.b32.xlu0 %v3717, 96
  %v4060 = vpop.permute.xlu0 %4059
  %4061 = vrot.lane.b32.xlu0 %v3718, 96
  %v4062 = vpop.permute.xlu0 %4061
  %4063 = vrot.lane.b32.xlu0 %v3719, 96
  %v4064 = vpop.permute.xlu0 %4063
  %4065 = vrot.lane.b32.xlu0 %v3720, 96
  %v4066 = vpop.permute.xlu0 %4065
  %4067 = vrot.lane.b32.xlu0 %v3721, 96
  %v4068 = vpop.permute.xlu0 %4067
  %4069 = vrot.lane.b32.xlu0 %v3722, 96
  %v4070 = vpop.permute.xlu0 %4069
  %4071 = vrot.lane.b32.xlu0 %v3723, 96
  %v4072 = vpop.permute.xlu0 %4071
  %4073 = vrot.lane.b32.xlu0 %v3724, 96
  %v4074 = vpop.permute.xlu0 %4073
  %4075 = vrot.lane.b32.xlu0 %v3725, 96
  %v4076 = vpop.permute.xlu0 %4075
  %4077 = vrot.lane.b32.xlu0 %v3726, 96
  %v4078 = vpop.permute.xlu0 %4077
  %4079 = vrot.lane.b32.xlu0 %v3727, 96
  %v4080 = vpop.permute.xlu0 %4079
  %4081 = vrot.lane.b32.xlu0 %v3728, 96
  %v4082 = vpop.permute.xlu0 %4081
  %4083 = vrot.lane.b32.xlu0 %v3729, 96
  %v4084 = vpop.permute.xlu0 %4083
  %4085 = vrot.lane.b32.xlu0 %v3730, 96
  %v4086 = vpop.permute.xlu0 %4085
  %4087 = vrot.lane.b32.xlu0 %v3731, 96
  %v4088 = vpop.permute.xlu0 %4087
  %4089 = vrot.lane.b32.xlu0 %v3732, 96
  %v4090 = vpop.permute.xlu0 %4089
  %4091 = vrot.lane.b32.xlu0 %v3733, 96
  %v4092 = vpop.permute.xlu0 %4091
  %4093 = vrot.lane.b32.xlu0 %v3734, 96
  %v4094 = vpop.permute.xlu0 %4093
  %4095 = vrot.lane.b32.xlu0 %v3735, 96
  %v4096 = vpop.permute.xlu0 %4095
  %4097 = vrot.lane.b32.xlu0 %v3736, 96
  %v4098 = vpop.permute.xlu0 %4097
  %4099 = vrot.lane.b32.xlu0 %v3737, 96
  %v4100 = vpop.permute.xlu0 %4099
  %4101 = vrot.lane.b32.xlu0 %v3738, 96
  %v4102 = vpop.permute.xlu0 %4101
  %4103 = vrot.lane.b32.xlu0 %v3739, 96
  %v4104 = vpop.permute.xlu0 %4103
  %4105 = vrot.lane.b32.xlu0 %v3740, 96
  %v4106 = vpop.permute.xlu0 %4105
  %4107 = vrot.lane.b32.xlu0 %v3741, 96
  %v4108 = vpop.permute.xlu0 %4107
  %4109 = vrot.lane.b32.xlu0 %v3742, 96
  %v4110 = vpop.permute.xlu0 %4109
  %4111 = vrot.lane.b32.xlu0 %v3743, 96
  %v4112 = vpop.permute.xlu0 %4111
  %4113 = vrot.lane.b32.xlu0 %v3744, 96
  %v4114 = vpop.permute.xlu0 %4113
  %4115 = vrot.lane.b32.xlu0 %v3745, 96
  %v4116 = vpop.permute.xlu0 %4115
  %4117 = vrot.lane.b32.xlu0 %v3746, 96
  %v4118 = vpop.permute.xlu0 %4117
  %4119 = vrot.lane.b32.xlu0 %v3747, 96
  %v4120 = vpop.permute.xlu0 %4119
  %4121 = vrot.lane.b32.xlu0 %v3748, 96
  %v4122 = vpop.permute.xlu0 %4121
  %4123 = vrot.lane.b32.xlu0 %v3749, 96
  %v4124 = vpop.permute.xlu0 %4123
  %4125 = vrot.lane.b32.xlu0 %v3750, 96
  %v4126 = vpop.permute.xlu0 %4125
  %4127 = vrot.lane.b32.xlu0 %v3751, 96
  %v4128 = vpop.permute.xlu0 %4127
  %4129 = vrot.lane.b32.xlu0 %v3752, 96
  %v4130 = vpop.permute.xlu0 %4129
  %4131 = vrot.lane.b32.xlu0 %v3753, 96
  %v4132 = vpop.permute.xlu0 %4131
  %4133 = vrot.lane.b32.xlu0 %v3754, 96
  %v4134 = vpop.permute.xlu0 %4133
  %4135 = vrot.lane.b32.xlu0 %v3755, 96
  %v4136 = vpop.permute.xlu0 %4135
  %4137 = vrot.lane.b32.xlu0 %v3756, 96
  %v4138 = vpop.permute.xlu0 %4137
  %4139 = vrot.lane.b32.xlu0 %v3757, 96
  %v4140 = vpop.permute.xlu0 %4139
  %4141 = vrot.lane.b32.xlu0 %v3758, 96
  %v4142 = vpop.permute.xlu0 %4141
  %vm4143 = vcmask 785408
  %v4144 = vsel %vm4143, %v3888, %v3890
  %v4145 = vsel %vm4143, %v3890, %v3892
  %v4146 = vsel %vm4143, %v3892, %v3894
  %v4147 = vsel %vm4143, %v3894, %v3896
  %v4148 = vsel %vm4143, %v3896, %v3898
  %v4149 = vsel %vm4143, %v3898, %v3900
  %v4150 = vsel %vm4143, %v3900, %v3902
  %v4151 = vsel %vm4143, %v3904, %v3906
  %v4152 = vsel %vm4143, %v3906, %v3908
  %v4153 = vsel %vm4143, %v3908, %v3910
  %v4154 = vsel %vm4143, %v3910, %v3912
  %v4155 = vsel %vm4143, %v3912, %v3914
  %v4156 = vsel %vm4143, %v3914, %v3916
  %v4157 = vsel %vm4143, %v3916, %v3918
  %v4158 = vsel %vm4143, %v3920, %v3922
  %v4159 = vsel %vm4143, %v3922, %v3924
  %v4160 = vsel %vm4143, %v3924, %v3926
  %v4161 = vsel %vm4143, %v3926, %v3928
  %v4162 = vsel %vm4143, %v3928, %v3930
  %v4163 = vsel %vm4143, %v3930, %v3932
  %v4164 = vsel %vm4143, %v3932, %v3934
  %v4165 = vsel %vm4143, %v3936, %v3938
  %v4166 = vsel %vm4143, %v3938, %v3940
  %v4167 = vsel %vm4143, %v3940, %v3942
  %v4168 = vsel %vm4143, %v3942, %v3944
  %v4169 = vsel %vm4143, %v3944, %v3946
  %v4170 = vsel %vm4143, %v3946, %v3948
  %v4171 = vsel %vm4143, %v3948, %v3950
  %v4172 = vsel %vm4143, %v3952, %v3954
  %v4173 = vsel %vm4143, %v3954, %v3956
  %v4174 = vsel %vm4143, %v3956, %v3958
  %v4175 = vsel %vm4143, %v3958, %v3960
  %v4176 = vsel %vm4143, %v3960, %v3962
  %v4177 = vsel %vm4143, %v3962, %v3964
  %v4178 = vsel %vm4143, %v3964, %v3966
  %v4179 = vsel %vm4143, %v3968, %v3970
  %v4180 = vsel %vm4143, %v3970, %v3972
  %v4181 = vsel %vm4143, %v3972, %v3974
  %v4182 = vsel %vm4143, %v3974, %v3976
  %v4183 = vsel %vm4143, %v3976, %v3978
  %v4184 = vsel %vm4143, %v3978, %v3980
  %v4185 = vsel %vm4143, %v3980, %v3982
  %v4186 = vsel %vm4143, %v3984, %v3986
  %v4187 = vsel %vm4143, %v3986, %v3988
  %v4188 = vsel %vm4143, %v3988, %v3990
  %v4189 = vsel %vm4143, %v3990, %v3992
  %v4190 = vsel %vm4143, %v3992, %v3994
  %v4191 = vsel %vm4143, %v3994, %v3996
  %v4192 = vsel %vm4143, %v3996, %v3998
  %v4193 = vsel %vm4143, %v4000, %v4002
  %v4194 = vsel %vm4143, %v4002, %v4004
  %v4195 = vsel %vm4143, %v4004, %v4006
  %v4196 = vsel %vm4143, %v4006, %v4008
  %v4197 = vsel %vm4143, %v4008, %v4010
  %v4198 = vsel %vm4143, %v4010, %v4012
  %v4199 = vsel %vm4143, %v4012, %v4014
  %v4200 = vsel %vm4143, %v4016, %v4018
  %v4201 = vsel %vm4143, %v4018, %v4020
  %v4202 = vsel %vm4143, %v4020, %v4022
  %v4203 = vsel %vm4143, %v4022, %v4024
  %v4204 = vsel %vm4143, %v4024, %v4026
  %v4205 = vsel %vm4143, %v4026, %v4028
  %v4206 = vsel %vm4143, %v4028, %v4030
  %v4207 = vsel %vm4143, %v4032, %v4034
  %v4208 = vsel %vm4143, %v4034, %v4036
  %v4209 = vsel %vm4143, %v4036, %v4038
  %v4210 = vsel %vm4143, %v4038, %v4040
  %v4211 = vsel %vm4143, %v4040, %v4042
  %v4212 = vsel %vm4143, %v4042, %v4044
  %v4213 = vsel %vm4143, %v4044, %v4046
  %v4214 = vsel %vm4143, %v4048, %v4050
  %v4215 = vsel %vm4143, %v4050, %v4052
  %v4216 = vsel %vm4143, %v4052, %v4054
  %v4217 = vsel %vm4143, %v4054, %v4056
  %v4218 = vsel %vm4143, %v4056, %v4058
  %v4219 = vsel %vm4143, %v4058, %v4060
  %v4220 = vsel %vm4143, %v4060, %v4062
  %v4221 = vsel %vm4143, %v4064, %v4066
  %v4222 = vsel %vm4143, %v4066, %v4068
  %v4223 = vsel %vm4143, %v4068, %v4070
  %v4224 = vsel %vm4143, %v4070, %v4072
  %v4225 = vsel %vm4143, %v4072, %v4074
  %v4226 = vsel %vm4143, %v4074, %v4076
  %v4227 = vsel %vm4143, %v4076, %v4078
  %v4228 = vsel %vm4143, %v4080, %v4082
  %v4229 = vsel %vm4143, %v4082, %v4084
  %v4230 = vsel %vm4143, %v4084, %v4086
  %v4231 = vsel %vm4143, %v4086, %v4088
  %v4232 = vsel %vm4143, %v4088, %v4090
  %v4233 = vsel %vm4143, %v4090, %v4092
  %v4234 = vsel %vm4143, %v4092, %v4094
  %v4235 = vsel %vm4143, %v4096, %v4098
  %v4236 = vsel %vm4143, %v4098, %v4100
  %v4237 = vsel %vm4143, %v4100, %v4102
  %v4238 = vsel %vm4143, %v4102, %v4104
  %v4239 = vsel %vm4143, %v4104, %v4106
  %v4240 = vsel %vm4143, %v4106, %v4108
  %v4241 = vsel %vm4143, %v4108, %v4110
  %v4242 = vsel %vm4143, %v4112, %v4114
  %v4243 = vsel %vm4143, %v4114, %v4116
  %v4244 = vsel %vm4143, %v4116, %v4118
  %v4245 = vsel %vm4143, %v4118, %v4120
  %v4246 = vsel %vm4143, %v4120, %v4122
  %v4247 = vsel %vm4143, %v4122, %v4124
  %v4248 = vsel %vm4143, %v4124, %v4126
  %v4249 = vsel %vm4143, %v4128, %v4130
  %v4250 = vsel %vm4143, %v4130, %v4132
  %v4251 = vsel %vm4143, %v4132, %v4134
  %v4252 = vsel %vm4143, %v4134, %v4136
  %v4253 = vsel %vm4143, %v4136, %v4138
  %v4254 = vsel %vm4143, %v4138, %v4140
  %v4255 = vsel %vm4143, %v4140, %v4142
  %4368 = vst [vmem:[#allocation2 + $0x1180] sm:$0xff] %v4144
  %4369 = vst [vmem:[#allocation2 + $0x1188] sm:$0xff] %v4145
  %4370 = vst [vmem:[#allocation2 + $0x1190] sm:$0xff] %v4146
  %4371 = vst [vmem:[#allocation2 + $0x1198] sm:$0xff] %v4147
  %4372 = vst [vmem:[#allocation2 + $0x11a0] sm:$0xff] %v4148
  %4373 = vst [vmem:[#allocation2 + $0x11a8] sm:$0xff] %v4149
  %4374 = vst [vmem:[#allocation2 + $0x11b0] sm:$0xff] %v4150
  %4375 = vst [vmem:[#allocation2 + $0x11b8] sm:$0xff] %v4151
  %4376 = vst [vmem:[#allocation2 + $0x11c0] sm:$0xff] %v4152
  %4377 = vst [vmem:[#allocation2 + $0x11c8] sm:$0xff] %v4153
  %4378 = vst [vmem:[#allocation2 + $0x11d0] sm:$0xff] %v4154
  %4379 = vst [vmem:[#allocation2 + $0x11d8] sm:$0xff] %v4155
  %4380 = vst [vmem:[#allocation2 + $0x11e0] sm:$0xff] %v4156
  %4381 = vst [vmem:[#allocation2 + $0x11e8] sm:$0xff] %v4157
  %4382 = vst [vmem:[#allocation2 + $0x11f0] sm:$0xff] %v4158
  %4383 = vst [vmem:[#allocation2 + $0x11f8] sm:$0xff] %v4159
  %4384 = vst [vmem:[#allocation2 + $0x1200] sm:$0xff] %v4160
  %4385 = vst [vmem:[#allocation2 + $0x1208] sm:$0xff] %v4161
  %4386 = vst [vmem:[#allocation2 + $0x1210] sm:$0xff] %v4162
  %4387 = vst [vmem:[#allocation2 + $0x1218] sm:$0xff] %v4163
  %4388 = vst [vmem:[#allocation2 + $0x1220] sm:$0xff] %v4164
  %4389 = vst [vmem:[#allocation2 + $0x1228] sm:$0xff] %v4165
  %4390 = vst [vmem:[#allocation2 + $0x1230] sm:$0xff] %v4166
  %4391 = vst [vmem:[#allocation2 + $0x1238] sm:$0xff] %v4167
  %4392 = vst [vmem:[#allocation2 + $0x1240] sm:$0xff] %v4168
  %4393 = vst [vmem:[#allocation2 + $0x1248] sm:$0xff] %v4169
  %4394 = vst [vmem:[#allocation2 + $0x1250] sm:$0xff] %v4170
  %4395 = vst [vmem:[#allocation2 + $0x1258] sm:$0xff] %v4171
  %4396 = vst [vmem:[#allocation2 + $0x1260] sm:$0xff] %v4172
  %4397 = vst [vmem:[#allocation2 + $0x1268] sm:$0xff] %v4173
  %4398 = vst [vmem:[#allocation2 + $0x1270] sm:$0xff] %v4174
  %4399 = vst [vmem:[#allocation2 + $0x1278] sm:$0xff] %v4175
  %4400 = vst [vmem:[#allocation2 + $0x1280] sm:$0xff] %v4176
  %4401 = vst [vmem:[#allocation2 + $0x1288] sm:$0xff] %v4177
  %4402 = vst [vmem:[#allocation2 + $0x1290] sm:$0xff] %v4178
  %4403 = vst [vmem:[#allocation2 + $0x1298] sm:$0xff] %v4179
  %4404 = vst [vmem:[#allocation2 + $0x12a0] sm:$0xff] %v4180
  %4405 = vst [vmem:[#allocation2 + $0x12a8] sm:$0xff] %v4181
  %4406 = vst [vmem:[#allocation2 + $0x12b0] sm:$0xff] %v4182
  %4407 = vst [vmem:[#allocation2 + $0x12b8] sm:$0xff] %v4183
  %4408 = vst [vmem:[#allocation2 + $0x12c0] sm:$0xff] %v4184
  %4409 = vst [vmem:[#allocation2 + $0x12c8] sm:$0xff] %v4185
  %4410 = vst [vmem:[#allocation2 + $0x12d0] sm:$0xff] %v4186
  %4411 = vst [vmem:[#allocation2 + $0x12d8] sm:$0xff] %v4187
  %4412 = vst [vmem:[#allocation2 + $0x12e0] sm:$0xff] %v4188
  %4413 = vst [vmem:[#allocation2 + $0x12e8] sm:$0xff] %v4189
  %4414 = vst [vmem:[#allocation2 + $0x12f0] sm:$0xff] %v4190
  %4415 = vst [vmem:[#allocation2 + $0x12f8] sm:$0xff] %v4191
  %4416 = vst [vmem:[#allocation2 + $0x1300] sm:$0xff] %v4192
  %4417 = vst [vmem:[#allocation2 + $0x1308] sm:$0xff] %v4193
  %4418 = vst [vmem:[#allocation2 + $0x1310] sm:$0xff] %v4194
  %4419 = vst [vmem:[#allocation2 + $0x1318] sm:$0xff] %v4195
  %4420 = vst [vmem:[#allocation2 + $0x1320] sm:$0xff] %v4196
  %4421 = vst [vmem:[#allocation2 + $0x1328] sm:$0xff] %v4197
  %4422 = vst [vmem:[#allocation2 + $0x1330] sm:$0xff] %v4198
  %4423 = vst [vmem:[#allocation2 + $0x1338] sm:$0xff] %v4199
  %4424 = vst [vmem:[#allocation2 + $0x1340] sm:$0xff] %v4200
  %4425 = vst [vmem:[#allocation2 + $0x1348] sm:$0xff] %v4201
  %4426 = vst [vmem:[#allocation2 + $0x1350] sm:$0xff] %v4202
  %4427 = vst [vmem:[#allocation2 + $0x1358] sm:$0xff] %v4203
  %4428 = vst [vmem:[#allocation2 + $0x1360] sm:$0xff] %v4204
  %4429 = vst [vmem:[#allocation2 + $0x1368] sm:$0xff] %v4205
  %4430 = vst [vmem:[#allocation2 + $0x1370] sm:$0xff] %v4206
  %4431 = vst [vmem:[#allocation2 + $0x1378] sm:$0xff] %v4207
  %4432 = vst [vmem:[#allocation2 + $0x1380] sm:$0xff] %v4208
  %4433 = vst [vmem:[#allocation2 + $0x1388] sm:$0xff] %v4209
  %4434 = vst [vmem:[#allocation2 + $0x1390] sm:$0xff] %v4210
  %4435 = vst [vmem:[#allocation2 + $0x1398] sm:$0xff] %v4211
  %4436 = vst [vmem:[#allocation2 + $0x13a0] sm:$0xff] %v4212
  %4437 = vst [vmem:[#allocation2 + $0x13a8] sm:$0xff] %v4213
  %4438 = vst [vmem:[#allocation2 + $0x13b0] sm:$0xff] %v4214
  %4439 = vst [vmem:[#allocation2 + $0x13b8] sm:$0xff] %v4215
  %4440 = vst [vmem:[#allocation2 + $0x13c0] sm:$0xff] %v4216
  %4441 = vst [vmem:[#allocation2 + $0x13c8] sm:$0xff] %v4217
  %4442 = vst [vmem:[#allocation2 + $0x13d0] sm:$0xff] %v4218
  %4443 = vst [vmem:[#allocation2 + $0x13d8] sm:$0xff] %v4219
  %4444 = vst [vmem:[#allocation2 + $0x13e0] sm:$0xff] %v4220
  %4445 = vst [vmem:[#allocation2 + $0x13e8] sm:$0xff] %v4221
  %4446 = vst [vmem:[#allocation2 + $0x13f0] sm:$0xff] %v4222
  %4447 = vst [vmem:[#allocation2 + $0x13f8] sm:$0xff] %v4223
  %4448 = vst [vmem:[#allocation2 + $0x1400] sm:$0xff] %v4224
  %4449 = vst [vmem:[#allocation2 + $0x1408] sm:$0xff] %v4225
  %4450 = vst [vmem:[#allocation2 + $0x1410] sm:$0xff] %v4226
  %4451 = vst [vmem:[#allocation2 + $0x1418] sm:$0xff] %v4227
  %4452 = vst [vmem:[#allocation2 + $0x1420] sm:$0xff] %v4228
  %4453 = vst [vmem:[#allocation2 + $0x1428] sm:$0xff] %v4229
  %4454 = vst [vmem:[#allocation2 + $0x1430] sm:$0xff] %v4230
  %4455 = vst [vmem:[#allocation2 + $0x1438] sm:$0xff] %v4231
  %4456 = vst [vmem:[#allocation2 + $0x1440] sm:$0xff] %v4232
  %4457 = vst [vmem:[#allocation2 + $0x1448] sm:$0xff] %v4233
  %4458 = vst [vmem:[#allocation2 + $0x1450] sm:$0xff] %v4234
  %4459 = vst [vmem:[#allocation2 + $0x1458] sm:$0xff] %v4235
  %4460 = vst [vmem:[#allocation2 + $0x1460] sm:$0xff] %v4236
  %4461 = vst [vmem:[#allocation2 + $0x1468] sm:$0xff] %v4237
  %4462 = vst [vmem:[#allocation2 + $0x1470] sm:$0xff] %v4238
  %4463 = vst [vmem:[#allocation2 + $0x1478] sm:$0xff] %v4239
  %4464 = vst [vmem:[#allocation2 + $0x1480] sm:$0xff] %v4240
  %4465 = vst [vmem:[#allocation2 + $0x1488] sm:$0xff] %v4241
  %4466 = vst [vmem:[#allocation2 + $0x1490] sm:$0xff] %v4242
  %4467 = vst [vmem:[#allocation2 + $0x1498] sm:$0xff] %v4243
  %4468 = vst [vmem:[#allocation2 + $0x14a0] sm:$0xff] %v4244
  %4469 = vst [vmem:[#allocation2 + $0x14a8] sm:$0xff] %v4245
  %4470 = vst [vmem:[#allocation2 + $0x14b0] sm:$0xff] %v4246
  %4471 = vst [vmem:[#allocation2 + $0x14b8] sm:$0xff] %v4247
  %4472 = vst [vmem:[#allocation2 + $0x14c0] sm:$0xff] %v4248
  %4473 = vst [vmem:[#allocation2 + $0x14c8] sm:$0xff] %v4249
  %4474 = vst [vmem:[#allocation2 + $0x14d0] sm:$0xff] %v4250
  %4475 = vst [vmem:[#allocation2 + $0x14d8] sm:$0xff] %v4251
  %4476 = vst [vmem:[#allocation2 + $0x14e0] sm:$0xff] %v4252
  %4477 = vst [vmem:[#allocation2 + $0x14e8] sm:$0xff] %v4253
  %4478 = vst [vmem:[#allocation2 + $0x14f0] sm:$0xff] %v4254
  %4479 = vst [vmem:[#allocation2 + $0x14f8] sm:$0xff] %v4255
  %v4480 = vld [vmem:[%s1] sm:$0xff]
  %v4481 = vld [vmem:[%s1 + $0x8] sm:$0xff]
  %v4482 = vld [vmem:[%s1 + $0x10] sm:$0xff]
  %v4483 = vld [vmem:[%s1 + $0x18] sm:$0xff]
  %v4484 = vld [vmem:[%s1 + $0x20] sm:$0xff]
  %v4485 = vld [vmem:[%s1 + $0x28] sm:$0xff]
  %v4486 = vld [vmem:[%s1 + $0x30] sm:$0xff]
  %v4487 = vld [vmem:[%s1 + $0x38] sm:$0xff]
  %v4488 = vld [vmem:[%s1 + $0x40] sm:$0xff]
  %v4489 = vld [vmem:[%s1 + $0x48] sm:$0xff]
  %v4490 = vld [vmem:[%s1 + $0x50] sm:$0xff]
  %v4491 = vld [vmem:[%s1 + $0x58] sm:$0xff]
  %v4492 = vld [vmem:[%s1 + $0x60] sm:$0xff]
  %v4493 = vld [vmem:[%s1 + $0x68] sm:$0xff]
  %v4494 = vld [vmem:[%s1 + $0x70] sm:$0xff]
  %v4495 = vld [vmem:[%s1 + $0x78] sm:$0xff]
  %v4496 = vld [vmem:[%s1 + $0x80] sm:$0xff]
  %v4497 = vld [vmem:[%s1 + $0x88] sm:$0xff]
  %v4498 = vld [vmem:[%s1 + $0x90] sm:$0xff]
  %v4499 = vld [vmem:[%s1 + $0x98] sm:$0xff]
  %v4500 = vld [vmem:[%s1 + $0xa0] sm:$0xff]
  %v4501 = vld [vmem:[%s1 + $0xa8] sm:$0xff]
  %v4502 = vld [vmem:[%s1 + $0xb0] sm:$0xff]
  %v4503 = vld [vmem:[%s1 + $0xb8] sm:$0xff]
  %v4504 = vld [vmem:[%s1 + $0xc0] sm:$0xff]
  %v4505 = vld [vmem:[%s1 + $0xc8] sm:$0xff]
  %v4506 = vld [vmem:[%s1 + $0xd0] sm:$0xff]
  %v4507 = vld [vmem:[%s1 + $0xd8] sm:$0xff]
  %v4508 = vld [vmem:[%s1 + $0xe0] sm:$0xff]
  %v4509 = vld [vmem:[%s1 + $0xe8] sm:$0xff]
  %v4510 = vld [vmem:[%s1 + $0xf0] sm:$0xff]
  %v4511 = vld [vmem:[%s1 + $0xf8] sm:$0xff]
  %v4512 = vld [vmem:[%s1 + $0x100] sm:$0xff]
  %v4513 = vld [vmem:[%s1 + $0x108] sm:$0xff]
  %v4514 = vld [vmem:[%s1 + $0x110] sm:$0xff]
  %v4515 = vld [vmem:[%s1 + $0x118] sm:$0xff]
  %v4516 = vld [vmem:[%s1 + $0x120] sm:$0xff]
  %v4517 = vld [vmem:[%s1 + $0x128] sm:$0xff]
  %v4518 = vld [vmem:[%s1 + $0x130] sm:$0xff]
  %v4519 = vld [vmem:[%s1 + $0x138] sm:$0xff]
  %v4520 = vld [vmem:[%s1 + $0x140] sm:$0xff]
  %v4521 = vld [vmem:[%s1 + $0x148] sm:$0xff]
  %v4522 = vld [vmem:[%s1 + $0x150] sm:$0xff]
  %v4523 = vld [vmem:[%s1 + $0x158] sm:$0xff]
  %v4524 = vld [vmem:[%s1 + $0x160] sm:$0xff]
  %v4525 = vld [vmem:[%s1 + $0x168] sm:$0xff]
  %v4526 = vld [vmem:[%s1 + $0x170] sm:$0xff]
  %v4527 = vld [vmem:[%s1 + $0x178] sm:$0xff]
  %v4528 = vld [vmem:[%s1 + $0x180] sm:$0xff]
  %v4529 = vld [vmem:[%s1 + $0x188] sm:$0xff]
  %v4530 = vld [vmem:[%s1 + $0x190] sm:$0xff]
  %v4531 = vld [vmem:[%s1 + $0x198] sm:$0xff]
  %v4532 = vld [vmem:[%s1 + $0x1a0] sm:$0xff]
  %v4533 = vld [vmem:[%s1 + $0x1a8] sm:$0xff]
  %v4534 = vld [vmem:[%s1 + $0x1b0] sm:$0xff]
  %v4535 = vld [vmem:[%s1 + $0x1b8] sm:$0xff]
  %v4536 = vld [vmem:[%s1 + $0x1c0] sm:$0xff]
  %v4537 = vld [vmem:[%s1 + $0x1c8] sm:$0xff]
  %v4538 = vld [vmem:[%s1 + $0x1d0] sm:$0xff]
  %v4539 = vld [vmem:[%s1 + $0x1d8] sm:$0xff]
  %v4540 = vld [vmem:[%s1 + $0x1e0] sm:$0xff]
  %v4541 = vld [vmem:[%s1 + $0x1e8] sm:$0xff]
  %v4542 = vld [vmem:[%s1 + $0x1f0] sm:$0xff]
  %v4543 = vld [vmem:[%s1 + $0x1f8] sm:$0xff]
  %v4544 = vld [vmem:[%s1 + $0x200] sm:$0xff]
  %v4545 = vld [vmem:[%s1 + $0x208] sm:$0xff]
  %v4546 = vld [vmem:[%s1 + $0x210] sm:$0xff]
  %v4547 = vld [vmem:[%s1 + $0x218] sm:$0xff]
  %v4548 = vld [vmem:[%s1 + $0x220] sm:$0xff]
  %v4549 = vld [vmem:[%s1 + $0x228] sm:$0xff]
  %v4550 = vld [vmem:[%s1 + $0x230] sm:$0xff]
  %v4551 = vld [vmem:[%s1 + $0x238] sm:$0xff]
  %v4552 = vld [vmem:[%s1 + $0x240] sm:$0xff]
  %v4553 = vld [vmem:[%s1 + $0x248] sm:$0xff]
  %v4554 = vld [vmem:[%s1 + $0x250] sm:$0xff]
  %v4555 = vld [vmem:[%s1 + $0x258] sm:$0xff]
  %v4556 = vld [vmem:[%s1 + $0x260] sm:$0xff]
  %v4557 = vld [vmem:[%s1 + $0x268] sm:$0xff]
  %v4558 = vld [vmem:[%s1 + $0x270] sm:$0xff]
  %v4559 = vld [vmem:[%s1 + $0x278] sm:$0xff]
  %v4560 = vld [vmem:[%s1 + $0x280] sm:$0xff]
  %v4561 = vld [vmem:[%s1 + $0x288] sm:$0xff]
  %v4562 = vld [vmem:[%s1 + $0x290] sm:$0xff]
  %v4563 = vld [vmem:[%s1 + $0x298] sm:$0xff]
  %v4564 = vld [vmem:[%s1 + $0x2a0] sm:$0xff]
  %v4565 = vld [vmem:[%s1 + $0x2a8] sm:$0xff]
  %v4566 = vld [vmem:[%s1 + $0x2b0] sm:$0xff]
  %v4567 = vld [vmem:[%s1 + $0x2b8] sm:$0xff]
  %v4568 = vld [vmem:[%s1 + $0x2c0] sm:$0xff]
  %v4569 = vld [vmem:[%s1 + $0x2c8] sm:$0xff]
  %v4570 = vld [vmem:[%s1 + $0x2d0] sm:$0xff]
  %v4571 = vld [vmem:[%s1 + $0x2d8] sm:$0xff]
  %v4572 = vld [vmem:[%s1 + $0x2e0] sm:$0xff]
  %v4573 = vld [vmem:[%s1 + $0x2e8] sm:$0xff]
  %v4574 = vld [vmem:[%s1 + $0x2f0] sm:$0xff]
  %v4575 = vld [vmem:[%s1 + $0x2f8] sm:$0xff]
  %v4576 = vld [vmem:[%s1 + $0x300] sm:$0xff]
  %v4577 = vld [vmem:[%s1 + $0x308] sm:$0xff]
  %v4578 = vld [vmem:[%s1 + $0x310] sm:$0xff]
  %v4579 = vld [vmem:[%s1 + $0x318] sm:$0xff]
  %v4580 = vld [vmem:[%s1 + $0x320] sm:$0xff]
  %v4581 = vld [vmem:[%s1 + $0x328] sm:$0xff]
  %v4582 = vld [vmem:[%s1 + $0x330] sm:$0xff]
  %v4583 = vld [vmem:[%s1 + $0x338] sm:$0xff]
  %v4584 = vld [vmem:[%s1 + $0x340] sm:$0xff]
  %v4585 = vld [vmem:[%s1 + $0x348] sm:$0xff]
  %v4586 = vld [vmem:[%s1 + $0x350] sm:$0xff]
  %v4587 = vld [vmem:[%s1 + $0x358] sm:$0xff]
  %v4588 = vld [vmem:[%s1 + $0x360] sm:$0xff]
  %v4589 = vld [vmem:[%s1 + $0x368] sm:$0xff]
  %v4590 = vld [vmem:[%s1 + $0x370] sm:$0xff]
  %v4591 = vld [vmem:[%s1 + $0x378] sm:$0xff]
  %v4592 = vld [vmem:[%s1 + $0x380] sm:$0xff]
  %v4593 = vld [vmem:[%s1 + $0x388] sm:$0xff]
  %v4594 = vld [vmem:[%s1 + $0x390] sm:$0xff]
  %v4595 = vld [vmem:[%s1 + $0x398] sm:$0xff]
  %v4596 = vld [vmem:[%s1 + $0x3a0] sm:$0xff]
  %v4597 = vld [vmem:[%s1 + $0x3a8] sm:$0xff]
  %v4598 = vld [vmem:[%s1 + $0x3b0] sm:$0xff]
  %v4599 = vld [vmem:[%s1 + $0x3b8] sm:$0xff]
  %v4600 = vld [vmem:[%s1 + $0x3c0] sm:$0xff]
  %v4601 = vld [vmem:[%s1 + $0x3c8] sm:$0xff]
  %v4602 = vld [vmem:[%s1 + $0x3d0] sm:$0xff]
  %v4603 = vld [vmem:[%s1 + $0x3d8] sm:$0xff]
  %v4604 = vld [vmem:[%s1 + $0x3e0] sm:$0xff]
  %v4605 = vld [vmem:[%s1 + $0x3e8] sm:$0xff]
  %v4606 = vld [vmem:[%s1 + $0x3f0] sm:$0xff]
  %v4607 = vld [vmem:[%s1 + $0x3f8] sm:$0xff]
  %4736 = vrot.lane.b32.xlu0 %v4480, 68
  %v4737 = vpop.permute.xlu0 %4736
  %4738 = vrot.lane.b32.xlu0 %v4481, 68
  %v4739 = vpop.permute.xlu0 %4738
  %4740 = vrot.lane.b32.xlu0 %v4482, 68
  %v4741 = vpop.permute.xlu0 %4740
  %4742 = vrot.lane.b32.xlu0 %v4483, 68
  %v4743 = vpop.permute.xlu0 %4742
  %4744 = vrot.lane.b32.xlu0 %v4484, 68
  %v4745 = vpop.permute.xlu0 %4744
  %4746 = vrot.lane.b32.xlu0 %v4485, 68
  %v4747 = vpop.permute.xlu0 %4746
  %4748 = vrot.lane.b32.xlu0 %v4486, 68
  %v4749 = vpop.permute.xlu0 %4748
  %4750 = vrot.lane.b32.xlu0 %v4487, 68
  %v4751 = vpop.permute.xlu0 %4750
  %4752 = vrot.lane.b32.xlu0 %v4488, 68
  %v4753 = vpop.permute.xlu0 %4752
  %4754 = vrot.lane.b32.xlu0 %v4489, 68
  %v4755 = vpop.permute.xlu0 %4754
  %4756 = vrot.lane.b32.xlu0 %v4490, 68
  %v4757 = vpop.permute.xlu0 %4756
  %4758 = vrot.lane.b32.xlu0 %v4491, 68
  %v4759 = vpop.permute.xlu0 %4758
  %4760 = vrot.lane.b32.xlu0 %v4492, 68
  %v4761 = vpop.permute.xlu0 %4760
  %4762 = vrot.lane.b32.xlu0 %v4493, 68
  %v4763 = vpop.permute.xlu0 %4762
  %4764 = vrot.lane.b32.xlu0 %v4494, 68
  %v4765 = vpop.permute.xlu0 %4764
  %4766 = vrot.lane.b32.xlu0 %v4495, 68
  %v4767 = vpop.permute.xlu0 %4766
  %4768 = vrot.lane.b32.xlu0 %v4496, 68
  %v4769 = vpop.permute.xlu0 %4768
  %4770 = vrot.lane.b32.xlu0 %v4497, 68
  %v4771 = vpop.permute.xlu0 %4770
  %4772 = vrot.lane.b32.xlu0 %v4498, 68
  %v4773 = vpop.permute.xlu0 %4772
  %4774 = vrot.lane.b32.xlu0 %v4499, 68
  %v4775 = vpop.permute.xlu0 %4774
  %4776 = vrot.lane.b32.xlu0 %v4500, 68
  %v4777 = vpop.permute.xlu0 %4776
  %4778 = vrot.lane.b32.xlu0 %v4501, 68
  %v4779 = vpop.permute.xlu0 %4778
  %4780 = vrot.lane.b32.xlu0 %v4502, 68
  %v4781 = vpop.permute.xlu0 %4780
  %4782 = vrot.lane.b32.xlu0 %v4503, 68
  %v4783 = vpop.permute.xlu0 %4782
  %4784 = vrot.lane.b32.xlu0 %v4504, 68
  %v4785 = vpop.permute.xlu0 %4784
  %4786 = vrot.lane.b32.xlu0 %v4505, 68
  %v4787 = vpop.permute.xlu0 %4786
  %4788 = vrot.lane.b32.xlu0 %v4506, 68
  %v4789 = vpop.permute.xlu0 %4788
  %4790 = vrot.lane.b32.xlu0 %v4507, 68
  %v4791 = vpop.permute.xlu0 %4790
  %4792 = vrot.lane.b32.xlu0 %v4508, 68
  %v4793 = vpop.permute.xlu0 %4792
  %4794 = vrot.lane.b32.xlu0 %v4509, 68
  %v4795 = vpop.permute.xlu0 %4794
  %4796 = vrot.lane.b32.xlu0 %v4510, 68
  %v4797 = vpop.permute.xlu0 %4796
  %4798 = vrot.lane.b32.xlu0 %v4511, 68
  %v4799 = vpop.permute.xlu0 %4798
  %4800 = vrot.lane.b32.xlu0 %v4512, 68
  %v4801 = vpop.permute.xlu0 %4800
  %4802 = vrot.lane.b32.xlu0 %v4513, 68
  %v4803 = vpop.permute.xlu0 %4802
  %4804 = vrot.lane.b32.xlu0 %v4514, 68
  %v4805 = vpop.permute.xlu0 %4804
  %4806 = vrot.lane.b32.xlu0 %v4515, 68
  %v4807 = vpop.permute.xlu0 %4806
  %4808 = vrot.lane.b32.xlu0 %v4516, 68
  %v4809 = vpop.permute.xlu0 %4808
  %4810 = vrot.lane.b32.xlu0 %v4517, 68
  %v4811 = vpop.permute.xlu0 %4810
  %4812 = vrot.lane.b32.xlu0 %v4518, 68
  %v4813 = vpop.permute.xlu0 %4812
  %4814 = vrot.lane.b32.xlu0 %v4519, 68
  %v4815 = vpop.permute.xlu0 %4814
  %4816 = vrot.lane.b32.xlu0 %v4520, 68
  %v4817 = vpop.permute.xlu0 %4816
  %4818 = vrot.lane.b32.xlu0 %v4521, 68
  %v4819 = vpop.permute.xlu0 %4818
  %4820 = vrot.lane.b32.xlu0 %v4522, 68
  %v4821 = vpop.permute.xlu0 %4820
  %4822 = vrot.lane.b32.xlu0 %v4523, 68
  %v4823 = vpop.permute.xlu0 %4822
  %4824 = vrot.lane.b32.xlu0 %v4524, 68
  %v4825 = vpop.permute.xlu0 %4824
  %4826 = vrot.lane.b32.xlu0 %v4525, 68
  %v4827 = vpop.permute.xlu0 %4826
  %4828 = vrot.lane.b32.xlu0 %v4526, 68
  %v4829 = vpop.permute.xlu0 %4828
  %4830 = vrot.lane.b32.xlu0 %v4527, 68
  %v4831 = vpop.permute.xlu0 %4830
  %4832 = vrot.lane.b32.xlu0 %v4528, 68
  %v4833 = vpop.permute.xlu0 %4832
  %4834 = vrot.lane.b32.xlu0 %v4529, 68
  %v4835 = vpop.permute.xlu0 %4834
  %4836 = vrot.lane.b32.xlu0 %v4530, 68
  %v4837 = vpop.permute.xlu0 %4836
  %4838 = vrot.lane.b32.xlu0 %v4531, 68
  %v4839 = vpop.permute.xlu0 %4838
  %4840 = vrot.lane.b32.xlu0 %v4532, 68
  %v4841 = vpop.permute.xlu0 %4840
  %4842 = vrot.lane.b32.xlu0 %v4533, 68
  %v4843 = vpop.permute.xlu0 %4842
  %4844 = vrot.lane.b32.xlu0 %v4534, 68
  %v4845 = vpop.permute.xlu0 %4844
  %4846 = vrot.lane.b32.xlu0 %v4535, 68
  %v4847 = vpop.permute.xlu0 %4846
  %4848 = vrot.lane.b32.xlu0 %v4536, 68
  %v4849 = vpop.permute.xlu0 %4848
  %4850 = vrot.lane.b32.xlu0 %v4537, 68
  %v4851 = vpop.permute.xlu0 %4850
  %4852 = vrot.lane.b32.xlu0 %v4538, 68
  %v4853 = vpop.permute.xlu0 %4852
  %4854 = vrot.lane.b32.xlu0 %v4539, 68
  %v4855 = vpop.permute.xlu0 %4854
  %4856 = vrot.lane.b32.xlu0 %v4540, 68
  %v4857 = vpop.permute.xlu0 %4856
  %4858 = vrot.lane.b32.xlu0 %v4541, 68
  %v4859 = vpop.permute.xlu0 %4858
  %4860 = vrot.lane.b32.xlu0 %v4542, 68
  %v4861 = vpop.permute.xlu0 %4860
  %4862 = vrot.lane.b32.xlu0 %v4543, 68
  %v4863 = vpop.permute.xlu0 %4862
  %4864 = vrot.lane.b32.xlu0 %v4544, 68
  %v4865 = vpop.permute.xlu0 %4864
  %4866 = vrot.lane.b32.xlu0 %v4545, 68
  %v4867 = vpop.permute.xlu0 %4866
  %4868 = vrot.lane.b32.xlu0 %v4546, 68
  %v4869 = vpop.permute.xlu0 %4868
  %4870 = vrot.lane.b32.xlu0 %v4547, 68
  %v4871 = vpop.permute.xlu0 %4870
  %4872 = vrot.lane.b32.xlu0 %v4548, 68
  %v4873 = vpop.permute.xlu0 %4872
  %4874 = vrot.lane.b32.xlu0 %v4549, 68
  %v4875 = vpop.permute.xlu0 %4874
  %4876 = vrot.lane.b32.xlu0 %v4550, 68
  %v4877 = vpop.permute.xlu0 %4876
  %4878 = vrot.lane.b32.xlu0 %v4551, 68
  %v4879 = vpop.permute.xlu0 %4878
  %4880 = vrot.lane.b32.xlu0 %v4552, 68
  %v4881 = vpop.permute.xlu0 %4880
  %4882 = vrot.lane.b32.xlu0 %v4553, 68
  %v4883 = vpop.permute.xlu0 %4882
  %4884 = vrot.lane.b32.xlu0 %v4554, 68
  %v4885 = vpop.permute.xlu0 %4884
  %4886 = vrot.lane.b32.xlu0 %v4555, 68
  %v4887 = vpop.permute.xlu0 %4886
  %4888 = vrot.lane.b32.xlu0 %v4556, 68
  %v4889 = vpop.permute.xlu0 %4888
  %4890 = vrot.lane.b32.xlu0 %v4557, 68
  %v4891 = vpop.permute.xlu0 %4890
  %4892 = vrot.lane.b32.xlu0 %v4558, 68
  %v4893 = vpop.permute.xlu0 %4892
  %4894 = vrot.lane.b32.xlu0 %v4559, 68
  %v4895 = vpop.permute.xlu0 %4894
  %4896 = vrot.lane.b32.xlu0 %v4560, 68
  %v4897 = vpop.permute.xlu0 %4896
  %4898 = vrot.lane.b32.xlu0 %v4561, 68
  %v4899 = vpop.permute.xlu0 %4898
  %4900 = vrot.lane.b32.xlu0 %v4562, 68
  %v4901 = vpop.permute.xlu0 %4900
  %4902 = vrot.lane.b32.xlu0 %v4563, 68
  %v4903 = vpop.permute.xlu0 %4902
  %4904 = vrot.lane.b32.xlu0 %v4564, 68
  %v4905 = vpop.permute.xlu0 %4904
  %4906 = vrot.lane.b32.xlu0 %v4565, 68
  %v4907 = vpop.permute.xlu0 %4906
  %4908 = vrot.lane.b32.xlu0 %v4566, 68
  %v4909 = vpop.permute.xlu0 %4908
  %4910 = vrot.lane.b32.xlu0 %v4567, 68
  %v4911 = vpop.permute.xlu0 %4910
  %4912 = vrot.lane.b32.xlu0 %v4568, 68
  %v4913 = vpop.permute.xlu0 %4912
  %4914 = vrot.lane.b32.xlu0 %v4569, 68
  %v4915 = vpop.permute.xlu0 %4914
  %4916 = vrot.lane.b32.xlu0 %v4570, 68
  %v4917 = vpop.permute.xlu0 %4916
  %4918 = vrot.lane.b32.xlu0 %v4571, 68
  %v4919 = vpop.permute.xlu0 %4918
  %4920 = vrot.lane.b32.xlu0 %v4572, 68
  %v4921 = vpop.permute.xlu0 %4920
  %4922 = vrot.lane.b32.xlu0 %v4573, 68
  %v4923 = vpop.permute.xlu0 %4922
  %4924 = vrot.lane.b32.xlu0 %v4574, 68
  %v4925 = vpop.permute.xlu0 %4924
  %4926 = vrot.lane.b32.xlu0 %v4575, 68
  %v4927 = vpop.permute.xlu0 %4926
  %4928 = vrot.lane.b32.xlu0 %v4576, 68
  %v4929 = vpop.permute.xlu0 %4928
  %4930 = vrot.lane.b32.xlu0 %v4577, 68
  %v4931 = vpop.permute.xlu0 %4930
  %4932 = vrot.lane.b32.xlu0 %v4578, 68
  %v4933 = vpop.permute.xlu0 %4932
  %4934 = vrot.lane.b32.xlu0 %v4579, 68
  %v4935 = vpop.permute.xlu0 %4934
  %4936 = vrot.lane.b32.xlu0 %v4580, 68
  %v4937 = vpop.permute.xlu0 %4936
  %4938 = vrot.lane.b32.xlu0 %v4581, 68
  %v4939 = vpop.permute.xlu0 %4938
  %4940 = vrot.lane.b32.xlu0 %v4582, 68
  %v4941 = vpop.permute.xlu0 %4940
  %4942 = vrot.lane.b32.xlu0 %v4583, 68
  %v4943 = vpop.permute.xlu0 %4942
  %4944 = vrot.lane.b32.xlu0 %v4584, 68
  %v4945 = vpop.permute.xlu0 %4944
  %4946 = vrot.lane.b32.xlu0 %v4585, 68
  %v4947 = vpop.permute.xlu0 %4946
  %4948 = vrot.lane.b32.xlu0 %v4586, 68
  %v4949 = vpop.permute.xlu0 %4948
  %4950 = vrot.lane.b32.xlu0 %v4587, 68
  %v4951 = vpop.permute.xlu0 %4950
  %4952 = vrot.lane.b32.xlu0 %v4588, 68
  %v4953 = vpop.permute.xlu0 %4952
  %4954 = vrot.lane.b32.xlu0 %v4589, 68
  %v4955 = vpop.permute.xlu0 %4954
  %4956 = vrot.lane.b32.xlu0 %v4590, 68
  %v4957 = vpop.permute.xlu0 %4956
  %4958 = vrot.lane.b32.xlu0 %v4591, 68
  %v4959 = vpop.permute.xlu0 %4958
  %4960 = vrot.lane.b32.xlu0 %v4592, 68
  %v4961 = vpop.permute.xlu0 %4960
  %4962 = vrot.lane.b32.xlu0 %v4593, 68
  %v4963 = vpop.permute.xlu0 %4962
  %4964 = vrot.lane.b32.xlu0 %v4594, 68
  %v4965 = vpop.permute.xlu0 %4964
  %4966 = vrot.lane.b32.xlu0 %v4595, 68
  %v4967 = vpop.permute.xlu0 %4966
  %4968 = vrot.lane.b32.xlu0 %v4596, 68
  %v4969 = vpop.permute.xlu0 %4968
  %4970 = vrot.lane.b32.xlu0 %v4597, 68
  %v4971 = vpop.permute.xlu0 %4970
  %4972 = vrot.lane.b32.xlu0 %v4598, 68
  %v4973 = vpop.permute.xlu0 %4972
  %4974 = vrot.lane.b32.xlu0 %v4599, 68
  %v4975 = vpop.permute.xlu0 %4974
  %4976 = vrot.lane.b32.xlu0 %v4600, 68
  %v4977 = vpop.permute.xlu0 %4976
  %4978 = vrot.lane.b32.xlu0 %v4601, 68
  %v4979 = vpop.permute.xlu0 %4978
  %4980 = vrot.lane.b32.xlu0 %v4602, 68
  %v4981 = vpop.permute.xlu0 %4980
  %4982 = vrot.lane.b32.xlu0 %v4603, 68
  %v4983 = vpop.permute.xlu0 %4982
  %4984 = vrot.lane.b32.xlu0 %v4604, 68
  %v4985 = vpop.permute.xlu0 %4984
  %4986 = vrot.lane.b32.xlu0 %v4605, 68
  %v4987 = vpop.permute.xlu0 %4986
  %4988 = vrot.lane.b32.xlu0 %v4606, 68
  %v4989 = vpop.permute.xlu0 %4988
  %4990 = vrot.lane.b32.xlu0 %v4607, 68
  %v4991 = vpop.permute.xlu0 %4990
  %vm4992 = vcmask 556032
  %v4993 = vsel %vm4992, %v4737, %v4739
  %v4994 = vsel %vm4992, %v4739, %v4741
  %v4995 = vsel %vm4992, %v4741, %v4743
  %v4996 = vsel %vm4992, %v4743, %v4745
  %v4997 = vsel %vm4992, %v4745, %v4747
  %v4998 = vsel %vm4992, %v4747, %v4749
  %v4999 = vsel %vm4992, %v4749, %v4751
  %v5000 = vsel %vm4992, %v4753, %v4755
  %v5001 = vsel %vm4992, %v4755, %v4757
  %v5002 = vsel %vm4992, %v4757, %v4759
  %v5003 = vsel %vm4992, %v4759, %v4761
  %v5004 = vsel %vm4992, %v4761, %v4763
  %v5005 = vsel %vm4992, %v4763, %v4765
  %v5006 = vsel %vm4992, %v4765, %v4767
  %v5007 = vsel %vm4992, %v4769, %v4771
  %v5008 = vsel %vm4992, %v4771, %v4773
  %v5009 = vsel %vm4992, %v4773, %v4775
  %v5010 = vsel %vm4992, %v4775, %v4777
  %v5011 = vsel %vm4992, %v4777, %v4779
  %v5012 = vsel %vm4992, %v4779, %v4781
  %v5013 = vsel %vm4992, %v4781, %v4783
  %v5014 = vsel %vm4992, %v4785, %v4787
  %v5015 = vsel %vm4992, %v4787, %v4789
  %v5016 = vsel %vm4992, %v4789, %v4791
  %v5017 = vsel %vm4992, %v4791, %v4793
  %v5018 = vsel %vm4992, %v4793, %v4795
  %v5019 = vsel %vm4992, %v4795, %v4797
  %v5020 = vsel %vm4992, %v4797, %v4799
  %v5021 = vsel %vm4992, %v4801, %v4803
  %v5022 = vsel %vm4992, %v4803, %v4805
  %v5023 = vsel %vm4992, %v4805, %v4807
  %v5024 = vsel %vm4992, %v4807, %v4809
  %v5025 = vsel %vm4992, %v4809, %v4811
  %v5026 = vsel %vm4992, %v4811, %v4813
  %v5027 = vsel %vm4992, %v4813, %v4815
  %v5028 = vsel %vm4992, %v4817, %v4819
  %v5029 = vsel %vm4992, %v4819, %v4821
  %v5030 = vsel %vm4992, %v4821, %v4823
  %v5031 = vsel %vm4992, %v4823, %v4825
  %v5032 = vsel %vm4992, %v4825, %v4827
  %v5033 = vsel %vm4992, %v4827, %v4829
  %v5034 = vsel %vm4992, %v4829, %v4831
  %v5035 = vsel %vm4992, %v4833, %v4835
  %v5036 = vsel %vm4992, %v4835, %v4837
  %v5037 = vsel %vm4992, %v4837, %v4839
  %v5038 = vsel %vm4992, %v4839, %v4841
  %v5039 = vsel %vm4992, %v4841, %v4843
  %v5040 = vsel %vm4992, %v4843, %v4845
  %v5041 = vsel %vm4992, %v4845, %v4847
  %v5042 = vsel %vm4992, %v4849, %v4851
  %v5043 = vsel %vm4992, %v4851, %v4853
  %v5044 = vsel %vm4992, %v4853, %v4855
  %v5045 = vsel %vm4992, %v4855, %v4857
  %v5046 = vsel %vm4992, %v4857, %v4859
  %v5047 = vsel %vm4992, %v4859, %v4861
  %v5048 = vsel %vm4992, %v4861, %v4863
  %v5049 = vsel %vm4992, %v4865, %v4867
  %v5050 = vsel %vm4992, %v4867, %v4869
  %v5051 = vsel %vm4992, %v4869, %v4871
  %v5052 = vsel %vm4992, %v4871, %v4873
  %v5053 = vsel %vm4992, %v4873, %v4875
  %v5054 = vsel %vm4992, %v4875, %v4877
  %v5055 = vsel %vm4992, %v4877, %v4879
  %v5056 = vsel %vm4992, %v4881, %v4883
  %v5057 = vsel %vm4992, %v4883, %v4885
  %v5058 = vsel %vm4992, %v4885, %v4887
  %v5059 = vsel %vm4992, %v4887, %v4889
  %v5060 = vsel %vm4992, %v4889, %v4891
  %v5061 = vsel %vm4992, %v4891, %v4893
  %v5062 = vsel %vm4992, %v4893, %v4895
  %v5063 = vsel %vm4992, %v4897, %v4899
  %v5064 = vsel %vm4992, %v4899, %v4901
  %v5065 = vsel %vm4992, %v4901, %v4903
  %v5066 = vsel %vm4992, %v4903, %v4905
  %v5067 = vsel %vm4992, %v4905, %v4907
  %v5068 = vsel %vm4992, %v4907, %v4909
  %v5069 = vsel %vm4992, %v4909, %v4911
  %v5070 = vsel %vm4992, %v4913, %v4915
  %v5071 = vsel %vm4992, %v4915, %v4917
  %v5072 = vsel %vm4992, %v4917, %v4919
  %v5073 = vsel %vm4992, %v4919, %v4921
  %v5074 = vsel %vm4992, %v4921, %v4923
  %v5075 = vsel %vm4992, %v4923, %v4925
  %v5076 = vsel %vm4992, %v4925, %v4927
  %v5077 = vsel %vm4992, %v4929, %v4931
  %v5078 = vsel %vm4992, %v4931, %v4933
  %v5079 = vsel %vm4992, %v4933, %v4935
  %v5080 = vsel %vm4992, %v4935, %v4937
  %v5081 = vsel %vm4992, %v4937, %v4939
  %v5082 = vsel %vm4992, %v4939, %v4941
  %v5083 = vsel %vm4992, %v4941, %v4943
  %v5084 = vsel %vm4992, %v4945, %v4947
  %v5085 = vsel %vm4992, %v4947, %v4949
  %v5086 = vsel %vm4992, %v4949, %v4951
  %v5087 = vsel %vm4992, %v4951, %v4953
  %v5088 = vsel %vm4992, %v4953, %v4955
  %v5089 = vsel %vm4992, %v4955, %v4957
  %v5090 = vsel %vm4992, %v4957, %v4959
  %v5091 = vsel %vm4992, %v4961, %v4963
  %v5092 = vsel %vm4992, %v4963, %v4965
  %v5093 = vsel %vm4992, %v4965, %v4967
  %v5094 = vsel %vm4992, %v4967, %v4969
  %v5095 = vsel %vm4992, %v4969, %v4971
  %v5096 = vsel %vm4992, %v4971, %v4973
  %v5097 = vsel %vm4992, %v4973, %v4975
  %v5098 = vsel %vm4992, %v4977, %v4979
  %v5099 = vsel %vm4992, %v4979, %v4981
  %v5100 = vsel %vm4992, %v4981, %v4983
  %v5101 = vsel %vm4992, %v4983, %v4985
  %v5102 = vsel %vm4992, %v4985, %v4987
  %v5103 = vsel %vm4992, %v4987, %v4989
  %v5104 = vsel %vm4992, %v4989, %v4991
  %5217 = vst [vmem:[#allocation2 + $0x1500] sm:$0xff] %v4993
  %5218 = vst [vmem:[#allocation2 + $0x1508] sm:$0xff] %v4994
  %5219 = vst [vmem:[#allocation2 + $0x1510] sm:$0xff] %v4995
  %5220 = vst [vmem:[#allocation2 + $0x1518] sm:$0xff] %v4996
  %5221 = vst [vmem:[#allocation2 + $0x1520] sm:$0xff] %v4997
  %5222 = vst [vmem:[#allocation2 + $0x1528] sm:$0xff] %v4998
  %5223 = vst [vmem:[#allocation2 + $0x1530] sm:$0xff] %v4999
  %5224 = vst [vmem:[#allocation2 + $0x1538] sm:$0xff] %v5000
  %5225 = vst [vmem:[#allocation2 + $0x1540] sm:$0xff] %v5001
  %5226 = vst [vmem:[#allocation2 + $0x1548] sm:$0xff] %v5002
  %5227 = vst [vmem:[#allocation2 + $0x1550] sm:$0xff] %v5003
  %5228 = vst [vmem:[#allocation2 + $0x1558] sm:$0xff] %v5004
  %5229 = vst [vmem:[#allocation2 + $0x1560] sm:$0xff] %v5005
  %5230 = vst [vmem:[#allocation2 + $0x1568] sm:$0xff] %v5006
  %5231 = vst [vmem:[#allocation2 + $0x1570] sm:$0xff] %v5007
  %5232 = vst [vmem:[#allocation2 + $0x1578] sm:$0xff] %v5008
  %5233 = vst [vmem:[#allocation2 + $0x1580] sm:$0xff] %v5009
  %5234 = vst [vmem:[#allocation2 + $0x1588] sm:$0xff] %v5010
  %5235 = vst [vmem:[#allocation2 + $0x1590] sm:$0xff] %v5011
  %5236 = vst [vmem:[#allocation2 + $0x1598] sm:$0xff] %v5012
  %5237 = vst [vmem:[#allocation2 + $0x15a0] sm:$0xff] %v5013
  %5238 = vst [vmem:[#allocation2 + $0x15a8] sm:$0xff] %v5014
  %5239 = vst [vmem:[#allocation2 + $0x15b0] sm:$0xff] %v5015
  %5240 = vst [vmem:[#allocation2 + $0x15b8] sm:$0xff] %v5016
  %5241 = vst [vmem:[#allocation2 + $0x15c0] sm:$0xff] %v5017
  %5242 = vst [vmem:[#allocation2 + $0x15c8] sm:$0xff] %v5018
  %5243 = vst [vmem:[#allocation2 + $0x15d0] sm:$0xff] %v5019
  %5244 = vst [vmem:[#allocation2 + $0x15d8] sm:$0xff] %v5020
  %5245 = vst [vmem:[#allocation2 + $0x15e0] sm:$0xff] %v5021
  %5246 = vst [vmem:[#allocation2 + $0x15e8] sm:$0xff] %v5022
  %5247 = vst [vmem:[#allocation2 + $0x15f0] sm:$0xff] %v5023
  %5248 = vst [vmem:[#allocation2 + $0x15f8] sm:$0xff] %v5024
  %5249 = vst [vmem:[#allocation2 + $0x1600] sm:$0xff] %v5025
  %5250 = vst [vmem:[#allocation2 + $0x1608] sm:$0xff] %v5026
  %5251 = vst [vmem:[#allocation2 + $0x1610] sm:$0xff] %v5027
  %5252 = vst [vmem:[#allocation2 + $0x1618] sm:$0xff] %v5028
  %5253 = vst [vmem:[#allocation2 + $0x1620] sm:$0xff] %v5029
  %5254 = vst [vmem:[#allocation2 + $0x1628] sm:$0xff] %v5030
  %5255 = vst [vmem:[#allocation2 + $0x1630] sm:$0xff] %v5031
  %5256 = vst [vmem:[#allocation2 + $0x1638] sm:$0xff] %v5032
  %5257 = vst [vmem:[#allocation2 + $0x1640] sm:$0xff] %v5033
  %5258 = vst [vmem:[#allocation2 + $0x1648] sm:$0xff] %v5034
  %5259 = vst [vmem:[#allocation2 + $0x1650] sm:$0xff] %v5035
  %5260 = vst [vmem:[#allocation2 + $0x1658] sm:$0xff] %v5036
  %5261 = vst [vmem:[#allocation2 + $0x1660] sm:$0xff] %v5037
  %5262 = vst [vmem:[#allocation2 + $0x1668] sm:$0xff] %v5038
  %5263 = vst [vmem:[#allocation2 + $0x1670] sm:$0xff] %v5039
  %5264 = vst [vmem:[#allocation2 + $0x1678] sm:$0xff] %v5040
  %5265 = vst [vmem:[#allocation2 + $0x1680] sm:$0xff] %v5041
  %5266 = vst [vmem:[#allocation2 + $0x1688] sm:$0xff] %v5042
  %5267 = vst [vmem:[#allocation2 + $0x1690] sm:$0xff] %v5043
  %5268 = vst [vmem:[#allocation2 + $0x1698] sm:$0xff] %v5044
  %5269 = vst [vmem:[#allocation2 + $0x16a0] sm:$0xff] %v5045
  %5270 = vst [vmem:[#allocation2 + $0x16a8] sm:$0xff] %v5046
  %5271 = vst [vmem:[#allocation2 + $0x16b0] sm:$0xff] %v5047
  %5272 = vst [vmem:[#allocation2 + $0x16b8] sm:$0xff] %v5048
  %5273 = vst [vmem:[#allocation2 + $0x16c0] sm:$0xff] %v5049
  %5274 = vst [vmem:[#allocation2 + $0x16c8] sm:$0xff] %v5050
  %5275 = vst [vmem:[#allocation2 + $0x16d0] sm:$0xff] %v5051
  %5276 = vst [vmem:[#allocation2 + $0x16d8] sm:$0xff] %v5052
  %5277 = vst [vmem:[#allocation2 + $0x16e0] sm:$0xff] %v5053
  %5278 = vst [vmem:[#allocation2 + $0x16e8] sm:$0xff] %v5054
  %5279 = vst [vmem:[#allocation2 + $0x16f0] sm:$0xff] %v5055
  %5280 = vst [vmem:[#allocation2 + $0x16f8] sm:$0xff] %v5056
  %5281 = vst [vmem:[#allocation2 + $0x1700] sm:$0xff] %v5057
  %5282 = vst [vmem:[#allocation2 + $0x1708] sm:$0xff] %v5058
  %5283 = vst [vmem:[#allocation2 + $0x1710] sm:$0xff] %v5059
  %5284 = vst [vmem:[#allocation2 + $0x1718] sm:$0xff] %v5060
  %5285 = vst [vmem:[#allocation2 + $0x1720] sm:$0xff] %v5061
  %5286 = vst [vmem:[#allocation2 + $0x1728] sm:$0xff] %v5062
  %5287 = vst [vmem:[#allocation2 + $0x1730] sm:$0xff] %v5063
  %5288 = vst [vmem:[#allocation2 + $0x1738] sm:$0xff] %v5064
  %5289 = vst [vmem:[#allocation2 + $0x1740] sm:$0xff] %v5065
  %5290 = vst [vmem:[#allocation2 + $0x1748] sm:$0xff] %v5066
  %5291 = vst [vmem:[#allocation2 + $0x1750] sm:$0xff] %v5067
  %5292 = vst [vmem:[#allocation2 + $0x1758] sm:$0xff] %v5068
  %5293 = vst [vmem:[#allocation2 + $0x1760] sm:$0xff] %v5069
  %5294 = vst [vmem:[#allocation2 + $0x1768] sm:$0xff] %v5070
  %5295 = vst [vmem:[#allocation2 + $0x1770] sm:$0xff] %v5071
  %5296 = vst [vmem:[#allocation2 + $0x1778] sm:$0xff] %v5072
  %5297 = vst [vmem:[#allocation2 + $0x1780] sm:$0xff] %v5073
  %5298 = vst [vmem:[#allocation2 + $0x1788] sm:$0xff] %v5074
  %5299 = vst [vmem:[#allocation2 + $0x1790] sm:$0xff] %v5075
  %5300 = vst [vmem:[#allocation2 + $0x1798] sm:$0xff] %v5076
  %5301 = vst [vmem:[#allocation2 + $0x17a0] sm:$0xff] %v5077
  %5302 = vst [vmem:[#allocation2 + $0x17a8] sm:$0xff] %v5078
  %5303 = vst [vmem:[#allocation2 + $0x17b0] sm:$0xff] %v5079
  %5304 = vst [vmem:[#allocation2 + $0x17b8] sm:$0xff] %v5080
  %5305 = vst [vmem:[#allocation2 + $0x17c0] sm:$0xff] %v5081
  %5306 = vst [vmem:[#allocation2 + $0x17c8] sm:$0xff] %v5082
  %5307 = vst [vmem:[#allocation2 + $0x17d0] sm:$0xff] %v5083
  %5308 = vst [vmem:[#allocation2 + $0x17d8] sm:$0xff] %v5084
  %5309 = vst [vmem:[#allocation2 + $0x17e0] sm:$0xff] %v5085
  %5310 = vst [vmem:[#allocation2 + $0x17e8] sm:$0xff] %v5086
  %5311 = vst [vmem:[#allocation2 + $0x17f0] sm:$0xff] %v5087
  %5312 = vst [vmem:[#allocation2 + $0x17f8] sm:$0xff] %v5088
  %5313 = vst [vmem:[#allocation2 + $0x1800] sm:$0xff] %v5089
  %5314 = vst [vmem:[#allocation2 + $0x1808] sm:$0xff] %v5090
  %5315 = vst [vmem:[#allocation2 + $0x1810] sm:$0xff] %v5091
  %5316 = vst [vmem:[#allocation2 + $0x1818] sm:$0xff] %v5092
  %5317 = vst [vmem:[#allocation2 + $0x1820] sm:$0xff] %v5093
  %5318 = vst [vmem:[#allocation2 + $0x1828] sm:$0xff] %v5094
  %5319 = vst [vmem:[#allocation2 + $0x1830] sm:$0xff] %v5095
  %5320 = vst [vmem:[#allocation2 + $0x1838] sm:$0xff] %v5096
  %5321 = vst [vmem:[#allocation2 + $0x1840] sm:$0xff] %v5097
  %5322 = vst [vmem:[#allocation2 + $0x1848] sm:$0xff] %v5098
  %5323 = vst [vmem:[#allocation2 + $0x1850] sm:$0xff] %v5099
  %5324 = vst [vmem:[#allocation2 + $0x1858] sm:$0xff] %v5100
  %5325 = vst [vmem:[#allocation2 + $0x1860] sm:$0xff] %v5101
  %5326 = vst [vmem:[#allocation2 + $0x1868] sm:$0xff] %v5102
  %5327 = vst [vmem:[#allocation2 + $0x1870] sm:$0xff] %v5103
  %5328 = vst [vmem:[#allocation2 + $0x1878] sm:$0xff] %v5104
  %v5329 = vld [vmem:[%s1] sm:$0xff]
  %v5330 = vld [vmem:[%s1 + $0x8] sm:$0xff]
  %v5331 = vld [vmem:[%s1 + $0x10] sm:$0xff]
  %v5332 = vld [vmem:[%s1 + $0x18] sm:$0xff]
  %v5333 = vld [vmem:[%s1 + $0x20] sm:$0xff]
  %v5334 = vld [vmem:[%s1 + $0x28] sm:$0xff]
  %v5335 = vld [vmem:[%s1 + $0x30] sm:$0xff]
  %v5336 = vld [vmem:[%s1 + $0x38] sm:$0xff]
  %v5337 = vld [vmem:[%s1 + $0x40] sm:$0xff]
  %v5338 = vld [vmem:[%s1 + $0x48] sm:$0xff]
  %v5339 = vld [vmem:[%s1 + $0x50] sm:$0xff]
  %v5340 = vld [vmem:[%s1 + $0x58] sm:$0xff]
  %v5341 = vld [vmem:[%s1 + $0x60] sm:$0xff]
  %v5342 = vld [vmem:[%s1 + $0x68] sm:$0xff]
  %v5343 = vld [vmem:[%s1 + $0x70] sm:$0xff]
  %v5344 = vld [vmem:[%s1 + $0x78] sm:$0xff]
  %v5345 = vld [vmem:[%s1 + $0x80] sm:$0xff]
  %v5346 = vld [vmem:[%s1 + $0x88] sm:$0xff]
  %v5347 = vld [vmem:[%s1 + $0x90] sm:$0xff]
  %v5348 = vld [vmem:[%s1 + $0x98] sm:$0xff]
  %v5349 = vld [vmem:[%s1 + $0xa0] sm:$0xff]
  %v5350 = vld [vmem:[%s1 + $0xa8] sm:$0xff]
  %v5351 = vld [vmem:[%s1 + $0xb0] sm:$0xff]
  %v5352 = vld [vmem:[%s1 + $0xb8] sm:$0xff]
  %v5353 = vld [vmem:[%s1 + $0xc0] sm:$0xff]
  %v5354 = vld [vmem:[%s1 + $0xc8] sm:$0xff]
  %v5355 = vld [vmem:[%s1 + $0xd0] sm:$0xff]
  %v5356 = vld [vmem:[%s1 + $0xd8] sm:$0xff]
  %v5357 = vld [vmem:[%s1 + $0xe0] sm:$0xff]
  %v5358 = vld [vmem:[%s1 + $0xe8] sm:$0xff]
  %v5359 = vld [vmem:[%s1 + $0xf0] sm:$0xff]
  %v5360 = vld [vmem:[%s1 + $0xf8] sm:$0xff]
  %v5361 = vld [vmem:[%s1 + $0x100] sm:$0xff]
  %v5362 = vld [vmem:[%s1 + $0x108] sm:$0xff]
  %v5363 = vld [vmem:[%s1 + $0x110] sm:$0xff]
  %v5364 = vld [vmem:[%s1 + $0x118] sm:$0xff]
  %v5365 = vld [vmem:[%s1 + $0x120] sm:$0xff]
  %v5366 = vld [vmem:[%s1 + $0x128] sm:$0xff]
  %v5367 = vld [vmem:[%s1 + $0x130] sm:$0xff]
  %v5368 = vld [vmem:[%s1 + $0x138] sm:$0xff]
  %v5369 = vld [vmem:[%s1 + $0x140] sm:$0xff]
  %v5370 = vld [vmem:[%s1 + $0x148] sm:$0xff]
  %v5371 = vld [vmem:[%s1 + $0x150] sm:$0xff]
  %v5372 = vld [vmem:[%s1 + $0x158] sm:$0xff]
  %v5373 = vld [vmem:[%s1 + $0x160] sm:$0xff]
  %v5374 = vld [vmem:[%s1 + $0x168] sm:$0xff]
  %v5375 = vld [vmem:[%s1 + $0x170] sm:$0xff]
  %v5376 = vld [vmem:[%s1 + $0x178] sm:$0xff]
  %v5377 = vld [vmem:[%s1 + $0x180] sm:$0xff]
  %v5378 = vld [vmem:[%s1 + $0x188] sm:$0xff]
  %v5379 = vld [vmem:[%s1 + $0x190] sm:$0xff]
  %v5380 = vld [vmem:[%s1 + $0x198] sm:$0xff]
  %v5381 = vld [vmem:[%s1 + $0x1a0] sm:$0xff]
  %v5382 = vld [vmem:[%s1 + $0x1a8] sm:$0xff]
  %v5383 = vld [vmem:[%s1 + $0x1b0] sm:$0xff]
  %v5384 = vld [vmem:[%s1 + $0x1b8] sm:$0xff]
  %v5385 = vld [vmem:[%s1 + $0x1c0] sm:$0xff]
  %v5386 = vld [vmem:[%s1 + $0x1c8] sm:$0xff]
  %v5387 = vld [vmem:[%s1 + $0x1d0] sm:$0xff]
  %v5388 = vld [vmem:[%s1 + $0x1d8] sm:$0xff]
  %v5389 = vld [vmem:[%s1 + $0x1e0] sm:$0xff]
  %v5390 = vld [vmem:[%s1 + $0x1e8] sm:$0xff]
  %v5391 = vld [vmem:[%s1 + $0x1f0] sm:$0xff]
  %v5392 = vld [vmem:[%s1 + $0x1f8] sm:$0xff]
  %v5393 = vld [vmem:[%s1 + $0x200] sm:$0xff]
  %v5394 = vld [vmem:[%s1 + $0x208] sm:$0xff]
  %v5395 = vld [vmem:[%s1 + $0x210] sm:$0xff]
  %v5396 = vld [vmem:[%s1 + $0x218] sm:$0xff]
  %v5397 = vld [vmem:[%s1 + $0x220] sm:$0xff]
  %v5398 = vld [vmem:[%s1 + $0x228] sm:$0xff]
  %v5399 = vld [vmem:[%s1 + $0x230] sm:$0xff]
  %v5400 = vld [vmem:[%s1 + $0x238] sm:$0xff]
  %v5401 = vld [vmem:[%s1 + $0x240] sm:$0xff]
  %v5402 = vld [vmem:[%s1 + $0x248] sm:$0xff]
  %v5403 = vld [vmem:[%s1 + $0x250] sm:$0xff]
  %v5404 = vld [vmem:[%s1 + $0x258] sm:$0xff]
  %v5405 = vld [vmem:[%s1 + $0x260] sm:$0xff]
  %v5406 = vld [vmem:[%s1 + $0x268] sm:$0xff]
  %v5407 = vld [vmem:[%s1 + $0x270] sm:$0xff]
  %v5408 = vld [vmem:[%s1 + $0x278] sm:$0xff]
  %v5409 = vld [vmem:[%s1 + $0x280] sm:$0xff]
  %v5410 = vld [vmem:[%s1 + $0x288] sm:$0xff]
  %v5411 = vld [vmem:[%s1 + $0x290] sm:$0xff]
  %v5412 = vld [vmem:[%s1 + $0x298] sm:$0xff]
  %v5413 = vld [vmem:[%s1 + $0x2a0] sm:$0xff]
  %v5414 = vld [vmem:[%s1 + $0x2a8] sm:$0xff]
  %v5415 = vld [vmem:[%s1 + $0x2b0] sm:$0xff]
  %v5416 = vld [vmem:[%s1 + $0x2b8] sm:$0xff]
  %v5417 = vld [vmem:[%s1 + $0x2c0] sm:$0xff]
  %v5418 = vld [vmem:[%s1 + $0x2c8] sm:$0xff]
  %v5419 = vld [vmem:[%s1 + $0x2d0] sm:$0xff]
  %v5420 = vld [vmem:[%s1 + $0x2d8] sm:$0xff]
  %v5421 = vld [vmem:[%s1 + $0x2e0] sm:$0xff]
  %v5422 = vld [vmem:[%s1 + $0x2e8] sm:$0xff]
  %v5423 = vld [vmem:[%s1 + $0x2f0] sm:$0xff]
  %v5424 = vld [vmem:[%s1 + $0x2f8] sm:$0xff]
  %v5425 = vld [vmem:[%s1 + $0x300] sm:$0xff]
  %v5426 = vld [vmem:[%s1 + $0x308] sm:$0xff]
  %v5427 = vld [vmem:[%s1 + $0x310] sm:$0xff]
  %v5428 = vld [vmem:[%s1 + $0x318] sm:$0xff]
  %v5429 = vld [vmem:[%s1 + $0x320] sm:$0xff]
  %v5430 = vld [vmem:[%s1 + $0x328] sm:$0xff]
  %v5431 = vld [vmem:[%s1 + $0x330] sm:$0xff]
  %v5432 = vld [vmem:[%s1 + $0x338] sm:$0xff]
  %v5433 = vld [vmem:[%s1 + $0x340] sm:$0xff]
  %v5434 = vld [vmem:[%s1 + $0x348] sm:$0xff]
  %v5435 = vld [vmem:[%s1 + $0x350] sm:$0xff]
  %v5436 = vld [vmem:[%s1 + $0x358] sm:$0xff]
  %v5437 = vld [vmem:[%s1 + $0x360] sm:$0xff]
  %v5438 = vld [vmem:[%s1 + $0x368] sm:$0xff]
  %v5439 = vld [vmem:[%s1 + $0x370] sm:$0xff]
  %v5440 = vld [vmem:[%s1 + $0x378] sm:$0xff]
  %v5441 = vld [vmem:[%s1 + $0x380] sm:$0xff]
  %v5442 = vld [vmem:[%s1 + $0x388] sm:$0xff]
  %v5443 = vld [vmem:[%s1 + $0x390] sm:$0xff]
  %v5444 = vld [vmem:[%s1 + $0x398] sm:$0xff]
  %v5445 = vld [vmem:[%s1 + $0x3a0] sm:$0xff]
  %v5446 = vld [vmem:[%s1 + $0x3a8] sm:$0xff]
  %v5447 = vld [vmem:[%s1 + $0x3b0] sm:$0xff]
  %v5448 = vld [vmem:[%s1 + $0x3b8] sm:$0xff]
  %v5449 = vld [vmem:[%s1 + $0x3c0] sm:$0xff]
  %v5450 = vld [vmem:[%s1 + $0x3c8] sm:$0xff]
  %v5451 = vld [vmem:[%s1 + $0x3d0] sm:$0xff]
  %v5452 = vld [vmem:[%s1 + $0x3d8] sm:$0xff]
  %v5453 = vld [vmem:[%s1 + $0x3e0] sm:$0xff]
  %v5454 = vld [vmem:[%s1 + $0x3e8] sm:$0xff]
  %v5455 = vld [vmem:[%s1 + $0x3f0] sm:$0xff]
  %v5456 = vld [vmem:[%s1 + $0x3f8] sm:$0xff]
  %5585 = vrot.lane.b32.xlu0 %v5329, 67
  %v5586 = vpop.permute.xlu0 %5585
  %5587 = vrot.lane.b32.xlu0 %v5330, 67
  %v5588 = vpop.permute.xlu0 %5587
  %5589 = vrot.lane.b32.xlu0 %v5331, 67
  %v5590 = vpop.permute.xlu0 %5589
  %5591 = vrot.lane.b32.xlu0 %v5332, 67
  %v5592 = vpop.permute.xlu0 %5591
  %5593 = vrot.lane.b32.xlu0 %v5333, 67
  %v5594 = vpop.permute.xlu0 %5593
  %5595 = vrot.lane.b32.xlu0 %v5334, 67
  %v5596 = vpop.permute.xlu0 %5595
  %5597 = vrot.lane.b32.xlu0 %v5335, 67
  %v5598 = vpop.permute.xlu0 %5597
  %5599 = vrot.lane.b32.xlu0 %v5336, 67
  %v5600 = vpop.permute.xlu0 %5599
  %5601 = vrot.lane.b32.xlu0 %v5337, 67
  %v5602 = vpop.permute.xlu0 %5601
  %5603 = vrot.lane.b32.xlu0 %v5338, 67
  %v5604 = vpop.permute.xlu0 %5603
  %5605 = vrot.lane.b32.xlu0 %v5339, 67
  %v5606 = vpop.permute.xlu0 %5605
  %5607 = vrot.lane.b32.xlu0 %v5340, 67
  %v5608 = vpop.permute.xlu0 %5607
  %5609 = vrot.lane.b32.xlu0 %v5341, 67
  %v5610 = vpop.permute.xlu0 %5609
  %5611 = vrot.lane.b32.xlu0 %v5342, 67
  %v5612 = vpop.permute.xlu0 %5611
  %5613 = vrot.lane.b32.xlu0 %v5343, 67
  %v5614 = vpop.permute.xlu0 %5613
  %5615 = vrot.lane.b32.xlu0 %v5344, 67
  %v5616 = vpop.permute.xlu0 %5615
  %5617 = vrot.lane.b32.xlu0 %v5345, 67
  %v5618 = vpop.permute.xlu0 %5617
  %5619 = vrot.lane.b32.xlu0 %v5346, 67
  %v5620 = vpop.permute.xlu0 %5619
  %5621 = vrot.lane.b32.xlu0 %v5347, 67
  %v5622 = vpop.permute.xlu0 %5621
  %5623 = vrot.lane.b32.xlu0 %v5348, 67
  %v5624 = vpop.permute.xlu0 %5623
  %5625 = vrot.lane.b32.xlu0 %v5349, 67
  %v5626 = vpop.permute.xlu0 %5625
  %5627 = vrot.lane.b32.xlu0 %v5350, 67
  %v5628 = vpop.permute.xlu0 %5627
  %5629 = vrot.lane.b32.xlu0 %v5351, 67
  %v5630 = vpop.permute.xlu0 %5629
  %5631 = vrot.lane.b32.xlu0 %v5352, 67
  %v5632 = vpop.permute.xlu0 %5631
  %5633 = vrot.lane.b32.xlu0 %v5353, 67
  %v5634 = vpop.permute.xlu0 %5633
  %5635 = vrot.lane.b32.xlu0 %v5354, 67
  %v5636 = vpop.permute.xlu0 %5635
  %5637 = vrot.lane.b32.xlu0 %v5355, 67
  %v5638 = vpop.permute.xlu0 %5637
  %5639 = vrot.lane.b32.xlu0 %v5356, 67
  %v5640 = vpop.permute.xlu0 %5639
  %5641 = vrot.lane.b32.xlu0 %v5357, 67
  %v5642 = vpop.permute.xlu0 %5641
  %5643 = vrot.lane.b32.xlu0 %v5358, 67
  %v5644 = vpop.permute.xlu0 %5643
  %5645 = vrot.lane.b32.xlu0 %v5359, 67
  %v5646 = vpop.permute.xlu0 %5645
  %5647 = vrot.lane.b32.xlu0 %v5360, 67
  %v5648 = vpop.permute.xlu0 %5647
  %5649 = vrot.lane.b32.xlu0 %v5361, 67
  %v5650 = vpop.permute.xlu0 %5649
  %5651 = vrot.lane.b32.xlu0 %v5362, 67
  %v5652 = vpop.permute.xlu0 %5651
  %5653 = vrot.lane.b32.xlu0 %v5363, 67
  %v5654 = vpop.permute.xlu0 %5653
  %5655 = vrot.lane.b32.xlu0 %v5364, 67
  %v5656 = vpop.permute.xlu0 %5655
  %5657 = vrot.lane.b32.xlu0 %v5365, 67
  %v5658 = vpop.permute.xlu0 %5657
  %5659 = vrot.lane.b32.xlu0 %v5366, 67
  %v5660 = vpop.permute.xlu0 %5659
  %5661 = vrot.lane.b32.xlu0 %v5367, 67
  %v5662 = vpop.permute.xlu0 %5661
  %5663 = vrot.lane.b32.xlu0 %v5368, 67
  %v5664 = vpop.permute.xlu0 %5663
  %5665 = vrot.lane.b32.xlu0 %v5369, 67
  %v5666 = vpop.permute.xlu0 %5665
  %5667 = vrot.lane.b32.xlu0 %v5370, 67
  %v5668 = vpop.permute.xlu0 %5667
  %5669 = vrot.lane.b32.xlu0 %v5371, 67
  %v5670 = vpop.permute.xlu0 %5669
  %5671 = vrot.lane.b32.xlu0 %v5372, 67
  %v5672 = vpop.permute.xlu0 %5671
  %5673 = vrot.lane.b32.xlu0 %v5373, 67
  %v5674 = vpop.permute.xlu0 %5673
  %5675 = vrot.lane.b32.xlu0 %v5374, 67
  %v5676 = vpop.permute.xlu0 %5675
  %5677 = vrot.lane.b32.xlu0 %v5375, 67
  %v5678 = vpop.permute.xlu0 %5677
  %5679 = vrot.lane.b32.xlu0 %v5376, 67
  %v5680 = vpop.permute.xlu0 %5679
  %5681 = vrot.lane.b32.xlu0 %v5377, 67
  %v5682 = vpop.permute.xlu0 %5681
  %5683 = vrot.lane.b32.xlu0 %v5378, 67
  %v5684 = vpop.permute.xlu0 %5683
  %5685 = vrot.lane.b32.xlu0 %v5379, 67
  %v5686 = vpop.permute.xlu0 %5685
  %5687 = vrot.lane.b32.xlu0 %v5380, 67
  %v5688 = vpop.permute.xlu0 %5687
  %5689 = vrot.lane.b32.xlu0 %v5381, 67
  %v5690 = vpop.permute.xlu0 %5689
  %5691 = vrot.lane.b32.xlu0 %v5382, 67
  %v5692 = vpop.permute.xlu0 %5691
  %5693 = vrot.lane.b32.xlu0 %v5383, 67
  %v5694 = vpop.permute.xlu0 %5693
  %5695 = vrot.lane.b32.xlu0 %v5384, 67
  %v5696 = vpop.permute.xlu0 %5695
  %5697 = vrot.lane.b32.xlu0 %v5385, 67
  %v5698 = vpop.permute.xlu0 %5697
  %5699 = vrot.lane.b32.xlu0 %v5386, 67
  %v5700 = vpop.permute.xlu0 %5699
  %5701 = vrot.lane.b32.xlu0 %v5387, 67
  %v5702 = vpop.permute.xlu0 %5701
  %5703 = vrot.lane.b32.xlu0 %v5388, 67
  %v5704 = vpop.permute.xlu0 %5703
  %5705 = vrot.lane.b32.xlu0 %v5389, 67
  %v5706 = vpop.permute.xlu0 %5705
  %5707 = vrot.lane.b32.xlu0 %v5390, 67
  %v5708 = vpop.permute.xlu0 %5707
  %5709 = vrot.lane.b32.xlu0 %v5391, 67
  %v5710 = vpop.permute.xlu0 %5709
  %5711 = vrot.lane.b32.xlu0 %v5392, 67
  %v5712 = vpop.permute.xlu0 %5711
  %5713 = vrot.lane.b32.xlu0 %v5393, 67
  %v5714 = vpop.permute.xlu0 %5713
  %5715 = vrot.lane.b32.xlu0 %v5394, 67
  %v5716 = vpop.permute.xlu0 %5715
  %5717 = vrot.lane.b32.xlu0 %v5395, 67
  %v5718 = vpop.permute.xlu0 %5717
  %5719 = vrot.lane.b32.xlu0 %v5396, 67
  %v5720 = vpop.permute.xlu0 %5719
  %5721 = vrot.lane.b32.xlu0 %v5397, 67
  %v5722 = vpop.permute.xlu0 %5721
  %5723 = vrot.lane.b32.xlu0 %v5398, 67
  %v5724 = vpop.permute.xlu0 %5723
  %5725 = vrot.lane.b32.xlu0 %v5399, 67
  %v5726 = vpop.permute.xlu0 %5725
  %5727 = vrot.lane.b32.xlu0 %v5400, 67
  %v5728 = vpop.permute.xlu0 %5727
  %5729 = vrot.lane.b32.xlu0 %v5401, 67
  %v5730 = vpop.permute.xlu0 %5729
  %5731 = vrot.lane.b32.xlu0 %v5402, 67
  %v5732 = vpop.permute.xlu0 %5731
  %5733 = vrot.lane.b32.xlu0 %v5403, 67
  %v5734 = vpop.permute.xlu0 %5733
  %5735 = vrot.lane.b32.xlu0 %v5404, 67
  %v5736 = vpop.permute.xlu0 %5735
  %5737 = vrot.lane.b32.xlu0 %v5405, 67
  %v5738 = vpop.permute.xlu0 %5737
  %5739 = vrot.lane.b32.xlu0 %v5406, 67
  %v5740 = vpop.permute.xlu0 %5739
  %5741 = vrot.lane.b32.xlu0 %v5407, 67
  %v5742 = vpop.permute.xlu0 %5741
  %5743 = vrot.lane.b32.xlu0 %v5408, 67
  %v5744 = vpop.permute.xlu0 %5743
  %5745 = vrot.lane.b32.xlu0 %v5409, 67
  %v5746 = vpop.permute.xlu0 %5745
  %5747 = vrot.lane.b32.xlu0 %v5410, 67
  %v5748 = vpop.permute.xlu0 %5747
  %5749 = vrot.lane.b32.xlu0 %v5411, 67
  %v5750 = vpop.permute.xlu0 %5749
  %5751 = vrot.lane.b32.xlu0 %v5412, 67
  %v5752 = vpop.permute.xlu0 %5751
  %5753 = vrot.lane.b32.xlu0 %v5413, 67
  %v5754 = vpop.permute.xlu0 %5753
  %5755 = vrot.lane.b32.xlu0 %v5414, 67
  %v5756 = vpop.permute.xlu0 %5755
  %5757 = vrot.lane.b32.xlu0 %v5415, 67
  %v5758 = vpop.permute.xlu0 %5757
  %5759 = vrot.lane.b32.xlu0 %v5416, 67
  %v5760 = vpop.permute.xlu0 %5759
  %5761 = vrot.lane.b32.xlu0 %v5417, 67
  %v5762 = vpop.permute.xlu0 %5761
  %5763 = vrot.lane.b32.xlu0 %v5418, 67
  %v5764 = vpop.permute.xlu0 %5763
  %5765 = vrot.lane.b32.xlu0 %v5419, 67
  %v5766 = vpop.permute.xlu0 %5765
  %5767 = vrot.lane.b32.xlu0 %v5420, 67
  %v5768 = vpop.permute.xlu0 %5767
  %5769 = vrot.lane.b32.xlu0 %v5421, 67
  %v5770 = vpop.permute.xlu0 %5769
  %5771 = vrot.lane.b32.xlu0 %v5422, 67
  %v5772 = vpop.permute.xlu0 %5771
  %5773 = vrot.lane.b32.xlu0 %v5423, 67
  %v5774 = vpop.permute.xlu0 %5773
  %5775 = vrot.lane.b32.xlu0 %v5424, 67
  %v5776 = vpop.permute.xlu0 %5775
  %5777 = vrot.lane.b32.xlu0 %v5425, 67
  %v5778 = vpop.permute.xlu0 %5777
  %5779 = vrot.lane.b32.xlu0 %v5426, 67
  %v5780 = vpop.permute.xlu0 %5779
  %5781 = vrot.lane.b32.xlu0 %v5427, 67
  %v5782 = vpop.permute.xlu0 %5781
  %5783 = vrot.lane.b32.xlu0 %v5428, 67
  %v5784 = vpop.permute.xlu0 %5783
  %5785 = vrot.lane.b32.xlu0 %v5429, 67
  %v5786 = vpop.permute.xlu0 %5785
  %5787 = vrot.lane.b32.xlu0 %v5430, 67
  %v5788 = vpop.permute.xlu0 %5787
  %5789 = vrot.lane.b32.xlu0 %v5431, 67
  %v5790 = vpop.permute.xlu0 %5789
  %5791 = vrot.lane.b32.xlu0 %v5432, 67
  %v5792 = vpop.permute.xlu0 %5791
  %5793 = vrot.lane.b32.xlu0 %v5433, 67
  %v5794 = vpop.permute.xlu0 %5793
  %5795 = vrot.lane.b32.xlu0 %v5434, 67
  %v5796 = vpop.permute.xlu0 %5795
  %5797 = vrot.lane.b32.xlu0 %v5435, 67
  %v5798 = vpop.permute.xlu0 %5797
  %5799 = vrot.lane.b32.xlu0 %v5436, 67
  %v5800 = vpop.permute.xlu0 %5799
  %5801 = vrot.lane.b32.xlu0 %v5437, 67
  %v5802 = vpop.permute.xlu0 %5801
  %5803 = vrot.lane.b32.xlu0 %v5438, 67
  %v5804 = vpop.permute.xlu0 %5803
  %5805 = vrot.lane.b32.xlu0 %v5439, 67
  %v5806 = vpop.permute.xlu0 %5805
  %5807 = vrot.lane.b32.xlu0 %v5440, 67
  %v5808 = vpop.permute.xlu0 %5807
  %5809 = vrot.lane.b32.xlu0 %v5441, 67
  %v5810 = vpop.permute.xlu0 %5809
  %5811 = vrot.lane.b32.xlu0 %v5442, 67
  %v5812 = vpop.permute.xlu0 %5811
  %5813 = vrot.lane.b32.xlu0 %v5443, 67
  %v5814 = vpop.permute.xlu0 %5813
  %5815 = vrot.lane.b32.xlu0 %v5444, 67
  %v5816 = vpop.permute.xlu0 %5815
  %5817 = vrot.lane.b32.xlu0 %v5445, 67
  %v5818 = vpop.permute.xlu0 %5817
  %5819 = vrot.lane.b32.xlu0 %v5446, 67
  %v5820 = vpop.permute.xlu0 %5819
  %5821 = vrot.lane.b32.xlu0 %v5447, 67
  %v5822 = vpop.permute.xlu0 %5821
  %5823 = vrot.lane.b32.xlu0 %v5448, 67
  %v5824 = vpop.permute.xlu0 %5823
  %5825 = vrot.lane.b32.xlu0 %v5449, 67
  %v5826 = vpop.permute.xlu0 %5825
  %5827 = vrot.lane.b32.xlu0 %v5450, 67
  %v5828 = vpop.permute.xlu0 %5827
  %5829 = vrot.lane.b32.xlu0 %v5451, 67
  %v5830 = vpop.permute.xlu0 %5829
  %5831 = vrot.lane.b32.xlu0 %v5452, 67
  %v5832 = vpop.permute.xlu0 %5831
  %5833 = vrot.lane.b32.xlu0 %v5453, 67
  %v5834 = vpop.permute.xlu0 %5833
  %5835 = vrot.lane.b32.xlu0 %v5454, 67
  %v5836 = vpop.permute.xlu0 %5835
  %5837 = vrot.lane.b32.xlu0 %v5455, 67
  %v5838 = vpop.permute.xlu0 %5837
  %5839 = vrot.lane.b32.xlu0 %v5456, 67
  %v5840 = vpop.permute.xlu0 %5839
  %vm5841 = vcmask 547840
  %v5842 = vsel %vm5841, %v5586, %v5588
  %v5843 = vsel %vm5841, %v5588, %v5590
  %v5844 = vsel %vm5841, %v5590, %v5592
  %v5845 = vsel %vm5841, %v5592, %v5594
  %v5846 = vsel %vm5841, %v5594, %v5596
  %v5847 = vsel %vm5841, %v5596, %v5598
  %v5848 = vsel %vm5841, %v5598, %v5600
  %v5849 = vsel %vm5841, %v5602, %v5604
  %v5850 = vsel %vm5841, %v5604, %v5606
  %v5851 = vsel %vm5841, %v5606, %v5608
  %v5852 = vsel %vm5841, %v5608, %v5610
  %v5853 = vsel %vm5841, %v5610, %v5612
  %v5854 = vsel %vm5841, %v5612, %v5614
  %v5855 = vsel %vm5841, %v5614, %v5616
  %v5856 = vsel %vm5841, %v5618, %v5620
  %v5857 = vsel %vm5841, %v5620, %v5622
  %v5858 = vsel %vm5841, %v5622, %v5624
  %v5859 = vsel %vm5841, %v5624, %v5626
  %v5860 = vsel %vm5841, %v5626, %v5628
  %v5861 = vsel %vm5841, %v5628, %v5630
  %v5862 = vsel %vm5841, %v5630, %v5632
  %v5863 = vsel %vm5841, %v5634, %v5636
  %v5864 = vsel %vm5841, %v5636, %v5638
  %v5865 = vsel %vm5841, %v5638, %v5640
  %v5866 = vsel %vm5841, %v5640, %v5642
  %v5867 = vsel %vm5841, %v5642, %v5644
  %v5868 = vsel %vm5841, %v5644, %v5646
  %v5869 = vsel %vm5841, %v5646, %v5648
  %v5870 = vsel %vm5841, %v5650, %v5652
  %v5871 = vsel %vm5841, %v5652, %v5654
  %v5872 = vsel %vm5841, %v5654, %v5656
  %v5873 = vsel %vm5841, %v5656, %v5658
  %v5874 = vsel %vm5841, %v5658, %v5660
  %v5875 = vsel %vm5841, %v5660, %v5662
  %v5876 = vsel %vm5841, %v5662, %v5664
  %v5877 = vsel %vm5841, %v5666, %v5668
  %v5878 = vsel %vm5841, %v5668, %v5670
  %v5879 = vsel %vm5841, %v5670, %v5672
  %v5880 = vsel %vm5841, %v5672, %v5674
  %v5881 = vsel %vm5841, %v5674, %v5676
  %v5882 = vsel %vm5841, %v5676, %v5678
  %v5883 = vsel %vm5841, %v5678, %v5680
  %v5884 = vsel %vm5841, %v5682, %v5684
  %v5885 = vsel %vm5841, %v5684, %v5686
  %v5886 = vsel %vm5841, %v5686, %v5688
  %v5887 = vsel %vm5841, %v5688, %v5690
  %v5888 = vsel %vm5841, %v5690, %v5692
  %v5889 = vsel %vm5841, %v5692, %v5694
  %v5890 = vsel %vm5841, %v5694, %v5696
  %v5891 = vsel %vm5841, %v5698, %v5700
  %v5892 = vsel %vm5841, %v5700, %v5702
  %v5893 = vsel %vm5841, %v5702, %v5704
  %v5894 = vsel %vm5841, %v5704, %v5706
  %v5895 = vsel %vm5841, %v5706, %v5708
  %v5896 = vsel %vm5841, %v5708, %v5710
  %v5897 = vsel %vm5841, %v5710, %v5712
  %v5898 = vsel %vm5841, %v5714, %v5716
  %v5899 = vsel %vm5841, %v5716, %v5718
  %v5900 = vsel %vm5841, %v5718, %v5720
  %v5901 = vsel %vm5841, %v5720, %v5722
  %v5902 = vsel %vm5841, %v5722, %v5724
  %v5903 = vsel %vm5841, %v5724, %v5726
  %v5904 = vsel %vm5841, %v5726, %v5728
  %v5905 = vsel %vm5841, %v5730, %v5732
  %v5906 = vsel %vm5841, %v5732, %v5734
  %v5907 = vsel %vm5841, %v5734, %v5736
  %v5908 = vsel %vm5841, %v5736, %v5738
  %v5909 = vsel %vm5841, %v5738, %v5740
  %v5910 = vsel %vm5841, %v5740, %v5742
  %v5911 = vsel %vm5841, %v5742, %v5744
  %v5912 = vsel %vm5841, %v5746, %v5748
  %v5913 = vsel %vm5841, %v5748, %v5750
  %v5914 = vsel %vm5841, %v5750, %v5752
  %v5915 = vsel %vm5841, %v5752, %v5754
  %v5916 = vsel %vm5841, %v5754, %v5756
  %v5917 = vsel %vm5841, %v5756, %v5758
  %v5918 = vsel %vm5841, %v5758, %v5760
  %v5919 = vsel %vm5841, %v5762, %v5764
  %v5920 = vsel %vm5841, %v5764, %v5766
  %v5921 = vsel %vm5841, %v5766, %v5768
  %v5922 = vsel %vm5841, %v5768, %v5770
  %v5923 = vsel %vm5841, %v5770, %v5772
  %v5924 = vsel %vm5841, %v5772, %v5774
  %v5925 = vsel %vm5841, %v5774, %v5776
  %v5926 = vsel %vm5841, %v5778, %v5780
  %v5927 = vsel %vm5841, %v5780, %v5782
  %v5928 = vsel %vm5841, %v5782, %v5784
  %v5929 = vsel %vm5841, %v5784, %v5786
  %v5930 = vsel %vm5841, %v5786, %v5788
  %v5931 = vsel %vm5841, %v5788, %v5790
  %v5932 = vsel %vm5841, %v5790, %v5792
  %v5933 = vsel %vm5841, %v5794, %v5796
  %v5934 = vsel %vm5841, %v5796, %v5798
  %v5935 = vsel %vm5841, %v5798, %v5800
  %v5936 = vsel %vm5841, %v5800, %v5802
  %v5937 = vsel %vm5841, %v5802, %v5804
  %v5938 = vsel %vm5841, %v5804, %v5806
  %v5939 = vsel %vm5841, %v5806, %v5808
  %v5940 = vsel %vm5841, %v5810, %v5812
  %v5941 = vsel %vm5841, %v5812, %v5814
  %v5942 = vsel %vm5841, %v5814, %v5816
  %v5943 = vsel %vm5841, %v5816, %v5818
  %v5944 = vsel %vm5841, %v5818, %v5820
  %v5945 = vsel %vm5841, %v5820, %v5822
  %v5946 = vsel %vm5841, %v5822, %v5824
  %v5947 = vsel %vm5841, %v5826, %v5828
  %v5948 = vsel %vm5841, %v5828, %v5830
  %v5949 = vsel %vm5841, %v5830, %v5832
  %v5950 = vsel %vm5841, %v5832, %v5834
  %v5951 = vsel %vm5841, %v5834, %v5836
  %v5952 = vsel %vm5841, %v5836, %v5838
  %v5953 = vsel %vm5841, %v5838, %v5840
  %6066 = vst [vmem:[#allocation2 + $0x1880] sm:$0xff] %v5842
  %6067 = vst [vmem:[#allocation2 + $0x1888] sm:$0xff] %v5843
  %6068 = vst [vmem:[#allocation2 + $0x1890] sm:$0xff] %v5844
  %6069 = vst [vmem:[#allocation2 + $0x1898] sm:$0xff] %v5845
  %6070 = vst [vmem:[#allocation2 + $0x18a0] sm:$0xff] %v5846
  %6071 = vst [vmem:[#allocation2 + $0x18a8] sm:$0xff] %v5847
  %6072 = vst [vmem:[#allocation2 + $0x18b0] sm:$0xff] %v5848
  %6073 = vst [vmem:[#allocation2 + $0x18b8] sm:$0xff] %v5849
  %6074 = vst [vmem:[#allocation2 + $0x18c0] sm:$0xff] %v5850
  %6075 = vst [vmem:[#allocation2 + $0x18c8] sm:$0xff] %v5851
  %6076 = vst [vmem:[#allocation2 + $0x18d0] sm:$0xff] %v5852
  %6077 = vst [vmem:[#allocation2 + $0x18d8] sm:$0xff] %v5853
  %6078 = vst [vmem:[#allocation2 + $0x18e0] sm:$0xff] %v5854
  %6079 = vst [vmem:[#allocation2 + $0x18e8] sm:$0xff] %v5855
  %6080 = vst [vmem:[#allocation2 + $0x18f0] sm:$0xff] %v5856
  %6081 = vst [vmem:[#allocation2 + $0x18f8] sm:$0xff] %v5857
  %6082 = vst [vmem:[#allocation2 + $0x1900] sm:$0xff] %v5858
  %6083 = vst [vmem:[#allocation2 + $0x1908] sm:$0xff] %v5859
  %6084 = vst [vmem:[#allocation2 + $0x1910] sm:$0xff] %v5860
  %6085 = vst [vmem:[#allocation2 + $0x1918] sm:$0xff] %v5861
  %6086 = vst [vmem:[#allocation2 + $0x1920] sm:$0xff] %v5862
  %6087 = vst [vmem:[#allocation2 + $0x1928] sm:$0xff] %v5863
  %6088 = vst [vmem:[#allocation2 + $0x1930] sm:$0xff] %v5864
  %6089 = vst [vmem:[#allocation2 + $0x1938] sm:$0xff] %v5865
  %6090 = vst [vmem:[#allocation2 + $0x1940] sm:$0xff] %v5866
  %6091 = vst [vmem:[#allocation2 + $0x1948] sm:$0xff] %v5867
  %6092 = vst [vmem:[#allocation2 + $0x1950] sm:$0xff] %v5868
  %6093 = vst [vmem:[#allocation2 + $0x1958] sm:$0xff] %v5869
  %6094 = vst [vmem:[#allocation2 + $0x1960] sm:$0xff] %v5870
  %6095 = vst [vmem:[#allocation2 + $0x1968] sm:$0xff] %v5871
  %6096 = vst [vmem:[#allocation2 + $0x1970] sm:$0xff] %v5872
  %6097 = vst [vmem:[#allocation2 + $0x1978] sm:$0xff] %v5873
  %6098 = vst [vmem:[#allocation2 + $0x1980] sm:$0xff] %v5874
  %6099 = vst [vmem:[#allocation2 + $0x1988] sm:$0xff] %v5875
  %6100 = vst [vmem:[#allocation2 + $0x1990] sm:$0xff] %v5876
  %6101 = vst [vmem:[#allocation2 + $0x1998] sm:$0xff] %v5877
  %6102 = vst [vmem:[#allocation2 + $0x19a0] sm:$0xff] %v5878
  %6103 = vst [vmem:[#allocation2 + $0x19a8] sm:$0xff] %v5879
  %6104 = vst [vmem:[#allocation2 + $0x19b0] sm:$0xff] %v5880
  %6105 = vst [vmem:[#allocation2 + $0x19b8] sm:$0xff] %v5881
  %6106 = vst [vmem:[#allocation2 + $0x19c0] sm:$0xff] %v5882
  %6107 = vst [vmem:[#allocation2 + $0x19c8] sm:$0xff] %v5883
  %6108 = vst [vmem:[#allocation2 + $0x19d0] sm:$0xff] %v5884
  %6109 = vst [vmem:[#allocation2 + $0x19d8] sm:$0xff] %v5885
  %6110 = vst [vmem:[#allocation2 + $0x19e0] sm:$0xff] %v5886
  %6111 = vst [vmem:[#allocation2 + $0x19e8] sm:$0xff] %v5887
  %6112 = vst [vmem:[#allocation2 + $0x19f0] sm:$0xff] %v5888
  %6113 = vst [vmem:[#allocation2 + $0x19f8] sm:$0xff] %v5889
  %6114 = vst [vmem:[#allocation2 + $0x1a00] sm:$0xff] %v5890
  %6115 = vst [vmem:[#allocation2 + $0x1a08] sm:$0xff] %v5891
  %6116 = vst [vmem:[#allocation2 + $0x1a10] sm:$0xff] %v5892
  %6117 = vst [vmem:[#allocation2 + $0x1a18] sm:$0xff] %v5893
  %6118 = vst [vmem:[#allocation2 + $0x1a20] sm:$0xff] %v5894
  %6119 = vst [vmem:[#allocation2 + $0x1a28] sm:$0xff] %v5895
  %6120 = vst [vmem:[#allocation2 + $0x1a30] sm:$0xff] %v5896
  %6121 = vst [vmem:[#allocation2 + $0x1a38] sm:$0xff] %v5897
  %6122 = vst [vmem:[#allocation2 + $0x1a40] sm:$0xff] %v5898
  %6123 = vst [vmem:[#allocation2 + $0x1a48] sm:$0xff] %v5899
  %6124 = vst [vmem:[#allocation2 + $0x1a50] sm:$0xff] %v5900
  %6125 = vst [vmem:[#allocation2 + $0x1a58] sm:$0xff] %v5901
  %6126 = vst [vmem:[#allocation2 + $0x1a60] sm:$0xff] %v5902
  %6127 = vst [vmem:[#allocation2 + $0x1a68] sm:$0xff] %v5903
  %6128 = vst [vmem:[#allocation2 + $0x1a70] sm:$0xff] %v5904
  %6129 = vst [vmem:[#allocation2 + $0x1a78] sm:$0xff] %v5905
  %6130 = vst [vmem:[#allocation2 + $0x1a80] sm:$0xff] %v5906
  %6131 = vst [vmem:[#allocation2 + $0x1a88] sm:$0xff] %v5907
  %6132 = vst [vmem:[#allocation2 + $0x1a90] sm:$0xff] %v5908
  %6133 = vst [vmem:[#allocation2 + $0x1a98] sm:$0xff] %v5909
  %6134 = vst [vmem:[#allocation2 + $0x1aa0] sm:$0xff] %v5910
  %6135 = vst [vmem:[#allocation2 + $0x1aa8] sm:$0xff] %v5911
  %6136 = vst [vmem:[#allocation2 + $0x1ab0] sm:$0xff] %v5912
  %6137 = vst [vmem:[#allocation2 + $0x1ab8] sm:$0xff] %v5913
  %6138 = vst [vmem:[#allocation2 + $0x1ac0] sm:$0xff] %v5914
  %6139 = vst [vmem:[#allocation2 + $0x1ac8] sm:$0xff] %v5915
  %6140 = vst [vmem:[#allocation2 + $0x1ad0] sm:$0xff] %v5916
  %6141 = vst [vmem:[#allocation2 + $0x1ad8] sm:$0xff] %v5917
  %6142 = vst [vmem:[#allocation2 + $0x1ae0] sm:$0xff] %v5918
  %6143 = vst [vmem:[#allocation2 + $0x1ae8] sm:$0xff] %v5919
  %6144 = vst [vmem:[#allocation2 + $0x1af0] sm:$0xff] %v5920
  %6145 = vst [vmem:[#allocation2 + $0x1af8] sm:$0xff] %v5921
  %6146 = vst [vmem:[#allocation2 + $0x1b00] sm:$0xff] %v5922
  %6147 = vst [vmem:[#allocation2 + $0x1b08] sm:$0xff] %v5923
  %6148 = vst [vmem:[#allocation2 + $0x1b10] sm:$0xff] %v5924
  %6149 = vst [vmem:[#allocation2 + $0x1b18] sm:$0xff] %v5925
  %6150 = vst [vmem:[#allocation2 + $0x1b20] sm:$0xff] %v5926
  %6151 = vst [vmem:[#allocation2 + $0x1b28] sm:$0xff] %v5927
  %6152 = vst [vmem:[#allocation2 + $0x1b30] sm:$0xff] %v5928
  %6153 = vst [vmem:[#allocation2 + $0x1b38] sm:$0xff] %v5929
  %6154 = vst [vmem:[#allocation2 + $0x1b40] sm:$0xff] %v5930
  %6155 = vst [vmem:[#allocation2 + $0x1b48] sm:$0xff] %v5931
  %6156 = vst [vmem:[#allocation2 + $0x1b50] sm:$0xff] %v5932
  %6157 = vst [vmem:[#allocation2 + $0x1b58] sm:$0xff] %v5933
  %6158 = vst [vmem:[#allocation2 + $0x1b60] sm:$0xff] %v5934
  %6159 = vst [vmem:[#allocation2 + $0x1b68] sm:$0xff] %v5935
  %6160 = vst [vmem:[#allocation2 + $0x1b70] sm:$0xff] %v5936
  %6161 = vst [vmem:[#allocation2 + $0x1b78] sm:$0xff] %v5937
  %6162 = vst [vmem:[#allocation2 + $0x1b80] sm:$0xff] %v5938
  %6163 = vst [vmem:[#allocation2 + $0x1b88] sm:$0xff] %v5939
  %6164 = vst [vmem:[#allocation2 + $0x1b90] sm:$0xff] %v5940
  %6165 = vst [vmem:[#allocation2 + $0x1b98] sm:$0xff] %v5941
  %6166 = vst [vmem:[#allocation2 + $0x1ba0] sm:$0xff] %v5942
  %6167 = vst [vmem:[#allocation2 + $0x1ba8] sm:$0xff] %v5943
  %6168 = vst [vmem:[#allocation2 + $0x1bb0] sm:$0xff] %v5944
  %6169 = vst [vmem:[#allocation2 + $0x1bb8] sm:$0xff] %v5945
  %6170 = vst [vmem:[#allocation2 + $0x1bc0] sm:$0xff] %v5946
  %6171 = vst [vmem:[#allocation2 + $0x1bc8] sm:$0xff] %v5947
  %6172 = vst [vmem:[#allocation2 + $0x1bd0] sm:$0xff] %v5948
  %6173 = vst [vmem:[#allocation2 + $0x1bd8] sm:$0xff] %v5949
  %6174 = vst [vmem:[#allocation2 + $0x1be0] sm:$0xff] %v5950
  %6175 = vst [vmem:[#allocation2 + $0x1be8] sm:$0xff] %v5951
  %6176 = vst [vmem:[#allocation2 + $0x1bf0] sm:$0xff] %v5952
  %6177 = vst [vmem:[#allocation2 + $0x1bf8] sm:$0xff] %v5953
  %v6178 = vld [vmem:[%s1] sm:$0xff]
  %v6179 = vld [vmem:[%s1 + $0x8] sm:$0xff]
  %v6180 = vld [vmem:[%s1 + $0x10] sm:$0xff]
  %v6181 = vld [vmem:[%s1 + $0x18] sm:$0xff]
  %v6182 = vld [vmem:[%s1 + $0x20] sm:$0xff]
  %v6183 = vld [vmem:[%s1 + $0x28] sm:$0xff]
  %v6184 = vld [vmem:[%s1 + $0x30] sm:$0xff]
  %v6185 = vld [vmem:[%s1 + $0x38] sm:$0xff]
  %v6186 = vld [vmem:[%s1 + $0x40] sm:$0xff]
  %v6187 = vld [vmem:[%s1 + $0x48] sm:$0xff]
  %v6188 = vld [vmem:[%s1 + $0x50] sm:$0xff]
  %v6189 = vld [vmem:[%s1 + $0x58] sm:$0xff]
  %v6190 = vld [vmem:[%s1 + $0x60] sm:$0xff]
  %v6191 = vld [vmem:[%s1 + $0x68] sm:$0xff]
  %v6192 = vld [vmem:[%s1 + $0x70] sm:$0xff]
  %v6193 = vld [vmem:[%s1 + $0x78] sm:$0xff]
  %v6194 = vld [vmem:[%s1 + $0x80] sm:$0xff]
  %v6195 = vld [vmem:[%s1 + $0x88] sm:$0xff]
  %v6196 = vld [vmem:[%s1 + $0x90] sm:$0xff]
  %v6197 = vld [vmem:[%s1 + $0x98] sm:$0xff]
  %v6198 = vld [vmem:[%s1 + $0xa0] sm:$0xff]
  %v6199 = vld [vmem:[%s1 + $0xa8] sm:$0xff]
  %v6200 = vld [vmem:[%s1 + $0xb0] sm:$0xff]
  %v6201 = vld [vmem:[%s1 + $0xb8] sm:$0xff]
  %v6202 = vld [vmem:[%s1 + $0xc0] sm:$0xff]
  %v6203 = vld [vmem:[%s1 + $0xc8] sm:$0xff]
  %v6204 = vld [vmem:[%s1 + $0xd0] sm:$0xff]
  %v6205 = vld [vmem:[%s1 + $0xd8] sm:$0xff]
  %v6206 = vld [vmem:[%s1 + $0xe0] sm:$0xff]
  %v6207 = vld [vmem:[%s1 + $0xe8] sm:$0xff]
  %v6208 = vld [vmem:[%s1 + $0xf0] sm:$0xff]
  %v6209 = vld [vmem:[%s1 + $0xf8] sm:$0xff]
  %v6210 = vld [vmem:[%s1 + $0x100] sm:$0xff]
  %v6211 = vld [vmem:[%s1 + $0x108] sm:$0xff]
  %v6212 = vld [vmem:[%s1 + $0x110] sm:$0xff]
  %v6213 = vld [vmem:[%s1 + $0x118] sm:$0xff]
  %v6214 = vld [vmem:[%s1 + $0x120] sm:$0xff]
  %v6215 = vld [vmem:[%s1 + $0x128] sm:$0xff]
  %v6216 = vld [vmem:[%s1 + $0x130] sm:$0xff]
  %v6217 = vld [vmem:[%s1 + $0x138] sm:$0xff]
  %v6218 = vld [vmem:[%s1 + $0x140] sm:$0xff]
  %v6219 = vld [vmem:[%s1 + $0x148] sm:$0xff]
  %v6220 = vld [vmem:[%s1 + $0x150] sm:$0xff]
  %v6221 = vld [vmem:[%s1 + $0x158] sm:$0xff]
  %v6222 = vld [vmem:[%s1 + $0x160] sm:$0xff]
  %v6223 = vld [vmem:[%s1 + $0x168] sm:$0xff]
  %v6224 = vld [vmem:[%s1 + $0x170] sm:$0xff]
  %v6225 = vld [vmem:[%s1 + $0x178] sm:$0xff]
  %v6226 = vld [vmem:[%s1 + $0x180] sm:$0xff]
  %v6227 = vld [vmem:[%s1 + $0x188] sm:$0xff]
  %v6228 = vld [vmem:[%s1 + $0x190] sm:$0xff]
  %v6229 = vld [vmem:[%s1 + $0x198] sm:$0xff]
  %v6230 = vld [vmem:[%s1 + $0x1a0] sm:$0xff]
  %v6231 = vld [vmem:[%s1 + $0x1a8] sm:$0xff]
  %v6232 = vld [vmem:[%s1 + $0x1b0] sm:$0xff]
  %v6233 = vld [vmem:[%s1 + $0x1b8] sm:$0xff]
  %v6234 = vld [vmem:[%s1 + $0x1c0] sm:$0xff]
  %v6235 = vld [vmem:[%s1 + $0x1c8] sm:$0xff]
  %v6236 = vld [vmem:[%s1 + $0x1d0] sm:$0xff]
  %v6237 = vld [vmem:[%s1 + $0x1d8] sm:$0xff]
  %v6238 = vld [vmem:[%s1 + $0x1e0] sm:$0xff]
  %v6239 = vld [vmem:[%s1 + $0x1e8] sm:$0xff]
  %v6240 = vld [vmem:[%s1 + $0x1f0] sm:$0xff]
  %v6241 = vld [vmem:[%s1 + $0x1f8] sm:$0xff]
  %v6242 = vld [vmem:[%s1 + $0x200] sm:$0xff]
  %v6243 = vld [vmem:[%s1 + $0x208] sm:$0xff]
  %v6244 = vld [vmem:[%s1 + $0x210] sm:$0xff]
  %v6245 = vld [vmem:[%s1 + $0x218] sm:$0xff]
  %v6246 = vld [vmem:[%s1 + $0x220] sm:$0xff]
  %v6247 = vld [vmem:[%s1 + $0x228] sm:$0xff]
  %v6248 = vld [vmem:[%s1 + $0x230] sm:$0xff]
  %v6249 = vld [vmem:[%s1 + $0x238] sm:$0xff]
  %v6250 = vld [vmem:[%s1 + $0x240] sm:$0xff]
  %v6251 = vld [vmem:[%s1 + $0x248] sm:$0xff]
  %v6252 = vld [vmem:[%s1 + $0x250] sm:$0xff]
  %v6253 = vld [vmem:[%s1 + $0x258] sm:$0xff]
  %v6254 = vld [vmem:[%s1 + $0x260] sm:$0xff]
  %v6255 = vld [vmem:[%s1 + $0x268] sm:$0xff]
  %v6256 = vld [vmem:[%s1 + $0x270] sm:$0xff]
  %v6257 = vld [vmem:[%s1 + $0x278] sm:$0xff]
  %v6258 = vld [vmem:[%s1 + $0x280] sm:$0xff]
  %v6259 = vld [vmem:[%s1 + $0x288] sm:$0xff]
  %v6260 = vld [vmem:[%s1 + $0x290] sm:$0xff]
  %v6261 = vld [vmem:[%s1 + $0x298] sm:$0xff]
  %v6262 = vld [vmem:[%s1 + $0x2a0] sm:$0xff]
  %v6263 = vld [vmem:[%s1 + $0x2a8] sm:$0xff]
  %v6264 = vld [vmem:[%s1 + $0x2b0] sm:$0xff]
  %v6265 = vld [vmem:[%s1 + $0x2b8] sm:$0xff]
  %v6266 = vld [vmem:[%s1 + $0x2c0] sm:$0xff]
  %v6267 = vld [vmem:[%s1 + $0x2c8] sm:$0xff]
  %v6268 = vld [vmem:[%s1 + $0x2d0] sm:$0xff]
  %v6269 = vld [vmem:[%s1 + $0x2d8] sm:$0xff]
  %v6270 = vld [vmem:[%s1 + $0x2e0] sm:$0xff]
  %v6271 = vld [vmem:[%s1 + $0x2e8] sm:$0xff]
  %v6272 = vld [vmem:[%s1 + $0x2f0] sm:$0xff]
  %v6273 = vld [vmem:[%s1 + $0x2f8] sm:$0xff]
  %v6274 = vld [vmem:[%s1 + $0x300] sm:$0xff]
  %v6275 = vld [vmem:[%s1 + $0x308] sm:$0xff]
  %v6276 = vld [vmem:[%s1 + $0x310] sm:$0xff]
  %v6277 = vld [vmem:[%s1 + $0x318] sm:$0xff]
  %v6278 = vld [vmem:[%s1 + $0x320] sm:$0xff]
  %v6279 = vld [vmem:[%s1 + $0x328] sm:$0xff]
  %v6280 = vld [vmem:[%s1 + $0x330] sm:$0xff]
  %v6281 = vld [vmem:[%s1 + $0x338] sm:$0xff]
  %v6282 = vld [vmem:[%s1 + $0x340] sm:$0xff]
  %v6283 = vld [vmem:[%s1 + $0x348] sm:$0xff]
  %v6284 = vld [vmem:[%s1 + $0x350] sm:$0xff]
  %v6285 = vld [vmem:[%s1 + $0x358] sm:$0xff]
  %v6286 = vld [vmem:[%s1 + $0x360] sm:$0xff]
  %v6287 = vld [vmem:[%s1 + $0x368] sm:$0xff]
  %v6288 = vld [vmem:[%s1 + $0x370] sm:$0xff]
  %v6289 = vld [vmem:[%s1 + $0x378] sm:$0xff]
  %v6290 = vld [vmem:[%s1 + $0x380] sm:$0xff]
  %v6291 = vld [vmem:[%s1 + $0x388] sm:$0xff]
  %v6292 = vld [vmem:[%s1 + $0x390] sm:$0xff]
  %v6293 = vld [vmem:[%s1 + $0x398] sm:$0xff]
  %v6294 = vld [vmem:[%s1 + $0x3a0] sm:$0xff]
  %v6295 = vld [vmem:[%s1 + $0x3a8] sm:$0xff]
  %v6296 = vld [vmem:[%s1 + $0x3b0] sm:$0xff]
  %v6297 = vld [vmem:[%s1 + $0x3b8] sm:$0xff]
  %v6298 = vld [vmem:[%s1 + $0x3c0] sm:$0xff]
  %v6299 = vld [vmem:[%s1 + $0x3c8] sm:$0xff]
  %v6300 = vld [vmem:[%s1 + $0x3d0] sm:$0xff]
  %v6301 = vld [vmem:[%s1 + $0x3d8] sm:$0xff]
  %v6302 = vld [vmem:[%s1 + $0x3e0] sm:$0xff]
  %v6303 = vld [vmem:[%s1 + $0x3e8] sm:$0xff]
  %v6304 = vld [vmem:[%s1 + $0x3f0] sm:$0xff]
  %v6305 = vld [vmem:[%s1 + $0x3f8] sm:$0xff]
  %6434 = vrot.lane.b32.xlu0 %v6178, 66
  %v6435 = vpop.permute.xlu0 %6434
  %6436 = vrot.lane.b32.xlu0 %v6179, 66
  %v6437 = vpop.permute.xlu0 %6436
  %6438 = vrot.lane.b32.xlu0 %v6180, 66
  %v6439 = vpop.permute.xlu0 %6438
  %6440 = vrot.lane.b32.xlu0 %v6181, 66
  %v6441 = vpop.permute.xlu0 %6440
  %6442 = vrot.lane.b32.xlu0 %v6182, 66
  %v6443 = vpop.permute.xlu0 %6442
  %6444 = vrot.lane.b32.xlu0 %v6183, 66
  %v6445 = vpop.permute.xlu0 %6444
  %6446 = vrot.lane.b32.xlu0 %v6184, 66
  %v6447 = vpop.permute.xlu0 %6446
  %6448 = vrot.lane.b32.xlu0 %v6185, 66
  %v6449 = vpop.permute.xlu0 %6448
  %6450 = vrot.lane.b32.xlu0 %v6186, 66
  %v6451 = vpop.permute.xlu0 %6450
  %6452 = vrot.lane.b32.xlu0 %v6187, 66
  %v6453 = vpop.permute.xlu0 %6452
  %6454 = vrot.lane.b32.xlu0 %v6188, 66
  %v6455 = vpop.permute.xlu0 %6454
  %6456 = vrot.lane.b32.xlu0 %v6189, 66
  %v6457 = vpop.permute.xlu0 %6456
  %6458 = vrot.lane.b32.xlu0 %v6190, 66
  %v6459 = vpop.permute.xlu0 %6458
  %6460 = vrot.lane.b32.xlu0 %v6191, 66
  %v6461 = vpop.permute.xlu0 %6460
  %6462 = vrot.lane.b32.xlu0 %v6192, 66
  %v6463 = vpop.permute.xlu0 %6462
  %6464 = vrot.lane.b32.xlu0 %v6193, 66
  %v6465 = vpop.permute.xlu0 %6464
  %6466 = vrot.lane.b32.xlu0 %v6194, 66
  %v6467 = vpop.permute.xlu0 %6466
  %6468 = vrot.lane.b32.xlu0 %v6195, 66
  %v6469 = vpop.permute.xlu0 %6468
  %6470 = vrot.lane.b32.xlu0 %v6196, 66
  %v6471 = vpop.permute.xlu0 %6470
  %6472 = vrot.lane.b32.xlu0 %v6197, 66
  %v6473 = vpop.permute.xlu0 %6472
  %6474 = vrot.lane.b32.xlu0 %v6198, 66
  %v6475 = vpop.permute.xlu0 %6474
  %6476 = vrot.lane.b32.xlu0 %v6199, 66
  %v6477 = vpop.permute.xlu0 %6476
  %6478 = vrot.lane.b32.xlu0 %v6200, 66
  %v6479 = vpop.permute.xlu0 %6478
  %6480 = vrot.lane.b32.xlu0 %v6201, 66
  %v6481 = vpop.permute.xlu0 %6480
  %6482 = vrot.lane.b32.xlu0 %v6202, 66
  %v6483 = vpop.permute.xlu0 %6482
  %6484 = vrot.lane.b32.xlu0 %v6203, 66
  %v6485 = vpop.permute.xlu0 %6484
  %6486 = vrot.lane.b32.xlu0 %v6204, 66
  %v6487 = vpop.permute.xlu0 %6486
  %6488 = vrot.lane.b32.xlu0 %v6205, 66
  %v6489 = vpop.permute.xlu0 %6488
  %6490 = vrot.lane.b32.xlu0 %v6206, 66
  %v6491 = vpop.permute.xlu0 %6490
  %6492 = vrot.lane.b32.xlu0 %v6207, 66
  %v6493 = vpop.permute.xlu0 %6492
  %6494 = vrot.lane.b32.xlu0 %v6208, 66
  %v6495 = vpop.permute.xlu0 %6494
  %6496 = vrot.lane.b32.xlu0 %v6209, 66
  %v6497 = vpop.permute.xlu0 %6496
  %6498 = vrot.lane.b32.xlu0 %v6210, 66
  %v6499 = vpop.permute.xlu0 %6498
  %6500 = vrot.lane.b32.xlu0 %v6211, 66
  %v6501 = vpop.permute.xlu0 %6500
  %6502 = vrot.lane.b32.xlu0 %v6212, 66
  %v6503 = vpop.permute.xlu0 %6502
  %6504 = vrot.lane.b32.xlu0 %v6213, 66
  %v6505 = vpop.permute.xlu0 %6504
  %6506 = vrot.lane.b32.xlu0 %v6214, 66
  %v6507 = vpop.permute.xlu0 %6506
  %6508 = vrot.lane.b32.xlu0 %v6215, 66
  %v6509 = vpop.permute.xlu0 %6508
  %6510 = vrot.lane.b32.xlu0 %v6216, 66
  %v6511 = vpop.permute.xlu0 %6510
  %6512 = vrot.lane.b32.xlu0 %v6217, 66
  %v6513 = vpop.permute.xlu0 %6512
  %6514 = vrot.lane.b32.xlu0 %v6218, 66
  %v6515 = vpop.permute.xlu0 %6514
  %6516 = vrot.lane.b32.xlu0 %v6219, 66
  %v6517 = vpop.permute.xlu0 %6516
  %6518 = vrot.lane.b32.xlu0 %v6220, 66
  %v6519 = vpop.permute.xlu0 %6518
  %6520 = vrot.lane.b32.xlu0 %v6221, 66
  %v6521 = vpop.permute.xlu0 %6520
  %6522 = vrot.lane.b32.xlu0 %v6222, 66
  %v6523 = vpop.permute.xlu0 %6522
  %6524 = vrot.lane.b32.xlu0 %v6223, 66
  %v6525 = vpop.permute.xlu0 %6524
  %6526 = vrot.lane.b32.xlu0 %v6224, 66
  %v6527 = vpop.permute.xlu0 %6526
  %6528 = vrot.lane.b32.xlu0 %v6225, 66
  %v6529 = vpop.permute.xlu0 %6528
  %6530 = vrot.lane.b32.xlu0 %v6226, 66
  %v6531 = vpop.permute.xlu0 %6530
  %6532 = vrot.lane.b32.xlu0 %v6227, 66
  %v6533 = vpop.permute.xlu0 %6532
  %6534 = vrot.lane.b32.xlu0 %v6228, 66
  %v6535 = vpop.permute.xlu0 %6534
  %6536 = vrot.lane.b32.xlu0 %v6229, 66
  %v6537 = vpop.permute.xlu0 %6536
  %6538 = vrot.lane.b32.xlu0 %v6230, 66
  %v6539 = vpop.permute.xlu0 %6538
  %6540 = vrot.lane.b32.xlu0 %v6231, 66
  %v6541 = vpop.permute.xlu0 %6540
  %6542 = vrot.lane.b32.xlu0 %v6232, 66
  %v6543 = vpop.permute.xlu0 %6542
  %6544 = vrot.lane.b32.xlu0 %v6233, 66
  %v6545 = vpop.permute.xlu0 %6544
  %6546 = vrot.lane.b32.xlu0 %v6234, 66
  %v6547 = vpop.permute.xlu0 %6546
  %6548 = vrot.lane.b32.xlu0 %v6235, 66
  %v6549 = vpop.permute.xlu0 %6548
  %6550 = vrot.lane.b32.xlu0 %v6236, 66
  %v6551 = vpop.permute.xlu0 %6550
  %6552 = vrot.lane.b32.xlu0 %v6237, 66
  %v6553 = vpop.permute.xlu0 %6552
  %6554 = vrot.lane.b32.xlu0 %v6238, 66
  %v6555 = vpop.permute.xlu0 %6554
  %6556 = vrot.lane.b32.xlu0 %v6239, 66
  %v6557 = vpop.permute.xlu0 %6556
  %6558 = vrot.lane.b32.xlu0 %v6240, 66
  %v6559 = vpop.permute.xlu0 %6558
  %6560 = vrot.lane.b32.xlu0 %v6241, 66
  %v6561 = vpop.permute.xlu0 %6560
  %6562 = vrot.lane.b32.xlu0 %v6242, 66
  %v6563 = vpop.permute.xlu0 %6562
  %6564 = vrot.lane.b32.xlu0 %v6243, 66
  %v6565 = vpop.permute.xlu0 %6564
  %6566 = vrot.lane.b32.xlu0 %v6244, 66
  %v6567 = vpop.permute.xlu0 %6566
  %6568 = vrot.lane.b32.xlu0 %v6245, 66
  %v6569 = vpop.permute.xlu0 %6568
  %6570 = vrot.lane.b32.xlu0 %v6246, 66
  %v6571 = vpop.permute.xlu0 %6570
  %6572 = vrot.lane.b32.xlu0 %v6247, 66
  %v6573 = vpop.permute.xlu0 %6572
  %6574 = vrot.lane.b32.xlu0 %v6248, 66
  %v6575 = vpop.permute.xlu0 %6574
  %6576 = vrot.lane.b32.xlu0 %v6249, 66
  %v6577 = vpop.permute.xlu0 %6576
  %6578 = vrot.lane.b32.xlu0 %v6250, 66
  %v6579 = vpop.permute.xlu0 %6578
  %6580 = vrot.lane.b32.xlu0 %v6251, 66
  %v6581 = vpop.permute.xlu0 %6580
  %6582 = vrot.lane.b32.xlu0 %v6252, 66
  %v6583 = vpop.permute.xlu0 %6582
  %6584 = vrot.lane.b32.xlu0 %v6253, 66
  %v6585 = vpop.permute.xlu0 %6584
  %6586 = vrot.lane.b32.xlu0 %v6254, 66
  %v6587 = vpop.permute.xlu0 %6586
  %6588 = vrot.lane.b32.xlu0 %v6255, 66
  %v6589 = vpop.permute.xlu0 %6588
  %6590 = vrot.lane.b32.xlu0 %v6256, 66
  %v6591 = vpop.permute.xlu0 %6590
  %6592 = vrot.lane.b32.xlu0 %v6257, 66
  %v6593 = vpop.permute.xlu0 %6592
  %6594 = vrot.lane.b32.xlu0 %v6258, 66
  %v6595 = vpop.permute.xlu0 %6594
  %6596 = vrot.lane.b32.xlu0 %v6259, 66
  %v6597 = vpop.permute.xlu0 %6596
  %6598 = vrot.lane.b32.xlu0 %v6260, 66
  %v6599 = vpop.permute.xlu0 %6598
  %6600 = vrot.lane.b32.xlu0 %v6261, 66
  %v6601 = vpop.permute.xlu0 %6600
  %6602 = vrot.lane.b32.xlu0 %v6262, 66
  %v6603 = vpop.permute.xlu0 %6602
  %6604 = vrot.lane.b32.xlu0 %v6263, 66
  %v6605 = vpop.permute.xlu0 %6604
  %6606 = vrot.lane.b32.xlu0 %v6264, 66
  %v6607 = vpop.permute.xlu0 %6606
  %6608 = vrot.lane.b32.xlu0 %v6265, 66
  %v6609 = vpop.permute.xlu0 %6608
  %6610 = vrot.lane.b32.xlu0 %v6266, 66
  %v6611 = vpop.permute.xlu0 %6610
  %6612 = vrot.lane.b32.xlu0 %v6267, 66
  %v6613 = vpop.permute.xlu0 %6612
  %6614 = vrot.lane.b32.xlu0 %v6268, 66
  %v6615 = vpop.permute.xlu0 %6614
  %6616 = vrot.lane.b32.xlu0 %v6269, 66
  %v6617 = vpop.permute.xlu0 %6616
  %6618 = vrot.lane.b32.xlu0 %v6270, 66
  %v6619 = vpop.permute.xlu0 %6618
  %6620 = vrot.lane.b32.xlu0 %v6271, 66
  %v6621 = vpop.permute.xlu0 %6620
  %6622 = vrot.lane.b32.xlu0 %v6272, 66
  %v6623 = vpop.permute.xlu0 %6622
  %6624 = vrot.lane.b32.xlu0 %v6273, 66
  %v6625 = vpop.permute.xlu0 %6624
  %6626 = vrot.lane.b32.xlu0 %v6274, 66
  %v6627 = vpop.permute.xlu0 %6626
  %6628 = vrot.lane.b32.xlu0 %v6275, 66
  %v6629 = vpop.permute.xlu0 %6628
  %6630 = vrot.lane.b32.xlu0 %v6276, 66
  %v6631 = vpop.permute.xlu0 %6630
  %6632 = vrot.lane.b32.xlu0 %v6277, 66
  %v6633 = vpop.permute.xlu0 %6632
  %6634 = vrot.lane.b32.xlu0 %v6278, 66
  %v6635 = vpop.permute.xlu0 %6634
  %6636 = vrot.lane.b32.xlu0 %v6279, 66
  %v6637 = vpop.permute.xlu0 %6636
  %6638 = vrot.lane.b32.xlu0 %v6280, 66
  %v6639 = vpop.permute.xlu0 %6638
  %6640 = vrot.lane.b32.xlu0 %v6281, 66
  %v6641 = vpop.permute.xlu0 %6640
  %6642 = vrot.lane.b32.xlu0 %v6282, 66
  %v6643 = vpop.permute.xlu0 %6642
  %6644 = vrot.lane.b32.xlu0 %v6283, 66
  %v6645 = vpop.permute.xlu0 %6644
  %6646 = vrot.lane.b32.xlu0 %v6284, 66
  %v6647 = vpop.permute.xlu0 %6646
  %6648 = vrot.lane.b32.xlu0 %v6285, 66
  %v6649 = vpop.permute.xlu0 %6648
  %6650 = vrot.lane.b32.xlu0 %v6286, 66
  %v6651 = vpop.permute.xlu0 %6650
  %6652 = vrot.lane.b32.xlu0 %v6287, 66
  %v6653 = vpop.permute.xlu0 %6652
  %6654 = vrot.lane.b32.xlu0 %v6288, 66
  %v6655 = vpop.permute.xlu0 %6654
  %6656 = vrot.lane.b32.xlu0 %v6289, 66
  %v6657 = vpop.permute.xlu0 %6656
  %6658 = vrot.lane.b32.xlu0 %v6290, 66
  %v6659 = vpop.permute.xlu0 %6658
  %6660 = vrot.lane.b32.xlu0 %v6291, 66
  %v6661 = vpop.permute.xlu0 %6660
  %6662 = vrot.lane.b32.xlu0 %v6292, 66
  %v6663 = vpop.permute.xlu0 %6662
  %6664 = vrot.lane.b32.xlu0 %v6293, 66
  %v6665 = vpop.permute.xlu0 %6664
  %6666 = vrot.lane.b32.xlu0 %v6294, 66
  %v6667 = vpop.permute.xlu0 %6666
  %6668 = vrot.lane.b32.xlu0 %v6295, 66
  %v6669 = vpop.permute.xlu0 %6668
  %6670 = vrot.lane.b32.xlu0 %v6296, 66
  %v6671 = vpop.permute.xlu0 %6670
  %6672 = vrot.lane.b32.xlu0 %v6297, 66
  %v6673 = vpop.permute.xlu0 %6672
  %6674 = vrot.lane.b32.xlu0 %v6298, 66
  %v6675 = vpop.permute.xlu0 %6674
  %6676 = vrot.lane.b32.xlu0 %v6299, 66
  %v6677 = vpop.permute.xlu0 %6676
  %6678 = vrot.lane.b32.xlu0 %v6300, 66
  %v6679 = vpop.permute.xlu0 %6678
  %6680 = vrot.lane.b32.xlu0 %v6301, 66
  %v6681 = vpop.permute.xlu0 %6680
  %6682 = vrot.lane.b32.xlu0 %v6302, 66
  %v6683 = vpop.permute.xlu0 %6682
  %6684 = vrot.lane.b32.xlu0 %v6303, 66
  %v6685 = vpop.permute.xlu0 %6684
  %6686 = vrot.lane.b32.xlu0 %v6304, 66
  %v6687 = vpop.permute.xlu0 %6686
  %6688 = vrot.lane.b32.xlu0 %v6305, 66
  %v6689 = vpop.permute.xlu0 %6688
  %vm6690 = vcmask 539648
  %v6691 = vsel %vm6690, %v6435, %v6437
  %v6692 = vsel %vm6690, %v6437, %v6439
  %v6693 = vsel %vm6690, %v6439, %v6441
  %v6694 = vsel %vm6690, %v6441, %v6443
  %v6695 = vsel %vm6690, %v6443, %v6445
  %v6696 = vsel %vm6690, %v6445, %v6447
  %v6697 = vsel %vm6690, %v6447, %v6449
  %v6698 = vsel %vm6690, %v6451, %v6453
  %v6699 = vsel %vm6690, %v6453, %v6455
  %v6700 = vsel %vm6690, %v6455, %v6457
  %v6701 = vsel %vm6690, %v6457, %v6459
  %v6702 = vsel %vm6690, %v6459, %v6461
  %v6703 = vsel %vm6690, %v6461, %v6463
  %v6704 = vsel %vm6690, %v6463, %v6465
  %v6705 = vsel %vm6690, %v6467, %v6469
  %v6706 = vsel %vm6690, %v6469, %v6471
  %v6707 = vsel %vm6690, %v6471, %v6473
  %v6708 = vsel %vm6690, %v6473, %v6475
  %v6709 = vsel %vm6690, %v6475, %v6477
  %v6710 = vsel %vm6690, %v6477, %v6479
  %v6711 = vsel %vm6690, %v6479, %v6481
  %v6712 = vsel %vm6690, %v6483, %v6485
  %v6713 = vsel %vm6690, %v6485, %v6487
  %v6714 = vsel %vm6690, %v6487, %v6489
  %v6715 = vsel %vm6690, %v6489, %v6491
  %v6716 = vsel %vm6690, %v6491, %v6493
  %v6717 = vsel %vm6690, %v6493, %v6495
  %v6718 = vsel %vm6690, %v6495, %v6497
  %v6719 = vsel %vm6690, %v6499, %v6501
  %v6720 = vsel %vm6690, %v6501, %v6503
  %v6721 = vsel %vm6690, %v6503, %v6505
  %v6722 = vsel %vm6690, %v6505, %v6507
  %v6723 = vsel %vm6690, %v6507, %v6509
  %v6724 = vsel %vm6690, %v6509, %v6511
  %v6725 = vsel %vm6690, %v6511, %v6513
  %v6726 = vsel %vm6690, %v6515, %v6517
  %v6727 = vsel %vm6690, %v6517, %v6519
  %v6728 = vsel %vm6690, %v6519, %v6521
  %v6729 = vsel %vm6690, %v6521, %v6523
  %v6730 = vsel %vm6690, %v6523, %v6525
  %v6731 = vsel %vm6690, %v6525, %v6527
  %v6732 = vsel %vm6690, %v6527, %v6529
  %v6733 = vsel %vm6690, %v6531, %v6533
  %v6734 = vsel %vm6690, %v6533, %v6535
  %v6735 = vsel %vm6690, %v6535, %v6537
  %v6736 = vsel %vm6690, %v6537, %v6539
  %v6737 = vsel %vm6690, %v6539, %v6541
  %v6738 = vsel %vm6690, %v6541, %v6543
  %v6739 = vsel %vm6690, %v6543, %v6545
  %v6740 = vsel %vm6690, %v6547, %v6549
  %v6741 = vsel %vm6690, %v6549, %v6551
  %v6742 = vsel %vm6690, %v6551, %v6553
  %v6743 = vsel %vm6690, %v6553, %v6555
  %v6744 = vsel %vm6690, %v6555, %v6557
  %v6745 = vsel %vm6690, %v6557, %v6559
  %v6746 = vsel %vm6690, %v6559, %v6561
  %v6747 = vsel %vm6690, %v6563, %v6565
  %v6748 = vsel %vm6690, %v6565, %v6567
  %v6749 = vsel %vm6690, %v6567, %v6569
  %v6750 = vsel %vm6690, %v6569, %v6571
  %v6751 = vsel %vm6690, %v6571, %v6573
  %v6752 = vsel %vm6690, %v6573, %v6575
  %v6753 = vsel %vm6690, %v6575, %v6577
  %v6754 = vsel %vm6690, %v6579, %v6581
  %v6755 = vsel %vm6690, %v6581, %v6583
  %v6756 = vsel %vm6690, %v6583, %v6585
  %v6757 = vsel %vm6690, %v6585, %v6587
  %v6758 = vsel %vm6690, %v6587, %v6589
  %v6759 = vsel %vm6690, %v6589, %v6591
  %v6760 = vsel %vm6690, %v6591, %v6593
  %v6761 = vsel %vm6690, %v6595, %v6597
  %v6762 = vsel %vm6690, %v6597, %v6599
  %v6763 = vsel %vm6690, %v6599, %v6601
  %v6764 = vsel %vm6690, %v6601, %v6603
  %v6765 = vsel %vm6690, %v6603, %v6605
  %v6766 = vsel %vm6690, %v6605, %v6607
  %v6767 = vsel %vm6690, %v6607, %v6609
  %v6768 = vsel %vm6690, %v6611, %v6613
  %v6769 = vsel %vm6690, %v6613, %v6615
  %v6770 = vsel %vm6690, %v6615, %v6617
  %v6771 = vsel %vm6690, %v6617, %v6619
  %v6772 = vsel %vm6690, %v6619, %v6621
  %v6773 = vsel %vm6690, %v6621, %v6623
  %v6774 = vsel %vm6690, %v6623, %v6625
  %v6775 = vsel %vm6690, %v6627, %v6629
  %v6776 = vsel %vm6690, %v6629, %v6631
  %v6777 = vsel %vm6690, %v6631, %v6633
  %v6778 = vsel %vm6690, %v6633, %v6635
  %v6779 = vsel %vm6690, %v6635, %v6637
  %v6780 = vsel %vm6690, %v6637, %v6639
  %v6781 = vsel %vm6690, %v6639, %v6641
  %v6782 = vsel %vm6690, %v6643, %v6645
  %v6783 = vsel %vm6690, %v6645, %v6647
  %v6784 = vsel %vm6690, %v6647, %v6649
  %v6785 = vsel %vm6690, %v6649, %v6651
  %v6786 = vsel %vm6690, %v6651, %v6653
  %v6787 = vsel %vm6690, %v6653, %v6655
  %v6788 = vsel %vm6690, %v6655, %v6657
  %v6789 = vsel %vm6690, %v6659, %v6661
  %v6790 = vsel %vm6690, %v6661, %v6663
  %v6791 = vsel %vm6690, %v6663, %v6665
  %v6792 = vsel %vm6690, %v6665, %v6667
  %v6793 = vsel %vm6690, %v6667, %v6669
  %v6794 = vsel %vm6690, %v6669, %v6671
  %v6795 = vsel %vm6690, %v6671, %v6673
  %v6796 = vsel %vm6690, %v6675, %v6677
  %v6797 = vsel %vm6690, %v6677, %v6679
  %v6798 = vsel %vm6690, %v6679, %v6681
  %v6799 = vsel %vm6690, %v6681, %v6683
  %v6800 = vsel %vm6690, %v6683, %v6685
  %v6801 = vsel %vm6690, %v6685, %v6687
  %v6802 = vsel %vm6690, %v6687, %v6689
  %6915 = vst [vmem:[#allocation2 + $0x1c00] sm:$0xff] %v6691
  %6916 = vst [vmem:[#allocation2 + $0x1c08] sm:$0xff] %v6692
  %6917 = vst [vmem:[#allocation2 + $0x1c10] sm:$0xff] %v6693
  %6918 = vst [vmem:[#allocation2 + $0x1c18] sm:$0xff] %v6694
  %6919 = vst [vmem:[#allocation2 + $0x1c20] sm:$0xff] %v6695
  %6920 = vst [vmem:[#allocation2 + $0x1c28] sm:$0xff] %v6696
  %6921 = vst [vmem:[#allocation2 + $0x1c30] sm:$0xff] %v6697
  %6922 = vst [vmem:[#allocation2 + $0x1c38] sm:$0xff] %v6698
  %6923 = vst [vmem:[#allocation2 + $0x1c40] sm:$0xff] %v6699
  %6924 = vst [vmem:[#allocation2 + $0x1c48] sm:$0xff] %v6700
  %6925 = vst [vmem:[#allocation2 + $0x1c50] sm:$0xff] %v6701
  %6926 = vst [vmem:[#allocation2 + $0x1c58] sm:$0xff] %v6702
  %6927 = vst [vmem:[#allocation2 + $0x1c60] sm:$0xff] %v6703
  %6928 = vst [vmem:[#allocation2 + $0x1c68] sm:$0xff] %v6704
  %6929 = vst [vmem:[#allocation2 + $0x1c70] sm:$0xff] %v6705
  %6930 = vst [vmem:[#allocation2 + $0x1c78] sm:$0xff] %v6706
  %6931 = vst [vmem:[#allocation2 + $0x1c80] sm:$0xff] %v6707
  %6932 = vst [vmem:[#allocation2 + $0x1c88] sm:$0xff] %v6708
  %6933 = vst [vmem:[#allocation2 + $0x1c90] sm:$0xff] %v6709
  %6934 = vst [vmem:[#allocation2 + $0x1c98] sm:$0xff] %v6710
  %6935 = vst [vmem:[#allocation2 + $0x1ca0] sm:$0xff] %v6711
  %6936 = vst [vmem:[#allocation2 + $0x1ca8] sm:$0xff] %v6712
  %6937 = vst [vmem:[#allocation2 + $0x1cb0] sm:$0xff] %v6713
  %6938 = vst [vmem:[#allocation2 + $0x1cb8] sm:$0xff] %v6714
  %6939 = vst [vmem:[#allocation2 + $0x1cc0] sm:$0xff] %v6715
  %6940 = vst [vmem:[#allocation2 + $0x1cc8] sm:$0xff] %v6716
  %6941 = vst [vmem:[#allocation2 + $0x1cd0] sm:$0xff] %v6717
  %6942 = vst [vmem:[#allocation2 + $0x1cd8] sm:$0xff] %v6718
  %6943 = vst [vmem:[#allocation2 + $0x1ce0] sm:$0xff] %v6719
  %6944 = vst [vmem:[#allocation2 + $0x1ce8] sm:$0xff] %v6720
  %6945 = vst [vmem:[#allocation2 + $0x1cf0] sm:$0xff] %v6721
  %6946 = vst [vmem:[#allocation2 + $0x1cf8] sm:$0xff] %v6722
  %6947 = vst [vmem:[#allocation2 + $0x1d00] sm:$0xff] %v6723
  %6948 = vst [vmem:[#allocation2 + $0x1d08] sm:$0xff] %v6724
  %6949 = vst [vmem:[#allocation2 + $0x1d10] sm:$0xff] %v6725
  %6950 = vst [vmem:[#allocation2 + $0x1d18] sm:$0xff] %v6726
  %6951 = vst [vmem:[#allocation2 + $0x1d20] sm:$0xff] %v6727
  %6952 = vst [vmem:[#allocation2 + $0x1d28] sm:$0xff] %v6728
  %6953 = vst [vmem:[#allocation2 + $0x1d30] sm:$0xff] %v6729
  %6954 = vst [vmem:[#allocation2 + $0x1d38] sm:$0xff] %v6730
  %6955 = vst [vmem:[#allocation2 + $0x1d40] sm:$0xff] %v6731
  %6956 = vst [vmem:[#allocation2 + $0x1d48] sm:$0xff] %v6732
  %6957 = vst [vmem:[#allocation2 + $0x1d50] sm:$0xff] %v6733
  %6958 = vst [vmem:[#allocation2 + $0x1d58] sm:$0xff] %v6734
  %6959 = vst [vmem:[#allocation2 + $0x1d60] sm:$0xff] %v6735
  %6960 = vst [vmem:[#allocation2 + $0x1d68] sm:$0xff] %v6736
  %6961 = vst [vmem:[#allocation2 + $0x1d70] sm:$0xff] %v6737
  %6962 = vst [vmem:[#allocation2 + $0x1d78] sm:$0xff] %v6738
  %6963 = vst [vmem:[#allocation2 + $0x1d80] sm:$0xff] %v6739
  %6964 = vst [vmem:[#allocation2 + $0x1d88] sm:$0xff] %v6740
  %6965 = vst [vmem:[#allocation2 + $0x1d90] sm:$0xff] %v6741
  %6966 = vst [vmem:[#allocation2 + $0x1d98] sm:$0xff] %v6742
  %6967 = vst [vmem:[#allocation2 + $0x1da0] sm:$0xff] %v6743
  %6968 = vst [vmem:[#allocation2 + $0x1da8] sm:$0xff] %v6744
  %6969 = vst [vmem:[#allocation2 + $0x1db0] sm:$0xff] %v6745
  %6970 = vst [vmem:[#allocation2 + $0x1db8] sm:$0xff] %v6746
  %6971 = vst [vmem:[#allocation2 + $0x1dc0] sm:$0xff] %v6747
  %6972 = vst [vmem:[#allocation2 + $0x1dc8] sm:$0xff] %v6748
  %6973 = vst [vmem:[#allocation2 + $0x1dd0] sm:$0xff] %v6749
  %6974 = vst [vmem:[#allocation2 + $0x1dd8] sm:$0xff] %v6750
  %6975 = vst [vmem:[#allocation2 + $0x1de0] sm:$0xff] %v6751
  %6976 = vst [vmem:[#allocation2 + $0x1de8] sm:$0xff] %v6752
  %6977 = vst [vmem:[#allocation2 + $0x1df0] sm:$0xff] %v6753
  %6978 = vst [vmem:[#allocation2 + $0x1df8] sm:$0xff] %v6754
  %6979 = vst [vmem:[#allocation2 + $0x1e00] sm:$0xff] %v6755
  %6980 = vst [vmem:[#allocation2 + $0x1e08] sm:$0xff] %v6756
  %6981 = vst [vmem:[#allocation2 + $0x1e10] sm:$0xff] %v6757
  %6982 = vst [vmem:[#allocation2 + $0x1e18] sm:$0xff] %v6758
  %6983 = vst [vmem:[#allocation2 + $0x1e20] sm:$0xff] %v6759
  %6984 = vst [vmem:[#allocation2 + $0x1e28] sm:$0xff] %v6760
  %6985 = vst [vmem:[#allocation2 + $0x1e30] sm:$0xff] %v6761
  %6986 = vst [vmem:[#allocation2 + $0x1e38] sm:$0xff] %v6762
  %6987 = vst [vmem:[#allocation2 + $0x1e40] sm:$0xff] %v6763
  %6988 = vst [vmem:[#allocation2 + $0x1e48] sm:$0xff] %v6764
  %6989 = vst [vmem:[#allocation2 + $0x1e50] sm:$0xff] %v6765
  %6990 = vst [vmem:[#allocation2 + $0x1e58] sm:$0xff] %v6766
  %6991 = vst [vmem:[#allocation2 + $0x1e60] sm:$0xff] %v6767
  %6992 = vst [vmem:[#allocation2 + $0x1e68] sm:$0xff] %v6768
  %6993 = vst [vmem:[#allocation2 + $0x1e70] sm:$0xff] %v6769
  %6994 = vst [vmem:[#allocation2 + $0x1e78] sm:$0xff] %v6770
  %6995 = vst [vmem:[#allocation2 + $0x1e80] sm:$0xff] %v6771
  %6996 = vst [vmem:[#allocation2 + $0x1e88] sm:$0xff] %v6772
  %6997 = vst [vmem:[#allocation2 + $0x1e90] sm:$0xff] %v6773
  %6998 = vst [vmem:[#allocation2 + $0x1e98] sm:$0xff] %v6774
  %6999 = vst [vmem:[#allocation2 + $0x1ea0] sm:$0xff] %v6775
  %7000 = vst [vmem:[#allocation2 + $0x1ea8] sm:$0xff] %v6776
  %7001 = vst [vmem:[#allocation2 + $0x1eb0] sm:$0xff] %v6777
  %7002 = vst [vmem:[#allocation2 + $0x1eb8] sm:$0xff] %v6778
  %7003 = vst [vmem:[#allocation2 + $0x1ec0] sm:$0xff] %v6779
  %7004 = vst [vmem:[#allocation2 + $0x1ec8] sm:$0xff] %v6780
  %7005 = vst [vmem:[#allocation2 + $0x1ed0] sm:$0xff] %v6781
  %7006 = vst [vmem:[#allocation2 + $0x1ed8] sm:$0xff] %v6782
  %7007 = vst [vmem:[#allocation2 + $0x1ee0] sm:$0xff] %v6783
  %7008 = vst [vmem:[#allocation2 + $0x1ee8] sm:$0xff] %v6784
  %7009 = vst [vmem:[#allocation2 + $0x1ef0] sm:$0xff] %v6785
  %7010 = vst [vmem:[#allocation2 + $0x1ef8] sm:$0xff] %v6786
  %7011 = vst [vmem:[#allocation2 + $0x1f00] sm:$0xff] %v6787
  %7012 = vst [vmem:[#allocation2 + $0x1f08] sm:$0xff] %v6788
  %7013 = vst [vmem:[#allocation2 + $0x1f10] sm:$0xff] %v6789
  %7014 = vst [vmem:[#allocation2 + $0x1f18] sm:$0xff] %v6790
  %7015 = vst [vmem:[#allocation2 + $0x1f20] sm:$0xff] %v6791
  %7016 = vst [vmem:[#allocation2 + $0x1f28] sm:$0xff] %v6792
  %7017 = vst [vmem:[#allocation2 + $0x1f30] sm:$0xff] %v6793
  %7018 = vst [vmem:[#allocation2 + $0x1f38] sm:$0xff] %v6794
  %7019 = vst [vmem:[#allocation2 + $0x1f40] sm:$0xff] %v6795
  %7020 = vst [vmem:[#allocation2 + $0x1f48] sm:$0xff] %v6796
  %7021 = vst [vmem:[#allocation2 + $0x1f50] sm:$0xff] %v6797
  %7022 = vst [vmem:[#allocation2 + $0x1f58] sm:$0xff] %v6798
  %7023 = vst [vmem:[#allocation2 + $0x1f60] sm:$0xff] %v6799
  %7024 = vst [vmem:[#allocation2 + $0x1f68] sm:$0xff] %v6800
  %7025 = vst [vmem:[#allocation2 + $0x1f70] sm:$0xff] %v6801
  %7026 = vst [vmem:[#allocation2 + $0x1f78] sm:$0xff] %v6802
  %v7027 = vld [vmem:[%s0] sm:$0xff]
  %v7028 = vld [vmem:[%s0 + $0x8] sm:$0xff]
  %v7029 = vld [vmem:[%s0 + $0x10] sm:$0xff]
  %v7030 = vld [vmem:[%s0 + $0x18] sm:$0xff]
  %v7031 = vld [vmem:[%s0 + $0x20] sm:$0xff]
  %v7032 = vld [vmem:[%s0 + $0x28] sm:$0xff]
  %v7033 = vld [vmem:[%s0 + $0x30] sm:$0xff]
  %v7034 = vld [vmem:[%s0 + $0x38] sm:$0xff]
  %v7035 = vld [vmem:[%s0 + $0x40] sm:$0xff]
  %v7036 = vld [vmem:[%s0 + $0x48] sm:$0xff]
  %v7037 = vld [vmem:[%s0 + $0x50] sm:$0xff]
  %v7038 = vld [vmem:[%s0 + $0x58] sm:$0xff]
  %v7039 = vld [vmem:[%s0 + $0x60] sm:$0xff]
  %v7040 = vld [vmem:[%s0 + $0x68] sm:$0xff]
  %v7041 = vld [vmem:[%s0 + $0x70] sm:$0xff]
  %v7042 = vld [vmem:[%s0 + $0x78] sm:$0xff]
  %v7043 = vld [vmem:[%s0 + $0x80] sm:$0xff]
  %v7044 = vld [vmem:[%s0 + $0x88] sm:$0xff]
  %v7045 = vld [vmem:[%s0 + $0x90] sm:$0xff]
  %v7046 = vld [vmem:[%s0 + $0x98] sm:$0xff]
  %v7047 = vld [vmem:[%s0 + $0xa0] sm:$0xff]
  %v7048 = vld [vmem:[%s0 + $0xa8] sm:$0xff]
  %v7049 = vld [vmem:[%s0 + $0xb0] sm:$0xff]
  %v7050 = vld [vmem:[%s0 + $0xb8] sm:$0xff]
  %v7051 = vld [vmem:[%s0 + $0xc0] sm:$0xff]
  %v7052 = vld [vmem:[%s0 + $0xc8] sm:$0xff]
  %v7053 = vld [vmem:[%s0 + $0xd0] sm:$0xff]
  %v7054 = vld [vmem:[%s0 + $0xd8] sm:$0xff]
  %v7055 = vld [vmem:[%s0 + $0xe0] sm:$0xff]
  %v7056 = vld [vmem:[%s0 + $0xe8] sm:$0xff]
  %v7057 = vld [vmem:[%s0 + $0xf0] sm:$0xff]
  %v7058 = vld [vmem:[%s0 + $0xf8] sm:$0xff]
  %v7059 = vld [vmem:[%s0 + $0x100] sm:$0xff]
  %v7060 = vld [vmem:[%s0 + $0x108] sm:$0xff]
  %v7061 = vld [vmem:[%s0 + $0x110] sm:$0xff]
  %v7062 = vld [vmem:[%s0 + $0x118] sm:$0xff]
  %v7063 = vld [vmem:[%s0 + $0x120] sm:$0xff]
  %v7064 = vld [vmem:[%s0 + $0x128] sm:$0xff]
  %v7065 = vld [vmem:[%s0 + $0x130] sm:$0xff]
  %v7066 = vld [vmem:[%s0 + $0x138] sm:$0xff]
  %v7067 = vld [vmem:[%s0 + $0x140] sm:$0xff]
  %v7068 = vld [vmem:[%s0 + $0x148] sm:$0xff]
  %v7069 = vld [vmem:[%s0 + $0x150] sm:$0xff]
  %v7070 = vld [vmem:[%s0 + $0x158] sm:$0xff]
  %v7071 = vld [vmem:[%s0 + $0x160] sm:$0xff]
  %v7072 = vld [vmem:[%s0 + $0x168] sm:$0xff]
  %v7073 = vld [vmem:[%s0 + $0x170] sm:$0xff]
  %v7074 = vld [vmem:[%s0 + $0x178] sm:$0xff]
  %v7075 = vld [vmem:[%s0 + $0x180] sm:$0xff]
  %v7076 = vld [vmem:[%s0 + $0x188] sm:$0xff]
  %v7077 = vld [vmem:[%s0 + $0x190] sm:$0xff]
  %v7078 = vld [vmem:[%s0 + $0x198] sm:$0xff]
  %v7079 = vld [vmem:[%s0 + $0x1a0] sm:$0xff]
  %v7080 = vld [vmem:[%s0 + $0x1a8] sm:$0xff]
  %v7081 = vld [vmem:[%s0 + $0x1b0] sm:$0xff]
  %v7082 = vld [vmem:[%s0 + $0x1b8] sm:$0xff]
  %v7083 = vld [vmem:[%s0 + $0x1c0] sm:$0xff]
  %v7084 = vld [vmem:[%s0 + $0x1c8] sm:$0xff]
  %v7085 = vld [vmem:[%s0 + $0x1d0] sm:$0xff]
  %v7086 = vld [vmem:[%s0 + $0x1d8] sm:$0xff]
  %v7087 = vld [vmem:[%s0 + $0x1e0] sm:$0xff]
  %v7088 = vld [vmem:[%s0 + $0x1e8] sm:$0xff]
  %v7089 = vld [vmem:[%s0 + $0x1f0] sm:$0xff]
  %v7090 = vld [vmem:[%s0 + $0x1f8] sm:$0xff]
  %v7091 = vld [vmem:[%s0 + $0x200] sm:$0xff]
  %v7092 = vld [vmem:[%s0 + $0x208] sm:$0xff]
  %v7093 = vld [vmem:[%s0 + $0x210] sm:$0xff]
  %v7094 = vld [vmem:[%s0 + $0x218] sm:$0xff]
  %v7095 = vld [vmem:[%s0 + $0x220] sm:$0xff]
  %v7096 = vld [vmem:[%s0 + $0x228] sm:$0xff]
  %v7097 = vld [vmem:[%s0 + $0x230] sm:$0xff]
  %v7098 = vld [vmem:[%s0 + $0x238] sm:$0xff]
  %v7099 = vld [vmem:[%s0 + $0x240] sm:$0xff]
  %v7100 = vld [vmem:[%s0 + $0x248] sm:$0xff]
  %v7101 = vld [vmem:[%s0 + $0x250] sm:$0xff]
  %v7102 = vld [vmem:[%s0 + $0x258] sm:$0xff]
  %v7103 = vld [vmem:[%s0 + $0x260] sm:$0xff]
  %v7104 = vld [vmem:[%s0 + $0x268] sm:$0xff]
  %v7105 = vld [vmem:[%s0 + $0x270] sm:$0xff]
  %v7106 = vld [vmem:[%s0 + $0x278] sm:$0xff]
  %v7107 = vld [vmem:[%s0 + $0x280] sm:$0xff]
  %v7108 = vld [vmem:[%s0 + $0x288] sm:$0xff]
  %v7109 = vld [vmem:[%s0 + $0x290] sm:$0xff]
  %v7110 = vld [vmem:[%s0 + $0x298] sm:$0xff]
  %v7111 = vld [vmem:[%s0 + $0x2a0] sm:$0xff]
  %v7112 = vld [vmem:[%s0 + $0x2a8] sm:$0xff]
  %v7113 = vld [vmem:[%s0 + $0x2b0] sm:$0xff]
  %v7114 = vld [vmem:[%s0 + $0x2b8] sm:$0xff]
  %v7115 = vld [vmem:[%s0 + $0x2c0] sm:$0xff]
  %v7116 = vld [vmem:[%s0 + $0x2c8] sm:$0xff]
  %v7117 = vld [vmem:[%s0 + $0x2d0] sm:$0xff]
  %v7118 = vld [vmem:[%s0 + $0x2d8] sm:$0xff]
  %v7119 = vld [vmem:[%s0 + $0x2e0] sm:$0xff]
  %v7120 = vld [vmem:[%s0 + $0x2e8] sm:$0xff]
  %v7121 = vld [vmem:[%s0 + $0x2f0] sm:$0xff]
  %v7122 = vld [vmem:[%s0 + $0x2f8] sm:$0xff]
  %v7123 = vld [vmem:[%s0 + $0x300] sm:$0xff]
  %v7124 = vld [vmem:[%s0 + $0x308] sm:$0xff]
  %v7125 = vld [vmem:[%s0 + $0x310] sm:$0xff]
  %v7126 = vld [vmem:[%s0 + $0x318] sm:$0xff]
  %v7127 = vld [vmem:[%s0 + $0x320] sm:$0xff]
  %v7128 = vld [vmem:[%s0 + $0x328] sm:$0xff]
  %v7129 = vld [vmem:[%s0 + $0x330] sm:$0xff]
  %v7130 = vld [vmem:[%s0 + $0x338] sm:$0xff]
  %v7131 = vld [vmem:[%s0 + $0x340] sm:$0xff]
  %v7132 = vld [vmem:[%s0 + $0x348] sm:$0xff]
  %v7133 = vld [vmem:[%s0 + $0x350] sm:$0xff]
  %v7134 = vld [vmem:[%s0 + $0x358] sm:$0xff]
  %v7135 = vld [vmem:[%s0 + $0x360] sm:$0xff]
  %v7136 = vld [vmem:[%s0 + $0x368] sm:$0xff]
  %v7137 = vld [vmem:[%s0 + $0x370] sm:$0xff]
  %v7138 = vld [vmem:[%s0 + $0x378] sm:$0xff]
  %v7139 = vld [vmem:[%s0 + $0x380] sm:$0xff]
  %v7140 = vld [vmem:[%s0 + $0x388] sm:$0xff]
  %v7141 = vld [vmem:[%s0 + $0x390] sm:$0xff]
  %v7142 = vld [vmem:[%s0 + $0x398] sm:$0xff]
  %v7143 = vld [vmem:[%s0 + $0x3a0] sm:$0xff]
  %v7144 = vld [vmem:[%s0 + $0x3a8] sm:$0xff]
  %v7145 = vld [vmem:[%s0 + $0x3b0] sm:$0xff]
  %v7146 = vld [vmem:[%s0 + $0x3b8] sm:$0xff]
  %v7147 = vld [vmem:[%s0 + $0x3c0] sm:$0xff]
  %v7148 = vld [vmem:[%s0 + $0x3c8] sm:$0xff]
  %v7149 = vld [vmem:[%s0 + $0x3d0] sm:$0xff]
  %v7150 = vld [vmem:[%s0 + $0x3d8] sm:$0xff]
  %v7151 = vld [vmem:[%s0 + $0x3e0] sm:$0xff]
  %v7152 = vld [vmem:[%s0 + $0x3e8] sm:$0xff]
  %v7153 = vld [vmem:[%s0 + $0x3f0] sm:$0xff]
  %v7154 = vld [vmem:[%s0 + $0x3f8] sm:$0xff]
  %v7155 = vld [vmem:[%s0 + $0x400] sm:$0xff]
  %v7156 = vld [vmem:[%s0 + $0x408] sm:$0xff]
  %v7157 = vld [vmem:[%s0 + $0x410] sm:$0xff]
  %v7158 = vld [vmem:[%s0 + $0x418] sm:$0xff]
  %v7159 = vld [vmem:[%s0 + $0x420] sm:$0xff]
  %v7160 = vld [vmem:[%s0 + $0x428] sm:$0xff]
  %v7161 = vld [vmem:[%s0 + $0x430] sm:$0xff]
  %v7162 = vld [vmem:[%s0 + $0x438] sm:$0xff]
  %v7163 = vld [vmem:[%s0 + $0x440] sm:$0xff]
  %v7164 = vld [vmem:[%s0 + $0x448] sm:$0xff]
  %v7165 = vld [vmem:[%s0 + $0x450] sm:$0xff]
  %v7166 = vld [vmem:[%s0 + $0x458] sm:$0xff]
  %v7167 = vld [vmem:[%s0 + $0x460] sm:$0xff]
  %v7168 = vld [vmem:[%s0 + $0x468] sm:$0xff]
  %v7169 = vld [vmem:[%s0 + $0x470] sm:$0xff]
  %v7170 = vld [vmem:[%s0 + $0x478] sm:$0xff]
  %v7171 = vld [vmem:[#allocation2] sm:$0xff]
  %v7172 = vld [vmem:[#allocation2 + $0x8] sm:$0xff]
  %v7173 = vld [vmem:[#allocation2 + $0x10] sm:$0xff]
  %v7174 = vld [vmem:[#allocation2 + $0x18] sm:$0xff]
  %v7175 = vld [vmem:[#allocation2 + $0x20] sm:$0xff]
  %v7176 = vld [vmem:[#allocation2 + $0x28] sm:$0xff]
  %v7177 = vld [vmem:[#allocation2 + $0x30] sm:$0xff]
  %v7178 = vld [vmem:[#allocation2 + $0x38] sm:$0xff]
  %v7179 = vld [vmem:[#allocation2 + $0x40] sm:$0xff]
  %v7180 = vld [vmem:[#allocation2 + $0x48] sm:$0xff]
  %v7181 = vld [vmem:[#allocation2 + $0x50] sm:$0xff]
  %v7182 = vld [vmem:[#allocation2 + $0x58] sm:$0xff]
  %v7183 = vld [vmem:[#allocation2 + $0x60] sm:$0xff]
  %v7184 = vld [vmem:[#allocation2 + $0x68] sm:$0xff]
  %v7185 = vld [vmem:[#allocation2 + $0x70] sm:$0xff]
  %v7186 = vld [vmem:[#allocation2 + $0x78] sm:$0xff]
  %v7187 = vld [vmem:[#allocation2 + $0x80] sm:$0xff]
  %v7188 = vld [vmem:[#allocation2 + $0x88] sm:$0xff]
  %v7189 = vld [vmem:[#allocation2 + $0x90] sm:$0xff]
  %v7190 = vld [vmem:[#allocation2 + $0x98] sm:$0xff]
  %v7191 = vld [vmem:[#allocation2 + $0xa0] sm:$0xff]
  %v7192 = vld [vmem:[#allocation2 + $0xa8] sm:$0xff]
  %v7193 = vld [vmem:[#allocation2 + $0xb0] sm:$0xff]
  %v7194 = vld [vmem:[#allocation2 + $0xb8] sm:$0xff]
  %v7195 = vld [vmem:[#allocation2 + $0xc0] sm:$0xff]
  %v7196 = vld [vmem:[#allocation2 + $0xc8] sm:$0xff]
  %v7197 = vld [vmem:[#allocation2 + $0xd0] sm:$0xff]
  %v7198 = vld [vmem:[#allocation2 + $0xd8] sm:$0xff]
  %v7199 = vld [vmem:[#allocation2 + $0xe0] sm:$0xff]
  %v7200 = vld [vmem:[#allocation2 + $0xe8] sm:$0xff]
  %v7201 = vld [vmem:[#allocation2 + $0xf0] sm:$0xff]
  %v7202 = vld [vmem:[#allocation2 + $0xf8] sm:$0xff]
  %v7203 = vld [vmem:[#allocation2 + $0x100] sm:$0xff]
  %v7204 = vld [vmem:[#allocation2 + $0x108] sm:$0xff]
  %v7205 = vld [vmem:[#allocation2 + $0x110] sm:$0xff]
  %v7206 = vld [vmem:[#allocation2 + $0x118] sm:$0xff]
  %v7207 = vld [vmem:[#allocation2 + $0x120] sm:$0xff]
  %v7208 = vld [vmem:[#allocation2 + $0x128] sm:$0xff]
  %v7209 = vld [vmem:[#allocation2 + $0x130] sm:$0xff]
  %v7210 = vld [vmem:[#allocation2 + $0x138] sm:$0xff]
  %v7211 = vld [vmem:[#allocation2 + $0x140] sm:$0xff]
  %v7212 = vld [vmem:[#allocation2 + $0x148] sm:$0xff]
  %v7213 = vld [vmem:[#allocation2 + $0x150] sm:$0xff]
  %v7214 = vld [vmem:[#allocation2 + $0x158] sm:$0xff]
  %v7215 = vld [vmem:[#allocation2 + $0x160] sm:$0xff]
  %v7216 = vld [vmem:[#allocation2 + $0x168] sm:$0xff]
  %v7217 = vld [vmem:[#allocation2 + $0x170] sm:$0xff]
  %v7218 = vld [vmem:[#allocation2 + $0x178] sm:$0xff]
  %v7219 = vld [vmem:[#allocation2 + $0x180] sm:$0xff]
  %v7220 = vld [vmem:[#allocation2 + $0x188] sm:$0xff]
  %v7221 = vld [vmem:[#allocation2 + $0x190] sm:$0xff]
  %v7222 = vld [vmem:[#allocation2 + $0x198] sm:$0xff]
  %v7223 = vld [vmem:[#allocation2 + $0x1a0] sm:$0xff]
  %v7224 = vld [vmem:[#allocation2 + $0x1a8] sm:$0xff]
  %v7225 = vld [vmem:[#allocation2 + $0x1b0] sm:$0xff]
  %v7226 = vld [vmem:[#allocation2 + $0x1b8] sm:$0xff]
  %v7227 = vld [vmem:[#allocation2 + $0x1c0] sm:$0xff]
  %v7228 = vld [vmem:[#allocation2 + $0x1c8] sm:$0xff]
  %v7229 = vld [vmem:[#allocation2 + $0x1d0] sm:$0xff]
  %v7230 = vld [vmem:[#allocation2 + $0x1d8] sm:$0xff]
  %v7231 = vld [vmem:[#allocation2 + $0x1e0] sm:$0xff]
  %v7232 = vld [vmem:[#allocation2 + $0x1e8] sm:$0xff]
  %v7233 = vld [vmem:[#allocation2 + $0x1f0] sm:$0xff]
  %v7234 = vld [vmem:[#allocation2 + $0x1f8] sm:$0xff]
  %v7235 = vld [vmem:[#allocation2 + $0x200] sm:$0xff]
  %v7236 = vld [vmem:[#allocation2 + $0x208] sm:$0xff]
  %v7237 = vld [vmem:[#allocation2 + $0x210] sm:$0xff]
  %v7238 = vld [vmem:[#allocation2 + $0x218] sm:$0xff]
  %v7239 = vld [vmem:[#allocation2 + $0x220] sm:$0xff]
  %v7240 = vld [vmem:[#allocation2 + $0x228] sm:$0xff]
  %v7241 = vld [vmem:[#allocation2 + $0x230] sm:$0xff]
  %v7242 = vld [vmem:[#allocation2 + $0x238] sm:$0xff]
  %v7243 = vld [vmem:[#allocation2 + $0x240] sm:$0xff]
  %v7244 = vld [vmem:[#allocation2 + $0x248] sm:$0xff]
  %v7245 = vld [vmem:[#allocation2 + $0x250] sm:$0xff]
  %v7246 = vld [vmem:[#allocation2 + $0x258] sm:$0xff]
  %v7247 = vld [vmem:[#allocation2 + $0x260] sm:$0xff]
  %v7248 = vld [vmem:[#allocation2 + $0x268] sm:$0xff]
  %v7249 = vld [vmem:[#allocation2 + $0x270] sm:$0xff]
  %v7250 = vld [vmem:[#allocation2 + $0x278] sm:$0xff]
  %v7251 = vld [vmem:[#allocation2 + $0x280] sm:$0xff]
  %v7252 = vld [vmem:[#allocation2 + $0x288] sm:$0xff]
  %v7253 = vld [vmem:[#allocation2 + $0x290] sm:$0xff]
  %v7254 = vld [vmem:[#allocation2 + $0x298] sm:$0xff]
  %v7255 = vld [vmem:[#allocation2 + $0x2a0] sm:$0xff]
  %v7256 = vld [vmem:[#allocation2 + $0x2a8] sm:$0xff]
  %v7257 = vld [vmem:[#allocation2 + $0x2b0] sm:$0xff]
  %v7258 = vld [vmem:[#allocation2 + $0x2b8] sm:$0xff]
  %v7259 = vld [vmem:[#allocation2 + $0x2c0] sm:$0xff]
  %v7260 = vld [vmem:[#allocation2 + $0x2c8] sm:$0xff]
  %v7261 = vld [vmem:[#allocation2 + $0x2d0] sm:$0xff]
  %v7262 = vld [vmem:[#allocation2 + $0x2d8] sm:$0xff]
  %v7263 = vld [vmem:[#allocation2 + $0x2e0] sm:$0xff]
  %v7264 = vld [vmem:[#allocation2 + $0x2e8] sm:$0xff]
  %v7265 = vld [vmem:[#allocation2 + $0x2f0] sm:$0xff]
  %v7266 = vld [vmem:[#allocation2 + $0x2f8] sm:$0xff]
  %v7267 = vld [vmem:[#allocation2 + $0x300] sm:$0xff]
  %v7268 = vld [vmem:[#allocation2 + $0x308] sm:$0xff]
  %v7269 = vld [vmem:[#allocation2 + $0x310] sm:$0xff]
  %v7270 = vld [vmem:[#allocation2 + $0x318] sm:$0xff]
  %v7271 = vld [vmem:[#allocation2 + $0x320] sm:$0xff]
  %v7272 = vld [vmem:[#allocation2 + $0x328] sm:$0xff]
  %v7273 = vld [vmem:[#allocation2 + $0x330] sm:$0xff]
  %v7274 = vld [vmem:[#allocation2 + $0x338] sm:$0xff]
  %v7275 = vld [vmem:[#allocation2 + $0x340] sm:$0xff]
  %v7276 = vld [vmem:[#allocation2 + $0x348] sm:$0xff]
  %v7277 = vld [vmem:[#allocation2 + $0x350] sm:$0xff]
  %v7278 = vld [vmem:[#allocation2 + $0x358] sm:$0xff]
  %v7279 = vld [vmem:[#allocation2 + $0x360] sm:$0xff]
  %v7280 = vld [vmem:[#allocation2 + $0x368] sm:$0xff]
  %v7281 = vld [vmem:[#allocation2 + $0x370] sm:$0xff]
  %v7282 = vld [vmem:[#allocation2 + $0x378] sm:$0xff]
  %v7283 = vld [vmem:[#allocation2 + $0x380] sm:$0xff]
  %v7284 = vld [vmem:[#allocation2 + $0x388] sm:$0xff]
  %v7285 = vld [vmem:[#allocation2 + $0x390] sm:$0xff]
  %v7286 = vld [vmem:[#allocation2 + $0x398] sm:$0xff]
  %v7287 = vld [vmem:[#allocation2 + $0x3a0] sm:$0xff]
  %v7288 = vld [vmem:[#allocation2 + $0x3a8] sm:$0xff]
  %v7289 = vld [vmem:[#allocation2 + $0x3b0] sm:$0xff]
  %v7290 = vld [vmem:[#allocation2 + $0x3b8] sm:$0xff]
  %v7291 = vld [vmem:[#allocation2 + $0x3c0] sm:$0xff]
  %v7292 = vld [vmem:[#allocation2 + $0x3c8] sm:$0xff]
  %v7293 = vld [vmem:[#allocation2 + $0x3d0] sm:$0xff]
  %v7294 = vld [vmem:[#allocation2 + $0x3d8] sm:$0xff]
  %v7295 = vld [vmem:[#allocation2 + $0x3e0] sm:$0xff]
  %v7296 = vld [vmem:[#allocation2 + $0x3e8] sm:$0xff]
  %v7297 = vld [vmem:[#allocation2 + $0x3f0] sm:$0xff]
  %v7298 = vld [vmem:[#allocation2 + $0x3f8] sm:$0xff]
  %v7299 = vld [vmem:[#allocation2 + $0x400] sm:$0xff]
  %v7300 = vld [vmem:[#allocation2 + $0x408] sm:$0xff]
  %v7301 = vld [vmem:[#allocation2 + $0x410] sm:$0xff]
  %v7302 = vld [vmem:[#allocation2 + $0x418] sm:$0xff]
  %v7303 = vld [vmem:[#allocation2 + $0x420] sm:$0xff]
  %v7304 = vld [vmem:[#allocation2 + $0x428] sm:$0xff]
  %v7305 = vld [vmem:[#allocation2 + $0x430] sm:$0xff]
  %v7306 = vld [vmem:[#allocation2 + $0x438] sm:$0xff]
  %v7307 = vld [vmem:[#allocation2 + $0x440] sm:$0xff]
  %v7308 = vld [vmem:[#allocation2 + $0x448] sm:$0xff]
  %v7309 = vld [vmem:[#allocation2 + $0x450] sm:$0xff]
  %v7310 = vld [vmem:[#allocation2 + $0x458] sm:$0xff]
  %v7311 = vld [vmem:[#allocation2 + $0x460] sm:$0xff]
  %v7312 = vld [vmem:[#allocation2 + $0x468] sm:$0xff]
  %v7313 = vld [vmem:[#allocation2 + $0x470] sm:$0xff]
  %v7314 = vld [vmem:[#allocation2 + $0x478] sm:$0xff]
  %v7315 = vld [vmem:[#allocation2 + $0x480] sm:$0xff]
  %v7316 = vld [vmem:[#allocation2 + $0x488] sm:$0xff]
  %v7317 = vld [vmem:[#allocation2 + $0x490] sm:$0xff]
  %v7318 = vld [vmem:[#allocation2 + $0x498] sm:$0xff]
  %v7319 = vld [vmem:[#allocation2 + $0x4a0] sm:$0xff]
  %v7320 = vld [vmem:[#allocation2 + $0x4a8] sm:$0xff]
  %v7321 = vld [vmem:[#allocation2 + $0x4b0] sm:$0xff]
  %v7322 = vld [vmem:[#allocation2 + $0x4b8] sm:$0xff]
  %v7323 = vld [vmem:[#allocation2 + $0x4c0] sm:$0xff]
  %v7324 = vld [vmem:[#allocation2 + $0x4c8] sm:$0xff]
  %v7325 = vld [vmem:[#allocation2 + $0x4d0] sm:$0xff]
  %v7326 = vld [vmem:[#allocation2 + $0x4d8] sm:$0xff]
  %v7327 = vld [vmem:[#allocation2 + $0x4e0] sm:$0xff]
  %v7328 = vld [vmem:[#allocation2 + $0x4e8] sm:$0xff]
  %v7329 = vld [vmem:[#allocation2 + $0x4f0] sm:$0xff]
  %v7330 = vld [vmem:[#allocation2 + $0x4f8] sm:$0xff]
  %v7331 = vld [vmem:[#allocation2 + $0x500] sm:$0xff]
  %v7332 = vld [vmem:[#allocation2 + $0x508] sm:$0xff]
  %v7333 = vld [vmem:[#allocation2 + $0x510] sm:$0xff]
  %v7334 = vld [vmem:[#allocation2 + $0x518] sm:$0xff]
  %v7335 = vld [vmem:[#allocation2 + $0x520] sm:$0xff]
  %v7336 = vld [vmem:[#allocation2 + $0x528] sm:$0xff]
  %v7337 = vld [vmem:[#allocation2 + $0x530] sm:$0xff]
  %v7338 = vld [vmem:[#allocation2 + $0x538] sm:$0xff]
  %v7339 = vld [vmem:[#allocation2 + $0x540] sm:$0xff]
  %v7340 = vld [vmem:[#allocation2 + $0x548] sm:$0xff]
  %v7341 = vld [vmem:[#allocation2 + $0x550] sm:$0xff]
  %v7342 = vld [vmem:[#allocation2 + $0x558] sm:$0xff]
  %v7343 = vld [vmem:[#allocation2 + $0x560] sm:$0xff]
  %v7344 = vld [vmem:[#allocation2 + $0x568] sm:$0xff]
  %v7345 = vld [vmem:[#allocation2 + $0x570] sm:$0xff]
  %v7346 = vld [vmem:[#allocation2 + $0x578] sm:$0xff]
  %v7347 = vld [vmem:[#allocation2 + $0x580] sm:$0xff]
  %v7348 = vld [vmem:[#allocation2 + $0x588] sm:$0xff]
  %v7349 = vld [vmem:[#allocation2 + $0x590] sm:$0xff]
  %v7350 = vld [vmem:[#allocation2 + $0x598] sm:$0xff]
  %v7351 = vld [vmem:[#allocation2 + $0x5a0] sm:$0xff]
  %v7352 = vld [vmem:[#allocation2 + $0x5a8] sm:$0xff]
  %v7353 = vld [vmem:[#allocation2 + $0x5b0] sm:$0xff]
  %v7354 = vld [vmem:[#allocation2 + $0x5b8] sm:$0xff]
  %v7355 = vld [vmem:[#allocation2 + $0x5c0] sm:$0xff]
  %v7356 = vld [vmem:[#allocation2 + $0x5c8] sm:$0xff]
  %v7357 = vld [vmem:[#allocation2 + $0x5d0] sm:$0xff]
  %v7358 = vld [vmem:[#allocation2 + $0x5d8] sm:$0xff]
  %v7359 = vld [vmem:[#allocation2 + $0x5e0] sm:$0xff]
  %v7360 = vld [vmem:[#allocation2 + $0x5e8] sm:$0xff]
  %v7361 = vld [vmem:[#allocation2 + $0x5f0] sm:$0xff]
  %v7362 = vld [vmem:[#allocation2 + $0x5f8] sm:$0xff]
  %v7363 = vld [vmem:[#allocation2 + $0x600] sm:$0xff]
  %v7364 = vld [vmem:[#allocation2 + $0x608] sm:$0xff]
  %v7365 = vld [vmem:[#allocation2 + $0x610] sm:$0xff]
  %v7366 = vld [vmem:[#allocation2 + $0x618] sm:$0xff]
  %v7367 = vld [vmem:[#allocation2 + $0x620] sm:$0xff]
  %v7368 = vld [vmem:[#allocation2 + $0x628] sm:$0xff]
  %v7369 = vld [vmem:[#allocation2 + $0x630] sm:$0xff]
  %v7370 = vld [vmem:[#allocation2 + $0x638] sm:$0xff]
  %v7371 = vld [vmem:[#allocation2 + $0x640] sm:$0xff]
  %v7372 = vld [vmem:[#allocation2 + $0x648] sm:$0xff]
  %v7373 = vld [vmem:[#allocation2 + $0x650] sm:$0xff]
  %v7374 = vld [vmem:[#allocation2 + $0x658] sm:$0xff]
  %v7375 = vld [vmem:[#allocation2 + $0x660] sm:$0xff]
  %v7376 = vld [vmem:[#allocation2 + $0x668] sm:$0xff]
  %v7377 = vld [vmem:[#allocation2 + $0x670] sm:$0xff]
  %v7378 = vld [vmem:[#allocation2 + $0x678] sm:$0xff]
  %v7379 = vld [vmem:[#allocation2 + $0x680] sm:$0xff]
  %v7380 = vld [vmem:[#allocation2 + $0x688] sm:$0xff]
  %v7381 = vld [vmem:[#allocation2 + $0x690] sm:$0xff]
  %v7382 = vld [vmem:[#allocation2 + $0x698] sm:$0xff]
  %v7383 = vld [vmem:[#allocation2 + $0x6a0] sm:$0xff]
  %v7384 = vld [vmem:[#allocation2 + $0x6a8] sm:$0xff]
  %v7385 = vld [vmem:[#allocation2 + $0x6b0] sm:$0xff]
  %v7386 = vld [vmem:[#allocation2 + $0x6b8] sm:$0xff]
  %v7387 = vld [vmem:[#allocation2 + $0x6c0] sm:$0xff]
  %v7388 = vld [vmem:[#allocation2 + $0x6c8] sm:$0xff]
  %v7389 = vld [vmem:[#allocation2 + $0x6d0] sm:$0xff]
  %v7390 = vld [vmem:[#allocation2 + $0x6d8] sm:$0xff]
  %v7391 = vld [vmem:[#allocation2 + $0x6e0] sm:$0xff]
  %v7392 = vld [vmem:[#allocation2 + $0x6e8] sm:$0xff]
  %v7393 = vld [vmem:[#allocation2 + $0x6f0] sm:$0xff]
  %v7394 = vld [vmem:[#allocation2 + $0x6f8] sm:$0xff]
  %v7395 = vld [vmem:[#allocation2 + $0x700] sm:$0xff]
  %v7396 = vld [vmem:[#allocation2 + $0x708] sm:$0xff]
  %v7397 = vld [vmem:[#allocation2 + $0x710] sm:$0xff]
  %v7398 = vld [vmem:[#allocation2 + $0x718] sm:$0xff]
  %v7399 = vld [vmem:[#allocation2 + $0x720] sm:$0xff]
  %v7400 = vld [vmem:[#allocation2 + $0x728] sm:$0xff]
  %v7401 = vld [vmem:[#allocation2 + $0x730] sm:$0xff]
  %v7402 = vld [vmem:[#allocation2 + $0x738] sm:$0xff]
  %v7403 = vld [vmem:[#allocation2 + $0x740] sm:$0xff]
  %v7404 = vld [vmem:[#allocation2 + $0x748] sm:$0xff]
  %v7405 = vld [vmem:[#allocation2 + $0x750] sm:$0xff]
  %v7406 = vld [vmem:[#allocation2 + $0x758] sm:$0xff]
  %v7407 = vld [vmem:[#allocation2 + $0x760] sm:$0xff]
  %v7408 = vld [vmem:[#allocation2 + $0x768] sm:$0xff]
  %v7409 = vld [vmem:[#allocation2 + $0x770] sm:$0xff]
  %v7410 = vld [vmem:[#allocation2 + $0x778] sm:$0xff]
  %v7411 = vld [vmem:[#allocation2 + $0x780] sm:$0xff]
  %v7412 = vld [vmem:[#allocation2 + $0x788] sm:$0xff]
  %v7413 = vld [vmem:[#allocation2 + $0x790] sm:$0xff]
  %v7414 = vld [vmem:[#allocation2 + $0x798] sm:$0xff]
  %v7415 = vld [vmem:[#allocation2 + $0x7a0] sm:$0xff]
  %v7416 = vld [vmem:[#allocation2 + $0x7a8] sm:$0xff]
  %v7417 = vld [vmem:[#allocation2 + $0x7b0] sm:$0xff]
  %v7418 = vld [vmem:[#allocation2 + $0x7b8] sm:$0xff]
  %v7419 = vld [vmem:[#allocation2 + $0x7c0] sm:$0xff]
  %v7420 = vld [vmem:[#allocation2 + $0x7c8] sm:$0xff]
  %v7421 = vld [vmem:[#allocation2 + $0x7d0] sm:$0xff]
  %v7422 = vld [vmem:[#allocation2 + $0x7d8] sm:$0xff]
  %v7423 = vld [vmem:[#allocation2 + $0x7e0] sm:$0xff]
  %v7424 = vld [vmem:[#allocation2 + $0x7e8] sm:$0xff]
  %v7425 = vld [vmem:[#allocation2 + $0x7f0] sm:$0xff]
  %v7426 = vld [vmem:[#allocation2 + $0x7f8] sm:$0xff]
  %v7427 = vld [vmem:[#allocation2 + $0x800] sm:$0xff]
  %v7428 = vld [vmem:[#allocation2 + $0x808] sm:$0xff]
  %v7429 = vld [vmem:[#allocation2 + $0x810] sm:$0xff]
  %v7430 = vld [vmem:[#allocation2 + $0x818] sm:$0xff]
  %v7431 = vld [vmem:[#allocation2 + $0x820] sm:$0xff]
  %v7432 = vld [vmem:[#allocation2 + $0x828] sm:$0xff]
  %v7433 = vld [vmem:[#allocation2 + $0x830] sm:$0xff]
  %v7434 = vld [vmem:[#allocation2 + $0x838] sm:$0xff]
  %v7435 = vld [vmem:[#allocation2 + $0x840] sm:$0xff]
  %v7436 = vld [vmem:[#allocation2 + $0x848] sm:$0xff]
  %v7437 = vld [vmem:[#allocation2 + $0x850] sm:$0xff]
  %v7438 = vld [vmem:[#allocation2 + $0x858] sm:$0xff]
  %v7439 = vld [vmem:[#allocation2 + $0x860] sm:$0xff]
  %v7440 = vld [vmem:[#allocation2 + $0x868] sm:$0xff]
  %v7441 = vld [vmem:[#allocation2 + $0x870] sm:$0xff]
  %v7442 = vld [vmem:[#allocation2 + $0x878] sm:$0xff]
  %v7443 = vld [vmem:[#allocation2 + $0x880] sm:$0xff]
  %v7444 = vld [vmem:[#allocation2 + $0x888] sm:$0xff]
  %v7445 = vld [vmem:[#allocation2 + $0x890] sm:$0xff]
  %v7446 = vld [vmem:[#allocation2 + $0x898] sm:$0xff]
  %v7447 = vld [vmem:[#allocation2 + $0x8a0] sm:$0xff]
  %v7448 = vld [vmem:[#allocation2 + $0x8a8] sm:$0xff]
  %v7449 = vld [vmem:[#allocation2 + $0x8b0] sm:$0xff]
  %v7450 = vld [vmem:[#allocation2 + $0x8b8] sm:$0xff]
  %v7451 = vld [vmem:[#allocation2 + $0x8c0] sm:$0xff]
  %v7452 = vld [vmem:[#allocation2 + $0x8c8] sm:$0xff]
  %v7453 = vld [vmem:[#allocation2 + $0x8d0] sm:$0xff]
  %v7454 = vld [vmem:[#allocation2 + $0x8d8] sm:$0xff]
  %v7455 = vld [vmem:[#allocation2 + $0x8e0] sm:$0xff]
  %v7456 = vld [vmem:[#allocation2 + $0x8e8] sm:$0xff]
  %v7457 = vld [vmem:[#allocation2 + $0x8f0] sm:$0xff]
  %v7458 = vld [vmem:[#allocation2 + $0x8f8] sm:$0xff]
  %v7459 = vld [vmem:[#allocation2 + $0x900] sm:$0xff]
  %v7460 = vld [vmem:[#allocation2 + $0x908] sm:$0xff]
  %v7461 = vld [vmem:[#allocation2 + $0x910] sm:$0xff]
  %v7462 = vld [vmem:[#allocation2 + $0x918] sm:$0xff]
  %v7463 = vld [vmem:[#allocation2 + $0x920] sm:$0xff]
  %v7464 = vld [vmem:[#allocation2 + $0x928] sm:$0xff]
  %v7465 = vld [vmem:[#allocation2 + $0x930] sm:$0xff]
  %v7466 = vld [vmem:[#allocation2 + $0x938] sm:$0xff]
  %v7467 = vld [vmem:[#allocation2 + $0x940] sm:$0xff]
  %v7468 = vld [vmem:[#allocation2 + $0x948] sm:$0xff]
  %v7469 = vld [vmem:[#allocation2 + $0x950] sm:$0xff]
  %v7470 = vld [vmem:[#allocation2 + $0x958] sm:$0xff]
  %v7471 = vld [vmem:[#allocation2 + $0x960] sm:$0xff]
  %v7472 = vld [vmem:[#allocation2 + $0x968] sm:$0xff]
  %v7473 = vld [vmem:[#allocation2 + $0x970] sm:$0xff]
  %v7474 = vld [vmem:[#allocation2 + $0x978] sm:$0xff]
  %v7475 = vld [vmem:[#allocation2 + $0x980] sm:$0xff]
  %v7476 = vld [vmem:[#allocation2 + $0x988] sm:$0xff]
  %v7477 = vld [vmem:[#allocation2 + $0x990] sm:$0xff]
  %v7478 = vld [vmem:[#allocation2 + $0x998] sm:$0xff]
  %v7479 = vld [vmem:[#allocation2 + $0x9a0] sm:$0xff]
  %v7480 = vld [vmem:[#allocation2 + $0x9a8] sm:$0xff]
  %v7481 = vld [vmem:[#allocation2 + $0x9b0] sm:$0xff]
  %v7482 = vld [vmem:[#allocation2 + $0x9b8] sm:$0xff]
  %v7483 = vld [vmem:[#allocation2 + $0x9c0] sm:$0xff]
  %v7484 = vld [vmem:[#allocation2 + $0x9c8] sm:$0xff]
  %v7485 = vld [vmem:[#allocation2 + $0x9d0] sm:$0xff]
  %v7486 = vld [vmem:[#allocation2 + $0x9d8] sm:$0xff]
  %v7487 = vld [vmem:[#allocation2 + $0x9e0] sm:$0xff]
  %v7488 = vld [vmem:[#allocation2 + $0x9e8] sm:$0xff]
  %v7489 = vld [vmem:[#allocation2 + $0x9f0] sm:$0xff]
  %v7490 = vld [vmem:[#allocation2 + $0x9f8] sm:$0xff]
  %v7491 = vld [vmem:[#allocation2 + $0xa00] sm:$0xff]
  %v7492 = vld [vmem:[#allocation2 + $0xa08] sm:$0xff]
  %v7493 = vld [vmem:[#allocation2 + $0xa10] sm:$0xff]
  %v7494 = vld [vmem:[#allocation2 + $0xa18] sm:$0xff]
  %v7495 = vld [vmem:[#allocation2 + $0xa20] sm:$0xff]
  %v7496 = vld [vmem:[#allocation2 + $0xa28] sm:$0xff]
  %v7497 = vld [vmem:[#allocation2 + $0xa30] sm:$0xff]
  %v7498 = vld [vmem:[#allocation2 + $0xa38] sm:$0xff]
  %v7499 = vld [vmem:[#allocation2 + $0xa40] sm:$0xff]
  %v7500 = vld [vmem:[#allocation2 + $0xa48] sm:$0xff]
  %v7501 = vld [vmem:[#allocation2 + $0xa50] sm:$0xff]
  %v7502 = vld [vmem:[#allocation2 + $0xa58] sm:$0xff]
  %v7503 = vld [vmem:[#allocation2 + $0xa60] sm:$0xff]
  %v7504 = vld [vmem:[#allocation2 + $0xa68] sm:$0xff]
  %v7505 = vld [vmem:[#allocation2 + $0xa70] sm:$0xff]
  %v7506 = vld [vmem:[#allocation2 + $0xa78] sm:$0xff]
  %v7507 = vld [vmem:[#allocation2 + $0xa80] sm:$0xff]
  %v7508 = vld [vmem:[#allocation2 + $0xa88] sm:$0xff]
  %v7509 = vld [vmem:[#allocation2 + $0xa90] sm:$0xff]
  %v7510 = vld [vmem:[#allocation2 + $0xa98] sm:$0xff]
  %v7511 = vld [vmem:[#allocation2 + $0xaa0] sm:$0xff]
  %v7512 = vld [vmem:[#allocation2 + $0xaa8] sm:$0xff]
  %v7513 = vld [vmem:[#allocation2 + $0xab0] sm:$0xff]
  %v7514 = vld [vmem:[#allocation2 + $0xab8] sm:$0xff]
  %v7515 = vld [vmem:[#allocation2 + $0xac0] sm:$0xff]
  %v7516 = vld [vmem:[#allocation2 + $0xac8] sm:$0xff]
  %v7517 = vld [vmem:[#allocation2 + $0xad0] sm:$0xff]
  %v7518 = vld [vmem:[#allocation2 + $0xad8] sm:$0xff]
  %v7519 = vld [vmem:[#allocation2 + $0xae0] sm:$0xff]
  %v7520 = vld [vmem:[#allocation2 + $0xae8] sm:$0xff]
  %v7521 = vld [vmem:[#allocation2 + $0xaf0] sm:$0xff]
  %v7522 = vld [vmem:[#allocation2 + $0xaf8] sm:$0xff]
  %v7523 = vld [vmem:[#allocation2 + $0xb00] sm:$0xff]
  %v7524 = vld [vmem:[#allocation2 + $0xb08] sm:$0xff]
  %v7525 = vld [vmem:[#allocation2 + $0xb10] sm:$0xff]
  %v7526 = vld [vmem:[#allocation2 + $0xb18] sm:$0xff]
  %v7527 = vld [vmem:[#allocation2 + $0xb20] sm:$0xff]
  %v7528 = vld [vmem:[#allocation2 + $0xb28] sm:$0xff]
  %v7529 = vld [vmem:[#allocation2 + $0xb30] sm:$0xff]
  %v7530 = vld [vmem:[#allocation2 + $0xb38] sm:$0xff]
  %v7531 = vld [vmem:[#allocation2 + $0xb40] sm:$0xff]
  %v7532 = vld [vmem:[#allocation2 + $0xb48] sm:$0xff]
  %v7533 = vld [vmem:[#allocation2 + $0xb50] sm:$0xff]
  %v7534 = vld [vmem:[#allocation2 + $0xb58] sm:$0xff]
  %v7535 = vld [vmem:[#allocation2 + $0xb60] sm:$0xff]
  %v7536 = vld [vmem:[#allocation2 + $0xb68] sm:$0xff]
  %v7537 = vld [vmem:[#allocation2 + $0xb70] sm:$0xff]
  %v7538 = vld [vmem:[#allocation2 + $0xb78] sm:$0xff]
  %v7539 = vld [vmem:[#allocation2 + $0xb80] sm:$0xff]
  %v7540 = vld [vmem:[#allocation2 + $0xb88] sm:$0xff]
  %v7541 = vld [vmem:[#allocation2 + $0xb90] sm:$0xff]
  %v7542 = vld [vmem:[#allocation2 + $0xb98] sm:$0xff]
  %v7543 = vld [vmem:[#allocation2 + $0xba0] sm:$0xff]
  %v7544 = vld [vmem:[#allocation2 + $0xba8] sm:$0xff]
  %v7545 = vld [vmem:[#allocation2 + $0xbb0] sm:$0xff]
  %v7546 = vld [vmem:[#allocation2 + $0xbb8] sm:$0xff]
  %v7547 = vld [vmem:[#allocation2 + $0xbc0] sm:$0xff]
  %v7548 = vld [vmem:[#allocation2 + $0xbc8] sm:$0xff]
  %v7549 = vld [vmem:[#allocation2 + $0xbd0] sm:$0xff]
  %v7550 = vld [vmem:[#allocation2 + $0xbd8] sm:$0xff]
  %v7551 = vld [vmem:[#allocation2 + $0xbe0] sm:$0xff]
  %v7552 = vld [vmem:[#allocation2 + $0xbe8] sm:$0xff]
  %v7553 = vld [vmem:[#allocation2 + $0xbf0] sm:$0xff]
  %v7554 = vld [vmem:[#allocation2 + $0xbf8] sm:$0xff]
  %v7555 = vld [vmem:[#allocation2 + $0xc00] sm:$0xff]
  %v7556 = vld [vmem:[#allocation2 + $0xc08] sm:$0xff]
  %v7557 = vld [vmem:[#allocation2 + $0xc10] sm:$0xff]
  %v7558 = vld [vmem:[#allocation2 + $0xc18] sm:$0xff]
  %v7559 = vld [vmem:[#allocation2 + $0xc20] sm:$0xff]
  %v7560 = vld [vmem:[#allocation2 + $0xc28] sm:$0xff]
  %v7561 = vld [vmem:[#allocation2 + $0xc30] sm:$0xff]
  %v7562 = vld [vmem:[#allocation2 + $0xc38] sm:$0xff]
  %v7563 = vld [vmem:[#allocation2 + $0xc40] sm:$0xff]
  %v7564 = vld [vmem:[#allocation2 + $0xc48] sm:$0xff]
  %v7565 = vld [vmem:[#allocation2 + $0xc50] sm:$0xff]
  %v7566 = vld [vmem:[#allocation2 + $0xc58] sm:$0xff]
  %v7567 = vld [vmem:[#allocation2 + $0xc60] sm:$0xff]
  %v7568 = vld [vmem:[#allocation2 + $0xc68] sm:$0xff]
  %v7569 = vld [vmem:[#allocation2 + $0xc70] sm:$0xff]
  %v7570 = vld [vmem:[#allocation2 + $0xc78] sm:$0xff]
  %v7571 = vld [vmem:[#allocation2 + $0xc80] sm:$0xff]
  %v7572 = vld [vmem:[#allocation2 + $0xc88] sm:$0xff]
  %v7573 = vld [vmem:[#allocation2 + $0xc90] sm:$0xff]
  %v7574 = vld [vmem:[#allocation2 + $0xc98] sm:$0xff]
  %v7575 = vld [vmem:[#allocation2 + $0xca0] sm:$0xff]
  %v7576 = vld [vmem:[#allocation2 + $0xca8] sm:$0xff]
  %v7577 = vld [vmem:[#allocation2 + $0xcb0] sm:$0xff]
  %v7578 = vld [vmem:[#allocation2 + $0xcb8] sm:$0xff]
  %v7579 = vld [vmem:[#allocation2 + $0xcc0] sm:$0xff]
  %v7580 = vld [vmem:[#allocation2 + $0xcc8] sm:$0xff]
  %v7581 = vld [vmem:[#allocation2 + $0xcd0] sm:$0xff]
  %v7582 = vld [vmem:[#allocation2 + $0xcd8] sm:$0xff]
  %v7583 = vld [vmem:[#allocation2 + $0xce0] sm:$0xff]
  %v7584 = vld [vmem:[#allocation2 + $0xce8] sm:$0xff]
  %v7585 = vld [vmem:[#allocation2 + $0xcf0] sm:$0xff]
  %v7586 = vld [vmem:[#allocation2 + $0xcf8] sm:$0xff]
  %v7587 = vld [vmem:[#allocation2 + $0xd00] sm:$0xff]
  %v7588 = vld [vmem:[#allocation2 + $0xd08] sm:$0xff]
  %v7589 = vld [vmem:[#allocation2 + $0xd10] sm:$0xff]
  %v7590 = vld [vmem:[#allocation2 + $0xd18] sm:$0xff]
  %v7591 = vld [vmem:[#allocation2 + $0xd20] sm:$0xff]
  %v7592 = vld [vmem:[#allocation2 + $0xd28] sm:$0xff]
  %v7593 = vld [vmem:[#allocation2 + $0xd30] sm:$0xff]
  %v7594 = vld [vmem:[#allocation2 + $0xd38] sm:$0xff]
  %v7595 = vld [vmem:[#allocation2 + $0xd40] sm:$0xff]
  %v7596 = vld [vmem:[#allocation2 + $0xd48] sm:$0xff]
  %v7597 = vld [vmem:[#allocation2 + $0xd50] sm:$0xff]
  %v7598 = vld [vmem:[#allocation2 + $0xd58] sm:$0xff]
  %v7599 = vld [vmem:[#allocation2 + $0xd60] sm:$0xff]
  %v7600 = vld [vmem:[#allocation2 + $0xd68] sm:$0xff]
  %v7601 = vld [vmem:[#allocation2 + $0xd70] sm:$0xff]
  %v7602 = vld [vmem:[#allocation2 + $0xd78] sm:$0xff]
  %v7603 = vld [vmem:[#allocation2 + $0xd80] sm:$0xff]
  %v7604 = vld [vmem:[#allocation2 + $0xd88] sm:$0xff]
  %v7605 = vld [vmem:[#allocation2 + $0xd90] sm:$0xff]
  %v7606 = vld [vmem:[#allocation2 + $0xd98] sm:$0xff]
  %v7607 = vld [vmem:[#allocation2 + $0xda0] sm:$0xff]
  %v7608 = vld [vmem:[#allocation2 + $0xda8] sm:$0xff]
  %v7609 = vld [vmem:[#allocation2 + $0xdb0] sm:$0xff]
  %v7610 = vld [vmem:[#allocation2 + $0xdb8] sm:$0xff]
  %v7611 = vld [vmem:[#allocation2 + $0xdc0] sm:$0xff]
  %v7612 = vld [vmem:[#allocation2 + $0xdc8] sm:$0xff]
  %v7613 = vld [vmem:[#allocation2 + $0xdd0] sm:$0xff]
  %v7614 = vld [vmem:[#allocation2 + $0xdd8] sm:$0xff]
  %v7615 = vld [vmem:[#allocation2 + $0xde0] sm:$0xff]
  %v7616 = vld [vmem:[#allocation2 + $0xde8] sm:$0xff]
  %v7617 = vld [vmem:[#allocation2 + $0xdf0] sm:$0xff]
  %v7618 = vld [vmem:[#allocation2 + $0xdf8] sm:$0xff]
  %v7619 = vld [vmem:[#allocation2 + $0xe00] sm:$0xff]
  %v7620 = vld [vmem:[#allocation2 + $0xe08] sm:$0xff]
  %v7621 = vld [vmem:[#allocation2 + $0xe10] sm:$0xff]
  %v7622 = vld [vmem:[#allocation2 + $0xe18] sm:$0xff]
  %v7623 = vld [vmem:[#allocation2 + $0xe20] sm:$0xff]
  %v7624 = vld [vmem:[#allocation2 + $0xe28] sm:$0xff]
  %v7625 = vld [vmem:[#allocation2 + $0xe30] sm:$0xff]
  %v7626 = vld [vmem:[#allocation2 + $0xe38] sm:$0xff]
  %v7627 = vld [vmem:[#allocation2 + $0xe40] sm:$0xff]
  %v7628 = vld [vmem:[#allocation2 + $0xe48] sm:$0xff]
  %v7629 = vld [vmem:[#allocation2 + $0xe50] sm:$0xff]
  %v7630 = vld [vmem:[#allocation2 + $0xe58] sm:$0xff]
  %v7631 = vld [vmem:[#allocation2 + $0xe60] sm:$0xff]
  %v7632 = vld [vmem:[#allocation2 + $0xe68] sm:$0xff]
  %v7633 = vld [vmem:[#allocation2 + $0xe70] sm:$0xff]
  %v7634 = vld [vmem:[#allocation2 + $0xe78] sm:$0xff]
  %v7635 = vld [vmem:[#allocation2 + $0xe80] sm:$0xff]
  %v7636 = vld [vmem:[#allocation2 + $0xe88] sm:$0xff]
  %v7637 = vld [vmem:[#allocation2 + $0xe90] sm:$0xff]
  %v7638 = vld [vmem:[#allocation2 + $0xe98] sm:$0xff]
  %v7639 = vld [vmem:[#allocation2 + $0xea0] sm:$0xff]
  %v7640 = vld [vmem:[#allocation2 + $0xea8] sm:$0xff]
  %v7641 = vld [vmem:[#allocation2 + $0xeb0] sm:$0xff]
  %v7642 = vld [vmem:[#allocation2 + $0xeb8] sm:$0xff]
  %v7643 = vld [vmem:[#allocation2 + $0xec0] sm:$0xff]
  %v7644 = vld [vmem:[#allocation2 + $0xec8] sm:$0xff]
  %v7645 = vld [vmem:[#allocation2 + $0xed0] sm:$0xff]
  %v7646 = vld [vmem:[#allocation2 + $0xed8] sm:$0xff]
  %v7647 = vld [vmem:[#allocation2 + $0xee0] sm:$0xff]
  %v7648 = vld [vmem:[#allocation2 + $0xee8] sm:$0xff]
  %v7649 = vld [vmem:[#allocation2 + $0xef0] sm:$0xff]
  %v7650 = vld [vmem:[#allocation2 + $0xef8] sm:$0xff]
  %v7651 = vld [vmem:[#allocation2 + $0xf00] sm:$0xff]
  %v7652 = vld [vmem:[#allocation2 + $0xf08] sm:$0xff]
  %v7653 = vld [vmem:[#allocation2 + $0xf10] sm:$0xff]
  %v7654 = vld [vmem:[#allocation2 + $0xf18] sm:$0xff]
  %v7655 = vld [vmem:[#allocation2 + $0xf20] sm:$0xff]
  %v7656 = vld [vmem:[#allocation2 + $0xf28] sm:$0xff]
  %v7657 = vld [vmem:[#allocation2 + $0xf30] sm:$0xff]
  %v7658 = vld [vmem:[#allocation2 + $0xf38] sm:$0xff]
  %v7659 = vld [vmem:[#allocation2 + $0xf40] sm:$0xff]
  %v7660 = vld [vmem:[#allocation2 + $0xf48] sm:$0xff]
  %v7661 = vld [vmem:[#allocation2 + $0xf50] sm:$0xff]
  %v7662 = vld [vmem:[#allocation2 + $0xf58] sm:$0xff]
  %v7663 = vld [vmem:[#allocation2 + $0xf60] sm:$0xff]
  %v7664 = vld [vmem:[#allocation2 + $0xf68] sm:$0xff]
  %v7665 = vld [vmem:[#allocation2 + $0xf70] sm:$0xff]
  %v7666 = vld [vmem:[#allocation2 + $0xf78] sm:$0xff]
  %v7667 = vld [vmem:[#allocation2 + $0xf80] sm:$0xff]
  %v7668 = vld [vmem:[#allocation2 + $0xf88] sm:$0xff]
  %v7669 = vld [vmem:[#allocation2 + $0xf90] sm:$0xff]
  %v7670 = vld [vmem:[#allocation2 + $0xf98] sm:$0xff]
  %v7671 = vld [vmem:[#allocation2 + $0xfa0] sm:$0xff]
  %v7672 = vld [vmem:[#allocation2 + $0xfa8] sm:$0xff]
  %v7673 = vld [vmem:[#allocation2 + $0xfb0] sm:$0xff]
  %v7674 = vld [vmem:[#allocation2 + $0xfb8] sm:$0xff]
  %v7675 = vld [vmem:[#allocation2 + $0xfc0] sm:$0xff]
  %v7676 = vld [vmem:[#allocation2 + $0xfc8] sm:$0xff]
  %v7677 = vld [vmem:[#allocation2 + $0xfd0] sm:$0xff]
  %v7678 = vld [vmem:[#allocation2 + $0xfd8] sm:$0xff]
  %v7679 = vld [vmem:[#allocation2 + $0xfe0] sm:$0xff]
  %v7680 = vld [vmem:[#allocation2 + $0xfe8] sm:$0xff]
  %v7681 = vld [vmem:[#allocation2 + $0xff0] sm:$0xff]
  %v7682 = vld [vmem:[#allocation2 + $0xff8] sm:$0xff]
  %v7683 = vld [vmem:[#allocation2 + $0x1000] sm:$0xff]
  %v7684 = vld [vmem:[#allocation2 + $0x1008] sm:$0xff]
  %v7685 = vld [vmem:[#allocation2 + $0x1010] sm:$0xff]
  %v7686 = vld [vmem:[#allocation2 + $0x1018] sm:$0xff]
  %v7687 = vld [vmem:[#allocation2 + $0x1020] sm:$0xff]
  %v7688 = vld [vmem:[#allocation2 + $0x1028] sm:$0xff]
  %v7689 = vld [vmem:[#allocation2 + $0x1030] sm:$0xff]
  %v7690 = vld [vmem:[#allocation2 + $0x1038] sm:$0xff]
  %v7691 = vld [vmem:[#allocation2 + $0x1040] sm:$0xff]
  %v7692 = vld [vmem:[#allocation2 + $0x1048] sm:$0xff]
  %v7693 = vld [vmem:[#allocation2 + $0x1050] sm:$0xff]
  %v7694 = vld [vmem:[#allocation2 + $0x1058] sm:$0xff]
  %v7695 = vld [vmem:[#allocation2 + $0x1060] sm:$0xff]
  %v7696 = vld [vmem:[#allocation2 + $0x1068] sm:$0xff]
  %v7697 = vld [vmem:[#allocation2 + $0x1070] sm:$0xff]
  %v7698 = vld [vmem:[#allocation2 + $0x1078] sm:$0xff]
  %v7699 = vld [vmem:[#allocation2 + $0x1080] sm:$0xff]
  %v7700 = vld [vmem:[#allocation2 + $0x1088] sm:$0xff]
  %v7701 = vld [vmem:[#allocation2 + $0x1090] sm:$0xff]
  %v7702 = vld [vmem:[#allocation2 + $0x1098] sm:$0xff]
  %v7703 = vld [vmem:[#allocation2 + $0x10a0] sm:$0xff]
  %v7704 = vld [vmem:[#allocation2 + $0x10a8] sm:$0xff]
  %v7705 = vld [vmem:[#allocation2 + $0x10b0] sm:$0xff]
  %v7706 = vld [vmem:[#allocation2 + $0x10b8] sm:$0xff]
  %v7707 = vld [vmem:[#allocation2 + $0x10c0] sm:$0xff]
  %v7708 = vld [vmem:[#allocation2 + $0x10c8] sm:$0xff]
  %v7709 = vld [vmem:[#allocation2 + $0x10d0] sm:$0xff]
  %v7710 = vld [vmem:[#allocation2 + $0x10d8] sm:$0xff]
  %v7711 = vld [vmem:[#allocation2 + $0x10e0] sm:$0xff]
  %v7712 = vld [vmem:[#allocation2 + $0x10e8] sm:$0xff]
  %v7713 = vld [vmem:[#allocation2 + $0x10f0] sm:$0xff]
  %v7714 = vld [vmem:[#allocation2 + $0x10f8] sm:$0xff]
  %v7715 = vld [vmem:[#allocation2 + $0x1100] sm:$0xff]
  %v7716 = vld [vmem:[#allocation2 + $0x1108] sm:$0xff]
  %v7717 = vld [vmem:[#allocation2 + $0x1110] sm:$0xff]
  %v7718 = vld [vmem:[#allocation2 + $0x1118] sm:$0xff]
  %v7719 = vld [vmem:[#allocation2 + $0x1120] sm:$0xff]
  %v7720 = vld [vmem:[#allocation2 + $0x1128] sm:$0xff]
  %v7721 = vld [vmem:[#allocation2 + $0x1130] sm:$0xff]
  %v7722 = vld [vmem:[#allocation2 + $0x1138] sm:$0xff]
  %v7723 = vld [vmem:[#allocation2 + $0x1140] sm:$0xff]
  %v7724 = vld [vmem:[#allocation2 + $0x1148] sm:$0xff]
  %v7725 = vld [vmem:[#allocation2 + $0x1150] sm:$0xff]
  %v7726 = vld [vmem:[#allocation2 + $0x1158] sm:$0xff]
  %v7727 = vld [vmem:[#allocation2 + $0x1160] sm:$0xff]
  %v7728 = vld [vmem:[#allocation2 + $0x1168] sm:$0xff]
  %v7729 = vld [vmem:[#allocation2 + $0x1170] sm:$0xff]
  %v7730 = vld [vmem:[#allocation2 + $0x1178] sm:$0xff]
  %v7731 = vld [vmem:[#allocation2 + $0x1180] sm:$0xff]
  %v7732 = vld [vmem:[#allocation2 + $0x1188] sm:$0xff]
  %v7733 = vld [vmem:[#allocation2 + $0x1190] sm:$0xff]
  %v7734 = vld [vmem:[#allocation2 + $0x1198] sm:$0xff]
  %v7735 = vld [vmem:[#allocation2 + $0x11a0] sm:$0xff]
  %v7736 = vld [vmem:[#allocation2 + $0x11a8] sm:$0xff]
  %v7737 = vld [vmem:[#allocation2 + $0x11b0] sm:$0xff]
  %v7738 = vld [vmem:[#allocation2 + $0x11b8] sm:$0xff]
  %v7739 = vld [vmem:[#allocation2 + $0x11c0] sm:$0xff]
  %v7740 = vld [vmem:[#allocation2 + $0x11c8] sm:$0xff]
  %v7741 = vld [vmem:[#allocation2 + $0x11d0] sm:$0xff]
  %v7742 = vld [vmem:[#allocation2 + $0x11d8] sm:$0xff]
  %v7743 = vld [vmem:[#allocation2 + $0x11e0] sm:$0xff]
  %v7744 = vld [vmem:[#allocation2 + $0x11e8] sm:$0xff]
  %v7745 = vld [vmem:[#allocation2 + $0x11f0] sm:$0xff]
  %v7746 = vld [vmem:[#allocation2 + $0x11f8] sm:$0xff]
  %v7747 = vld [vmem:[#allocation2 + $0x1200] sm:$0xff]
  %v7748 = vld [vmem:[#allocation2 + $0x1208] sm:$0xff]
  %v7749 = vld [vmem:[#allocation2 + $0x1210] sm:$0xff]
  %v7750 = vld [vmem:[#allocation2 + $0x1218] sm:$0xff]
  %v7751 = vld [vmem:[#allocation2 + $0x1220] sm:$0xff]
  %v7752 = vld [vmem:[#allocation2 + $0x1228] sm:$0xff]
  %v7753 = vld [vmem:[#allocation2 + $0x1230] sm:$0xff]
  %v7754 = vld [vmem:[#allocation2 + $0x1238] sm:$0xff]
  %v7755 = vld [vmem:[#allocation2 + $0x1240] sm:$0xff]
  %v7756 = vld [vmem:[#allocation2 + $0x1248] sm:$0xff]
  %v7757 = vld [vmem:[#allocation2 + $0x1250] sm:$0xff]
  %v7758 = vld [vmem:[#allocation2 + $0x1258] sm:$0xff]
  %v7759 = vld [vmem:[#allocation2 + $0x1260] sm:$0xff]
  %v7760 = vld [vmem:[#allocation2 + $0x1268] sm:$0xff]
  %v7761 = vld [vmem:[#allocation2 + $0x1270] sm:$0xff]
  %v7762 = vld [vmem:[#allocation2 + $0x1278] sm:$0xff]
  %v7763 = vld [vmem:[#allocation2 + $0x1280] sm:$0xff]
  %v7764 = vld [vmem:[#allocation2 + $0x1288] sm:$0xff]
  %v7765 = vld [vmem:[#allocation2 + $0x1290] sm:$0xff]
  %v7766 = vld [vmem:[#allocation2 + $0x1298] sm:$0xff]
  %v7767 = vld [vmem:[#allocation2 + $0x12a0] sm:$0xff]
  %v7768 = vld [vmem:[#allocation2 + $0x12a8] sm:$0xff]
  %v7769 = vld [vmem:[#allocation2 + $0x12b0] sm:$0xff]
  %v7770 = vld [vmem:[#allocation2 + $0x12b8] sm:$0xff]
  %v7771 = vld [vmem:[#allocation2 + $0x12c0] sm:$0xff]
  %v7772 = vld [vmem:[#allocation2 + $0x12c8] sm:$0xff]
  %v7773 = vld [vmem:[#allocation2 + $0x12d0] sm:$0xff]
  %v7774 = vld [vmem:[#allocation2 + $0x12d8] sm:$0xff]
  %v7775 = vld [vmem:[#allocation2 + $0x12e0] sm:$0xff]
  %v7776 = vld [vmem:[#allocation2 + $0x12e8] sm:$0xff]
  %v7777 = vld [vmem:[#allocation2 + $0x12f0] sm:$0xff]
  %v7778 = vld [vmem:[#allocation2 + $0x12f8] sm:$0xff]
  %v7779 = vld [vmem:[#allocation2 + $0x1300] sm:$0xff]
  %v7780 = vld [vmem:[#allocation2 + $0x1308] sm:$0xff]
  %v7781 = vld [vmem:[#allocation2 + $0x1310] sm:$0xff]
  %v7782 = vld [vmem:[#allocation2 + $0x1318] sm:$0xff]
  %v7783 = vld [vmem:[#allocation2 + $0x1320] sm:$0xff]
  %v7784 = vld [vmem:[#allocation2 + $0x1328] sm:$0xff]
  %v7785 = vld [vmem:[#allocation2 + $0x1330] sm:$0xff]
  %v7786 = vld [vmem:[#allocation2 + $0x1338] sm:$0xff]
  %v7787 = vld [vmem:[#allocation2 + $0x1340] sm:$0xff]
  %v7788 = vld [vmem:[#allocation2 + $0x1348] sm:$0xff]
  %v7789 = vld [vmem:[#allocation2 + $0x1350] sm:$0xff]
  %v7790 = vld [vmem:[#allocation2 + $0x1358] sm:$0xff]
  %v7791 = vld [vmem:[#allocation2 + $0x1360] sm:$0xff]
  %v7792 = vld [vmem:[#allocation2 + $0x1368] sm:$0xff]
  %v7793 = vld [vmem:[#allocation2 + $0x1370] sm:$0xff]
  %v7794 = vld [vmem:[#allocation2 + $0x1378] sm:$0xff]
  %v7795 = vld [vmem:[#allocation2 + $0x1380] sm:$0xff]
  %v7796 = vld [vmem:[#allocation2 + $0x1388] sm:$0xff]
  %v7797 = vld [vmem:[#allocation2 + $0x1390] sm:$0xff]
  %v7798 = vld [vmem:[#allocation2 + $0x1398] sm:$0xff]
  %v7799 = vld [vmem:[#allocation2 + $0x13a0] sm:$0xff]
  %v7800 = vld [vmem:[#allocation2 + $0x13a8] sm:$0xff]
  %v7801 = vld [vmem:[#allocation2 + $0x13b0] sm:$0xff]
  %v7802 = vld [vmem:[#allocation2 + $0x13b8] sm:$0xff]
  %v7803 = vld [vmem:[#allocation2 + $0x13c0] sm:$0xff]
  %v7804 = vld [vmem:[#allocation2 + $0x13c8] sm:$0xff]
  %v7805 = vld [vmem:[#allocation2 + $0x13d0] sm:$0xff]
  %v7806 = vld [vmem:[#allocation2 + $0x13d8] sm:$0xff]
  %v7807 = vld [vmem:[#allocation2 + $0x13e0] sm:$0xff]
  %v7808 = vld [vmem:[#allocation2 + $0x13e8] sm:$0xff]
  %v7809 = vld [vmem:[#allocation2 + $0x13f0] sm:$0xff]
  %v7810 = vld [vmem:[#allocation2 + $0x13f8] sm:$0xff]
  %v7811 = vld [vmem:[#allocation2 + $0x1400] sm:$0xff]
  %v7812 = vld [vmem:[#allocation2 + $0x1408] sm:$0xff]
  %v7813 = vld [vmem:[#allocation2 + $0x1410] sm:$0xff]
  %v7814 = vld [vmem:[#allocation2 + $0x1418] sm:$0xff]
  %v7815 = vld [vmem:[#allocation2 + $0x1420] sm:$0xff]
  %v7816 = vld [vmem:[#allocation2 + $0x1428] sm:$0xff]
  %v7817 = vld [vmem:[#allocation2 + $0x1430] sm:$0xff]
  %v7818 = vld [vmem:[#allocation2 + $0x1438] sm:$0xff]
  %v7819 = vld [vmem:[#allocation2 + $0x1440] sm:$0xff]
  %v7820 = vld [vmem:[#allocation2 + $0x1448] sm:$0xff]
  %v7821 = vld [vmem:[#allocation2 + $0x1450] sm:$0xff]
  %v7822 = vld [vmem:[#allocation2 + $0x1458] sm:$0xff]
  %v7823 = vld [vmem:[#allocation2 + $0x1460] sm:$0xff]
  %v7824 = vld [vmem:[#allocation2 + $0x1468] sm:$0xff]
  %v7825 = vld [vmem:[#allocation2 + $0x1470] sm:$0xff]
  %v7826 = vld [vmem:[#allocation2 + $0x1478] sm:$0xff]
  %v7827 = vld [vmem:[#allocation2 + $0x1480] sm:$0xff]
  %v7828 = vld [vmem:[#allocation2 + $0x1488] sm:$0xff]
  %v7829 = vld [vmem:[#allocation2 + $0x1490] sm:$0xff]
  %v7830 = vld [vmem:[#allocation2 + $0x1498] sm:$0xff]
  %v7831 = vld [vmem:[#allocation2 + $0x14a0] sm:$0xff]
  %v7832 = vld [vmem:[#allocation2 + $0x14a8] sm:$0xff]
  %v7833 = vld [vmem:[#allocation2 + $0x14b0] sm:$0xff]
  %v7834 = vld [vmem:[#allocation2 + $0x14b8] sm:$0xff]
  %v7835 = vld [vmem:[#allocation2 + $0x14c0] sm:$0xff]
  %v7836 = vld [vmem:[#allocation2 + $0x14c8] sm:$0xff]
  %v7837 = vld [vmem:[#allocation2 + $0x14d0] sm:$0xff]
  %v7838 = vld [vmem:[#allocation2 + $0x14d8] sm:$0xff]
  %v7839 = vld [vmem:[#allocation2 + $0x14e0] sm:$0xff]
  %v7840 = vld [vmem:[#allocation2 + $0x14e8] sm:$0xff]
  %v7841 = vld [vmem:[#allocation2 + $0x14f0] sm:$0xff]
  %v7842 = vld [vmem:[#allocation2 + $0x14f8] sm:$0xff]
  %v7843 = vld [vmem:[#allocation2 + $0x1500] sm:$0xff]
  %v7844 = vld [vmem:[#allocation2 + $0x1508] sm:$0xff]
  %v7845 = vld [vmem:[#allocation2 + $0x1510] sm:$0xff]
  %v7846 = vld [vmem:[#allocation2 + $0x1518] sm:$0xff]
  %v7847 = vld [vmem:[#allocation2 + $0x1520] sm:$0xff]
  %v7848 = vld [vmem:[#allocation2 + $0x1528] sm:$0xff]
  %v7849 = vld [vmem:[#allocation2 + $0x1530] sm:$0xff]
  %v7850 = vld [vmem:[#allocation2 + $0x1538] sm:$0xff]
  %v7851 = vld [vmem:[#allocation2 + $0x1540] sm:$0xff]
  %v7852 = vld [vmem:[#allocation2 + $0x1548] sm:$0xff]
  %v7853 = vld [vmem:[#allocation2 + $0x1550] sm:$0xff]
  %v7854 = vld [vmem:[#allocation2 + $0x1558] sm:$0xff]
  %v7855 = vld [vmem:[#allocation2 + $0x1560] sm:$0xff]
  %v7856 = vld [vmem:[#allocation2 + $0x1568] sm:$0xff]
  %v7857 = vld [vmem:[#allocation2 + $0x1570] sm:$0xff]
  %v7858 = vld [vmem:[#allocation2 + $0x1578] sm:$0xff]
  %v7859 = vld [vmem:[#allocation2 + $0x1580] sm:$0xff]
  %v7860 = vld [vmem:[#allocation2 + $0x1588] sm:$0xff]
  %v7861 = vld [vmem:[#allocation2 + $0x1590] sm:$0xff]
  %v7862 = vld [vmem:[#allocation2 + $0x1598] sm:$0xff]
  %v7863 = vld [vmem:[#allocation2 + $0x15a0] sm:$0xff]
  %v7864 = vld [vmem:[#allocation2 + $0x15a8] sm:$0xff]
  %v7865 = vld [vmem:[#allocation2 + $0x15b0] sm:$0xff]
  %v7866 = vld [vmem:[#allocation2 + $0x15b8] sm:$0xff]
  %v7867 = vld [vmem:[#allocation2 + $0x15c0] sm:$0xff]
  %v7868 = vld [vmem:[#allocation2 + $0x15c8] sm:$0xff]
  %v7869 = vld [vmem:[#allocation2 + $0x15d0] sm:$0xff]
  %v7870 = vld [vmem:[#allocation2 + $0x15d8] sm:$0xff]
  %v7871 = vld [vmem:[#allocation2 + $0x15e0] sm:$0xff]
  %v7872 = vld [vmem:[#allocation2 + $0x15e8] sm:$0xff]
  %v7873 = vld [vmem:[#allocation2 + $0x15f0] sm:$0xff]
  %v7874 = vld [vmem:[#allocation2 + $0x15f8] sm:$0xff]
  %v7875 = vld [vmem:[#allocation2 + $0x1600] sm:$0xff]
  %v7876 = vld [vmem:[#allocation2 + $0x1608] sm:$0xff]
  %v7877 = vld [vmem:[#allocation2 + $0x1610] sm:$0xff]
  %v7878 = vld [vmem:[#allocation2 + $0x1618] sm:$0xff]
  %v7879 = vld [vmem:[#allocation2 + $0x1620] sm:$0xff]
  %v7880 = vld [vmem:[#allocation2 + $0x1628] sm:$0xff]
  %v7881 = vld [vmem:[#allocation2 + $0x1630] sm:$0xff]
  %v7882 = vld [vmem:[#allocation2 + $0x1638] sm:$0xff]
  %v7883 = vld [vmem:[#allocation2 + $0x1640] sm:$0xff]
  %v7884 = vld [vmem:[#allocation2 + $0x1648] sm:$0xff]
  %v7885 = vld [vmem:[#allocation2 + $0x1650] sm:$0xff]
  %v7886 = vld [vmem:[#allocation2 + $0x1658] sm:$0xff]
  %v7887 = vld [vmem:[#allocation2 + $0x1660] sm:$0xff]
  %v7888 = vld [vmem:[#allocation2 + $0x1668] sm:$0xff]
  %v7889 = vld [vmem:[#allocation2 + $0x1670] sm:$0xff]
  %v7890 = vld [vmem:[#allocation2 + $0x1678] sm:$0xff]
  %v7891 = vld [vmem:[#allocation2 + $0x1680] sm:$0xff]
  %v7892 = vld [vmem:[#allocation2 + $0x1688] sm:$0xff]
  %v7893 = vld [vmem:[#allocation2 + $0x1690] sm:$0xff]
  %v7894 = vld [vmem:[#allocation2 + $0x1698] sm:$0xff]
  %v7895 = vld [vmem:[#allocation2 + $0x16a0] sm:$0xff]
  %v7896 = vld [vmem:[#allocation2 + $0x16a8] sm:$0xff]
  %v7897 = vld [vmem:[#allocation2 + $0x16b0] sm:$0xff]
  %v7898 = vld [vmem:[#allocation2 + $0x16b8] sm:$0xff]
  %v7899 = vld [vmem:[#allocation2 + $0x16c0] sm:$0xff]
  %v7900 = vld [vmem:[#allocation2 + $0x16c8] sm:$0xff]
  %v7901 = vld [vmem:[#allocation2 + $0x16d0] sm:$0xff]
  %v7902 = vld [vmem:[#allocation2 + $0x16d8] sm:$0xff]
  %v7903 = vld [vmem:[#allocation2 + $0x16e0] sm:$0xff]
  %v7904 = vld [vmem:[#allocation2 + $0x16e8] sm:$0xff]
  %v7905 = vld [vmem:[#allocation2 + $0x16f0] sm:$0xff]
  %v7906 = vld [vmem:[#allocation2 + $0x16f8] sm:$0xff]
  %v7907 = vld [vmem:[#allocation2 + $0x1700] sm:$0xff]
  %v7908 = vld [vmem:[#allocation2 + $0x1708] sm:$0xff]
  %v7909 = vld [vmem:[#allocation2 + $0x1710] sm:$0xff]
  %v7910 = vld [vmem:[#allocation2 + $0x1718] sm:$0xff]
  %v7911 = vld [vmem:[#allocation2 + $0x1720] sm:$0xff]
  %v7912 = vld [vmem:[#allocation2 + $0x1728] sm:$0xff]
  %v7913 = vld [vmem:[#allocation2 + $0x1730] sm:$0xff]
  %v7914 = vld [vmem:[#allocation2 + $0x1738] sm:$0xff]
  %v7915 = vld [vmem:[#allocation2 + $0x1740] sm:$0xff]
  %v7916 = vld [vmem:[#allocation2 + $0x1748] sm:$0xff]
  %v7917 = vld [vmem:[#allocation2 + $0x1750] sm:$0xff]
  %v7918 = vld [vmem:[#allocation2 + $0x1758] sm:$0xff]
  %v7919 = vld [vmem:[#allocation2 + $0x1760] sm:$0xff]
  %v7920 = vld [vmem:[#allocation2 + $0x1768] sm:$0xff]
  %v7921 = vld [vmem:[#allocation2 + $0x1770] sm:$0xff]
  %v7922 = vld [vmem:[#allocation2 + $0x1778] sm:$0xff]
  %v7923 = vld [vmem:[#allocation2 + $0x1780] sm:$0xff]
  %v7924 = vld [vmem:[#allocation2 + $0x1788] sm:$0xff]
  %v7925 = vld [vmem:[#allocation2 + $0x1790] sm:$0xff]
  %v7926 = vld [vmem:[#allocation2 + $0x1798] sm:$0xff]
  %v7927 = vld [vmem:[#allocation2 + $0x17a0] sm:$0xff]
  %v7928 = vld [vmem:[#allocation2 + $0x17a8] sm:$0xff]
  %v7929 = vld [vmem:[#allocation2 + $0x17b0] sm:$0xff]
  %v7930 = vld [vmem:[#allocation2 + $0x17b8] sm:$0xff]
  %v7931 = vld [vmem:[#allocation2 + $0x17c0] sm:$0xff]
  %v7932 = vld [vmem:[#allocation2 + $0x17c8] sm:$0xff]
  %v7933 = vld [vmem:[#allocation2 + $0x17d0] sm:$0xff]
  %v7934 = vld [vmem:[#allocation2 + $0x17d8] sm:$0xff]
  %v7935 = vld [vmem:[#allocation2 + $0x17e0] sm:$0xff]
  %v7936 = vld [vmem:[#allocation2 + $0x17e8] sm:$0xff]
  %v7937 = vld [vmem:[#allocation2 + $0x17f0] sm:$0xff]
  %v7938 = vld [vmem:[#allocation2 + $0x17f8] sm:$0xff]
  %v7939 = vld [vmem:[#allocation2 + $0x1800] sm:$0xff]
  %v7940 = vld [vmem:[#allocation2 + $0x1808] sm:$0xff]
  %v7941 = vld [vmem:[#allocation2 + $0x1810] sm:$0xff]
  %v7942 = vld [vmem:[#allocation2 + $0x1818] sm:$0xff]
  %v7943 = vld [vmem:[#allocation2 + $0x1820] sm:$0xff]
  %v7944 = vld [vmem:[#allocation2 + $0x1828] sm:$0xff]
  %v7945 = vld [vmem:[#allocation2 + $0x1830] sm:$0xff]
  %v7946 = vld [vmem:[#allocation2 + $0x1838] sm:$0xff]
  %v7947 = vld [vmem:[#allocation2 + $0x1840] sm:$0xff]
  %v7948 = vld [vmem:[#allocation2 + $0x1848] sm:$0xff]
  %v7949 = vld [vmem:[#allocation2 + $0x1850] sm:$0xff]
  %v7950 = vld [vmem:[#allocation2 + $0x1858] sm:$0xff]
  %v7951 = vld [vmem:[#allocation2 + $0x1860] sm:$0xff]
  %v7952 = vld [vmem:[#allocation2 + $0x1868] sm:$0xff]
  %v7953 = vld [vmem:[#allocation2 + $0x1870] sm:$0xff]
  %v7954 = vld [vmem:[#allocation2 + $0x1878] sm:$0xff]
  %v7955 = vld [vmem:[#allocation2 + $0x1880] sm:$0xff]
  %v7956 = vld [vmem:[#allocation2 + $0x1888] sm:$0xff]
  %v7957 = vld [vmem:[#allocation2 + $0x1890] sm:$0xff]
  %v7958 = vld [vmem:[#allocation2 + $0x1898] sm:$0xff]
  %v7959 = vld [vmem:[#allocation2 + $0x18a0] sm:$0xff]
  %v7960 = vld [vmem:[#allocation2 + $0x18a8] sm:$0xff]
  %v7961 = vld [vmem:[#allocation2 + $0x18b0] sm:$0xff]
  %v7962 = vld [vmem:[#allocation2 + $0x18b8] sm:$0xff]
  %v7963 = vld [vmem:[#allocation2 + $0x18c0] sm:$0xff]
  %v7964 = vld [vmem:[#allocation2 + $0x18c8] sm:$0xff]
  %v7965 = vld [vmem:[#allocation2 + $0x18d0] sm:$0xff]
  %v7966 = vld [vmem:[#allocation2 + $0x18d8] sm:$0xff]
  %v7967 = vld [vmem:[#allocation2 + $0x18e0] sm:$0xff]
  %v7968 = vld [vmem:[#allocation2 + $0x18e8] sm:$0xff]
  %v7969 = vld [vmem:[#allocation2 + $0x18f0] sm:$0xff]
  %v7970 = vld [vmem:[#allocation2 + $0x18f8] sm:$0xff]
  %v7971 = vld [vmem:[#allocation2 + $0x1900] sm:$0xff]
  %v7972 = vld [vmem:[#allocation2 + $0x1908] sm:$0xff]
  %v7973 = vld [vmem:[#allocation2 + $0x1910] sm:$0xff]
  %v7974 = vld [vmem:[#allocation2 + $0x1918] sm:$0xff]
  %v7975 = vld [vmem:[#allocation2 + $0x1920] sm:$0xff]
  %v7976 = vld [vmem:[#allocation2 + $0x1928] sm:$0xff]
  %v7977 = vld [vmem:[#allocation2 + $0x1930] sm:$0xff]
  %v7978 = vld [vmem:[#allocation2 + $0x1938] sm:$0xff]
  %v7979 = vld [vmem:[#allocation2 + $0x1940] sm:$0xff]
  %v7980 = vld [vmem:[#allocation2 + $0x1948] sm:$0xff]
  %v7981 = vld [vmem:[#allocation2 + $0x1950] sm:$0xff]
  %v7982 = vld [vmem:[#allocation2 + $0x1958] sm:$0xff]
  %v7983 = vld [vmem:[#allocation2 + $0x1960] sm:$0xff]
  %v7984 = vld [vmem:[#allocation2 + $0x1968] sm:$0xff]
  %v7985 = vld [vmem:[#allocation2 + $0x1970] sm:$0xff]
  %v7986 = vld [vmem:[#allocation2 + $0x1978] sm:$0xff]
  %v7987 = vld [vmem:[#allocation2 + $0x1980] sm:$0xff]
  %v7988 = vld [vmem:[#allocation2 + $0x1988] sm:$0xff]
  %v7989 = vld [vmem:[#allocation2 + $0x1990] sm:$0xff]
  %v7990 = vld [vmem:[#allocation2 + $0x1998] sm:$0xff]
  %v7991 = vld [vmem:[#allocation2 + $0x19a0] sm:$0xff]
  %v7992 = vld [vmem:[#allocation2 + $0x19a8] sm:$0xff]
  %v7993 = vld [vmem:[#allocation2 + $0x19b0] sm:$0xff]
  %v7994 = vld [vmem:[#allocation2 + $0x19b8] sm:$0xff]
  %v7995 = vld [vmem:[#allocation2 + $0x19c0] sm:$0xff]
  %v7996 = vld [vmem:[#allocation2 + $0x19c8] sm:$0xff]
  %v7997 = vld [vmem:[#allocation2 + $0x19d0] sm:$0xff]
  %v7998 = vld [vmem:[#allocation2 + $0x19d8] sm:$0xff]
  %v7999 = vld [vmem:[#allocation2 + $0x19e0] sm:$0xff]
  %v8000 = vld [vmem:[#allocation2 + $0x19e8] sm:$0xff]
  %v8001 = vld [vmem:[#allocation2 + $0x19f0] sm:$0xff]
  %v8002 = vld [vmem:[#allocation2 + $0x19f8] sm:$0xff]
  %v8003 = vld [vmem:[#allocation2 + $0x1a00] sm:$0xff]
  %v8004 = vld [vmem:[#allocation2 + $0x1a08] sm:$0xff]
  %v8005 = vld [vmem:[#allocation2 + $0x1a10] sm:$0xff]
  %v8006 = vld [vmem:[#allocation2 + $0x1a18] sm:$0xff]
  %v8007 = vld [vmem:[#allocation2 + $0x1a20] sm:$0xff]
  %v8008 = vld [vmem:[#allocation2 + $0x1a28] sm:$0xff]
  %v8009 = vld [vmem:[#allocation2 + $0x1a30] sm:$0xff]
  %v8010 = vld [vmem:[#allocation2 + $0x1a38] sm:$0xff]
  %v8011 = vld [vmem:[#allocation2 + $0x1a40] sm:$0xff]
  %v8012 = vld [vmem:[#allocation2 + $0x1a48] sm:$0xff]
  %v8013 = vld [vmem:[#allocation2 + $0x1a50] sm:$0xff]
  %v8014 = vld [vmem:[#allocation2 + $0x1a58] sm:$0xff]
  %v8015 = vld [vmem:[#allocation2 + $0x1a60] sm:$0xff]
  %v8016 = vld [vmem:[#allocation2 + $0x1a68] sm:$0xff]
  %v8017 = vld [vmem:[#allocation2 + $0x1a70] sm:$0xff]
  %v8018 = vld [vmem:[#allocation2 + $0x1a78] sm:$0xff]
  %v8019 = vld [vmem:[#allocation2 + $0x1a80] sm:$0xff]
  %v8020 = vld [vmem:[#allocation2 + $0x1a88] sm:$0xff]
  %v8021 = vld [vmem:[#allocation2 + $0x1a90] sm:$0xff]
  %v8022 = vld [vmem:[#allocation2 + $0x1a98] sm:$0xff]
  %v8023 = vld [vmem:[#allocation2 + $0x1aa0] sm:$0xff]
  %v8024 = vld [vmem:[#allocation2 + $0x1aa8] sm:$0xff]
  %v8025 = vld [vmem:[#allocation2 + $0x1ab0] sm:$0xff]
  %v8026 = vld [vmem:[#allocation2 + $0x1ab8] sm:$0xff]
  %v8027 = vld [vmem:[#allocation2 + $0x1ac0] sm:$0xff]
  %v8028 = vld [vmem:[#allocation2 + $0x1ac8] sm:$0xff]
  %v8029 = vld [vmem:[#allocation2 + $0x1ad0] sm:$0xff]
  %v8030 = vld [vmem:[#allocation2 + $0x1ad8] sm:$0xff]
  %v8031 = vld [vmem:[#allocation2 + $0x1ae0] sm:$0xff]
  %v8032 = vld [vmem:[#allocation2 + $0x1ae8] sm:$0xff]
  %v8033 = vld [vmem:[#allocation2 + $0x1af0] sm:$0xff]
  %v8034 = vld [vmem:[#allocation2 + $0x1af8] sm:$0xff]
  %v8035 = vld [vmem:[#allocation2 + $0x1b00] sm:$0xff]
  %v8036 = vld [vmem:[#allocation2 + $0x1b08] sm:$0xff]
  %v8037 = vld [vmem:[#allocation2 + $0x1b10] sm:$0xff]
  %v8038 = vld [vmem:[#allocation2 + $0x1b18] sm:$0xff]
  %v8039 = vld [vmem:[#allocation2 + $0x1b20] sm:$0xff]
  %v8040 = vld [vmem:[#allocation2 + $0x1b28] sm:$0xff]
  %v8041 = vld [vmem:[#allocation2 + $0x1b30] sm:$0xff]
  %v8042 = vld [vmem:[#allocation2 + $0x1b38] sm:$0xff]
  %v8043 = vld [vmem:[#allocation2 + $0x1b40] sm:$0xff]
  %v8044 = vld [vmem:[#allocation2 + $0x1b48] sm:$0xff]
  %v8045 = vld [vmem:[#allocation2 + $0x1b50] sm:$0xff]
  %v8046 = vld [vmem:[#allocation2 + $0x1b58] sm:$0xff]
  %v8047 = vld [vmem:[#allocation2 + $0x1b60] sm:$0xff]
  %v8048 = vld [vmem:[#allocation2 + $0x1b68] sm:$0xff]
  %v8049 = vld [vmem:[#allocation2 + $0x1b70] sm:$0xff]
  %v8050 = vld [vmem:[#allocation2 + $0x1b78] sm:$0xff]
  %v8051 = vld [vmem:[#allocation2 + $0x1b80] sm:$0xff]
  %v8052 = vld [vmem:[#allocation2 + $0x1b88] sm:$0xff]
  %v8053 = vld [vmem:[#allocation2 + $0x1b90] sm:$0xff]
  %v8054 = vld [vmem:[#allocation2 + $0x1b98] sm:$0xff]
  %v8055 = vld [vmem:[#allocation2 + $0x1ba0] sm:$0xff]
  %v8056 = vld [vmem:[#allocation2 + $0x1ba8] sm:$0xff]
  %v8057 = vld [vmem:[#allocation2 + $0x1bb0] sm:$0xff]
  %v8058 = vld [vmem:[#allocation2 + $0x1bb8] sm:$0xff]
  %v8059 = vld [vmem:[#allocation2 + $0x1bc0] sm:$0xff]
  %v8060 = vld [vmem:[#allocation2 + $0x1bc8] sm:$0xff]
  %v8061 = vld [vmem:[#allocation2 + $0x1bd0] sm:$0xff]
  %v8062 = vld [vmem:[#allocation2 + $0x1bd8] sm:$0xff]
  %v8063 = vld [vmem:[#allocation2 + $0x1be0] sm:$0xff]
  %v8064 = vld [vmem:[#allocation2 + $0x1be8] sm:$0xff]
  %v8065 = vld [vmem:[#allocation2 + $0x1bf0] sm:$0xff]
  %v8066 = vld [vmem:[#allocation2 + $0x1bf8] sm:$0xff]
  %v8067 = vld [vmem:[#allocation2 + $0x1c00] sm:$0xff]
  %v8068 = vld [vmem:[#allocation2 + $0x1c08] sm:$0xff]
  %v8069 = vld [vmem:[#allocation2 + $0x1c10] sm:$0xff]
  %v8070 = vld [vmem:[#allocation2 + $0x1c18] sm:$0xff]
  %v8071 = vld [vmem:[#allocation2 + $0x1c20] sm:$0xff]
  %v8072 = vld [vmem:[#allocation2 + $0x1c28] sm:$0xff]
  %v8073 = vld [vmem:[#allocation2 + $0x1c30] sm:$0xff]
  %v8074 = vld [vmem:[#allocation2 + $0x1c38] sm:$0xff]
  %v8075 = vld [vmem:[#allocation2 + $0x1c40] sm:$0xff]
  %v8076 = vld [vmem:[#allocation2 + $0x1c48] sm:$0xff]
  %v8077 = vld [vmem:[#allocation2 + $0x1c50] sm:$0xff]
  %v8078 = vld [vmem:[#allocation2 + $0x1c58] sm:$0xff]
  %v8079 = vld [vmem:[#allocation2 + $0x1c60] sm:$0xff]
  %v8080 = vld [vmem:[#allocation2 + $0x1c68] sm:$0xff]
  %v8081 = vld [vmem:[#allocation2 + $0x1c70] sm:$0xff]
  %v8082 = vld [vmem:[#allocation2 + $0x1c78] sm:$0xff]
  %v8083 = vld [vmem:[#allocation2 + $0x1c80] sm:$0xff]
  %v8084 = vld [vmem:[#allocation2 + $0x1c88] sm:$0xff]
  %v8085 = vld [vmem:[#allocation2 + $0x1c90] sm:$0xff]
  %v8086 = vld [vmem:[#allocation2 + $0x1c98] sm:$0xff]
  %v8087 = vld [vmem:[#allocation2 + $0x1ca0] sm:$0xff]
  %v8088 = vld [vmem:[#allocation2 + $0x1ca8] sm:$0xff]
  %v8089 = vld [vmem:[#allocation2 + $0x1cb0] sm:$0xff]
  %v8090 = vld [vmem:[#allocation2 + $0x1cb8] sm:$0xff]
  %v8091 = vld [vmem:[#allocation2 + $0x1cc0] sm:$0xff]
  %v8092 = vld [vmem:[#allocation2 + $0x1cc8] sm:$0xff]
  %v8093 = vld [vmem:[#allocation2 + $0x1cd0] sm:$0xff]
  %v8094 = vld [vmem:[#allocation2 + $0x1cd8] sm:$0xff]
  %v8095 = vld [vmem:[#allocation2 + $0x1ce0] sm:$0xff]
  %v8096 = vld [vmem:[#allocation2 + $0x1ce8] sm:$0xff]
  %v8097 = vld [vmem:[#allocation2 + $0x1cf0] sm:$0xff]
  %v8098 = vld [vmem:[#allocation2 + $0x1cf8] sm:$0xff]
  %v8099 = vld [vmem:[#allocation2 + $0x1d00] sm:$0xff]
  %v8100 = vld [vmem:[#allocation2 + $0x1d08] sm:$0xff]
  %v8101 = vld [vmem:[#allocation2 + $0x1d10] sm:$0xff]
  %v8102 = vld [vmem:[#allocation2 + $0x1d18] sm:$0xff]
  %v8103 = vld [vmem:[#allocation2 + $0x1d20] sm:$0xff]
  %v8104 = vld [vmem:[#allocation2 + $0x1d28] sm:$0xff]
  %v8105 = vld [vmem:[#allocation2 + $0x1d30] sm:$0xff]
  %v8106 = vld [vmem:[#allocation2 + $0x1d38] sm:$0xff]
  %v8107 = vld [vmem:[#allocation2 + $0x1d40] sm:$0xff]
  %v8108 = vld [vmem:[#allocation2 + $0x1d48] sm:$0xff]
  %v8109 = vld [vmem:[#allocation2 + $0x1d50] sm:$0xff]
  %v8110 = vld [vmem:[#allocation2 + $0x1d58] sm:$0xff]
  %v8111 = vld [vmem:[#allocation2 + $0x1d60] sm:$0xff]
  %v8112 = vld [vmem:[#allocation2 + $0x1d68] sm:$0xff]
  %v8113 = vld [vmem:[#allocation2 + $0x1d70] sm:$0xff]
  %v8114 = vld [vmem:[#allocation2 + $0x1d78] sm:$0xff]
  %v8115 = vld [vmem:[#allocation2 + $0x1d80] sm:$0xff]
  %v8116 = vld [vmem:[#allocation2 + $0x1d88] sm:$0xff]
  %v8117 = vld [vmem:[#allocation2 + $0x1d90] sm:$0xff]
  %v8118 = vld [vmem:[#allocation2 + $0x1d98] sm:$0xff]
  %v8119 = vld [vmem:[#allocation2 + $0x1da0] sm:$0xff]
  %v8120 = vld [vmem:[#allocation2 + $0x1da8] sm:$0xff]
  %v8121 = vld [vmem:[#allocation2 + $0x1db0] sm:$0xff]
  %v8122 = vld [vmem:[#allocation2 + $0x1db8] sm:$0xff]
  %v8123 = vld [vmem:[#allocation2 + $0x1dc0] sm:$0xff]
  %v8124 = vld [vmem:[#allocation2 + $0x1dc8] sm:$0xff]
  %v8125 = vld [vmem:[#allocation2 + $0x1dd0] sm:$0xff]
  %v8126 = vld [vmem:[#allocation2 + $0x1dd8] sm:$0xff]
  %v8127 = vld [vmem:[#allocation2 + $0x1de0] sm:$0xff]
  %v8128 = vld [vmem:[#allocation2 + $0x1de8] sm:$0xff]
  %v8129 = vld [vmem:[#allocation2 + $0x1df0] sm:$0xff]
  %v8130 = vld [vmem:[#allocation2 + $0x1df8] sm:$0xff]
  %v8131 = vld [vmem:[#allocation2 + $0x1e00] sm:$0xff]
  %v8132 = vld [vmem:[#allocation2 + $0x1e08] sm:$0xff]
  %v8133 = vld [vmem:[#allocation2 + $0x1e10] sm:$0xff]
  %v8134 = vld [vmem:[#allocation2 + $0x1e18] sm:$0xff]
  %v8135 = vld [vmem:[#allocation2 + $0x1e20] sm:$0xff]
  %v8136 = vld [vmem:[#allocation2 + $0x1e28] sm:$0xff]
  %v8137 = vld [vmem:[#allocation2 + $0x1e30] sm:$0xff]
  %v8138 = vld [vmem:[#allocation2 + $0x1e38] sm:$0xff]
  %v8139 = vld [vmem:[#allocation2 + $0x1e40] sm:$0xff]
  %v8140 = vld [vmem:[#allocation2 + $0x1e48] sm:$0xff]
  %v8141 = vld [vmem:[#allocation2 + $0x1e50] sm:$0xff]
  %v8142 = vld [vmem:[#allocation2 + $0x1e58] sm:$0xff]
  %v8143 = vld [vmem:[#allocation2 + $0x1e60] sm:$0xff]
  %v8144 = vld [vmem:[#allocation2 + $0x1e68] sm:$0xff]
  %v8145 = vld [vmem:[#allocation2 + $0x1e70] sm:$0xff]
  %v8146 = vld [vmem:[#allocation2 + $0x1e78] sm:$0xff]
  %v8147 = vld [vmem:[#allocation2 + $0x1e80] sm:$0xff]
  %v8148 = vld [vmem:[#allocation2 + $0x1e88] sm:$0xff]
  %v8149 = vld [vmem:[#allocation2 + $0x1e90] sm:$0xff]
  %v8150 = vld [vmem:[#allocation2 + $0x1e98] sm:$0xff]
  %v8151 = vld [vmem:[#allocation2 + $0x1ea0] sm:$0xff]
  %v8152 = vld [vmem:[#allocation2 + $0x1ea8] sm:$0xff]
  %v8153 = vld [vmem:[#allocation2 + $0x1eb0] sm:$0xff]
  %v8154 = vld [vmem:[#allocation2 + $0x1eb8] sm:$0xff]
  %v8155 = vld [vmem:[#allocation2 + $0x1ec0] sm:$0xff]
  %v8156 = vld [vmem:[#allocation2 + $0x1ec8] sm:$0xff]
  %v8157 = vld [vmem:[#allocation2 + $0x1ed0] sm:$0xff]
  %v8158 = vld [vmem:[#allocation2 + $0x1ed8] sm:$0xff]
  %v8159 = vld [vmem:[#allocation2 + $0x1ee0] sm:$0xff]
  %v8160 = vld [vmem:[#allocation2 + $0x1ee8] sm:$0xff]
  %v8161 = vld [vmem:[#allocation2 + $0x1ef0] sm:$0xff]
  %v8162 = vld [vmem:[#allocation2 + $0x1ef8] sm:$0xff]
  %v8163 = vld [vmem:[#allocation2 + $0x1f00] sm:$0xff]
  %v8164 = vld [vmem:[#allocation2 + $0x1f08] sm:$0xff]
  %v8165 = vld [vmem:[#allocation2 + $0x1f10] sm:$0xff]
  %v8166 = vld [vmem:[#allocation2 + $0x1f18] sm:$0xff]
  %v8167 = vld [vmem:[#allocation2 + $0x1f20] sm:$0xff]
  %v8168 = vld [vmem:[#allocation2 + $0x1f28] sm:$0xff]
  %v8169 = vld [vmem:[#allocation2 + $0x1f30] sm:$0xff]
  %v8170 = vld [vmem:[#allocation2 + $0x1f38] sm:$0xff]
  %v8171 = vld [vmem:[#allocation2 + $0x1f40] sm:$0xff]
  %v8172 = vld [vmem:[#allocation2 + $0x1f48] sm:$0xff]
  %v8173 = vld [vmem:[#allocation2 + $0x1f50] sm:$0xff]
  %v8174 = vld [vmem:[#allocation2 + $0x1f58] sm:$0xff]
  %v8175 = vld [vmem:[#allocation2 + $0x1f60] sm:$0xff]
  %v8176 = vld [vmem:[#allocation2 + $0x1f68] sm:$0xff]
  %v8177 = vld [vmem:[#allocation2 + $0x1f70] sm:$0xff]
  %v8178 = vld [vmem:[#allocation2 + $0x1f78] sm:$0xff]
  %8179 = vmatprep.subr.mxu0 %v7277
  %8180 = vmatpush1.msra.mxu0 %v7276
  %8181 = vmatprep.subr.mxu0 %v7270
  %8182 = vmatpush1.msra.mxu0 %v7269
  %8183 = vmatprep.subr.mxu0 %v7263
  %8184 = vmatpush1.msra.mxu0 %v7262
  %8185 = vmatprep.subr.mxu0 %v7256
  %8186 = vmatpush1.msra.mxu0 %v7255
  %8187 = vmatprep.subr.mxu0 %v7249
  %8188 = vmatpush1.msra.mxu0 %v7248
  %8189 = vmatprep.subr.mxu0 %v7242
  %8190 = vmatpush1.msra.mxu0 %v7241
  %8191 = vmatprep.subr.mxu0 %v7235
  %8192 = vmatpush1.msra.mxu0 %v7234
  %8193 = vmatprep.subr.mxu0 %v7228
  %8194 = vmatpush1.msra.mxu0 %v7227
  %8195 = vmatprep.subr.mxu0 %v7221
  %8196 = vmatpush1.msra.mxu0 %v7220
  %8197 = vmatprep.subr.mxu0 %v7214
  %8198 = vmatpush1.msra.mxu0 %v7213
  %8199 = vmatprep.subr.mxu0 %v7207
  %8200 = vmatpush1.msra.mxu0 %v7206
  %8201 = vmatprep.subr.mxu0 %v7200
  %8202 = vmatpush1.msra.mxu0 %v7199
  %8203 = vmatprep.subr.mxu0 %v7193
  %8204 = vmatpush1.msra.mxu0 %v7192
  %8205 = vmatprep.subr.mxu0 %v7186
  %8206 = vmatpush1.msra.mxu0 %v7185
  %8207 = vmatprep.subr.mxu0 %v7179
  %8208 = vmatpush1.msra.mxu0 %v7178
  %8209 = vmatprep.subr.mxu0 %v7172
  %8210 = vmatpush1.msra.mxu0 %v7171
  %8211 = vmatprep.subr.mxu0 %v7389
  %8212 = vmatpush2.msra.mxu0 %v7388
  %8213 = vmatprep.subr.mxu0 %v7382
  %8214 = vmatpush2.msra.mxu0 %v7381
  %8215 = vmatprep.subr.mxu0 %v7375
  %8216 = vmatpush2.msra.mxu0 %v7374
  %8217 = vmatprep.subr.mxu0 %v7368
  %8218 = vmatpush2.msra.mxu0 %v7367
  %8219 = vmatprep.subr.mxu0 %v7361
  %8220 = vmatpush2.msra.mxu0 %v7360
  %8221 = vmatprep.subr.mxu0 %v7354
  %8222 = vmatpush2.msra.mxu0 %v7353
  %8223 = vmatprep.subr.mxu0 %v7347
  %8224 = vmatpush2.msra.mxu0 %v7346
  %8225 = vmatprep.subr.mxu0 %v7340
  %8226 = vmatpush2.msra.mxu0 %v7339
  %8227 = vmatprep.subr.mxu0 %v7333
  %8228 = vmatpush2.msra.mxu0 %v7332
  %8229 = vmatprep.subr.mxu0 %v7326
  %8230 = vmatpush2.msra.mxu0 %v7325
  %8231 = vmatprep.subr.mxu0 %v7319
  %8232 = vmatpush2.msra.mxu0 %v7318
  %8233 = vmatprep.subr.mxu0 %v7312
  %8234 = vmatpush2.msra.mxu0 %v7311
  %8235 = vmatprep.subr.mxu0 %v7305
  %8236 = vmatpush2.msra.mxu0 %v7304
  %8237 = vmatprep.subr.mxu0 %v7298
  %8238 = vmatpush2.msra.mxu0 %v7297
  %8239 = vmatprep.subr.mxu0 %v7291
  %8240 = vmatpush2.msra.mxu0 %v7290
  %8241 = vmatprep.subr.mxu0 %v7284
  %8242 = vmatpush2.msra.mxu0 %v7283
  %8243 = vmatprep.mubr.f32.mxu0 %v7028
  %8244 = vmatmul.mubr.f32.gmra.mxu0 %v7027
  %v8245 = vpop.f32.mrf.mxu0
  %v8246 = vadd.f32 0.0, %v8245
  %v8247 = vpop.f32.mrf.mxu0
  %v8248 = vadd.f32 0.0, %v8247
  %8249 = vmatprep.mubr.f32.mxu0 %v7037
  %8250 = vmatmul.mubr.f32.gmra.mxu0 %v7036
  %v8251 = vpop.f32.mrf.mxu0
  %v8252 = vadd.f32 0.0, %v8251
  %v8253 = vpop.f32.mrf.mxu0
  %v8254 = vadd.f32 0.0, %v8253
  %8255 = vmatprep.mubr.f32.mxu0 %v7046
  %8256 = vmatmul.mubr.f32.gmra.mxu0 %v7045
  %v8257 = vpop.f32.mrf.mxu0
  %v8258 = vadd.f32 0.0, %v8257
  %v8259 = vpop.f32.mrf.mxu0
  %v8260 = vadd.f32 0.0, %v8259
  %8261 = vmatprep.mubr.f32.mxu0 %v7055
  %8262 = vmatmul.mubr.f32.gmra.mxu0 %v7054
  %v8263 = vpop.f32.mrf.mxu0
  %v8264 = vadd.f32 0.0, %v8263
  %v8265 = vpop.f32.mrf.mxu0
  %v8266 = vadd.f32 0.0, %v8265
  %8267 = vmatprep.mubr.f32.mxu0 %v7064
  %8268 = vmatmul.mubr.f32.gmra.mxu0 %v7063
  %v8269 = vpop.f32.mrf.mxu0
  %v8270 = vadd.f32 0.0, %v8269
  %v8271 = vpop.f32.mrf.mxu0
  %v8272 = vadd.f32 0.0, %v8271
  %8273 = vmatprep.mubr.f32.mxu0 %v7073
  %8274 = vmatmul.mubr.f32.gmra.mxu0 %v7072
  %v8275 = vpop.f32.mrf.mxu0
  %v8276 = vadd.f32 0.0, %v8275
  %v8277 = vpop.f32.mrf.mxu0
  %v8278 = vadd.f32 0.0, %v8277
  %8279 = vmatprep.mubr.f32.mxu0 %v7082
  %8280 = vmatmul.mubr.f32.gmra.mxu0 %v7081
  %v8281 = vpop.f32.mrf.mxu0
  %v8282 = vadd.f32 0.0, %v8281
  %v8283 = vpop.f32.mrf.mxu0
  %v8284 = vadd.f32 0.0, %v8283
  %8285 = vmatprep.mubr.f32.mxu0 %v7091
  %8286 = vmatmul.mubr.f32.gmra.mxu0 %v7090
  %v8287 = vpop.f32.mrf.mxu0
  %v8288 = vadd.f32 0.0, %v8287
  %v8289 = vpop.f32.mrf.mxu0
  %v8290 = vadd.f32 0.0, %v8289
  %8291 = vmatprep.mubr.f32.mxu0 %v7100
  %8292 = vmatmul.mubr.f32.gmra.mxu0 %v7099
  %v8293 = vpop.f32.mrf.mxu0
  %v8294 = vadd.f32 0.0, %v8293
  %v8295 = vpop.f32.mrf.mxu0
  %v8296 = vadd.f32 0.0, %v8295
  %8297 = vmatprep.mubr.f32.mxu0 %v7109
  %8298 = vmatmul.mubr.f32.gmra.mxu0 %v7108
  %v8299 = vpop.f32.mrf.mxu0
  %v8300 = vadd.f32 0.0, %v8299
  %v8301 = vpop.f32.mrf.mxu0
  %v8302 = vadd.f32 0.0, %v8301
  %8303 = vmatprep.mubr.f32.mxu0 %v7118
  %8304 = vmatmul.mubr.f32.gmra.mxu0 %v7117
  %v8305 = vpop.f32.mrf.mxu0
  %v8306 = vadd.f32 0.0, %v8305
  %v8307 = vpop.f32.mrf.mxu0
  %v8308 = vadd.f32 0.0, %v8307
  %8309 = vmatprep.mubr.f32.mxu0 %v7127
  %8310 = vmatmul.mubr.f32.gmra.mxu0 %v7126
  %v8311 = vpop.f32.mrf.mxu0
  %v8312 = vadd.f32 0.0, %v8311
  %v8313 = vpop.f32.mrf.mxu0
  %v8314 = vadd.f32 0.0, %v8313
  %8315 = vmatprep.mubr.f32.mxu0 %v7136
  %8316 = vmatmul.mubr.f32.gmra.mxu0 %v7135
  %v8317 = vpop.f32.mrf.mxu0
  %v8318 = vadd.f32 0.0, %v8317
  %v8319 = vpop.f32.mrf.mxu0
  %v8320 = vadd.f32 0.0, %v8319
  %8321 = vmatprep.mubr.f32.mxu0 %v7145
  %8322 = vmatmul.mubr.f32.gmra.mxu0 %v7144
  %v8323 = vpop.f32.mrf.mxu0
  %v8324 = vadd.f32 0.0, %v8323
  %v8325 = vpop.f32.mrf.mxu0
  %v8326 = vadd.f32 0.0, %v8325
  %8327 = vmatprep.mubr.f32.mxu0 %v7154
  %8328 = vmatmul.mubr.f32.gmra.mxu0 %v7153
  %v8329 = vpop.f32.mrf.mxu0
  %v8330 = vadd.f32 0.0, %v8329
  %v8331 = vpop.f32.mrf.mxu0
  %v8332 = vadd.f32 0.0, %v8331
  %8333 = vmatprep.mubr.f32.mxu0 %v7163
  %8334 = vmatmul.mubr.f32.gmra.mxu0 %v7162
  %v8335 = vpop.f32.mrf.mxu0
  %v8336 = vadd.f32 0.0, %v8335
  %v8337 = vpop.f32.mrf.mxu0
  %v8338 = vadd.f32 0.0, %v8337
  %8339 = vdwg.mxu0
  %8340 = vmatprep.subr.mxu0 %v7501
  %8341 = vmatpush1.msra.mxu0 %v7500
  %8342 = vmatprep.subr.mxu0 %v7494
  %8343 = vmatpush1.msra.mxu0 %v7493
  %8344 = vmatprep.subr.mxu0 %v7487
  %8345 = vmatpush1.msra.mxu0 %v7486
  %8346 = vmatprep.subr.mxu0 %v7480
  %8347 = vmatpush1.msra.mxu0 %v7479
  %8348 = vmatprep.subr.mxu0 %v7473
  %8349 = vmatpush1.msra.mxu0 %v7472
  %8350 = vmatprep.subr.mxu0 %v7466
  %8351 = vmatpush1.msra.mxu0 %v7465
  %8352 = vmatprep.subr.mxu0 %v7459
  %8353 = vmatpush1.msra.mxu0 %v7458
  %8354 = vmatprep.subr.mxu0 %v7452
  %8355 = vmatpush1.msra.mxu0 %v7451
  %8356 = vmatprep.subr.mxu0 %v7445
  %8357 = vmatpush1.msra.mxu0 %v7444
  %8358 = vmatprep.subr.mxu0 %v7438
  %8359 = vmatpush1.msra.mxu0 %v7437
  %8360 = vmatprep.subr.mxu0 %v7431
  %8361 = vmatpush1.msra.mxu0 %v7430
  %8362 = vmatprep.subr.mxu0 %v7424
  %8363 = vmatpush1.msra.mxu0 %v7423
  %8364 = vmatprep.subr.mxu0 %v7417
  %8365 = vmatpush1.msra.mxu0 %v7416
  %8366 = vmatprep.subr.mxu0 %v7410
  %8367 = vmatpush1.msra.mxu0 %v7409
  %8368 = vmatprep.subr.mxu0 %v7403
  %8369 = vmatpush1.msra.mxu0 %v7402
  %8370 = vmatprep.subr.mxu0 %v7396
  %8371 = vmatpush1.msra.mxu0 %v7395
  %8372 = vmatprep.subr.mxu0 %v7613
  %8373 = vmatpush2.msra.mxu0 %v7612
  %8374 = vmatprep.subr.mxu0 %v7606
  %8375 = vmatpush2.msra.mxu0 %v7605
  %8376 = vmatprep.subr.mxu0 %v7599
  %8377 = vmatpush2.msra.mxu0 %v7598
  %8378 = vmatprep.subr.mxu0 %v7592
  %8379 = vmatpush2.msra.mxu0 %v7591
  %8380 = vmatprep.subr.mxu0 %v7585
  %8381 = vmatpush2.msra.mxu0 %v7584
  %8382 = vmatprep.subr.mxu0 %v7578
  %8383 = vmatpush2.msra.mxu0 %v7577
  %8384 = vmatprep.subr.mxu0 %v7571
  %8385 = vmatpush2.msra.mxu0 %v7570
  %8386 = vmatprep.subr.mxu0 %v7564
  %8387 = vmatpush2.msra.mxu0 %v7563
  %8388 = vmatprep.subr.mxu0 %v7557
  %8389 = vmatpush2.msra.mxu0 %v7556
  %8390 = vmatprep.subr.mxu0 %v7550
  %8391 = vmatpush2.msra.mxu0 %v7549
  %8392 = vmatprep.subr.mxu0 %v7543
  %8393 = vmatpush2.msra.mxu0 %v7542
  %8394 = vmatprep.subr.mxu0 %v7536
  %8395 = vmatpush2.msra.mxu0 %v7535
  %8396 = vmatprep.subr.mxu0 %v7529
  %8397 = vmatpush2.msra.mxu0 %v7528
  %8398 = vmatprep.subr.mxu0 %v7522
  %8399 = vmatpush2.msra.mxu0 %v7521
  %8400 = vmatprep.subr.mxu0 %v7515
  %8401 = vmatpush2.msra.mxu0 %v7514
  %8402 = vmatprep.subr.mxu0 %v7508
  %8403 = vmatpush2.msra.mxu0 %v7507
  %8404 = vmatprep.mubr.f32.mxu0 %v7030
  %8405 = vmatmul.mubr.f32.gmra.mxu0 %v7029
  %v8406 = vpop.f32.mrf.mxu0
  %v8407 = vadd.f32 %v8246, %v8406
  %v8408 = vpop.f32.mrf.mxu0
  %v8409 = vadd.f32 %v8248, %v8408
  %8410 = vmatprep.mubr.f32.mxu0 %v7039
  %8411 = vmatmul.mubr.f32.gmra.mxu0 %v7038
  %v8412 = vpop.f32.mrf.mxu0
  %v8413 = vadd.f32 %v8252, %v8412
  %v8414 = vpop.f32.mrf.mxu0
  %v8415 = vadd.f32 %v8254, %v8414
  %8416 = vmatprep.mubr.f32.mxu0 %v7048
  %8417 = vmatmul.mubr.f32.gmra.mxu0 %v7047
  %v8418 = vpop.f32.mrf.mxu0
  %v8419 = vadd.f32 %v8258, %v8418
  %v8420 = vpop.f32.mrf.mxu0
  %v8421 = vadd.f32 %v8260, %v8420
  %8422 = vmatprep.mubr.f32.mxu0 %v7057
  %8423 = vmatmul.mubr.f32.gmra.mxu0 %v7056
  %v8424 = vpop.f32.mrf.mxu0
  %v8425 = vadd.f32 %v8264, %v8424
  %v8426 = vpop.f32.mrf.mxu0
  %v8427 = vadd.f32 %v8266, %v8426
  %8428 = vmatprep.mubr.f32.mxu0 %v7066
  %8429 = vmatmul.mubr.f32.gmra.mxu0 %v7065
  %v8430 = vpop.f32.mrf.mxu0
  %v8431 = vadd.f32 %v8270, %v8430
  %v8432 = vpop.f32.mrf.mxu0
  %v8433 = vadd.f32 %v8272, %v8432
  %8434 = vmatprep.mubr.f32.mxu0 %v7075
  %8435 = vmatmul.mubr.f32.gmra.mxu0 %v7074
  %v8436 = vpop.f32.mrf.mxu0
  %v8437 = vadd.f32 %v8276, %v8436
  %v8438 = vpop.f32.mrf.mxu0
  %v8439 = vadd.f32 %v8278, %v8438
  %8440 = vmatprep.mubr.f32.mxu0 %v7084
  %8441 = vmatmul.mubr.f32.gmra.mxu0 %v7083
  %v8442 = vpop.f32.mrf.mxu0
  %v8443 = vadd.f32 %v8282, %v8442
  %v8444 = vpop.f32.mrf.mxu0
  %v8445 = vadd.f32 %v8284, %v8444
  %8446 = vmatprep.mubr.f32.mxu0 %v7093
  %8447 = vmatmul.mubr.f32.gmra.mxu0 %v7092
  %v8448 = vpop.f32.mrf.mxu0
  %v8449 = vadd.f32 %v8288, %v8448
  %v8450 = vpop.f32.mrf.mxu0
  %v8451 = vadd.f32 %v8290, %v8450
  %8452 = vmatprep.mubr.f32.mxu0 %v7102
  %8453 = vmatmul.mubr.f32.gmra.mxu0 %v7101
  %v8454 = vpop.f32.mrf.mxu0
  %v8455 = vadd.f32 %v8294, %v8454
  %v8456 = vpop.f32.mrf.mxu0
  %v8457 = vadd.f32 %v8296, %v8456
  %8458 = vmatprep.mubr.f32.mxu0 %v7111
  %8459 = vmatmul.mubr.f32.gmra.mxu0 %v7110
  %v8460 = vpop.f32.mrf.mxu0
  %v8461 = vadd.f32 %v8300, %v8460
  %v8462 = vpop.f32.mrf.mxu0
  %v8463 = vadd.f32 %v8302, %v8462
  %8464 = vmatprep.mubr.f32.mxu0 %v7120
  %8465 = vmatmul.mubr.f32.gmra.mxu0 %v7119
  %v8466 = vpop.f32.mrf.mxu0
  %v8467 = vadd.f32 %v8306, %v8466
  %v8468 = vpop.f32.mrf.mxu0
  %v8469 = vadd.f32 %v8308, %v8468
  %8470 = vmatprep.mubr.f32.mxu0 %v7129
  %8471 = vmatmul.mubr.f32.gmra.mxu0 %v7128
  %v8472 = vpop.f32.mrf.mxu0
  %v8473 = vadd.f32 %v8312, %v8472
  %v8474 = vpop.f32.mrf.mxu0
  %v8475 = vadd.f32 %v8314, %v8474
  %8476 = vmatprep.mubr.f32.mxu0 %v7138
  %8477 = vmatmul.mubr.f32.gmra.mxu0 %v7137
  %v8478 = vpop.f32.mrf.mxu0
  %v8479 = vadd.f32 %v8318, %v8478
  %v8480 = vpop.f32.mrf.mxu0
  %v8481 = vadd.f32 %v8320, %v8480
  %8482 = vmatprep.mubr.f32.mxu0 %v7147
  %8483 = vmatmul.mubr.f32.gmra.mxu0 %v7146
  %v8484 = vpop.f32.mrf.mxu0
  %v8485 = vadd.f32 %v8324, %v8484
  %v8486 = vpop.f32.mrf.mxu0
  %v8487 = vadd.f32 %v8326, %v8486
  %8488 = vmatprep.mubr.f32.mxu0 %v7156
  %8489 = vmatmul.mubr.f32.gmra.mxu0 %v7155
  %v8490 = vpop.f32.mrf.mxu0
  %v8491 = vadd.f32 %v8330, %v8490
  %v8492 = vpop.f32.mrf.mxu0
  %v8493 = vadd.f32 %v8332, %v8492
  %8494 = vmatprep.mubr.f32.mxu0 %v7165
  %8495 = vmatmul.mubr.f32.gmra.mxu0 %v7164
  %v8496 = vpop.f32.mrf.mxu0
  %v8497 = vadd.f32 %v8336, %v8496
  %v8498 = vpop.f32.mrf.mxu0
  %v8499 = vadd.f32 %v8338, %v8498
  %8500 = vdwg.mxu0
  %8501 = vmatprep.subr.mxu0 %v7725
  %8502 = vmatpush1.msra.mxu0 %v7724
  %8503 = vmatprep.subr.mxu0 %v7718
  %8504 = vmatpush1.msra.mxu0 %v7717
  %8505 = vmatprep.subr.mxu0 %v7711
  %8506 = vmatpush1.msra.mxu0 %v7710
  %8507 = vmatprep.subr.mxu0 %v7704
  %8508 = vmatpush1.msra.mxu0 %v7703
  %8509 = vmatprep.subr.mxu0 %v7697
  %8510 = vmatpush1.msra.mxu0 %v7696
  %8511 = vmatprep.subr.mxu0 %v7690
  %8512 = vmatpush1.msra.mxu0 %v7689
  %8513 = vmatprep.subr.mxu0 %v7683
  %8514 = vmatpush1.msra.mxu0 %v7682
  %8515 = vmatprep.subr.mxu0 %v7676
  %8516 = vmatpush1.msra.mxu0 %v7675
  %8517 = vmatprep.subr.mxu0 %v7669
  %8518 = vmatpush1.msra.mxu0 %v7668
  %8519 = vmatprep.subr.mxu0 %v7662
  %8520 = vmatpush1.msra.mxu0 %v7661
  %8521 = vmatprep.subr.mxu0 %v7655
  %8522 = vmatpush1.msra.mxu0 %v7654
  %8523 = vmatprep.subr.mxu0 %v7648
  %8524 = vmatpush1.msra.mxu0 %v7647
  %8525 = vmatprep.subr.mxu0 %v7641
  %8526 = vmatpush1.msra.mxu0 %v7640
  %8527 = vmatprep.subr.mxu0 %v7634
  %8528 = vmatpush1.msra.mxu0 %v7633
  %8529 = vmatprep.subr.mxu0 %v7627
  %8530 = vmatpush1.msra.mxu0 %v7626
  %8531 = vmatprep.subr.mxu0 %v7620
  %8532 = vmatpush1.msra.mxu0 %v7619
  %8533 = vmatprep.subr.mxu0 %v7837
  %8534 = vmatpush2.msra.mxu0 %v7836
  %8535 = vmatprep.subr.mxu0 %v7830
  %8536 = vmatpush2.msra.mxu0 %v7829
  %8537 = vmatprep.subr.mxu0 %v7823
  %8538 = vmatpush2.msra.mxu0 %v7822
  %8539 = vmatprep.subr.mxu0 %v7816
  %8540 = vmatpush2.msra.mxu0 %v7815
  %8541 = vmatprep.subr.mxu0 %v7809
  %8542 = vmatpush2.msra.mxu0 %v7808
  %8543 = vmatprep.subr.mxu0 %v7802
  %8544 = vmatpush2.msra.mxu0 %v7801
  %8545 = vmatprep.subr.mxu0 %v7795
  %8546 = vmatpush2.msra.mxu0 %v7794
  %8547 = vmatprep.subr.mxu0 %v7788
  %8548 = vmatpush2.msra.mxu0 %v7787
  %8549 = vmatprep.subr.mxu0 %v7781
  %8550 = vmatpush2.msra.mxu0 %v7780
  %8551 = vmatprep.subr.mxu0 %v7774
  %8552 = vmatpush2.msra.mxu0 %v7773
  %8553 = vmatprep.subr.mxu0 %v7767
  %8554 = vmatpush2.msra.mxu0 %v7766
  %8555 = vmatprep.subr.mxu0 %v7760
  %8556 = vmatpush2.msra.mxu0 %v7759
  %8557 = vmatprep.subr.mxu0 %v7753
  %8558 = vmatpush2.msra.mxu0 %v7752
  %8559 = vmatprep.subr.mxu0 %v7746
  %8560 = vmatpush2.msra.mxu0 %v7745
  %8561 = vmatprep.subr.mxu0 %v7739
  %8562 = vmatpush2.msra.mxu0 %v7738
  %8563 = vmatprep.subr.mxu0 %v7732
  %8564 = vmatpush2.msra.mxu0 %v7731
  %8565 = vmatprep.mubr.f32.mxu0 %v7032
  %8566 = vmatmul.mubr.f32.gmra.mxu0 %v7031
  %v8567 = vpop.f32.mrf.mxu0
  %v8568 = vadd.f32 %v8407, %v8567
  %v8569 = vpop.f32.mrf.mxu0
  %v8570 = vadd.f32 %v8409, %v8569
  %8571 = vmatprep.mubr.f32.mxu0 %v7041
  %8572 = vmatmul.mubr.f32.gmra.mxu0 %v7040
  %v8573 = vpop.f32.mrf.mxu0
  %v8574 = vadd.f32 %v8413, %v8573
  %v8575 = vpop.f32.mrf.mxu0
  %v8576 = vadd.f32 %v8415, %v8575
  %8577 = vmatprep.mubr.f32.mxu0 %v7050
  %8578 = vmatmul.mubr.f32.gmra.mxu0 %v7049
  %v8579 = vpop.f32.mrf.mxu0
  %v8580 = vadd.f32 %v8419, %v8579
  %v8581 = vpop.f32.mrf.mxu0
  %v8582 = vadd.f32 %v8421, %v8581
  %8583 = vmatprep.mubr.f32.mxu0 %v7059
  %8584 = vmatmul.mubr.f32.gmra.mxu0 %v7058
  %v8585 = vpop.f32.mrf.mxu0
  %v8586 = vadd.f32 %v8425, %v8585
  %v8587 = vpop.f32.mrf.mxu0
  %v8588 = vadd.f32 %v8427, %v8587
  %8589 = vmatprep.mubr.f32.mxu0 %v7068
  %8590 = vmatmul.mubr.f32.gmra.mxu0 %v7067
  %v8591 = vpop.f32.mrf.mxu0
  %v8592 = vadd.f32 %v8431, %v8591
  %v8593 = vpop.f32.mrf.mxu0
  %v8594 = vadd.f32 %v8433, %v8593
  %8595 = vmatprep.mubr.f32.mxu0 %v7077
  %8596 = vmatmul.mubr.f32.gmra.mxu0 %v7076
  %v8597 = vpop.f32.mrf.mxu0
  %v8598 = vadd.f32 %v8437, %v8597
  %v8599 = vpop.f32.mrf.mxu0
  %v8600 = vadd.f32 %v8439, %v8599
  %8601 = vmatprep.mubr.f32.mxu0 %v7086
  %8602 = vmatmul.mubr.f32.gmra.mxu0 %v7085
  %v8603 = vpop.f32.mrf.mxu0
  %v8604 = vadd.f32 %v8443, %v8603
  %v8605 = vpop.f32.mrf.mxu0
  %v8606 = vadd.f32 %v8445, %v8605
  %8607 = vmatprep.mubr.f32.mxu0 %v7095
  %8608 = vmatmul.mubr.f32.gmra.mxu0 %v7094
  %v8609 = vpop.f32.mrf.mxu0
  %v8610 = vadd.f32 %v8449, %v8609
  %v8611 = vpop.f32.mrf.mxu0
  %v8612 = vadd.f32 %v8451, %v8611
  %8613 = vmatprep.mubr.f32.mxu0 %v7104
  %8614 = vmatmul.mubr.f32.gmra.mxu0 %v7103
  %v8615 = vpop.f32.mrf.mxu0
  %v8616 = vadd.f32 %v8455, %v8615
  %v8617 = vpop.f32.mrf.mxu0
  %v8618 = vadd.f32 %v8457, %v8617
  %8619 = vmatprep.mubr.f32.mxu0 %v7113
  %8620 = vmatmul.mubr.f32.gmra.mxu0 %v7112
  %v8621 = vpop.f32.mrf.mxu0
  %v8622 = vadd.f32 %v8461, %v8621
  %v8623 = vpop.f32.mrf.mxu0
  %v8624 = vadd.f32 %v8463, %v8623
  %8625 = vmatprep.mubr.f32.mxu0 %v7122
  %8626 = vmatmul.mubr.f32.gmra.mxu0 %v7121
  %v8627 = vpop.f32.mrf.mxu0
  %v8628 = vadd.f32 %v8467, %v8627
  %v8629 = vpop.f32.mrf.mxu0
  %v8630 = vadd.f32 %v8469, %v8629
  %8631 = vmatprep.mubr.f32.mxu0 %v7131
  %8632 = vmatmul.mubr.f32.gmra.mxu0 %v7130
  %v8633 = vpop.f32.mrf.mxu0
  %v8634 = vadd.f32 %v8473, %v8633
  %v8635 = vpop.f32.mrf.mxu0
  %v8636 = vadd.f32 %v8475, %v8635
  %8637 = vmatprep.mubr.f32.mxu0 %v7140
  %8638 = vmatmul.mubr.f32.gmra.mxu0 %v7139
  %v8639 = vpop.f32.mrf.mxu0
  %v8640 = vadd.f32 %v8479, %v8639
  %v8641 = vpop.f32.mrf.mxu0
  %v8642 = vadd.f32 %v8481, %v8641
  %8643 = vmatprep.mubr.f32.mxu0 %v7149
  %8644 = vmatmul.mubr.f32.gmra.mxu0 %v7148
  %v8645 = vpop.f32.mrf.mxu0
  %v8646 = vadd.f32 %v8485, %v8645
  %v8647 = vpop.f32.mrf.mxu0
  %v8648 = vadd.f32 %v8487, %v8647
  %8649 = vmatprep.mubr.f32.mxu0 %v7158
  %8650 = vmatmul.mubr.f32.gmra.mxu0 %v7157
  %v8651 = vpop.f32.mrf.mxu0
  %v8652 = vadd.f32 %v8491, %v8651
  %v8653 = vpop.f32.mrf.mxu0
  %v8654 = vadd.f32 %v8493, %v8653
  %8655 = vmatprep.mubr.f32.mxu0 %v7167
  %8656 = vmatmul.mubr.f32.gmra.mxu0 %v7166
  %v8657 = vpop.f32.mrf.mxu0
  %v8658 = vadd.f32 %v8497, %v8657
  %v8659 = vpop.f32.mrf.mxu0
  %v8660 = vadd.f32 %v8499, %v8659
  %8661 = vdwg.mxu0
  %8662 = vmatprep.subr.mxu0 %v7949
  %8663 = vmatpush1.msra.mxu0 %v7948
  %8664 = vmatprep.subr.mxu0 %v7942
  %8665 = vmatpush1.msra.mxu0 %v7941
  %8666 = vmatprep.subr.mxu0 %v7935
  %8667 = vmatpush1.msra.mxu0 %v7934
  %8668 = vmatprep.subr.mxu0 %v7928
  %8669 = vmatpush1.msra.mxu0 %v7927
  %8670 = vmatprep.subr.mxu0 %v7921
  %8671 = vmatpush1.msra.mxu0 %v7920
  %8672 = vmatprep.subr.mxu0 %v7914
  %8673 = vmatpush1.msra.mxu0 %v7913
  %8674 = vmatprep.subr.mxu0 %v7907
  %8675 = vmatpush1.msra.mxu0 %v7906
  %8676 = vmatprep.subr.mxu0 %v7900
  %8677 = vmatpush1.msra.mxu0 %v7899
  %8678 = vmatprep.subr.mxu0 %v7893
  %8679 = vmatpush1.msra.mxu0 %v7892
  %8680 = vmatprep.subr.mxu0 %v7886
  %8681 = vmatpush1.msra.mxu0 %v7885
  %8682 = vmatprep.subr.mxu0 %v7879
  %8683 = vmatpush1.msra.mxu0 %v7878
  %8684 = vmatprep.subr.mxu0 %v7872
  %8685 = vmatpush1.msra.mxu0 %v7871
  %8686 = vmatprep.subr.mxu0 %v7865
  %8687 = vmatpush1.msra.mxu0 %v7864
  %8688 = vmatprep.subr.mxu0 %v7858
  %8689 = vmatpush1.msra.mxu0 %v7857
  %8690 = vmatprep.subr.mxu0 %v7851
  %8691 = vmatpush1.msra.mxu0 %v7850
  %8692 = vmatprep.subr.mxu0 %v7844
  %8693 = vmatpush1.msra.mxu0 %v7843
  %8694 = vmatprep.subr.mxu0 %v8061
  %8695 = vmatpush2.msra.mxu0 %v8060
  %8696 = vmatprep.subr.mxu0 %v8054
  %8697 = vmatpush2.msra.mxu0 %v8053
  %8698 = vmatprep.subr.mxu0 %v8047
  %8699 = vmatpush2.msra.mxu0 %v8046
  %8700 = vmatprep.subr.mxu0 %v8040
  %8701 = vmatpush2.msra.mxu0 %v8039
  %8702 = vmatprep.subr.mxu0 %v8033
  %8703 = vmatpush2.msra.mxu0 %v8032
  %8704 = vmatprep.subr.mxu0 %v8026
  %8705 = vmatpush2.msra.mxu0 %v8025
  %8706 = vmatprep.subr.mxu0 %v8019
  %8707 = vmatpush2.msra.mxu0 %v8018
  %8708 = vmatprep.subr.mxu0 %v8012
  %8709 = vmatpush2.msra.mxu0 %v8011
  %8710 = vmatprep.subr.mxu0 %v8005
  %8711 = vmatpush2.msra.mxu0 %v8004
  %8712 = vmatprep.subr.mxu0 %v7998
  %8713 = vmatpush2.msra.mxu0 %v7997
  %8714 = vmatprep.subr.mxu0 %v7991
  %8715 = vmatpush2.msra.mxu0 %v7990
  %8716 = vmatprep.subr.mxu0 %v7984
  %8717 = vmatpush2.msra.mxu0 %v7983
  %8718 = vmatprep.subr.mxu0 %v7977
  %8719 = vmatpush2.msra.mxu0 %v7976
  %8720 = vmatprep.subr.mxu0 %v7970
  %8721 = vmatpush2.msra.mxu0 %v7969
  %8722 = vmatprep.subr.mxu0 %v7963
  %8723 = vmatpush2.msra.mxu0 %v7962
  %8724 = vmatprep.subr.mxu0 %v7956
  %8725 = vmatpush2.msra.mxu0 %v7955
  %8726 = vmatprep.mubr.f32.mxu0 %v7034
  %8727 = vmatmul.mubr.f32.gmra.mxu0 %v7033
  %v8728 = vpop.f32.mrf.mxu0
  %v8729 = vadd.f32 %v8568, %v8728
  %v8730 = vpop.f32.mrf.mxu0
  %v8731 = vadd.f32 %v8570, %v8730
  %8732 = vmatprep.mubr.f32.mxu0 %v7043
  %8733 = vmatmul.mubr.f32.gmra.mxu0 %v7042
  %v8734 = vpop.f32.mrf.mxu0
  %v8735 = vadd.f32 %v8574, %v8734
  %v8736 = vpop.f32.mrf.mxu0
  %v8737 = vadd.f32 %v8576, %v8736
  %8738 = vmatprep.mubr.f32.mxu0 %v7052
  %8739 = vmatmul.mubr.f32.gmra.mxu0 %v7051
  %v8740 = vpop.f32.mrf.mxu0
  %v8741 = vadd.f32 %v8580, %v8740
  %v8742 = vpop.f32.mrf.mxu0
  %v8743 = vadd.f32 %v8582, %v8742
  %8744 = vmatprep.mubr.f32.mxu0 %v7061
  %8745 = vmatmul.mubr.f32.gmra.mxu0 %v7060
  %v8746 = vpop.f32.mrf.mxu0
  %v8747 = vadd.f32 %v8586, %v8746
  %v8748 = vpop.f32.mrf.mxu0
  %v8749 = vadd.f32 %v8588, %v8748
  %8750 = vmatprep.mubr.f32.mxu0 %v7070
  %8751 = vmatmul.mubr.f32.gmra.mxu0 %v7069
  %v8752 = vpop.f32.mrf.mxu0
  %v8753 = vadd.f32 %v8592, %v8752
  %v8754 = vpop.f32.mrf.mxu0
  %v8755 = vadd.f32 %v8594, %v8754
  %8756 = vmatprep.mubr.f32.mxu0 %v7079
  %8757 = vmatmul.mubr.f32.gmra.mxu0 %v7078
  %v8758 = vpop.f32.mrf.mxu0
  %v8759 = vadd.f32 %v8598, %v8758
  %v8760 = vpop.f32.mrf.mxu0
  %v8761 = vadd.f32 %v8600, %v8760
  %8762 = vmatprep.mubr.f32.mxu0 %v7088
  %8763 = vmatmul.mubr.f32.gmra.mxu0 %v7087
  %v8764 = vpop.f32.mrf.mxu0
  %v8765 = vadd.f32 %v8604, %v8764
  %v8766 = vpop.f32.mrf.mxu0
  %v8767 = vadd.f32 %v8606, %v8766
  %8768 = vmatprep.mubr.f32.mxu0 %v7097
  %8769 = vmatmul.mubr.f32.gmra.mxu0 %v7096
  %v8770 = vpop.f32.mrf.mxu0
  %v8771 = vadd.f32 %v8610, %v8770
  %v8772 = vpop.f32.mrf.mxu0
  %v8773 = vadd.f32 %v8612, %v8772
  %8774 = vmatprep.mubr.f32.mxu0 %v7106
  %8775 = vmatmul.mubr.f32.gmra.mxu0 %v7105
  %v8776 = vpop.f32.mrf.mxu0
  %v8777 = vadd.f32 %v8616, %v8776
  %v8778 = vpop.f32.mrf.mxu0
  %v8779 = vadd.f32 %v8618, %v8778
  %8780 = vmatprep.mubr.f32.mxu0 %v7115
  %8781 = vmatmul.mubr.f32.gmra.mxu0 %v7114
  %v8782 = vpop.f32.mrf.mxu0
  %v8783 = vadd.f32 %v8622, %v8782
  %v8784 = vpop.f32.mrf.mxu0
  %v8785 = vadd.f32 %v8624, %v8784
  %8786 = vmatprep.mubr.f32.mxu0 %v7124
  %8787 = vmatmul.mubr.f32.gmra.mxu0 %v7123
  %v8788 = vpop.f32.mrf.mxu0
  %v8789 = vadd.f32 %v8628, %v8788
  %v8790 = vpop.f32.mrf.mxu0
  %v8791 = vadd.f32 %v8630, %v8790
  %8792 = vmatprep.mubr.f32.mxu0 %v7133
  %8793 = vmatmul.mubr.f32.gmra.mxu0 %v7132
  %v8794 = vpop.f32.mrf.mxu0
  %v8795 = vadd.f32 %v8634, %v8794
  %v8796 = vpop.f32.mrf.mxu0
  %v8797 = vadd.f32 %v8636, %v8796
  %8798 = vmatprep.mubr.f32.mxu0 %v7142
  %8799 = vmatmul.mubr.f32.gmra.mxu0 %v7141
  %v8800 = vpop.f32.mrf.mxu0
  %v8801 = vadd.f32 %v8640, %v8800
  %v8802 = vpop.f32.mrf.mxu0
  %v8803 = vadd.f32 %v8642, %v8802
  %8804 = vmatprep.mubr.f32.mxu0 %v7151
  %8805 = vmatmul.mubr.f32.gmra.mxu0 %v7150
  %v8806 = vpop.f32.mrf.mxu0
  %v8807 = vadd.f32 %v8646, %v8806
  %v8808 = vpop.f32.mrf.mxu0
  %v8809 = vadd.f32 %v8648, %v8808
  %8810 = vmatprep.mubr.f32.mxu0 %v7160
  %8811 = vmatmul.mubr.f32.gmra.mxu0 %v7159
  %v8812 = vpop.f32.mrf.mxu0
  %v8813 = vadd.f32 %v8652, %v8812
  %v8814 = vpop.f32.mrf.mxu0
  %v8815 = vadd.f32 %v8654, %v8814
  %8816 = vmatprep.mubr.f32.mxu0 %v7169
  %8817 = vmatmul.mubr.f32.gmra.mxu0 %v7168
  %v8818 = vpop.f32.mrf.mxu0
  %v8819 = vadd.f32 %v8658, %v8818
  %v8820 = vpop.f32.mrf.mxu0
  %v8821 = vadd.f32 %v8660, %v8820
  %8822 = vdwg.mxu0
  %8823 = vmatprep.subr.mxu0 %v8173
  %8824 = vmatpush1.msra.mxu0 %v8172
  %8825 = vmatprep.subr.mxu0 %v8166
  %8826 = vmatpush1.msra.mxu0 %v8165
  %8827 = vmatprep.subr.mxu0 %v8159
  %8828 = vmatpush1.msra.mxu0 %v8158
  %8829 = vmatprep.subr.mxu0 %v8152
  %8830 = vmatpush1.msra.mxu0 %v8151
  %8831 = vmatprep.subr.mxu0 %v8145
  %8832 = vmatpush1.msra.mxu0 %v8144
  %8833 = vmatprep.subr.mxu0 %v8138
  %8834 = vmatpush1.msra.mxu0 %v8137
  %8835 = vmatprep.subr.mxu0 %v8131
  %8836 = vmatpush1.msra.mxu0 %v8130
  %8837 = vmatprep.subr.mxu0 %v8124
  %8838 = vmatpush1.msra.mxu0 %v8123
  %8839 = vmatprep.subr.mxu0 %v8117
  %8840 = vmatpush1.msra.mxu0 %v8116
  %8841 = vmatprep.subr.mxu0 %v8110
  %8842 = vmatpush1.msra.mxu0 %v8109
  %8843 = vmatprep.subr.mxu0 %v8103
  %8844 = vmatpush1.msra.mxu0 %v8102
  %8845 = vmatprep.subr.mxu0 %v8096
  %8846 = vmatpush1.msra.mxu0 %v8095
  %8847 = vmatprep.subr.mxu0 %v8089
  %8848 = vmatpush1.msra.mxu0 %v8088
  %8849 = vmatprep.subr.mxu0 %v8082
  %8850 = vmatpush1.msra.mxu0 %v8081
  %8851 = vmatprep.subr.mxu0 %v8075
  %8852 = vmatpush1.msra.mxu0 %v8074
  %8853 = vmatprep.subr.mxu0 %v8068
  %8854 = vmatpush1.msra.mxu0 %v8067
  %8855 = vmatprep.subr.mxu0 0.0
  %8856 = vmatpush2.msra.mxu0 0.0
  %8857 = vmatprep.subr.mxu0 0.0
  %8858 = vmatpush2.msra.mxu0 0.0
  %8859 = vmatprep.subr.mxu0 0.0
  %8860 = vmatpush2.msra.mxu0 0.0
  %8861 = vmatprep.subr.mxu0 0.0
  %8862 = vmatpush2.msra.mxu0 0.0
  %8863 = vmatprep.subr.mxu0 0.0
  %8864 = vmatpush2.msra.mxu0 0.0
  %8865 = vmatprep.subr.mxu0 0.0
  %8866 = vmatpush2.msra.mxu0 0.0
  %8867 = vmatprep.subr.mxu0 0.0
  %8868 = vmatpush2.msra.mxu0 0.0
  %8869 = vmatprep.subr.mxu0 0.0
  %8870 = vmatpush2.msra.mxu0 0.0
  %8871 = vmatprep.subr.mxu0 0.0
  %8872 = vmatpush2.msra.mxu0 0.0
  %8873 = vmatprep.subr.mxu0 0.0
  %8874 = vmatpush2.msra.mxu0 0.0
  %8875 = vmatprep.subr.mxu0 0.0
  %8876 = vmatpush2.msra.mxu0 0.0
  %8877 = vmatprep.subr.mxu0 0.0
  %8878 = vmatpush2.msra.mxu0 0.0
  %8879 = vmatprep.subr.mxu0 0.0
  %8880 = vmatpush2.msra.mxu0 0.0
  %8881 = vmatprep.subr.mxu0 0.0
  %8882 = vmatpush2.msra.mxu0 0.0
  %8883 = vmatprep.subr.mxu0 0.0
  %8884 = vmatpush2.msra.mxu0 0.0
  %8885 = vmatprep.subr.mxu0 0.0
  %8886 = vmatpush2.msra.mxu0 0.0
  %8887 = vmatprep.mubr.f32.mxu0 0.0
  %8888 = vmatmul.mubr.f32.gmra.mxu0 %v7035
  %v8889 = vpop.f32.mrf.mxu0
  %v8890 = vadd.f32 %v8729, %v8889
  %v8891 = vpop.f32.mrf.mxu0
  %v8892 = vadd.f32 %v8731, %v8891
  %8893 = vmatprep.mubr.f32.mxu0 0.0
  %8894 = vmatmul.mubr.f32.gmra.mxu0 %v7044
  %v8895 = vpop.f32.mrf.mxu0
  %v8896 = vadd.f32 %v8735, %v8895
  %v8897 = vpop.f32.mrf.mxu0
  %v8898 = vadd.f32 %v8737, %v8897
  %8899 = vmatprep.mubr.f32.mxu0 0.0
  %8900 = vmatmul.mubr.f32.gmra.mxu0 %v7053
  %v8901 = vpop.f32.mrf.mxu0
  %v8902 = vadd.f32 %v8741, %v8901
  %v8903 = vpop.f32.mrf.mxu0
  %v8904 = vadd.f32 %v8743, %v8903
  %8905 = vmatprep.mubr.f32.mxu0 0.0
  %8906 = vmatmul.mubr.f32.gmra.mxu0 %v7062
  %v8907 = vpop.f32.mrf.mxu0
  %v8908 = vadd.f32 %v8747, %v8907
  %v8909 = vpop.f32.mrf.mxu0
  %v8910 = vadd.f32 %v8749, %v8909
  %8911 = vmatprep.mubr.f32.mxu0 0.0
  %8912 = vmatmul.mubr.f32.gmra.mxu0 %v7071
  %v8913 = vpop.f32.mrf.mxu0
  %v8914 = vadd.f32 %v8753, %v8913
  %v8915 = vpop.f32.mrf.mxu0
  %v8916 = vadd.f32 %v8755, %v8915
  %8917 = vmatprep.mubr.f32.mxu0 0.0
  %8918 = vmatmul.mubr.f32.gmra.mxu0 %v7080
  %v8919 = vpop.f32.mrf.mxu0
  %v8920 = vadd.f32 %v8759, %v8919
  %v8921 = vpop.f32.mrf.mxu0
  %v8922 = vadd.f32 %v8761, %v8921
  %8923 = vmatprep.mubr.f32.mxu0 0.0
  %8924 = vmatmul.mubr.f32.gmra.mxu0 %v7089
  %v8925 = vpop.f32.mrf.mxu0
  %v8926 = vadd.f32 %v8765, %v8925
  %v8927 = vpop.f32.mrf.mxu0
  %v8928 = vadd.f32 %v8767, %v8927
  %8929 = vmatprep.mubr.f32.mxu0 0.0
  %8930 = vmatmul.mubr.f32.gmra.mxu0 %v7098
  %v8931 = vpop.f32.mrf.mxu0
  %v8932 = vadd.f32 %v8771, %v8931
  %v8933 = vpop.f32.mrf.mxu0
  %v8934 = vadd.f32 %v8773, %v8933
  %8935 = vmatprep.mubr.f32.mxu0 0.0
  %8936 = vmatmul.mubr.f32.gmra.mxu0 %v7107
  %v8937 = vpop.f32.mrf.mxu0
  %v8938 = vadd.f32 %v8777, %v8937
  %v8939 = vpop.f32.mrf.mxu0
  %v8940 = vadd.f32 %v8779, %v8939
  %8941 = vmatprep.mubr.f32.mxu0 0.0
  %8942 = vmatmul.mubr.f32.gmra.mxu0 %v7116
  %v8943 = vpop.f32.mrf.mxu0
  %v8944 = vadd.f32 %v8783, %v8943
  %v8945 = vpop.f32.mrf.mxu0
  %v8946 = vadd.f32 %v8785, %v8945
  %8947 = vmatprep.mubr.f32.mxu0 0.0
  %8948 = vmatmul.mubr.f32.gmra.mxu0 %v7125
  %v8949 = vpop.f32.mrf.mxu0
  %v8950 = vadd.f32 %v8789, %v8949
  %v8951 = vpop.f32.mrf.mxu0
  %v8952 = vadd.f32 %v8791, %v8951
  %8953 = vmatprep.mubr.f32.mxu0 0.0
  %8954 = vmatmul.mubr.f32.gmra.mxu0 %v7134
  %v8955 = vpop.f32.mrf.mxu0
  %v8956 = vadd.f32 %v8795, %v8955
  %v8957 = vpop.f32.mrf.mxu0
  %v8958 = vadd.f32 %v8797, %v8957
  %8959 = vmatprep.mubr.f32.mxu0 0.0
  %8960 = vmatmul.mubr.f32.gmra.mxu0 %v7143
  %v8961 = vpop.f32.mrf.mxu0
  %v8962 = vadd.f32 %v8801, %v8961
  %v8963 = vpop.f32.mrf.mxu0
  %v8964 = vadd.f32 %v8803, %v8963
  %8965 = vmatprep.mubr.f32.mxu0 0.0
  %8966 = vmatmul.mubr.f32.gmra.mxu0 %v7152
  %v8967 = vpop.f32.mrf.mxu0
  %v8968 = vadd.f32 %v8807, %v8967
  %v8969 = vpop.f32.mrf.mxu0
  %v8970 = vadd.f32 %v8809, %v8969
  %8971 = vmatprep.mubr.f32.mxu0 0.0
  %8972 = vmatmul.mubr.f32.gmra.mxu0 %v7161
  %v8973 = vpop.f32.mrf.mxu0
  %v8974 = vadd.f32 %v8813, %v8973
  %v8975 = vpop.f32.mrf.mxu0
  %v8976 = vadd.f32 %v8815, %v8975
  %8977 = vmatprep.mubr.f32.mxu0 0.0
  %8978 = vmatmul.mubr.f32.gmra.mxu0 %v7170
  %v8979 = vpop.f32.mrf.mxu0
  %v8980 = vadd.f32 %v8819, %v8979
  %v8981 = vpop.f32.mrf.mxu0
  %v8982 = vadd.f32 %v8821, %v8981
  %8983 = vdwg.mxu0
  %8984 = vmatprep.subr.mxu0 %v7279
  %8985 = vmatpush1.msra.mxu0 %v7278
  %8986 = vmatprep.subr.mxu0 %v7272
  %8987 = vmatpush1.msra.mxu0 %v7271
  %8988 = vmatprep.subr.mxu0 %v7265
  %8989 = vmatpush1.msra.mxu0 %v7264
  %8990 = vmatprep.subr.mxu0 %v7258
  %8991 = vmatpush1.msra.mxu0 %v7257
  %8992 = vmatprep.subr.mxu0 %v7251
  %8993 = vmatpush1.msra.mxu0 %v7250
  %8994 = vmatprep.subr.mxu0 %v7244
  %8995 = vmatpush1.msra.mxu0 %v7243
  %8996 = vmatprep.subr.mxu0 %v7237
  %8997 = vmatpush1.msra.mxu0 %v7236
  %8998 = vmatprep.subr.mxu0 %v7230
  %8999 = vmatpush1.msra.mxu0 %v7229
  %9000 = vmatprep.subr.mxu0 %v7223
  %9001 = vmatpush1.msra.mxu0 %v7222
  %9002 = vmatprep.subr.mxu0 %v7216
  %9003 = vmatpush1.msra.mxu0 %v7215
  %9004 = vmatprep.subr.mxu0 %v7209
  %9005 = vmatpush1.msra.mxu0 %v7208
  %9006 = vmatprep.subr.mxu0 %v7202
  %9007 = vmatpush1.msra.mxu0 %v7201
  %9008 = vmatprep.subr.mxu0 %v7195
  %9009 = vmatpush1.msra.mxu0 %v7194
  %9010 = vmatprep.subr.mxu0 %v7188
  %9011 = vmatpush1.msra.mxu0 %v7187
  %9012 = vmatprep.subr.mxu0 %v7181
  %9013 = vmatpush1.msra.mxu0 %v7180
  %9014 = vmatprep.subr.mxu0 %v7174
  %9015 = vmatpush1.msra.mxu0 %v7173
  %9016 = vmatprep.subr.mxu0 %v7391
  %9017 = vmatpush2.msra.mxu0 %v7390
  %9018 = vmatprep.subr.mxu0 %v7384
  %9019 = vmatpush2.msra.mxu0 %v7383
  %9020 = vmatprep.subr.mxu0 %v7377
  %9021 = vmatpush2.msra.mxu0 %v7376
  %9022 = vmatprep.subr.mxu0 %v7370
  %9023 = vmatpush2.msra.mxu0 %v7369
  %9024 = vmatprep.subr.mxu0 %v7363
  %9025 = vmatpush2.msra.mxu0 %v7362
  %9026 = vmatprep.subr.mxu0 %v7356
  %9027 = vmatpush2.msra.mxu0 %v7355
  %9028 = vmatprep.subr.mxu0 %v7349
  %9029 = vmatpush2.msra.mxu0 %v7348
  %9030 = vmatprep.subr.mxu0 %v7342
  %9031 = vmatpush2.msra.mxu0 %v7341
  %9032 = vmatprep.subr.mxu0 %v7335
  %9033 = vmatpush2.msra.mxu0 %v7334
  %9034 = vmatprep.subr.mxu0 %v7328
  %9035 = vmatpush2.msra.mxu0 %v7327
  %9036 = vmatprep.subr.mxu0 %v7321
  %9037 = vmatpush2.msra.mxu0 %v7320
  %9038 = vmatprep.subr.mxu0 %v7314
  %9039 = vmatpush2.msra.mxu0 %v7313
  %9040 = vmatprep.subr.mxu0 %v7307
  %9041 = vmatpush2.msra.mxu0 %v7306
  %9042 = vmatprep.subr.mxu0 %v7300
  %9043 = vmatpush2.msra.mxu0 %v7299
  %9044 = vmatprep.subr.mxu0 %v7293
  %9045 = vmatpush2.msra.mxu0 %v7292
  %9046 = vmatprep.subr.mxu0 %v7286
  %9047 = vmatpush2.msra.mxu0 %v7285
  %9048 = vmatprep.mubr.f32.mxu0 %v7028
  %9049 = vmatmul.mubr.f32.gmra.mxu0 %v7027
  %v9050 = vpop.f32.mrf.mxu0
  %v9051 = vadd.f32 0.0, %v9050
  %v9052 = vpop.f32.mrf.mxu0
  %v9053 = vadd.f32 0.0, %v9052
  %9054 = vmatprep.mubr.f32.mxu0 %v7037
  %9055 = vmatmul.mubr.f32.gmra.mxu0 %v7036
  %v9056 = vpop.f32.mrf.mxu0
  %v9057 = vadd.f32 0.0, %v9056
  %v9058 = vpop.f32.mrf.mxu0
  %v9059 = vadd.f32 0.0, %v9058
  %9060 = vmatprep.mubr.f32.mxu0 %v7046
  %9061 = vmatmul.mubr.f32.gmra.mxu0 %v7045
  %v9062 = vpop.f32.mrf.mxu0
  %v9063 = vadd.f32 0.0, %v9062
  %v9064 = vpop.f32.mrf.mxu0
  %v9065 = vadd.f32 0.0, %v9064
  %9066 = vmatprep.mubr.f32.mxu0 %v7055
  %9067 = vmatmul.mubr.f32.gmra.mxu0 %v7054
  %v9068 = vpop.f32.mrf.mxu0
  %v9069 = vadd.f32 0.0, %v9068
  %v9070 = vpop.f32.mrf.mxu0
  %v9071 = vadd.f32 0.0, %v9070
  %9072 = vmatprep.mubr.f32.mxu0 %v7064
  %9073 = vmatmul.mubr.f32.gmra.mxu0 %v7063
  %v9074 = vpop.f32.mrf.mxu0
  %v9075 = vadd.f32 0.0, %v9074
  %v9076 = vpop.f32.mrf.mxu0
  %v9077 = vadd.f32 0.0, %v9076
  %9078 = vmatprep.mubr.f32.mxu0 %v7073
  %9079 = vmatmul.mubr.f32.gmra.mxu0 %v7072
  %v9080 = vpop.f32.mrf.mxu0
  %v9081 = vadd.f32 0.0, %v9080
  %v9082 = vpop.f32.mrf.mxu0
  %v9083 = vadd.f32 0.0, %v9082
  %9084 = vmatprep.mubr.f32.mxu0 %v7082
  %9085 = vmatmul.mubr.f32.gmra.mxu0 %v7081
  %v9086 = vpop.f32.mrf.mxu0
  %v9087 = vadd.f32 0.0, %v9086
  %v9088 = vpop.f32.mrf.mxu0
  %v9089 = vadd.f32 0.0, %v9088
  %9090 = vmatprep.mubr.f32.mxu0 %v7091
  %9091 = vmatmul.mubr.f32.gmra.mxu0 %v7090
  %v9092 = vpop.f32.mrf.mxu0
  %v9093 = vadd.f32 0.0, %v9092
  %v9094 = vpop.f32.mrf.mxu0
  %v9095 = vadd.f32 0.0, %v9094
  %9096 = vmatprep.mubr.f32.mxu0 %v7100
  %9097 = vmatmul.mubr.f32.gmra.mxu0 %v7099
  %v9098 = vpop.f32.mrf.mxu0
  %v9099 = vadd.f32 0.0, %v9098
  %v9100 = vpop.f32.mrf.mxu0
  %v9101 = vadd.f32 0.0, %v9100
  %9102 = vmatprep.mubr.f32.mxu0 %v7109
  %9103 = vmatmul.mubr.f32.gmra.mxu0 %v7108
  %v9104 = vpop.f32.mrf.mxu0
  %v9105 = vadd.f32 0.0, %v9104
  %v9106 = vpop.f32.mrf.mxu0
  %v9107 = vadd.f32 0.0, %v9106
  %9108 = vmatprep.mubr.f32.mxu0 %v7118
  %9109 = vmatmul.mubr.f32.gmra.mxu0 %v7117
  %v9110 = vpop.f32.mrf.mxu0
  %v9111 = vadd.f32 0.0, %v9110
  %v9112 = vpop.f32.mrf.mxu0
  %v9113 = vadd.f32 0.0, %v9112
  %9114 = vmatprep.mubr.f32.mxu0 %v7127
  %9115 = vmatmul.mubr.f32.gmra.mxu0 %v7126
  %v9116 = vpop.f32.mrf.mxu0
  %v9117 = vadd.f32 0.0, %v9116
  %v9118 = vpop.f32.mrf.mxu0
  %v9119 = vadd.f32 0.0, %v9118
  %9120 = vmatprep.mubr.f32.mxu0 %v7136
  %9121 = vmatmul.mubr.f32.gmra.mxu0 %v7135
  %v9122 = vpop.f32.mrf.mxu0
  %v9123 = vadd.f32 0.0, %v9122
  %v9124 = vpop.f32.mrf.mxu0
  %v9125 = vadd.f32 0.0, %v9124
  %9126 = vmatprep.mubr.f32.mxu0 %v7145
  %9127 = vmatmul.mubr.f32.gmra.mxu0 %v7144
  %v9128 = vpop.f32.mrf.mxu0
  %v9129 = vadd.f32 0.0, %v9128
  %v9130 = vpop.f32.mrf.mxu0
  %v9131 = vadd.f32 0.0, %v9130
  %9132 = vmatprep.mubr.f32.mxu0 %v7154
  %9133 = vmatmul.mubr.f32.gmra.mxu0 %v7153
  %v9134 = vpop.f32.mrf.mxu0
  %v9135 = vadd.f32 0.0, %v9134
  %v9136 = vpop.f32.mrf.mxu0
  %v9137 = vadd.f32 0.0, %v9136
  %9138 = vmatprep.mubr.f32.mxu0 %v7163
  %9139 = vmatmul.mubr.f32.gmra.mxu0 %v7162
  %v9140 = vpop.f32.mrf.mxu0
  %v9141 = vadd.f32 0.0, %v9140
  %v9142 = vpop.f32.mrf.mxu0
  %v9143 = vadd.f32 0.0, %v9142
  %9144 = vdwg.mxu0
  %9145 = vmatprep.subr.mxu0 %v7503
  %9146 = vmatpush1.msra.mxu0 %v7502
  %9147 = vmatprep.subr.mxu0 %v7496
  %9148 = vmatpush1.msra.mxu0 %v7495
  %9149 = vmatprep.subr.mxu0 %v7489
  %9150 = vmatpush1.msra.mxu0 %v7488
  %9151 = vmatprep.subr.mxu0 %v7482
  %9152 = vmatpush1.msra.mxu0 %v7481
  %9153 = vmatprep.subr.mxu0 %v7475
  %9154 = vmatpush1.msra.mxu0 %v7474
  %9155 = vmatprep.subr.mxu0 %v7468
  %9156 = vmatpush1.msra.mxu0 %v7467
  %9157 = vmatprep.subr.mxu0 %v7461
  %9158 = vmatpush1.msra.mxu0 %v7460
  %9159 = vmatprep.subr.mxu0 %v7454
  %9160 = vmatpush1.msra.mxu0 %v7453
  %9161 = vmatprep.subr.mxu0 %v7447
  %9162 = vmatpush1.msra.mxu0 %v7446
  %9163 = vmatprep.subr.mxu0 %v7440
  %9164 = vmatpush1.msra.mxu0 %v7439
  %9165 = vmatprep.subr.mxu0 %v7433
  %9166 = vmatpush1.msra.mxu0 %v7432
  %9167 = vmatprep.subr.mxu0 %v7426
  %9168 = vmatpush1.msra.mxu0 %v7425
  %9169 = vmatprep.subr.mxu0 %v7419
  %9170 = vmatpush1.msra.mxu0 %v7418
  %9171 = vmatprep.subr.mxu0 %v7412
  %9172 = vmatpush1.msra.mxu0 %v7411
  %9173 = vmatprep.subr.mxu0 %v7405
  %9174 = vmatpush1.msra.mxu0 %v7404
  %9175 = vmatprep.subr.mxu0 %v7398
  %9176 = vmatpush1.msra.mxu0 %v7397
  %9177 = vmatprep.subr.mxu0 %v7615
  %9178 = vmatpush2.msra.mxu0 %v7614
  %9179 = vmatprep.subr.mxu0 %v7608
  %9180 = vmatpush2.msra.mxu0 %v7607
  %9181 = vmatprep.subr.mxu0 %v7601
  %9182 = vmatpush2.msra.mxu0 %v7600
  %9183 = vmatprep.subr.mxu0 %v7594
  %9184 = vmatpush2.msra.mxu0 %v7593
  %9185 = vmatprep.subr.mxu0 %v7587
  %9186 = vmatpush2.msra.mxu0 %v7586
  %9187 = vmatprep.subr.mxu0 %v7580
  %9188 = vmatpush2.msra.mxu0 %v7579
  %9189 = vmatprep.subr.mxu0 %v7573
  %9190 = vmatpush2.msra.mxu0 %v7572
  %9191 = vmatprep.subr.mxu0 %v7566
  %9192 = vmatpush2.msra.mxu0 %v7565
  %9193 = vmatprep.subr.mxu0 %v7559
  %9194 = vmatpush2.msra.mxu0 %v7558
  %9195 = vmatprep.subr.mxu0 %v7552
  %9196 = vmatpush2.msra.mxu0 %v7551
  %9197 = vmatprep.subr.mxu0 %v7545
  %9198 = vmatpush2.msra.mxu0 %v7544
  %9199 = vmatprep.subr.mxu0 %v7538
  %9200 = vmatpush2.msra.mxu0 %v7537
  %9201 = vmatprep.subr.mxu0 %v7531
  %9202 = vmatpush2.msra.mxu0 %v7530
  %9203 = vmatprep.subr.mxu0 %v7524
  %9204 = vmatpush2.msra.mxu0 %v7523
  %9205 = vmatprep.subr.mxu0 %v7517
  %9206 = vmatpush2.msra.mxu0 %v7516
  %9207 = vmatprep.subr.mxu0 %v7510
  %9208 = vmatpush2.msra.mxu0 %v7509
  %9209 = vmatprep.mubr.f32.mxu0 %v7030
  %9210 = vmatmul.mubr.f32.gmra.mxu0 %v7029
  %v9211 = vpop.f32.mrf.mxu0
  %v9212 = vadd.f32 %v9051, %v9211
  %v9213 = vpop.f32.mrf.mxu0
  %v9214 = vadd.f32 %v9053, %v9213
  %9215 = vmatprep.mubr.f32.mxu0 %v7039
  %9216 = vmatmul.mubr.f32.gmra.mxu0 %v7038
  %v9217 = vpop.f32.mrf.mxu0
  %v9218 = vadd.f32 %v9057, %v9217
  %v9219 = vpop.f32.mrf.mxu0
  %v9220 = vadd.f32 %v9059, %v9219
  %9221 = vmatprep.mubr.f32.mxu0 %v7048
  %9222 = vmatmul.mubr.f32.gmra.mxu0 %v7047
  %v9223 = vpop.f32.mrf.mxu0
  %v9224 = vadd.f32 %v9063, %v9223
  %v9225 = vpop.f32.mrf.mxu0
  %v9226 = vadd.f32 %v9065, %v9225
  %9227 = vmatprep.mubr.f32.mxu0 %v7057
  %9228 = vmatmul.mubr.f32.gmra.mxu0 %v7056
  %v9229 = vpop.f32.mrf.mxu0
  %v9230 = vadd.f32 %v9069, %v9229
  %v9231 = vpop.f32.mrf.mxu0
  %v9232 = vadd.f32 %v9071, %v9231
  %9233 = vmatprep.mubr.f32.mxu0 %v7066
  %9234 = vmatmul.mubr.f32.gmra.mxu0 %v7065
  %v9235 = vpop.f32.mrf.mxu0
  %v9236 = vadd.f32 %v9075, %v9235
  %v9237 = vpop.f32.mrf.mxu0
  %v9238 = vadd.f32 %v9077, %v9237
  %9239 = vmatprep.mubr.f32.mxu0 %v7075
  %9240 = vmatmul.mubr.f32.gmra.mxu0 %v7074
  %v9241 = vpop.f32.mrf.mxu0
  %v9242 = vadd.f32 %v9081, %v9241
  %v9243 = vpop.f32.mrf.mxu0
  %v9244 = vadd.f32 %v9083, %v9243
  %9245 = vmatprep.mubr.f32.mxu0 %v7084
  %9246 = vmatmul.mubr.f32.gmra.mxu0 %v7083
  %v9247 = vpop.f32.mrf.mxu0
  %v9248 = vadd.f32 %v9087, %v9247
  %v9249 = vpop.f32.mrf.mxu0
  %v9250 = vadd.f32 %v9089, %v9249
  %9251 = vmatprep.mubr.f32.mxu0 %v7093
  %9252 = vmatmul.mubr.f32.gmra.mxu0 %v7092
  %v9253 = vpop.f32.mrf.mxu0
  %v9254 = vadd.f32 %v9093, %v9253
  %v9255 = vpop.f32.mrf.mxu0
  %v9256 = vadd.f32 %v9095, %v9255
  %9257 = vmatprep.mubr.f32.mxu0 %v7102
  %9258 = vmatmul.mubr.f32.gmra.mxu0 %v7101
  %v9259 = vpop.f32.mrf.mxu0
  %v9260 = vadd.f32 %v9099, %v9259
  %v9261 = vpop.f32.mrf.mxu0
  %v9262 = vadd.f32 %v9101, %v9261
  %9263 = vmatprep.mubr.f32.mxu0 %v7111
  %9264 = vmatmul.mubr.f32.gmra.mxu0 %v7110
  %v9265 = vpop.f32.mrf.mxu0
  %v9266 = vadd.f32 %v9105, %v9265
  %v9267 = vpop.f32.mrf.mxu0
  %v9268 = vadd.f32 %v9107, %v9267
  %9269 = vmatprep.mubr.f32.mxu0 %v7120
  %9270 = vmatmul.mubr.f32.gmra.mxu0 %v7119
  %v9271 = vpop.f32.mrf.mxu0
  %v9272 = vadd.f32 %v9111, %v9271
  %v9273 = vpop.f32.mrf.mxu0
  %v9274 = vadd.f32 %v9113, %v9273
  %9275 = vmatprep.mubr.f32.mxu0 %v7129
  %9276 = vmatmul.mubr.f32.gmra.mxu0 %v7128
  %v9277 = vpop.f32.mrf.mxu0
  %v9278 = vadd.f32 %v9117, %v9277
  %v9279 = vpop.f32.mrf.mxu0
  %v9280 = vadd.f32 %v9119, %v9279
  %9281 = vmatprep.mubr.f32.mxu0 %v7138
  %9282 = vmatmul.mubr.f32.gmra.mxu0 %v7137
  %v9283 = vpop.f32.mrf.mxu0
  %v9284 = vadd.f32 %v9123, %v9283
  %v9285 = vpop.f32.mrf.mxu0
  %v9286 = vadd.f32 %v9125, %v9285
  %9287 = vmatprep.mubr.f32.mxu0 %v7147
  %9288 = vmatmul.mubr.f32.gmra.mxu0 %v7146
  %v9289 = vpop.f32.mrf.mxu0
  %v9290 = vadd.f32 %v9129, %v9289
  %v9291 = vpop.f32.mrf.mxu0
  %v9292 = vadd.f32 %v9131, %v9291
  %9293 = vmatprep.mubr.f32.mxu0 %v7156
  %9294 = vmatmul.mubr.f32.gmra.mxu0 %v7155
  %v9295 = vpop.f32.mrf.mxu0
  %v9296 = vadd.f32 %v9135, %v9295
  %v9297 = vpop.f32.mrf.mxu0
  %v9298 = vadd.f32 %v9137, %v9297
  %9299 = vmatprep.mubr.f32.mxu0 %v7165
  %9300 = vmatmul.mubr.f32.gmra.mxu0 %v7164
  %v9301 = vpop.f32.mrf.mxu0
  %v9302 = vadd.f32 %v9141, %v9301
  %v9303 = vpop.f32.mrf.mxu0
  %v9304 = vadd.f32 %v9143, %v9303
  %9305 = vdwg.mxu0
  %9306 = vmatprep.subr.mxu0 %v7727
  %9307 = vmatpush1.msra.mxu0 %v7726
  %9308 = vmatprep.subr.mxu0 %v7720
  %9309 = vmatpush1.msra.mxu0 %v7719
  %9310 = vmatprep.subr.mxu0 %v7713
  %9311 = vmatpush1.msra.mxu0 %v7712
  %9312 = vmatprep.subr.mxu0 %v7706
  %9313 = vmatpush1.msra.mxu0 %v7705
  %9314 = vmatprep.subr.mxu0 %v7699
  %9315 = vmatpush1.msra.mxu0 %v7698
  %9316 = vmatprep.subr.mxu0 %v7692
  %9317 = vmatpush1.msra.mxu0 %v7691
  %9318 = vmatprep.subr.mxu0 %v7685
  %9319 = vmatpush1.msra.mxu0 %v7684
  %9320 = vmatprep.subr.mxu0 %v7678
  %9321 = vmatpush1.msra.mxu0 %v7677
  %9322 = vmatprep.subr.mxu0 %v7671
  %9323 = vmatpush1.msra.mxu0 %v7670
  %9324 = vmatprep.subr.mxu0 %v7664
  %9325 = vmatpush1.msra.mxu0 %v7663
  %9326 = vmatprep.subr.mxu0 %v7657
  %9327 = vmatpush1.msra.mxu0 %v7656
  %9328 = vmatprep.subr.mxu0 %v7650
  %9329 = vmatpush1.msra.mxu0 %v7649
  %9330 = vmatprep.subr.mxu0 %v7643
  %9331 = vmatpush1.msra.mxu0 %v7642
  %9332 = vmatprep.subr.mxu0 %v7636
  %9333 = vmatpush1.msra.mxu0 %v7635
  %9334 = vmatprep.subr.mxu0 %v7629
  %9335 = vmatpush1.msra.mxu0 %v7628
  %9336 = vmatprep.subr.mxu0 %v7622
  %9337 = vmatpush1.msra.mxu0 %v7621
  %9338 = vmatprep.subr.mxu0 %v7839
  %9339 = vmatpush2.msra.mxu0 %v7838
  %9340 = vmatprep.subr.mxu0 %v7832
  %9341 = vmatpush2.msra.mxu0 %v7831
  %9342 = vmatprep.subr.mxu0 %v7825
  %9343 = vmatpush2.msra.mxu0 %v7824
  %9344 = vmatprep.subr.mxu0 %v7818
  %9345 = vmatpush2.msra.mxu0 %v7817
  %9346 = vmatprep.subr.mxu0 %v7811
  %9347 = vmatpush2.msra.mxu0 %v7810
  %9348 = vmatprep.subr.mxu0 %v7804
  %9349 = vmatpush2.msra.mxu0 %v7803
  %9350 = vmatprep.subr.mxu0 %v7797
  %9351 = vmatpush2.msra.mxu0 %v7796
  %9352 = vmatprep.subr.mxu0 %v7790
  %9353 = vmatpush2.msra.mxu0 %v7789
  %9354 = vmatprep.subr.mxu0 %v7783
  %9355 = vmatpush2.msra.mxu0 %v7782
  %9356 = vmatprep.subr.mxu0 %v7776
  %9357 = vmatpush2.msra.mxu0 %v7775
  %9358 = vmatprep.subr.mxu0 %v7769
  %9359 = vmatpush2.msra.mxu0 %v7768
  %9360 = vmatprep.subr.mxu0 %v7762
  %9361 = vmatpush2.msra.mxu0 %v7761
  %9362 = vmatprep.subr.mxu0 %v7755
  %9363 = vmatpush2.msra.mxu0 %v7754
  %9364 = vmatprep.subr.mxu0 %v7748
  %9365 = vmatpush2.msra.mxu0 %v7747
  %9366 = vmatprep.subr.mxu0 %v7741
  %9367 = vmatpush2.msra.mxu0 %v7740
  %9368 = vmatprep.subr.mxu0 %v7734
  %9369 = vmatpush2.msra.mxu0 %v7733
  %9370 = vmatprep.mubr.f32.mxu0 %v7032
  %9371 = vmatmul.mubr.f32.gmra.mxu0 %v7031
  %v9372 = vpop.f32.mrf.mxu0
  %v9373 = vadd.f32 %v9212, %v9372
  %v9374 = vpop.f32.mrf.mxu0
  %v9375 = vadd.f32 %v9214, %v9374
  %9376 = vmatprep.mubr.f32.mxu0 %v7041
  %9377 = vmatmul.mubr.f32.gmra.mxu0 %v7040
  %v9378 = vpop.f32.mrf.mxu0
  %v9379 = vadd.f32 %v9218, %v9378
  %v9380 = vpop.f32.mrf.mxu0
  %v9381 = vadd.f32 %v9220, %v9380
  %9382 = vmatprep.mubr.f32.mxu0 %v7050
  %9383 = vmatmul.mubr.f32.gmra.mxu0 %v7049
  %v9384 = vpop.f32.mrf.mxu0
  %v9385 = vadd.f32 %v9224, %v9384
  %v9386 = vpop.f32.mrf.mxu0
  %v9387 = vadd.f32 %v9226, %v9386
  %9388 = vmatprep.mubr.f32.mxu0 %v7059
  %9389 = vmatmul.mubr.f32.gmra.mxu0 %v7058
  %v9390 = vpop.f32.mrf.mxu0
  %v9391 = vadd.f32 %v9230, %v9390
  %v9392 = vpop.f32.mrf.mxu0
  %v9393 = vadd.f32 %v9232, %v9392
  %9394 = vmatprep.mubr.f32.mxu0 %v7068
  %9395 = vmatmul.mubr.f32.gmra.mxu0 %v7067
  %v9396 = vpop.f32.mrf.mxu0
  %v9397 = vadd.f32 %v9236, %v9396
  %v9398 = vpop.f32.mrf.mxu0
  %v9399 = vadd.f32 %v9238, %v9398
  %9400 = vmatprep.mubr.f32.mxu0 %v7077
  %9401 = vmatmul.mubr.f32.gmra.mxu0 %v7076
  %v9402 = vpop.f32.mrf.mxu0
  %v9403 = vadd.f32 %v9242, %v9402
  %v9404 = vpop.f32.mrf.mxu0
  %v9405 = vadd.f32 %v9244, %v9404
  %9406 = vmatprep.mubr.f32.mxu0 %v7086
  %9407 = vmatmul.mubr.f32.gmra.mxu0 %v7085
  %v9408 = vpop.f32.mrf.mxu0
  %v9409 = vadd.f32 %v9248, %v9408
  %v9410 = vpop.f32.mrf.mxu0
  %v9411 = vadd.f32 %v9250, %v9410
  %9412 = vmatprep.mubr.f32.mxu0 %v7095
  %9413 = vmatmul.mubr.f32.gmra.mxu0 %v7094
  %v9414 = vpop.f32.mrf.mxu0
  %v9415 = vadd.f32 %v9254, %v9414
  %v9416 = vpop.f32.mrf.mxu0
  %v9417 = vadd.f32 %v9256, %v9416
  %9418 = vmatprep.mubr.f32.mxu0 %v7104
  %9419 = vmatmul.mubr.f32.gmra.mxu0 %v7103
  %v9420 = vpop.f32.mrf.mxu0
  %v9421 = vadd.f32 %v9260, %v9420
  %v9422 = vpop.f32.mrf.mxu0
  %v9423 = vadd.f32 %v9262, %v9422
  %9424 = vmatprep.mubr.f32.mxu0 %v7113
  %9425 = vmatmul.mubr.f32.gmra.mxu0 %v7112
  %v9426 = vpop.f32.mrf.mxu0
  %v9427 = vadd.f32 %v9266, %v9426
  %v9428 = vpop.f32.mrf.mxu0
  %v9429 = vadd.f32 %v9268, %v9428
  %9430 = vmatprep.mubr.f32.mxu0 %v7122
  %9431 = vmatmul.mubr.f32.gmra.mxu0 %v7121
  %v9432 = vpop.f32.mrf.mxu0
  %v9433 = vadd.f32 %v9272, %v9432
  %v9434 = vpop.f32.mrf.mxu0
  %v9435 = vadd.f32 %v9274, %v9434
  %9436 = vmatprep.mubr.f32.mxu0 %v7131
  %9437 = vmatmul.mubr.f32.gmra.mxu0 %v7130
  %v9438 = vpop.f32.mrf.mxu0
  %v9439 = vadd.f32 %v9278, %v9438
  %v9440 = vpop.f32.mrf.mxu0
  %v9441 = vadd.f32 %v9280, %v9440
  %9442 = vmatprep.mubr.f32.mxu0 %v7140
  %9443 = vmatmul.mubr.f32.gmra.mxu0 %v7139
  %v9444 = vpop.f32.mrf.mxu0
  %v9445 = vadd.f32 %v9284, %v9444
  %v9446 = vpop.f32.mrf.mxu0
  %v9447 = vadd.f32 %v9286, %v9446
  %9448 = vmatprep.mubr.f32.mxu0 %v7149
  %9449 = vmatmul.mubr.f32.gmra.mxu0 %v7148
  %v9450 = vpop.f32.mrf.mxu0
  %v9451 = vadd.f32 %v9290, %v9450
  %v9452 = vpop.f32.mrf.mxu0
  %v9453 = vadd.f32 %v9292, %v9452
  %9454 = vmatprep.mubr.f32.mxu0 %v7158
  %9455 = vmatmul.mubr.f32.gmra.mxu0 %v7157
  %v9456 = vpop.f32.mrf.mxu0
  %v9457 = vadd.f32 %v9296, %v9456
  %v9458 = vpop.f32.mrf.mxu0
  %v9459 = vadd.f32 %v9298, %v9458
  %9460 = vmatprep.mubr.f32.mxu0 %v7167
  %9461 = vmatmul.mubr.f32.gmra.mxu0 %v7166
  %v9462 = vpop.f32.mrf.mxu0
  %v9463 = vadd.f32 %v9302, %v9462
  %v9464 = vpop.f32.mrf.mxu0
  %v9465 = vadd.f32 %v9304, %v9464
  %9466 = vdwg.mxu0
  %9467 = vmatprep.subr.mxu0 %v7951
  %9468 = vmatpush1.msra.mxu0 %v7950
  %9469 = vmatprep.subr.mxu0 %v7944
  %9470 = vmatpush1.msra.mxu0 %v7943
  %9471 = vmatprep.subr.mxu0 %v7937
  %9472 = vmatpush1.msra.mxu0 %v7936
  %9473 = vmatprep.subr.mxu0 %v7930
  %9474 = vmatpush1.msra.mxu0 %v7929
  %9475 = vmatprep.subr.mxu0 %v7923
  %9476 = vmatpush1.msra.mxu0 %v7922
  %9477 = vmatprep.subr.mxu0 %v7916
  %9478 = vmatpush1.msra.mxu0 %v7915
  %9479 = vmatprep.subr.mxu0 %v7909
  %9480 = vmatpush1.msra.mxu0 %v7908
  %9481 = vmatprep.subr.mxu0 %v7902
  %9482 = vmatpush1.msra.mxu0 %v7901
  %9483 = vmatprep.subr.mxu0 %v7895
  %9484 = vmatpush1.msra.mxu0 %v7894
  %9485 = vmatprep.subr.mxu0 %v7888
  %9486 = vmatpush1.msra.mxu0 %v7887
  %9487 = vmatprep.subr.mxu0 %v7881
  %9488 = vmatpush1.msra.mxu0 %v7880
  %9489 = vmatprep.subr.mxu0 %v7874
  %9490 = vmatpush1.msra.mxu0 %v7873
  %9491 = vmatprep.subr.mxu0 %v7867
  %9492 = vmatpush1.msra.mxu0 %v7866
  %9493 = vmatprep.subr.mxu0 %v7860
  %9494 = vmatpush1.msra.mxu0 %v7859
  %9495 = vmatprep.subr.mxu0 %v7853
  %9496 = vmatpush1.msra.mxu0 %v7852
  %9497 = vmatprep.subr.mxu0 %v7846
  %9498 = vmatpush1.msra.mxu0 %v7845
  %9499 = vmatprep.subr.mxu0 %v8063
  %9500 = vmatpush2.msra.mxu0 %v8062
  %9501 = vmatprep.subr.mxu0 %v8056
  %9502 = vmatpush2.msra.mxu0 %v8055
  %9503 = vmatprep.subr.mxu0 %v8049
  %9504 = vmatpush2.msra.mxu0 %v8048
  %9505 = vmatprep.subr.mxu0 %v8042
  %9506 = vmatpush2.msra.mxu0 %v8041
  %9507 = vmatprep.subr.mxu0 %v8035
  %9508 = vmatpush2.msra.mxu0 %v8034
  %9509 = vmatprep.subr.mxu0 %v8028
  %9510 = vmatpush2.msra.mxu0 %v8027
  %9511 = vmatprep.subr.mxu0 %v8021
  %9512 = vmatpush2.msra.mxu0 %v8020
  %9513 = vmatprep.subr.mxu0 %v8014
  %9514 = vmatpush2.msra.mxu0 %v8013
  %9515 = vmatprep.subr.mxu0 %v8007
  %9516 = vmatpush2.msra.mxu0 %v8006
  %9517 = vmatprep.subr.mxu0 %v8000
  %9518 = vmatpush2.msra.mxu0 %v7999
  %9519 = vmatprep.subr.mxu0 %v7993
  %9520 = vmatpush2.msra.mxu0 %v7992
  %9521 = vmatprep.subr.mxu0 %v7986
  %9522 = vmatpush2.msra.mxu0 %v7985
  %9523 = vmatprep.subr.mxu0 %v7979
  %9524 = vmatpush2.msra.mxu0 %v7978
  %9525 = vmatprep.subr.mxu0 %v7972
  %9526 = vmatpush2.msra.mxu0 %v7971
  %9527 = vmatprep.subr.mxu0 %v7965
  %9528 = vmatpush2.msra.mxu0 %v7964
  %9529 = vmatprep.subr.mxu0 %v7958
  %9530 = vmatpush2.msra.mxu0 %v7957
  %9531 = vmatprep.mubr.f32.mxu0 %v7034
  %9532 = vmatmul.mubr.f32.gmra.mxu0 %v7033
  %v9533 = vpop.f32.mrf.mxu0
  %v9534 = vadd.f32 %v9373, %v9533
  %v9535 = vpop.f32.mrf.mxu0
  %v9536 = vadd.f32 %v9375, %v9535
  %9537 = vmatprep.mubr.f32.mxu0 %v7043
  %9538 = vmatmul.mubr.f32.gmra.mxu0 %v7042
  %v9539 = vpop.f32.mrf.mxu0
  %v9540 = vadd.f32 %v9379, %v9539
  %v9541 = vpop.f32.mrf.mxu0
  %v9542 = vadd.f32 %v9381, %v9541
  %9543 = vmatprep.mubr.f32.mxu0 %v7052
  %9544 = vmatmul.mubr.f32.gmra.mxu0 %v7051
  %v9545 = vpop.f32.mrf.mxu0
  %v9546 = vadd.f32 %v9385, %v9545
  %v9547 = vpop.f32.mrf.mxu0
  %v9548 = vadd.f32 %v9387, %v9547
  %9549 = vmatprep.mubr.f32.mxu0 %v7061
  %9550 = vmatmul.mubr.f32.gmra.mxu0 %v7060
  %v9551 = vpop.f32.mrf.mxu0
  %v9552 = vadd.f32 %v9391, %v9551
  %v9553 = vpop.f32.mrf.mxu0
  %v9554 = vadd.f32 %v9393, %v9553
  %9555 = vmatprep.mubr.f32.mxu0 %v7070
  %9556 = vmatmul.mubr.f32.gmra.mxu0 %v7069
  %v9557 = vpop.f32.mrf.mxu0
  %v9558 = vadd.f32 %v9397, %v9557
  %v9559 = vpop.f32.mrf.mxu0
  %v9560 = vadd.f32 %v9399, %v9559
  %9561 = vmatprep.mubr.f32.mxu0 %v7079
  %9562 = vmatmul.mubr.f32.gmra.mxu0 %v7078
  %v9563 = vpop.f32.mrf.mxu0
  %v9564 = vadd.f32 %v9403, %v9563
  %v9565 = vpop.f32.mrf.mxu0
  %v9566 = vadd.f32 %v9405, %v9565
  %9567 = vmatprep.mubr.f32.mxu0 %v7088
  %9568 = vmatmul.mubr.f32.gmra.mxu0 %v7087
  %v9569 = vpop.f32.mrf.mxu0
  %v9570 = vadd.f32 %v9409, %v9569
  %v9571 = vpop.f32.mrf.mxu0
  %v9572 = vadd.f32 %v9411, %v9571
  %9573 = vmatprep.mubr.f32.mxu0 %v7097
  %9574 = vmatmul.mubr.f32.gmra.mxu0 %v7096
  %v9575 = vpop.f32.mrf.mxu0
  %v9576 = vadd.f32 %v9415, %v9575
  %v9577 = vpop.f32.mrf.mxu0
  %v9578 = vadd.f32 %v9417, %v9577
  %9579 = vmatprep.mubr.f32.mxu0 %v7106
  %9580 = vmatmul.mubr.f32.gmra.mxu0 %v7105
  %v9581 = vpop.f32.mrf.mxu0
  %v9582 = vadd.f32 %v9421, %v9581
  %v9583 = vpop.f32.mrf.mxu0
  %v9584 = vadd.f32 %v9423, %v9583
  %9585 = vmatprep.mubr.f32.mxu0 %v7115
  %9586 = vmatmul.mubr.f32.gmra.mxu0 %v7114
  %v9587 = vpop.f32.mrf.mxu0
  %v9588 = vadd.f32 %v9427, %v9587
  %v9589 = vpop.f32.mrf.mxu0
  %v9590 = vadd.f32 %v9429, %v9589
  %9591 = vmatprep.mubr.f32.mxu0 %v7124
  %9592 = vmatmul.mubr.f32.gmra.mxu0 %v7123
  %v9593 = vpop.f32.mrf.mxu0
  %v9594 = vadd.f32 %v9433, %v9593
  %v9595 = vpop.f32.mrf.mxu0
  %v9596 = vadd.f32 %v9435, %v9595
  %9597 = vmatprep.mubr.f32.mxu0 %v7133
  %9598 = vmatmul.mubr.f32.gmra.mxu0 %v7132
  %v9599 = vpop.f32.mrf.mxu0
  %v9600 = vadd.f32 %v9439, %v9599
  %v9601 = vpop.f32.mrf.mxu0
  %v9602 = vadd.f32 %v9441, %v9601
  %9603 = vmatprep.mubr.f32.mxu0 %v7142
  %9604 = vmatmul.mubr.f32.gmra.mxu0 %v7141
  %v9605 = vpop.f32.mrf.mxu0
  %v9606 = vadd.f32 %v9445, %v9605
  %v9607 = vpop.f32.mrf.mxu0
  %v9608 = vadd.f32 %v9447, %v9607
  %9609 = vmatprep.mubr.f32.mxu0 %v7151
  %9610 = vmatmul.mubr.f32.gmra.mxu0 %v7150
  %v9611 = vpop.f32.mrf.mxu0
  %v9612 = vadd.f32 %v9451, %v9611
  %v9613 = vpop.f32.mrf.mxu0
  %v9614 = vadd.f32 %v9453, %v9613
  %9615 = vmatprep.mubr.f32.mxu0 %v7160
  %9616 = vmatmul.mubr.f32.gmra.mxu0 %v7159
  %v9617 = vpop.f32.mrf.mxu0
  %v9618 = vadd.f32 %v9457, %v9617
  %v9619 = vpop.f32.mrf.mxu0
  %v9620 = vadd.f32 %v9459, %v9619
  %9621 = vmatprep.mubr.f32.mxu0 %v7169
  %9622 = vmatmul.mubr.f32.gmra.mxu0 %v7168
  %v9623 = vpop.f32.mrf.mxu0
  %v9624 = vadd.f32 %v9463, %v9623
  %v9625 = vpop.f32.mrf.mxu0
  %v9626 = vadd.f32 %v9465, %v9625
  %9627 = vdwg.mxu0
  %9628 = vmatprep.subr.mxu0 %v8175
  %9629 = vmatpush1.msra.mxu0 %v8174
  %9630 = vmatprep.subr.mxu0 %v8168
  %9631 = vmatpush1.msra.mxu0 %v8167
  %9632 = vmatprep.subr.mxu0 %v8161
  %9633 = vmatpush1.msra.mxu0 %v8160
  %9634 = vmatprep.subr.mxu0 %v8154
  %9635 = vmatpush1.msra.mxu0 %v8153
  %9636 = vmatprep.subr.mxu0 %v8147
  %9637 = vmatpush1.msra.mxu0 %v8146
  %9638 = vmatprep.subr.mxu0 %v8140
  %9639 = vmatpush1.msra.mxu0 %v8139
  %9640 = vmatprep.subr.mxu0 %v8133
  %9641 = vmatpush1.msra.mxu0 %v8132
  %9642 = vmatprep.subr.mxu0 %v8126
  %9643 = vmatpush1.msra.mxu0 %v8125
  %9644 = vmatprep.subr.mxu0 %v8119
  %9645 = vmatpush1.msra.mxu0 %v8118
  %9646 = vmatprep.subr.mxu0 %v8112
  %9647 = vmatpush1.msra.mxu0 %v8111
  %9648 = vmatprep.subr.mxu0 %v8105
  %9649 = vmatpush1.msra.mxu0 %v8104
  %9650 = vmatprep.subr.mxu0 %v8098
  %9651 = vmatpush1.msra.mxu0 %v8097
  %9652 = vmatprep.subr.mxu0 %v8091
  %9653 = vmatpush1.msra.mxu0 %v8090
  %9654 = vmatprep.subr.mxu0 %v8084
  %9655 = vmatpush1.msra.mxu0 %v8083
  %9656 = vmatprep.subr.mxu0 %v8077
  %9657 = vmatpush1.msra.mxu0 %v8076
  %9658 = vmatprep.subr.mxu0 %v8070
  %9659 = vmatpush1.msra.mxu0 %v8069
  %9660 = vmatprep.subr.mxu0 0.0
  %9661 = vmatpush2.msra.mxu0 0.0
  %9662 = vmatprep.subr.mxu0 0.0
  %9663 = vmatpush2.msra.mxu0 0.0
  %9664 = vmatprep.subr.mxu0 0.0
  %9665 = vmatpush2.msra.mxu0 0.0
  %9666 = vmatprep.subr.mxu0 0.0
  %9667 = vmatpush2.msra.mxu0 0.0
  %9668 = vmatprep.subr.mxu0 0.0
  %9669 = vmatpush2.msra.mxu0 0.0
  %9670 = vmatprep.subr.mxu0 0.0
  %9671 = vmatpush2.msra.mxu0 0.0
  %9672 = vmatprep.subr.mxu0 0.0
  %9673 = vmatpush2.msra.mxu0 0.0
  %9674 = vmatprep.subr.mxu0 0.0
  %9675 = vmatpush2.msra.mxu0 0.0
  %9676 = vmatprep.subr.mxu0 0.0
  %9677 = vmatpush2.msra.mxu0 0.0
  %9678 = vmatprep.subr.mxu0 0.0
  %9679 = vmatpush2.msra.mxu0 0.0
  %9680 = vmatprep.subr.mxu0 0.0
  %9681 = vmatpush2.msra.mxu0 0.0
  %9682 = vmatprep.subr.mxu0 0.0
  %9683 = vmatpush2.msra.mxu0 0.0
  %9684 = vmatprep.subr.mxu0 0.0
  %9685 = vmatpush2.msra.mxu0 0.0
  %9686 = vmatprep.subr.mxu0 0.0
  %9687 = vmatpush2.msra.mxu0 0.0
  %9688 = vmatprep.subr.mxu0 0.0
  %9689 = vmatpush2.msra.mxu0 0.0
  %9690 = vmatprep.subr.mxu0 0.0
  %9691 = vmatpush2.msra.mxu0 0.0
  %9692 = vmatprep.mubr.f32.mxu0 0.0
  %9693 = vmatmul.mubr.f32.gmra.mxu0 %v7035
  %v9694 = vpop.f32.mrf.mxu0
  %v9695 = vadd.f32 %v9534, %v9694
  %v9696 = vpop.f32.mrf.mxu0
  %v9697 = vadd.f32 %v9536, %v9696
  %9698 = vmatprep.mubr.f32.mxu0 0.0
  %9699 = vmatmul.mubr.f32.gmra.mxu0 %v7044
  %v9700 = vpop.f32.mrf.mxu0
  %v9701 = vadd.f32 %v9540, %v9700
  %v9702 = vpop.f32.mrf.mxu0
  %v9703 = vadd.f32 %v9542, %v9702
  %9704 = vmatprep.mubr.f32.mxu0 0.0
  %9705 = vmatmul.mubr.f32.gmra.mxu0 %v7053
  %v9706 = vpop.f32.mrf.mxu0
  %v9707 = vadd.f32 %v9546, %v9706
  %v9708 = vpop.f32.mrf.mxu0
  %v9709 = vadd.f32 %v9548, %v9708
  %9710 = vmatprep.mubr.f32.mxu0 0.0
  %9711 = vmatmul.mubr.f32.gmra.mxu0 %v7062
  %v9712 = vpop.f32.mrf.mxu0
  %v9713 = vadd.f32 %v9552, %v9712
  %v9714 = vpop.f32.mrf.mxu0
  %v9715 = vadd.f32 %v9554, %v9714
  %9716 = vmatprep.mubr.f32.mxu0 0.0
  %9717 = vmatmul.mubr.f32.gmra.mxu0 %v7071
  %v9718 = vpop.f32.mrf.mxu0
  %v9719 = vadd.f32 %v9558, %v9718
  %v9720 = vpop.f32.mrf.mxu0
  %v9721 = vadd.f32 %v9560, %v9720
  %9722 = vmatprep.mubr.f32.mxu0 0.0
  %9723 = vmatmul.mubr.f32.gmra.mxu0 %v7080
  %v9724 = vpop.f32.mrf.mxu0
  %v9725 = vadd.f32 %v9564, %v9724
  %v9726 = vpop.f32.mrf.mxu0
  %v9727 = vadd.f32 %v9566, %v9726
  %9728 = vmatprep.mubr.f32.mxu0 0.0
  %9729 = vmatmul.mubr.f32.gmra.mxu0 %v7089
  %v9730 = vpop.f32.mrf.mxu0
  %v9731 = vadd.f32 %v9570, %v9730
  %v9732 = vpop.f32.mrf.mxu0
  %v9733 = vadd.f32 %v9572, %v9732
  %9734 = vmatprep.mubr.f32.mxu0 0.0
  %9735 = vmatmul.mubr.f32.gmra.mxu0 %v7098
  %v9736 = vpop.f32.mrf.mxu0
  %v9737 = vadd.f32 %v9576, %v9736
  %v9738 = vpop.f32.mrf.mxu0
  %v9739 = vadd.f32 %v9578, %v9738
  %9740 = vmatprep.mubr.f32.mxu0 0.0
  %9741 = vmatmul.mubr.f32.gmra.mxu0 %v7107
  %v9742 = vpop.f32.mrf.mxu0
  %v9743 = vadd.f32 %v9582, %v9742
  %v9744 = vpop.f32.mrf.mxu0
  %v9745 = vadd.f32 %v9584, %v9744
  %9746 = vmatprep.mubr.f32.mxu0 0.0
  %9747 = vmatmul.mubr.f32.gmra.mxu0 %v7116
  %v9748 = vpop.f32.mrf.mxu0
  %v9749 = vadd.f32 %v9588, %v9748
  %v9750 = vpop.f32.mrf.mxu0
  %v9751 = vadd.f32 %v9590, %v9750
  %9752 = vmatprep.mubr.f32.mxu0 0.0
  %9753 = vmatmul.mubr.f32.gmra.mxu0 %v7125
  %v9754 = vpop.f32.mrf.mxu0
  %v9755 = vadd.f32 %v9594, %v9754
  %v9756 = vpop.f32.mrf.mxu0
  %v9757 = vadd.f32 %v9596, %v9756
  %9758 = vmatprep.mubr.f32.mxu0 0.0
  %9759 = vmatmul.mubr.f32.gmra.mxu0 %v7134
  %v9760 = vpop.f32.mrf.mxu0
  %v9761 = vadd.f32 %v9600, %v9760
  %v9762 = vpop.f32.mrf.mxu0
  %v9763 = vadd.f32 %v9602, %v9762
  %9764 = vmatprep.mubr.f32.mxu0 0.0
  %9765 = vmatmul.mubr.f32.gmra.mxu0 %v7143
  %v9766 = vpop.f32.mrf.mxu0
  %v9767 = vadd.f32 %v9606, %v9766
  %v9768 = vpop.f32.mrf.mxu0
  %v9769 = vadd.f32 %v9608, %v9768
  %9770 = vmatprep.mubr.f32.mxu0 0.0
  %9771 = vmatmul.mubr.f32.gmra.mxu0 %v7152
  %v9772 = vpop.f32.mrf.mxu0
  %v9773 = vadd.f32 %v9612, %v9772
  %v9774 = vpop.f32.mrf.mxu0
  %v9775 = vadd.f32 %v9614, %v9774
  %9776 = vmatprep.mubr.f32.mxu0 0.0
  %9777 = vmatmul.mubr.f32.gmra.mxu0 %v7161
  %v9778 = vpop.f32.mrf.mxu0
  %v9779 = vadd.f32 %v9618, %v9778
  %v9780 = vpop.f32.mrf.mxu0
  %v9781 = vadd.f32 %v9620, %v9780
  %9782 = vmatprep.mubr.f32.mxu0 0.0
  %9783 = vmatmul.mubr.f32.gmra.mxu0 %v7170
  %v9784 = vpop.f32.mrf.mxu0
  %v9785 = vadd.f32 %v9624, %v9784
  %v9786 = vpop.f32.mrf.mxu0
  %v9787 = vadd.f32 %v9626, %v9786
  %9788 = vdwg.mxu0
  %9789 = vmatprep.subr.mxu0 %v7281
  %9790 = vmatpush1.msra.mxu0 %v7280
  %9791 = vmatprep.subr.mxu0 %v7274
  %9792 = vmatpush1.msra.mxu0 %v7273
  %9793 = vmatprep.subr.mxu0 %v7267
  %9794 = vmatpush1.msra.mxu0 %v7266
  %9795 = vmatprep.subr.mxu0 %v7260
  %9796 = vmatpush1.msra.mxu0 %v7259
  %9797 = vmatprep.subr.mxu0 %v7253
  %9798 = vmatpush1.msra.mxu0 %v7252
  %9799 = vmatprep.subr.mxu0 %v7246
  %9800 = vmatpush1.msra.mxu0 %v7245
  %9801 = vmatprep.subr.mxu0 %v7239
  %9802 = vmatpush1.msra.mxu0 %v7238
  %9803 = vmatprep.subr.mxu0 %v7232
  %9804 = vmatpush1.msra.mxu0 %v7231
  %9805 = vmatprep.subr.mxu0 %v7225
  %9806 = vmatpush1.msra.mxu0 %v7224
  %9807 = vmatprep.subr.mxu0 %v7218
  %9808 = vmatpush1.msra.mxu0 %v7217
  %9809 = vmatprep.subr.mxu0 %v7211
  %9810 = vmatpush1.msra.mxu0 %v7210
  %9811 = vmatprep.subr.mxu0 %v7204
  %9812 = vmatpush1.msra.mxu0 %v7203
  %9813 = vmatprep.subr.mxu0 %v7197
  %9814 = vmatpush1.msra.mxu0 %v7196
  %9815 = vmatprep.subr.mxu0 %v7190
  %9816 = vmatpush1.msra.mxu0 %v7189
  %9817 = vmatprep.subr.mxu0 %v7183
  %9818 = vmatpush1.msra.mxu0 %v7182
  %9819 = vmatprep.subr.mxu0 %v7176
  %9820 = vmatpush1.msra.mxu0 %v7175
  %9821 = vmatprep.subr.mxu0 %v7393
  %9822 = vmatpush2.msra.mxu0 %v7392
  %9823 = vmatprep.subr.mxu0 %v7386
  %9824 = vmatpush2.msra.mxu0 %v7385
  %9825 = vmatprep.subr.mxu0 %v7379
  %9826 = vmatpush2.msra.mxu0 %v7378
  %9827 = vmatprep.subr.mxu0 %v7372
  %9828 = vmatpush2.msra.mxu0 %v7371
  %9829 = vmatprep.subr.mxu0 %v7365
  %9830 = vmatpush2.msra.mxu0 %v7364
  %9831 = vmatprep.subr.mxu0 %v7358
  %9832 = vmatpush2.msra.mxu0 %v7357
  %9833 = vmatprep.subr.mxu0 %v7351
  %9834 = vmatpush2.msra.mxu0 %v7350
  %9835 = vmatprep.subr.mxu0 %v7344
  %9836 = vmatpush2.msra.mxu0 %v7343
  %9837 = vmatprep.subr.mxu0 %v7337
  %9838 = vmatpush2.msra.mxu0 %v7336
  %9839 = vmatprep.subr.mxu0 %v7330
  %9840 = vmatpush2.msra.mxu0 %v7329
  %9841 = vmatprep.subr.mxu0 %v7323
  %9842 = vmatpush2.msra.mxu0 %v7322
  %9843 = vmatprep.subr.mxu0 %v7316
  %9844 = vmatpush2.msra.mxu0 %v7315
  %9845 = vmatprep.subr.mxu0 %v7309
  %9846 = vmatpush2.msra.mxu0 %v7308
  %9847 = vmatprep.subr.mxu0 %v7302
  %9848 = vmatpush2.msra.mxu0 %v7301
  %9849 = vmatprep.subr.mxu0 %v7295
  %9850 = vmatpush2.msra.mxu0 %v7294
  %9851 = vmatprep.subr.mxu0 %v7288
  %9852 = vmatpush2.msra.mxu0 %v7287
  %9853 = vmatprep.mubr.f32.mxu0 %v7028
  %9854 = vmatmul.mubr.f32.gmra.mxu0 %v7027
  %v9855 = vpop.f32.mrf.mxu0
  %v9856 = vadd.f32 0.0, %v9855
  %v9857 = vpop.f32.mrf.mxu0
  %v9858 = vadd.f32 0.0, %v9857
  %9859 = vmatprep.mubr.f32.mxu0 %v7037
  %9860 = vmatmul.mubr.f32.gmra.mxu0 %v7036
  %v9861 = vpop.f32.mrf.mxu0
  %v9862 = vadd.f32 0.0, %v9861
  %v9863 = vpop.f32.mrf.mxu0
  %v9864 = vadd.f32 0.0, %v9863
  %9865 = vmatprep.mubr.f32.mxu0 %v7046
  %9866 = vmatmul.mubr.f32.gmra.mxu0 %v7045
  %v9867 = vpop.f32.mrf.mxu0
  %v9868 = vadd.f32 0.0, %v9867
  %v9869 = vpop.f32.mrf.mxu0
  %v9870 = vadd.f32 0.0, %v9869
  %9871 = vmatprep.mubr.f32.mxu0 %v7055
  %9872 = vmatmul.mubr.f32.gmra.mxu0 %v7054
  %v9873 = vpop.f32.mrf.mxu0
  %v9874 = vadd.f32 0.0, %v9873
  %v9875 = vpop.f32.mrf.mxu0
  %v9876 = vadd.f32 0.0, %v9875
  %9877 = vmatprep.mubr.f32.mxu0 %v7064
  %9878 = vmatmul.mubr.f32.gmra.mxu0 %v7063
  %v9879 = vpop.f32.mrf.mxu0
  %v9880 = vadd.f32 0.0, %v9879
  %v9881 = vpop.f32.mrf.mxu0
  %v9882 = vadd.f32 0.0, %v9881
  %9883 = vmatprep.mubr.f32.mxu0 %v7073
  %9884 = vmatmul.mubr.f32.gmra.mxu0 %v7072
  %v9885 = vpop.f32.mrf.mxu0
  %v9886 = vadd.f32 0.0, %v9885
  %v9887 = vpop.f32.mrf.mxu0
  %v9888 = vadd.f32 0.0, %v9887
  %9889 = vmatprep.mubr.f32.mxu0 %v7082
  %9890 = vmatmul.mubr.f32.gmra.mxu0 %v7081
  %v9891 = vpop.f32.mrf.mxu0
  %v9892 = vadd.f32 0.0, %v9891
  %v9893 = vpop.f32.mrf.mxu0
  %v9894 = vadd.f32 0.0, %v9893
  %9895 = vmatprep.mubr.f32.mxu0 %v7091
  %9896 = vmatmul.mubr.f32.gmra.mxu0 %v7090
  %v9897 = vpop.f32.mrf.mxu0
  %v9898 = vadd.f32 0.0, %v9897
  %v9899 = vpop.f32.mrf.mxu0
  %v9900 = vadd.f32 0.0, %v9899
  %9901 = vmatprep.mubr.f32.mxu0 %v7100
  %9902 = vmatmul.mubr.f32.gmra.mxu0 %v7099
  %v9903 = vpop.f32.mrf.mxu0
  %v9904 = vadd.f32 0.0, %v9903
  %v9905 = vpop.f32.mrf.mxu0
  %v9906 = vadd.f32 0.0, %v9905
  %9907 = vmatprep.mubr.f32.mxu0 %v7109
  %9908 = vmatmul.mubr.f32.gmra.mxu0 %v7108
  %v9909 = vpop.f32.mrf.mxu0
  %v9910 = vadd.f32 0.0, %v9909
  %v9911 = vpop.f32.mrf.mxu0
  %v9912 = vadd.f32 0.0, %v9911
  %9913 = vmatprep.mubr.f32.mxu0 %v7118
  %9914 = vmatmul.mubr.f32.gmra.mxu0 %v7117
  %v9915 = vpop.f32.mrf.mxu0
  %v9916 = vadd.f32 0.0, %v9915
  %v9917 = vpop.f32.mrf.mxu0
  %v9918 = vadd.f32 0.0, %v9917
  %9919 = vmatprep.mubr.f32.mxu0 %v7127
  %9920 = vmatmul.mubr.f32.gmra.mxu0 %v7126
  %v9921 = vpop.f32.mrf.mxu0
  %v9922 = vadd.f32 0.0, %v9921
  %v9923 = vpop.f32.mrf.mxu0
  %v9924 = vadd.f32 0.0, %v9923
  %9925 = vmatprep.mubr.f32.mxu0 %v7136
  %9926 = vmatmul.mubr.f32.gmra.mxu0 %v7135
  %v9927 = vpop.f32.mrf.mxu0
  %v9928 = vadd.f32 0.0, %v9927
  %v9929 = vpop.f32.mrf.mxu0
  %v9930 = vadd.f32 0.0, %v9929
  %9931 = vmatprep.mubr.f32.mxu0 %v7145
  %9932 = vmatmul.mubr.f32.gmra.mxu0 %v7144
  %v9933 = vpop.f32.mrf.mxu0
  %v9934 = vadd.f32 0.0, %v9933
  %v9935 = vpop.f32.mrf.mxu0
  %v9936 = vadd.f32 0.0, %v9935
  %9937 = vmatprep.mubr.f32.mxu0 %v7154
  %9938 = vmatmul.mubr.f32.gmra.mxu0 %v7153
  %v9939 = vpop.f32.mrf.mxu0
  %v9940 = vadd.f32 0.0, %v9939
  %v9941 = vpop.f32.mrf.mxu0
  %v9942 = vadd.f32 0.0, %v9941
  %9943 = vmatprep.mubr.f32.mxu0 %v7163
  %9944 = vmatmul.mubr.f32.gmra.mxu0 %v7162
  %v9945 = vpop.f32.mrf.mxu0
  %v9946 = vadd.f32 0.0, %v9945
  %v9947 = vpop.f32.mrf.mxu0
  %v9948 = vadd.f32 0.0, %v9947
  %9949 = vdwg.mxu0
  %9950 = vmatprep.subr.mxu0 %v7505
  %9951 = vmatpush1.msra.mxu0 %v7504
  %9952 = vmatprep.subr.mxu0 %v7498
  %9953 = vmatpush1.msra.mxu0 %v7497
  %9954 = vmatprep.subr.mxu0 %v7491
  %9955 = vmatpush1.msra.mxu0 %v7490
  %9956 = vmatprep.subr.mxu0 %v7484
  %9957 = vmatpush1.msra.mxu0 %v7483
  %9958 = vmatprep.subr.mxu0 %v7477
  %9959 = vmatpush1.msra.mxu0 %v7476
  %9960 = vmatprep.subr.mxu0 %v7470
  %9961 = vmatpush1.msra.mxu0 %v7469
  %9962 = vmatprep.subr.mxu0 %v7463
  %9963 = vmatpush1.msra.mxu0 %v7462
  %9964 = vmatprep.subr.mxu0 %v7456
  %9965 = vmatpush1.msra.mxu0 %v7455
  %9966 = vmatprep.subr.mxu0 %v7449
  %9967 = vmatpush1.msra.mxu0 %v7448
  %9968 = vmatprep.subr.mxu0 %v7442
  %9969 = vmatpush1.msra.mxu0 %v7441
  %9970 = vmatprep.subr.mxu0 %v7435
  %9971 = vmatpush1.msra.mxu0 %v7434
  %9972 = vmatprep.subr.mxu0 %v7428
  %9973 = vmatpush1.msra.mxu0 %v7427
  %9974 = vmatprep.subr.mxu0 %v7421
  %9975 = vmatpush1.msra.mxu0 %v7420
  %9976 = vmatprep.subr.mxu0 %v7414
  %9977 = vmatpush1.msra.mxu0 %v7413
  %9978 = vmatprep.subr.mxu0 %v7407
  %9979 = vmatpush1.msra.mxu0 %v7406
  %9980 = vmatprep.subr.mxu0 %v7400
  %9981 = vmatpush1.msra.mxu0 %v7399
  %9982 = vmatprep.subr.mxu0 %v7617
  %9983 = vmatpush2.msra.mxu0 %v7616
  %9984 = vmatprep.subr.mxu0 %v7610
  %9985 = vmatpush2.msra.mxu0 %v7609
  %9986 = vmatprep.subr.mxu0 %v7603
  %9987 = vmatpush2.msra.mxu0 %v7602
  %9988 = vmatprep.subr.mxu0 %v7596
  %9989 = vmatpush2.msra.mxu0 %v7595
  %9990 = vmatprep.subr.mxu0 %v7589
  %9991 = vmatpush2.msra.mxu0 %v7588
  %9992 = vmatprep.subr.mxu0 %v7582
  %9993 = vmatpush2.msra.mxu0 %v7581
  %9994 = vmatprep.subr.mxu0 %v7575
  %9995 = vmatpush2.msra.mxu0 %v7574
  %9996 = vmatprep.subr.mxu0 %v7568
  %9997 = vmatpush2.msra.mxu0 %v7567
  %9998 = vmatprep.subr.mxu0 %v7561
  %9999 = vmatpush2.msra.mxu0 %v7560
  %10000 = vmatprep.subr.mxu0 %v7554
  %10001 = vmatpush2.msra.mxu0 %v7553
  %10002 = vmatprep.subr.mxu0 %v7547
  %10003 = vmatpush2.msra.mxu0 %v7546
  %10004 = vmatprep.subr.mxu0 %v7540
  %10005 = vmatpush2.msra.mxu0 %v7539
  %10006 = vmatprep.subr.mxu0 %v7533
  %10007 = vmatpush2.msra.mxu0 %v7532
  %10008 = vmatprep.subr.mxu0 %v7526
  %10009 = vmatpush2.msra.mxu0 %v7525
  %10010 = vmatprep.subr.mxu0 %v7519
  %10011 = vmatpush2.msra.mxu0 %v7518
  %10012 = vmatprep.subr.mxu0 %v7512
  %10013 = vmatpush2.msra.mxu0 %v7511
  %10014 = vmatprep.mubr.f32.mxu0 %v7030
  %10015 = vmatmul.mubr.f32.gmra.mxu0 %v7029
  %v10016 = vpop.f32.mrf.mxu0
  %v10017 = vadd.f32 %v9856, %v10016
  %v10018 = vpop.f32.mrf.mxu0
  %v10019 = vadd.f32 %v9858, %v10018
  %10020 = vmatprep.mubr.f32.mxu0 %v7039
  %10021 = vmatmul.mubr.f32.gmra.mxu0 %v7038
  %v10022 = vpop.f32.mrf.mxu0
  %v10023 = vadd.f32 %v9862, %v10022
  %v10024 = vpop.f32.mrf.mxu0
  %v10025 = vadd.f32 %v9864, %v10024
  %10026 = vmatprep.mubr.f32.mxu0 %v7048
  %10027 = vmatmul.mubr.f32.gmra.mxu0 %v7047
  %v10028 = vpop.f32.mrf.mxu0
  %v10029 = vadd.f32 %v9868, %v10028
  %v10030 = vpop.f32.mrf.mxu0
  %v10031 = vadd.f32 %v9870, %v10030
  %10032 = vmatprep.mubr.f32.mxu0 %v7057
  %10033 = vmatmul.mubr.f32.gmra.mxu0 %v7056
  %v10034 = vpop.f32.mrf.mxu0
  %v10035 = vadd.f32 %v9874, %v10034
  %v10036 = vpop.f32.mrf.mxu0
  %v10037 = vadd.f32 %v9876, %v10036
  %10038 = vmatprep.mubr.f32.mxu0 %v7066
  %10039 = vmatmul.mubr.f32.gmra.mxu0 %v7065
  %v10040 = vpop.f32.mrf.mxu0
  %v10041 = vadd.f32 %v9880, %v10040
  %v10042 = vpop.f32.mrf.mxu0
  %v10043 = vadd.f32 %v9882, %v10042
  %10044 = vmatprep.mubr.f32.mxu0 %v7075
  %10045 = vmatmul.mubr.f32.gmra.mxu0 %v7074
  %v10046 = vpop.f32.mrf.mxu0
  %v10047 = vadd.f32 %v9886, %v10046
  %v10048 = vpop.f32.mrf.mxu0
  %v10049 = vadd.f32 %v9888, %v10048
  %10050 = vmatprep.mubr.f32.mxu0 %v7084
  %10051 = vmatmul.mubr.f32.gmra.mxu0 %v7083
  %v10052 = vpop.f32.mrf.mxu0
  %v10053 = vadd.f32 %v9892, %v10052
  %v10054 = vpop.f32.mrf.mxu0
  %v10055 = vadd.f32 %v9894, %v10054
  %10056 = vmatprep.mubr.f32.mxu0 %v7093
  %10057 = vmatmul.mubr.f32.gmra.mxu0 %v7092
  %v10058 = vpop.f32.mrf.mxu0
  %v10059 = vadd.f32 %v9898, %v10058
  %v10060 = vpop.f32.mrf.mxu0
  %v10061 = vadd.f32 %v9900, %v10060
  %10062 = vmatprep.mubr.f32.mxu0 %v7102
  %10063 = vmatmul.mubr.f32.gmra.mxu0 %v7101
  %v10064 = vpop.f32.mrf.mxu0
  %v10065 = vadd.f32 %v9904, %v10064
  %v10066 = vpop.f32.mrf.mxu0
  %v10067 = vadd.f32 %v9906, %v10066
  %10068 = vmatprep.mubr.f32.mxu0 %v7111
  %10069 = vmatmul.mubr.f32.gmra.mxu0 %v7110
  %v10070 = vpop.f32.mrf.mxu0
  %v10071 = vadd.f32 %v9910, %v10070
  %v10072 = vpop.f32.mrf.mxu0
  %v10073 = vadd.f32 %v9912, %v10072
  %10074 = vmatprep.mubr.f32.mxu0 %v7120
  %10075 = vmatmul.mubr.f32.gmra.mxu0 %v7119
  %v10076 = vpop.f32.mrf.mxu0
  %v10077 = vadd.f32 %v9916, %v10076
  %v10078 = vpop.f32.mrf.mxu0
  %v10079 = vadd.f32 %v9918, %v10078
  %10080 = vmatprep.mubr.f32.mxu0 %v7129
  %10081 = vmatmul.mubr.f32.gmra.mxu0 %v7128
  %v10082 = vpop.f32.mrf.mxu0
  %v10083 = vadd.f32 %v9922, %v10082
  %v10084 = vpop.f32.mrf.mxu0
  %v10085 = vadd.f32 %v9924, %v10084
  %10086 = vmatprep.mubr.f32.mxu0 %v7138
  %10087 = vmatmul.mubr.f32.gmra.mxu0 %v7137
  %v10088 = vpop.f32.mrf.mxu0
  %v10089 = vadd.f32 %v9928, %v10088
  %v10090 = vpop.f32.mrf.mxu0
  %v10091 = vadd.f32 %v9930, %v10090
  %10092 = vmatprep.mubr.f32.mxu0 %v7147
  %10093 = vmatmul.mubr.f32.gmra.mxu0 %v7146
  %v10094 = vpop.f32.mrf.mxu0
  %v10095 = vadd.f32 %v9934, %v10094
  %v10096 = vpop.f32.mrf.mxu0
  %v10097 = vadd.f32 %v9936, %v10096
  %10098 = vmatprep.mubr.f32.mxu0 %v7156
  %10099 = vmatmul.mubr.f32.gmra.mxu0 %v7155
  %v10100 = vpop.f32.mrf.mxu0
  %v10101 = vadd.f32 %v9940, %v10100
  %v10102 = vpop.f32.mrf.mxu0
  %v10103 = vadd.f32 %v9942, %v10102
  %10104 = vmatprep.mubr.f32.mxu0 %v7165
  %10105 = vmatmul.mubr.f32.gmra.mxu0 %v7164
  %v10106 = vpop.f32.mrf.mxu0
  %v10107 = vadd.f32 %v9946, %v10106
  %v10108 = vpop.f32.mrf.mxu0
  %v10109 = vadd.f32 %v9948, %v10108
  %10110 = vdwg.mxu0
  %10111 = vmatprep.subr.mxu0 %v7729
  %10112 = vmatpush1.msra.mxu0 %v7728
  %10113 = vmatprep.subr.mxu0 %v7722
  %10114 = vmatpush1.msra.mxu0 %v7721
  %10115 = vmatprep.subr.mxu0 %v7715
  %10116 = vmatpush1.msra.mxu0 %v7714
  %10117 = vmatprep.subr.mxu0 %v7708
  %10118 = vmatpush1.msra.mxu0 %v7707
  %10119 = vmatprep.subr.mxu0 %v7701
  %10120 = vmatpush1.msra.mxu0 %v7700
  %10121 = vmatprep.subr.mxu0 %v7694
  %10122 = vmatpush1.msra.mxu0 %v7693
  %10123 = vmatprep.subr.mxu0 %v7687
  %10124 = vmatpush1.msra.mxu0 %v7686
  %10125 = vmatprep.subr.mxu0 %v7680
  %10126 = vmatpush1.msra.mxu0 %v7679
  %10127 = vmatprep.subr.mxu0 %v7673
  %10128 = vmatpush1.msra.mxu0 %v7672
  %10129 = vmatprep.subr.mxu0 %v7666
  %10130 = vmatpush1.msra.mxu0 %v7665
  %10131 = vmatprep.subr.mxu0 %v7659
  %10132 = vmatpush1.msra.mxu0 %v7658
  %10133 = vmatprep.subr.mxu0 %v7652
  %10134 = vmatpush1.msra.mxu0 %v7651
  %10135 = vmatprep.subr.mxu0 %v7645
  %10136 = vmatpush1.msra.mxu0 %v7644
  %10137 = vmatprep.subr.mxu0 %v7638
  %10138 = vmatpush1.msra.mxu0 %v7637
  %10139 = vmatprep.subr.mxu0 %v7631
  %10140 = vmatpush1.msra.mxu0 %v7630
  %10141 = vmatprep.subr.mxu0 %v7624
  %10142 = vmatpush1.msra.mxu0 %v7623
  %10143 = vmatprep.subr.mxu0 %v7841
  %10144 = vmatpush2.msra.mxu0 %v7840
  %10145 = vmatprep.subr.mxu0 %v7834
  %10146 = vmatpush2.msra.mxu0 %v7833
  %10147 = vmatprep.subr.mxu0 %v7827
  %10148 = vmatpush2.msra.mxu0 %v7826
  %10149 = vmatprep.subr.mxu0 %v7820
  %10150 = vmatpush2.msra.mxu0 %v7819
  %10151 = vmatprep.subr.mxu0 %v7813
  %10152 = vmatpush2.msra.mxu0 %v7812
  %10153 = vmatprep.subr.mxu0 %v7806
  %10154 = vmatpush2.msra.mxu0 %v7805
  %10155 = vmatprep.subr.mxu0 %v7799
  %10156 = vmatpush2.msra.mxu0 %v7798
  %10157 = vmatprep.subr.mxu0 %v7792
  %10158 = vmatpush2.msra.mxu0 %v7791
  %10159 = vmatprep.subr.mxu0 %v7785
  %10160 = vmatpush2.msra.mxu0 %v7784
  %10161 = vmatprep.subr.mxu0 %v7778
  %10162 = vmatpush2.msra.mxu0 %v7777
  %10163 = vmatprep.subr.mxu0 %v7771
  %10164 = vmatpush2.msra.mxu0 %v7770
  %10165 = vmatprep.subr.mxu0 %v7764
  %10166 = vmatpush2.msra.mxu0 %v7763
  %10167 = vmatprep.subr.mxu0 %v7757
  %10168 = vmatpush2.msra.mxu0 %v7756
  %10169 = vmatprep.subr.mxu0 %v7750
  %10170 = vmatpush2.msra.mxu0 %v7749
  %10171 = vmatprep.subr.mxu0 %v7743
  %10172 = vmatpush2.msra.mxu0 %v7742
  %10173 = vmatprep.subr.mxu0 %v7736
  %10174 = vmatpush2.msra.mxu0 %v7735
  %10175 = vmatprep.mubr.f32.mxu0 %v7032
  %10176 = vmatmul.mubr.f32.gmra.mxu0 %v7031
  %v10177 = vpop.f32.mrf.mxu0
  %v10178 = vadd.f32 %v10017, %v10177
  %v10179 = vpop.f32.mrf.mxu0
  %v10180 = vadd.f32 %v10019, %v10179
  %10181 = vmatprep.mubr.f32.mxu0 %v7041
  %10182 = vmatmul.mubr.f32.gmra.mxu0 %v7040
  %v10183 = vpop.f32.mrf.mxu0
  %v10184 = vadd.f32 %v10023, %v10183
  %v10185 = vpop.f32.mrf.mxu0
  %v10186 = vadd.f32 %v10025, %v10185
  %10187 = vmatprep.mubr.f32.mxu0 %v7050
  %10188 = vmatmul.mubr.f32.gmra.mxu0 %v7049
  %v10189 = vpop.f32.mrf.mxu0
  %v10190 = vadd.f32 %v10029, %v10189
  %v10191 = vpop.f32.mrf.mxu0
  %v10192 = vadd.f32 %v10031, %v10191
  %10193 = vmatprep.mubr.f32.mxu0 %v7059
  %10194 = vmatmul.mubr.f32.gmra.mxu0 %v7058
  %v10195 = vpop.f32.mrf.mxu0
  %v10196 = vadd.f32 %v10035, %v10195
  %v10197 = vpop.f32.mrf.mxu0
  %v10198 = vadd.f32 %v10037, %v10197
  %10199 = vmatprep.mubr.f32.mxu0 %v7068
  %10200 = vmatmul.mubr.f32.gmra.mxu0 %v7067
  %v10201 = vpop.f32.mrf.mxu0
  %v10202 = vadd.f32 %v10041, %v10201
  %v10203 = vpop.f32.mrf.mxu0
  %v10204 = vadd.f32 %v10043, %v10203
  %10205 = vmatprep.mubr.f32.mxu0 %v7077
  %10206 = vmatmul.mubr.f32.gmra.mxu0 %v7076
  %v10207 = vpop.f32.mrf.mxu0
  %v10208 = vadd.f32 %v10047, %v10207
  %v10209 = vpop.f32.mrf.mxu0
  %v10210 = vadd.f32 %v10049, %v10209
  %10211 = vmatprep.mubr.f32.mxu0 %v7086
  %10212 = vmatmul.mubr.f32.gmra.mxu0 %v7085
  %v10213 = vpop.f32.mrf.mxu0
  %v10214 = vadd.f32 %v10053, %v10213
  %v10215 = vpop.f32.mrf.mxu0
  %v10216 = vadd.f32 %v10055, %v10215
  %10217 = vmatprep.mubr.f32.mxu0 %v7095
  %10218 = vmatmul.mubr.f32.gmra.mxu0 %v7094
  %v10219 = vpop.f32.mrf.mxu0
  %v10220 = vadd.f32 %v10059, %v10219
  %v10221 = vpop.f32.mrf.mxu0
  %v10222 = vadd.f32 %v10061, %v10221
  %10223 = vmatprep.mubr.f32.mxu0 %v7104
  %10224 = vmatmul.mubr.f32.gmra.mxu0 %v7103
  %v10225 = vpop.f32.mrf.mxu0
  %v10226 = vadd.f32 %v10065, %v10225
  %v10227 = vpop.f32.mrf.mxu0
  %v10228 = vadd.f32 %v10067, %v10227
  %10229 = vmatprep.mubr.f32.mxu0 %v7113
  %10230 = vmatmul.mubr.f32.gmra.mxu0 %v7112
  %v10231 = vpop.f32.mrf.mxu0
  %v10232 = vadd.f32 %v10071, %v10231
  %v10233 = vpop.f32.mrf.mxu0
  %v10234 = vadd.f32 %v10073, %v10233
  %10235 = vmatprep.mubr.f32.mxu0 %v7122
  %10236 = vmatmul.mubr.f32.gmra.mxu0 %v7121
  %v10237 = vpop.f32.mrf.mxu0
  %v10238 = vadd.f32 %v10077, %v10237
  %v10239 = vpop.f32.mrf.mxu0
  %v10240 = vadd.f32 %v10079, %v10239
  %10241 = vmatprep.mubr.f32.mxu0 %v7131
  %10242 = vmatmul.mubr.f32.gmra.mxu0 %v7130
  %v10243 = vpop.f32.mrf.mxu0
  %v10244 = vadd.f32 %v10083, %v10243
  %v10245 = vpop.f32.mrf.mxu0
  %v10246 = vadd.f32 %v10085, %v10245
  %10247 = vmatprep.mubr.f32.mxu0 %v7140
  %10248 = vmatmul.mubr.f32.gmra.mxu0 %v7139
  %v10249 = vpop.f32.mrf.mxu0
  %v10250 = vadd.f32 %v10089, %v10249
  %v10251 = vpop.f32.mrf.mxu0
  %v10252 = vadd.f32 %v10091, %v10251
  %10253 = vmatprep.mubr.f32.mxu0 %v7149
  %10254 = vmatmul.mubr.f32.gmra.mxu0 %v7148
  %v10255 = vpop.f32.mrf.mxu0
  %v10256 = vadd.f32 %v10095, %v10255
  %v10257 = vpop.f32.mrf.mxu0
  %v10258 = vadd.f32 %v10097, %v10257
  %10259 = vmatprep.mubr.f32.mxu0 %v7158
  %10260 = vmatmul.mubr.f32.gmra.mxu0 %v7157
  %v10261 = vpop.f32.mrf.mxu0
  %v10262 = vadd.f32 %v10101, %v10261
  %v10263 = vpop.f32.mrf.mxu0
  %v10264 = vadd.f32 %v10103, %v10263
  %10265 = vmatprep.mubr.f32.mxu0 %v7167
  %10266 = vmatmul.mubr.f32.gmra.mxu0 %v7166
  %v10267 = vpop.f32.mrf.mxu0
  %v10268 = vadd.f32 %v10107, %v10267
  %v10269 = vpop.f32.mrf.mxu0
  %v10270 = vadd.f32 %v10109, %v10269
  %10271 = vdwg.mxu0
  %10272 = vmatprep.subr.mxu0 %v7953
  %10273 = vmatpush1.msra.mxu0 %v7952
  %10274 = vmatprep.subr.mxu0 %v7946
  %10275 = vmatpush1.msra.mxu0 %v7945
  %10276 = vmatprep.subr.mxu0 %v7939
  %10277 = vmatpush1.msra.mxu0 %v7938
  %10278 = vmatprep.subr.mxu0 %v7932
  %10279 = vmatpush1.msra.mxu0 %v7931
  %10280 = vmatprep.subr.mxu0 %v7925
  %10281 = vmatpush1.msra.mxu0 %v7924
  %10282 = vmatprep.subr.mxu0 %v7918
  %10283 = vmatpush1.msra.mxu0 %v7917
  %10284 = vmatprep.subr.mxu0 %v7911
  %10285 = vmatpush1.msra.mxu0 %v7910
  %10286 = vmatprep.subr.mxu0 %v7904
  %10287 = vmatpush1.msra.mxu0 %v7903
  %10288 = vmatprep.subr.mxu0 %v7897
  %10289 = vmatpush1.msra.mxu0 %v7896
  %10290 = vmatprep.subr.mxu0 %v7890
  %10291 = vmatpush1.msra.mxu0 %v7889
  %10292 = vmatprep.subr.mxu0 %v7883
  %10293 = vmatpush1.msra.mxu0 %v7882
  %10294 = vmatprep.subr.mxu0 %v7876
  %10295 = vmatpush1.msra.mxu0 %v7875
  %10296 = vmatprep.subr.mxu0 %v7869
  %10297 = vmatpush1.msra.mxu0 %v7868
  %10298 = vmatprep.subr.mxu0 %v7862
  %10299 = vmatpush1.msra.mxu0 %v7861
  %10300 = vmatprep.subr.mxu0 %v7855
  %10301 = vmatpush1.msra.mxu0 %v7854
  %10302 = vmatprep.subr.mxu0 %v7848
  %10303 = vmatpush1.msra.mxu0 %v7847
  %10304 = vmatprep.subr.mxu0 %v8065
  %10305 = vmatpush2.msra.mxu0 %v8064
  %10306 = vmatprep.subr.mxu0 %v8058
  %10307 = vmatpush2.msra.mxu0 %v8057
  %10308 = vmatprep.subr.mxu0 %v8051
  %10309 = vmatpush2.msra.mxu0 %v8050
  %10310 = vmatprep.subr.mxu0 %v8044
  %10311 = vmatpush2.msra.mxu0 %v8043
  %10312 = vmatprep.subr.mxu0 %v8037
  %10313 = vmatpush2.msra.mxu0 %v8036
  %10314 = vmatprep.subr.mxu0 %v8030
  %10315 = vmatpush2.msra.mxu0 %v8029
  %10316 = vmatprep.subr.mxu0 %v8023
  %10317 = vmatpush2.msra.mxu0 %v8022
  %10318 = vmatprep.subr.mxu0 %v8016
  %10319 = vmatpush2.msra.mxu0 %v8015
  %10320 = vmatprep.subr.mxu0 %v8009
  %10321 = vmatpush2.msra.mxu0 %v8008
  %10322 = vmatprep.subr.mxu0 %v8002
  %10323 = vmatpush2.msra.mxu0 %v8001
  %10324 = vmatprep.subr.mxu0 %v7995
  %10325 = vmatpush2.msra.mxu0 %v7994
  %10326 = vmatprep.subr.mxu0 %v7988
  %10327 = vmatpush2.msra.mxu0 %v7987
  %10328 = vmatprep.subr.mxu0 %v7981
  %10329 = vmatpush2.msra.mxu0 %v7980
  %10330 = vmatprep.subr.mxu0 %v7974
  %10331 = vmatpush2.msra.mxu0 %v7973
  %10332 = vmatprep.subr.mxu0 %v7967
  %10333 = vmatpush2.msra.mxu0 %v7966
  %10334 = vmatprep.subr.mxu0 %v7960
  %10335 = vmatpush2.msra.mxu0 %v7959
  %10336 = vmatprep.mubr.f32.mxu0 %v7034
  %10337 = vmatmul.mubr.f32.gmra.mxu0 %v7033
  %v10338 = vpop.f32.mrf.mxu0
  %v10339 = vadd.f32 %v10178, %v10338
  %v10340 = vpop.f32.mrf.mxu0
  %v10341 = vadd.f32 %v10180, %v10340
  %10342 = vmatprep.mubr.f32.mxu0 %v7043
  %10343 = vmatmul.mubr.f32.gmra.mxu0 %v7042
  %v10344 = vpop.f32.mrf.mxu0
  %v10345 = vadd.f32 %v10184, %v10344
  %v10346 = vpop.f32.mrf.mxu0
  %v10347 = vadd.f32 %v10186, %v10346
  %10348 = vmatprep.mubr.f32.mxu0 %v7052
  %10349 = vmatmul.mubr.f32.gmra.mxu0 %v7051
  %v10350 = vpop.f32.mrf.mxu0
  %v10351 = vadd.f32 %v10190, %v10350
  %v10352 = vpop.f32.mrf.mxu0
  %v10353 = vadd.f32 %v10192, %v10352
  %10354 = vmatprep.mubr.f32.mxu0 %v7061
  %10355 = vmatmul.mubr.f32.gmra.mxu0 %v7060
  %v10356 = vpop.f32.mrf.mxu0
  %v10357 = vadd.f32 %v10196, %v10356
  %v10358 = vpop.f32.mrf.mxu0
  %v10359 = vadd.f32 %v10198, %v10358
  %10360 = vmatprep.mubr.f32.mxu0 %v7070
  %10361 = vmatmul.mubr.f32.gmra.mxu0 %v7069
  %v10362 = vpop.f32.mrf.mxu0
  %v10363 = vadd.f32 %v10202, %v10362
  %v10364 = vpop.f32.mrf.mxu0
  %v10365 = vadd.f32 %v10204, %v10364
  %10366 = vmatprep.mubr.f32.mxu0 %v7079
  %10367 = vmatmul.mubr.f32.gmra.mxu0 %v7078
  %v10368 = vpop.f32.mrf.mxu0
  %v10369 = vadd.f32 %v10208, %v10368
  %v10370 = vpop.f32.mrf.mxu0
  %v10371 = vadd.f32 %v10210, %v10370
  %10372 = vmatprep.mubr.f32.mxu0 %v7088
  %10373 = vmatmul.mubr.f32.gmra.mxu0 %v7087
  %v10374 = vpop.f32.mrf.mxu0
  %v10375 = vadd.f32 %v10214, %v10374
  %v10376 = vpop.f32.mrf.mxu0
  %v10377 = vadd.f32 %v10216, %v10376
  %10378 = vmatprep.mubr.f32.mxu0 %v7097
  %10379 = vmatmul.mubr.f32.gmra.mxu0 %v7096
  %v10380 = vpop.f32.mrf.mxu0
  %v10381 = vadd.f32 %v10220, %v10380
  %v10382 = vpop.f32.mrf.mxu0
  %v10383 = vadd.f32 %v10222, %v10382
  %10384 = vmatprep.mubr.f32.mxu0 %v7106
  %10385 = vmatmul.mubr.f32.gmra.mxu0 %v7105
  %v10386 = vpop.f32.mrf.mxu0
  %v10387 = vadd.f32 %v10226, %v10386
  %v10388 = vpop.f32.mrf.mxu0
  %v10389 = vadd.f32 %v10228, %v10388
  %10390 = vmatprep.mubr.f32.mxu0 %v7115
  %10391 = vmatmul.mubr.f32.gmra.mxu0 %v7114
  %v10392 = vpop.f32.mrf.mxu0
  %v10393 = vadd.f32 %v10232, %v10392
  %v10394 = vpop.f32.mrf.mxu0
  %v10395 = vadd.f32 %v10234, %v10394
  %10396 = vmatprep.mubr.f32.mxu0 %v7124
  %10397 = vmatmul.mubr.f32.gmra.mxu0 %v7123
  %v10398 = vpop.f32.mrf.mxu0
  %v10399 = vadd.f32 %v10238, %v10398
  %v10400 = vpop.f32.mrf.mxu0
  %v10401 = vadd.f32 %v10240, %v10400
  %10402 = vmatprep.mubr.f32.mxu0 %v7133
  %10403 = vmatmul.mubr.f32.gmra.mxu0 %v7132
  %v10404 = vpop.f32.mrf.mxu0
  %v10405 = vadd.f32 %v10244, %v10404
  %v10406 = vpop.f32.mrf.mxu0
  %v10407 = vadd.f32 %v10246, %v10406
  %10408 = vmatprep.mubr.f32.mxu0 %v7142
  %10409 = vmatmul.mubr.f32.gmra.mxu0 %v7141
  %v10410 = vpop.f32.mrf.mxu0
  %v10411 = vadd.f32 %v10250, %v10410
  %v10412 = vpop.f32.mrf.mxu0
  %v10413 = vadd.f32 %v10252, %v10412
  %10414 = vmatprep.mubr.f32.mxu0 %v7151
  %10415 = vmatmul.mubr.f32.gmra.mxu0 %v7150
  %v10416 = vpop.f32.mrf.mxu0
  %v10417 = vadd.f32 %v10256, %v10416
  %v10418 = vpop.f32.mrf.mxu0
  %v10419 = vadd.f32 %v10258, %v10418
  %10420 = vmatprep.mubr.f32.mxu0 %v7160
  %10421 = vmatmul.mubr.f32.gmra.mxu0 %v7159
  %v10422 = vpop.f32.mrf.mxu0
  %v10423 = vadd.f32 %v10262, %v10422
  %v10424 = vpop.f32.mrf.mxu0
  %v10425 = vadd.f32 %v10264, %v10424
  %10426 = vmatprep.mubr.f32.mxu0 %v7169
  %10427 = vmatmul.mubr.f32.gmra.mxu0 %v7168
  %v10428 = vpop.f32.mrf.mxu0
  %v10429 = vadd.f32 %v10268, %v10428
  %v10430 = vpop.f32.mrf.mxu0
  %v10431 = vadd.f32 %v10270, %v10430
  %10432 = vdwg.mxu0
  %10433 = vmatprep.subr.mxu0 %v8177
  %10434 = vmatpush1.msra.mxu0 %v8176
  %10435 = vmatprep.subr.mxu0 %v8170
  %10436 = vmatpush1.msra.mxu0 %v8169
  %10437 = vmatprep.subr.mxu0 %v8163
  %10438 = vmatpush1.msra.mxu0 %v8162
  %10439 = vmatprep.subr.mxu0 %v8156
  %10440 = vmatpush1.msra.mxu0 %v8155
  %10441 = vmatprep.subr.mxu0 %v8149
  %10442 = vmatpush1.msra.mxu0 %v8148
  %10443 = vmatprep.subr.mxu0 %v8142
  %10444 = vmatpush1.msra.mxu0 %v8141
  %10445 = vmatprep.subr.mxu0 %v8135
  %10446 = vmatpush1.msra.mxu0 %v8134
  %10447 = vmatprep.subr.mxu0 %v8128
  %10448 = vmatpush1.msra.mxu0 %v8127
  %10449 = vmatprep.subr.mxu0 %v8121
  %10450 = vmatpush1.msra.mxu0 %v8120
  %10451 = vmatprep.subr.mxu0 %v8114
  %10452 = vmatpush1.msra.mxu0 %v8113
  %10453 = vmatprep.subr.mxu0 %v8107
  %10454 = vmatpush1.msra.mxu0 %v8106
  %10455 = vmatprep.subr.mxu0 %v8100
  %10456 = vmatpush1.msra.mxu0 %v8099
  %10457 = vmatprep.subr.mxu0 %v8093
  %10458 = vmatpush1.msra.mxu0 %v8092
  %10459 = vmatprep.subr.mxu0 %v8086
  %10460 = vmatpush1.msra.mxu0 %v8085
  %10461 = vmatprep.subr.mxu0 %v8079
  %10462 = vmatpush1.msra.mxu0 %v8078
  %10463 = vmatprep.subr.mxu0 %v8072
  %10464 = vmatpush1.msra.mxu0 %v8071
  %10465 = vmatprep.subr.mxu0 0.0
  %10466 = vmatpush2.msra.mxu0 0.0
  %10467 = vmatprep.subr.mxu0 0.0
  %10468 = vmatpush2.msra.mxu0 0.0
  %10469 = vmatprep.subr.mxu0 0.0
  %10470 = vmatpush2.msra.mxu0 0.0
  %10471 = vmatprep.subr.mxu0 0.0
  %10472 = vmatpush2.msra.mxu0 0.0
  %10473 = vmatprep.subr.mxu0 0.0
  %10474 = vmatpush2.msra.mxu0 0.0
  %10475 = vmatprep.subr.mxu0 0.0
  %10476 = vmatpush2.msra.mxu0 0.0
  %10477 = vmatprep.subr.mxu0 0.0
  %10478 = vmatpush2.msra.mxu0 0.0
  %10479 = vmatprep.subr.mxu0 0.0
  %10480 = vmatpush2.msra.mxu0 0.0
  %10481 = vmatprep.subr.mxu0 0.0
  %10482 = vmatpush2.msra.mxu0 0.0
  %10483 = vmatprep.subr.mxu0 0.0
  %10484 = vmatpush2.msra.mxu0 0.0
  %10485 = vmatprep.subr.mxu0 0.0
  %10486 = vmatpush2.msra.mxu0 0.0
  %10487 = vmatprep.subr.mxu0 0.0
  %10488 = vmatpush2.msra.mxu0 0.0
  %10489 = vmatprep.subr.mxu0 0.0
  %10490 = vmatpush2.msra.mxu0 0.0
  %10491 = vmatprep.subr.mxu0 0.0
  %10492 = vmatpush2.msra.mxu0 0.0
  %10493 = vmatprep.subr.mxu0 0.0
  %10494 = vmatpush2.msra.mxu0 0.0
  %10495 = vmatprep.subr.mxu0 0.0
  %10496 = vmatpush2.msra.mxu0 0.0
  %10497 = vmatprep.mubr.f32.mxu0 0.0
  %10498 = vmatmul.mubr.f32.gmra.mxu0 %v7035
  %v10499 = vpop.f32.mrf.mxu0
  %v10500 = vadd.f32 %v10339, %v10499
  %v10501 = vpop.f32.mrf.mxu0
  %v10502 = vadd.f32 %v10341, %v10501
  %10503 = vmatprep.mubr.f32.mxu0 0.0
  %10504 = vmatmul.mubr.f32.gmra.mxu0 %v7044
  %v10505 = vpop.f32.mrf.mxu0
  %v10506 = vadd.f32 %v10345, %v10505
  %v10507 = vpop.f32.mrf.mxu0
  %v10508 = vadd.f32 %v10347, %v10507
  %10509 = vmatprep.mubr.f32.mxu0 0.0
  %10510 = vmatmul.mubr.f32.gmra.mxu0 %v7053
  %v10511 = vpop.f32.mrf.mxu0
  %v10512 = vadd.f32 %v10351, %v10511
  %v10513 = vpop.f32.mrf.mxu0
  %v10514 = vadd.f32 %v10353, %v10513
  %10515 = vmatprep.mubr.f32.mxu0 0.0
  %10516 = vmatmul.mubr.f32.gmra.mxu0 %v7062
  %v10517 = vpop.f32.mrf.mxu0
  %v10518 = vadd.f32 %v10357, %v10517
  %v10519 = vpop.f32.mrf.mxu0
  %v10520 = vadd.f32 %v10359, %v10519
  %10521 = vmatprep.mubr.f32.mxu0 0.0
  %10522 = vmatmul.mubr.f32.gmra.mxu0 %v7071
  %v10523 = vpop.f32.mrf.mxu0
  %v10524 = vadd.f32 %v10363, %v10523
  %v10525 = vpop.f32.mrf.mxu0
  %v10526 = vadd.f32 %v10365, %v10525
  %10527 = vmatprep.mubr.f32.mxu0 0.0
  %10528 = vmatmul.mubr.f32.gmra.mxu0 %v7080
  %v10529 = vpop.f32.mrf.mxu0
  %v10530 = vadd.f32 %v10369, %v10529
  %v10531 = vpop.f32.mrf.mxu0
  %v10532 = vadd.f32 %v10371, %v10531
  %10533 = vmatprep.mubr.f32.mxu0 0.0
  %10534 = vmatmul.mubr.f32.gmra.mxu0 %v7089
  %v10535 = vpop.f32.mrf.mxu0
  %v10536 = vadd.f32 %v10375, %v10535
  %v10537 = vpop.f32.mrf.mxu0
  %v10538 = vadd.f32 %v10377, %v10537
  %10539 = vmatprep.mubr.f32.mxu0 0.0
  %10540 = vmatmul.mubr.f32.gmra.mxu0 %v7098
  %v10541 = vpop.f32.mrf.mxu0
  %v10542 = vadd.f32 %v10381, %v10541
  %v10543 = vpop.f32.mrf.mxu0
  %v10544 = vadd.f32 %v10383, %v10543
  %10545 = vmatprep.mubr.f32.mxu0 0.0
  %10546 = vmatmul.mubr.f32.gmra.mxu0 %v7107
  %v10547 = vpop.f32.mrf.mxu0
  %v10548 = vadd.f32 %v10387, %v10547
  %v10549 = vpop.f32.mrf.mxu0
  %v10550 = vadd.f32 %v10389, %v10549
  %10551 = vmatprep.mubr.f32.mxu0 0.0
  %10552 = vmatmul.mubr.f32.gmra.mxu0 %v7116
  %v10553 = vpop.f32.mrf.mxu0
  %v10554 = vadd.f32 %v10393, %v10553
  %v10555 = vpop.f32.mrf.mxu0
  %v10556 = vadd.f32 %v10395, %v10555
  %10557 = vmatprep.mubr.f32.mxu0 0.0
  %10558 = vmatmul.mubr.f32.gmra.mxu0 %v7125
  %v10559 = vpop.f32.mrf.mxu0
  %v10560 = vadd.f32 %v10399, %v10559
  %v10561 = vpop.f32.mrf.mxu0
  %v10562 = vadd.f32 %v10401, %v10561
  %10563 = vmatprep.mubr.f32.mxu0 0.0
  %10564 = vmatmul.mubr.f32.gmra.mxu0 %v7134
  %v10565 = vpop.f32.mrf.mxu0
  %v10566 = vadd.f32 %v10405, %v10565
  %v10567 = vpop.f32.mrf.mxu0
  %v10568 = vadd.f32 %v10407, %v10567
  %10569 = vmatprep.mubr.f32.mxu0 0.0
  %10570 = vmatmul.mubr.f32.gmra.mxu0 %v7143
  %v10571 = vpop.f32.mrf.mxu0
  %v10572 = vadd.f32 %v10411, %v10571
  %v10573 = vpop.f32.mrf.mxu0
  %v10574 = vadd.f32 %v10413, %v10573
  %10575 = vmatprep.mubr.f32.mxu0 0.0
  %10576 = vmatmul.mubr.f32.gmra.mxu0 %v7152
  %v10577 = vpop.f32.mrf.mxu0
  %v10578 = vadd.f32 %v10417, %v10577
  %v10579 = vpop.f32.mrf.mxu0
  %v10580 = vadd.f32 %v10419, %v10579
  %10581 = vmatprep.mubr.f32.mxu0 0.0
  %10582 = vmatmul.mubr.f32.gmra.mxu0 %v7161
  %v10583 = vpop.f32.mrf.mxu0
  %v10584 = vadd.f32 %v10423, %v10583
  %v10585 = vpop.f32.mrf.mxu0
  %v10586 = vadd.f32 %v10425, %v10585
  %10587 = vmatprep.mubr.f32.mxu0 0.0
  %10588 = vmatmul.mubr.f32.gmra.mxu0 %v7170
  %v10589 = vpop.f32.mrf.mxu0
  %v10590 = vadd.f32 %v10429, %v10589
  %v10591 = vpop.f32.mrf.mxu0
  %v10592 = vadd.f32 %v10431, %v10591
  %10593 = vdwg.mxu0
  %10594 = vmatprep.subr.mxu0 0.0
  %10595 = vmatpush1.msra.mxu0 %v7282
  %10596 = vmatprep.subr.mxu0 0.0
  %10597 = vmatpush1.msra.mxu0 %v7275
  %10598 = vmatprep.subr.mxu0 0.0
  %10599 = vmatpush1.msra.mxu0 %v7268
  %10600 = vmatprep.subr.mxu0 0.0
  %10601 = vmatpush1.msra.mxu0 %v7261
  %10602 = vmatprep.subr.mxu0 0.0
  %10603 = vmatpush1.msra.mxu0 %v7254
  %10604 = vmatprep.subr.mxu0 0.0
  %10605 = vmatpush1.msra.mxu0 %v7247
  %10606 = vmatprep.subr.mxu0 0.0
  %10607 = vmatpush1.msra.mxu0 %v7240
  %10608 = vmatprep.subr.mxu0 0.0
  %10609 = vmatpush1.msra.mxu0 %v7233
  %10610 = vmatprep.subr.mxu0 0.0
  %10611 = vmatpush1.msra.mxu0 %v7226
  %10612 = vmatprep.subr.mxu0 0.0
  %10613 = vmatpush1.msra.mxu0 %v7219
  %10614 = vmatprep.subr.mxu0 0.0
  %10615 = vmatpush1.msra.mxu0 %v7212
  %10616 = vmatprep.subr.mxu0 0.0
  %10617 = vmatpush1.msra.mxu0 %v7205
  %10618 = vmatprep.subr.mxu0 0.0
  %10619 = vmatpush1.msra.mxu0 %v7198
  %10620 = vmatprep.subr.mxu0 0.0
  %10621 = vmatpush1.msra.mxu0 %v7191
  %10622 = vmatprep.subr.mxu0 0.0
  %10623 = vmatpush1.msra.mxu0 %v7184
  %10624 = vmatprep.subr.mxu0 0.0
  %10625 = vmatpush1.msra.mxu0 %v7177
  %10626 = vmatprep.subr.mxu0 0.0
  %10627 = vmatpush2.msra.mxu0 %v7394
  %10628 = vmatprep.subr.mxu0 0.0
  %10629 = vmatpush2.msra.mxu0 %v7387
  %10630 = vmatprep.subr.mxu0 0.0
  %10631 = vmatpush2.msra.mxu0 %v7380
  %10632 = vmatprep.subr.mxu0 0.0
  %10633 = vmatpush2.msra.mxu0 %v7373
  %10634 = vmatprep.subr.mxu0 0.0
  %10635 = vmatpush2.msra.mxu0 %v7366
  %10636 = vmatprep.subr.mxu0 0.0
  %10637 = vmatpush2.msra.mxu0 %v7359
  %10638 = vmatprep.subr.mxu0 0.0
  %10639 = vmatpush2.msra.mxu0 %v7352
  %10640 = vmatprep.subr.mxu0 0.0
  %10641 = vmatpush2.msra.mxu0 %v7345
  %10642 = vmatprep.subr.mxu0 0.0
  %10643 = vmatpush2.msra.mxu0 %v7338
  %10644 = vmatprep.subr.mxu0 0.0
  %10645 = vmatpush2.msra.mxu0 %v7331
  %10646 = vmatprep.subr.mxu0 0.0
  %10647 = vmatpush2.msra.mxu0 %v7324
  %10648 = vmatprep.subr.mxu0 0.0
  %10649 = vmatpush2.msra.mxu0 %v7317
  %10650 = vmatprep.subr.mxu0 0.0
  %10651 = vmatpush2.msra.mxu0 %v7310
  %10652 = vmatprep.subr.mxu0 0.0
  %10653 = vmatpush2.msra.mxu0 %v7303
  %10654 = vmatprep.subr.mxu0 0.0
  %10655 = vmatpush2.msra.mxu0 %v7296
  %10656 = vmatprep.subr.mxu0 0.0
  %10657 = vmatpush2.msra.mxu0 %v7289
  %10658 = vmatprep.mubr.f32.mxu0 %v7028
  %10659 = vmatmul.mubr.f32.gmra.mxu0 %v7027
  %v10660 = vpop.f32.mrf.mxu0
  %v10661 = vadd.f32 0.0, %v10660
  %v10662 = vpop.f32.mrf.mxu0
  %10663 = vmatprep.mubr.f32.mxu0 %v7037
  %10664 = vmatmul.mubr.f32.gmra.mxu0 %v7036
  %v10665 = vpop.f32.mrf.mxu0
  %v10666 = vadd.f32 0.0, %v10665
  %v10667 = vpop.f32.mrf.mxu0
  %10668 = vmatprep.mubr.f32.mxu0 %v7046
  %10669 = vmatmul.mubr.f32.gmra.mxu0 %v7045
  %v10670 = vpop.f32.mrf.mxu0
  %v10671 = vadd.f32 0.0, %v10670
  %v10672 = vpop.f32.mrf.mxu0
  %10673 = vmatprep.mubr.f32.mxu0 %v7055
  %10674 = vmatmul.mubr.f32.gmra.mxu0 %v7054
  %v10675 = vpop.f32.mrf.mxu0
  %v10676 = vadd.f32 0.0, %v10675
  %v10677 = vpop.f32.mrf.mxu0
  %10678 = vmatprep.mubr.f32.mxu0 %v7064
  %10679 = vmatmul.mubr.f32.gmra.mxu0 %v7063
  %v10680 = vpop.f32.mrf.mxu0
  %v10681 = vadd.f32 0.0, %v10680
  %v10682 = vpop.f32.mrf.mxu0
  %10683 = vmatprep.mubr.f32.mxu0 %v7073
  %10684 = vmatmul.mubr.f32.gmra.mxu0 %v7072
  %v10685 = vpop.f32.mrf.mxu0
  %v10686 = vadd.f32 0.0, %v10685
  %v10687 = vpop.f32.mrf.mxu0
  %10688 = vmatprep.mubr.f32.mxu0 %v7082
  %10689 = vmatmul.mubr.f32.gmra.mxu0 %v7081
  %v10690 = vpop.f32.mrf.mxu0
  %v10691 = vadd.f32 0.0, %v10690
  %v10692 = vpop.f32.mrf.mxu0
  %10693 = vmatprep.mubr.f32.mxu0 %v7091
  %10694 = vmatmul.mubr.f32.gmra.mxu0 %v7090
  %v10695 = vpop.f32.mrf.mxu0
  %v10696 = vadd.f32 0.0, %v10695
  %v10697 = vpop.f32.mrf.mxu0
  %10698 = vmatprep.mubr.f32.mxu0 %v7100
  %10699 = vmatmul.mubr.f32.gmra.mxu0 %v7099
  %v10700 = vpop.f32.mrf.mxu0
  %v10701 = vadd.f32 0.0, %v10700
  %v10702 = vpop.f32.mrf.mxu0
  %10703 = vmatprep.mubr.f32.mxu0 %v7109
  %10704 = vmatmul.mubr.f32.gmra.mxu0 %v7108
  %v10705 = vpop.f32.mrf.mxu0
  %v10706 = vadd.f32 0.0, %v10705
  %v10707 = vpop.f32.mrf.mxu0
  %10708 = vmatprep.mubr.f32.mxu0 %v7118
  %10709 = vmatmul.mubr.f32.gmra.mxu0 %v7117
  %v10710 = vpop.f32.mrf.mxu0
  %v10711 = vadd.f32 0.0, %v10710
  %v10712 = vpop.f32.mrf.mxu0
  %10713 = vmatprep.mubr.f32.mxu0 %v7127
  %10714 = vmatmul.mubr.f32.gmra.mxu0 %v7126
  %v10715 = vpop.f32.mrf.mxu0
  %v10716 = vadd.f32 0.0, %v10715
  %v10717 = vpop.f32.mrf.mxu0
  %10718 = vmatprep.mubr.f32.mxu0 %v7136
  %10719 = vmatmul.mubr.f32.gmra.mxu0 %v7135
  %v10720 = vpop.f32.mrf.mxu0
  %v10721 = vadd.f32 0.0, %v10720
  %v10722 = vpop.f32.mrf.mxu0
  %10723 = vmatprep.mubr.f32.mxu0 %v7145
  %10724 = vmatmul.mubr.f32.gmra.mxu0 %v7144
  %v10725 = vpop.f32.mrf.mxu0
  %v10726 = vadd.f32 0.0, %v10725
  %v10727 = vpop.f32.mrf.mxu0
  %10728 = vmatprep.mubr.f32.mxu0 %v7154
  %10729 = vmatmul.mubr.f32.gmra.mxu0 %v7153
  %v10730 = vpop.f32.mrf.mxu0
  %v10731 = vadd.f32 0.0, %v10730
  %v10732 = vpop.f32.mrf.mxu0
  %10733 = vmatprep.mubr.f32.mxu0 %v7163
  %10734 = vmatmul.mubr.f32.gmra.mxu0 %v7162
  %v10735 = vpop.f32.mrf.mxu0
  %v10736 = vadd.f32 0.0, %v10735
  %v10737 = vpop.f32.mrf.mxu0
  %10738 = vdwg.mxu0
  %10739 = vmatprep.subr.mxu0 0.0
  %10740 = vmatpush1.msra.mxu0 %v7506
  %10741 = vmatprep.subr.mxu0 0.0
  %10742 = vmatpush1.msra.mxu0 %v7499
  %10743 = vmatprep.subr.mxu0 0.0
  %10744 = vmatpush1.msra.mxu0 %v7492
  %10745 = vmatprep.subr.mxu0 0.0
  %10746 = vmatpush1.msra.mxu0 %v7485
  %10747 = vmatprep.subr.mxu0 0.0
  %10748 = vmatpush1.msra.mxu0 %v7478
  %10749 = vmatprep.subr.mxu0 0.0
  %10750 = vmatpush1.msra.mxu0 %v7471
  %10751 = vmatprep.subr.mxu0 0.0
  %10752 = vmatpush1.msra.mxu0 %v7464
  %10753 = vmatprep.subr.mxu0 0.0
  %10754 = vmatpush1.msra.mxu0 %v7457
  %10755 = vmatprep.subr.mxu0 0.0
  %10756 = vmatpush1.msra.mxu0 %v7450
  %10757 = vmatprep.subr.mxu0 0.0
  %10758 = vmatpush1.msra.mxu0 %v7443
  %10759 = vmatprep.subr.mxu0 0.0
  %10760 = vmatpush1.msra.mxu0 %v7436
  %10761 = vmatprep.subr.mxu0 0.0
  %10762 = vmatpush1.msra.mxu0 %v7429
  %10763 = vmatprep.subr.mxu0 0.0
  %10764 = vmatpush1.msra.mxu0 %v7422
  %10765 = vmatprep.subr.mxu0 0.0
  %10766 = vmatpush1.msra.mxu0 %v7415
  %10767 = vmatprep.subr.mxu0 0.0
  %10768 = vmatpush1.msra.mxu0 %v7408
  %10769 = vmatprep.subr.mxu0 0.0
  %10770 = vmatpush1.msra.mxu0 %v7401
  %10771 = vmatprep.subr.mxu0 0.0
  %10772 = vmatpush2.msra.mxu0 %v7618
  %10773 = vmatprep.subr.mxu0 0.0
  %10774 = vmatpush2.msra.mxu0 %v7611
  %10775 = vmatprep.subr.mxu0 0.0
  %10776 = vmatpush2.msra.mxu0 %v7604
  %10777 = vmatprep.subr.mxu0 0.0
  %10778 = vmatpush2.msra.mxu0 %v7597
  %10779 = vmatprep.subr.mxu0 0.0
  %10780 = vmatpush2.msra.mxu0 %v7590
  %10781 = vmatprep.subr.mxu0 0.0
  %10782 = vmatpush2.msra.mxu0 %v7583
  %10783 = vmatprep.subr.mxu0 0.0
  %10784 = vmatpush2.msra.mxu0 %v7576
  %10785 = vmatprep.subr.mxu0 0.0
  %10786 = vmatpush2.msra.mxu0 %v7569
  %10787 = vmatprep.subr.mxu0 0.0
  %10788 = vmatpush2.msra.mxu0 %v7562
  %10789 = vmatprep.subr.mxu0 0.0
  %10790 = vmatpush2.msra.mxu0 %v7555
  %10791 = vmatprep.subr.mxu0 0.0
  %10792 = vmatpush2.msra.mxu0 %v7548
  %10793 = vmatprep.subr.mxu0 0.0
  %10794 = vmatpush2.msra.mxu0 %v7541
  %10795 = vmatprep.subr.mxu0 0.0
  %10796 = vmatpush2.msra.mxu0 %v7534
  %10797 = vmatprep.subr.mxu0 0.0
  %10798 = vmatpush2.msra.mxu0 %v7527
  %10799 = vmatprep.subr.mxu0 0.0
  %10800 = vmatpush2.msra.mxu0 %v7520
  %10801 = vmatprep.subr.mxu0 0.0
  %10802 = vmatpush2.msra.mxu0 %v7513
  %10803 = vmatprep.mubr.f32.mxu0 %v7030
  %10804 = vmatmul.mubr.f32.gmra.mxu0 %v7029
  %v10805 = vpop.f32.mrf.mxu0
  %v10806 = vadd.f32 %v10661, %v10805
  %v10807 = vpop.f32.mrf.mxu0
  %10808 = vmatprep.mubr.f32.mxu0 %v7039
  %10809 = vmatmul.mubr.f32.gmra.mxu0 %v7038
  %v10810 = vpop.f32.mrf.mxu0
  %v10811 = vadd.f32 %v10666, %v10810
  %v10812 = vpop.f32.mrf.mxu0
  %10813 = vmatprep.mubr.f32.mxu0 %v7048
  %10814 = vmatmul.mubr.f32.gmra.mxu0 %v7047
  %v10815 = vpop.f32.mrf.mxu0
  %v10816 = vadd.f32 %v10671, %v10815
  %v10817 = vpop.f32.mrf.mxu0
  %10818 = vmatprep.mubr.f32.mxu0 %v7057
  %10819 = vmatmul.mubr.f32.gmra.mxu0 %v7056
  %v10820 = vpop.f32.mrf.mxu0
  %v10821 = vadd.f32 %v10676, %v10820
  %v10822 = vpop.f32.mrf.mxu0
  %10823 = vmatprep.mubr.f32.mxu0 %v7066
  %10824 = vmatmul.mubr.f32.gmra.mxu0 %v7065
  %v10825 = vpop.f32.mrf.mxu0
  %v10826 = vadd.f32 %v10681, %v10825
  %v10827 = vpop.f32.mrf.mxu0
  %10828 = vmatprep.mubr.f32.mxu0 %v7075
  %10829 = vmatmul.mubr.f32.gmra.mxu0 %v7074
  %v10830 = vpop.f32.mrf.mxu0
  %v10831 = vadd.f32 %v10686, %v10830
  %v10832 = vpop.f32.mrf.mxu0
  %10833 = vmatprep.mubr.f32.mxu0 %v7084
  %10834 = vmatmul.mubr.f32.gmra.mxu0 %v7083
  %v10835 = vpop.f32.mrf.mxu0
  %v10836 = vadd.f32 %v10691, %v10835
  %v10837 = vpop.f32.mrf.mxu0
  %10838 = vmatprep.mubr.f32.mxu0 %v7093
  %10839 = vmatmul.mubr.f32.gmra.mxu0 %v7092
  %v10840 = vpop.f32.mrf.mxu0
  %v10841 = vadd.f32 %v10696, %v10840
  %v10842 = vpop.f32.mrf.mxu0
  %10843 = vmatprep.mubr.f32.mxu0 %v7102
  %10844 = vmatmul.mubr.f32.gmra.mxu0 %v7101
  %v10845 = vpop.f32.mrf.mxu0
  %v10846 = vadd.f32 %v10701, %v10845
  %v10847 = vpop.f32.mrf.mxu0
  %10848 = vmatprep.mubr.f32.mxu0 %v7111
  %10849 = vmatmul.mubr.f32.gmra.mxu0 %v7110
  %v10850 = vpop.f32.mrf.mxu0
  %v10851 = vadd.f32 %v10706, %v10850
  %v10852 = vpop.f32.mrf.mxu0
  %10853 = vmatprep.mubr.f32.mxu0 %v7120
  %10854 = vmatmul.mubr.f32.gmra.mxu0 %v7119
  %v10855 = vpop.f32.mrf.mxu0
  %v10856 = vadd.f32 %v10711, %v10855
  %v10857 = vpop.f32.mrf.mxu0
  %10858 = vmatprep.mubr.f32.mxu0 %v7129
  %10859 = vmatmul.mubr.f32.gmra.mxu0 %v7128
  %v10860 = vpop.f32.mrf.mxu0
  %v10861 = vadd.f32 %v10716, %v10860
  %v10862 = vpop.f32.mrf.mxu0
  %10863 = vmatprep.mubr.f32.mxu0 %v7138
  %10864 = vmatmul.mubr.f32.gmra.mxu0 %v7137
  %v10865 = vpop.f32.mrf.mxu0
  %v10866 = vadd.f32 %v10721, %v10865
  %v10867 = vpop.f32.mrf.mxu0
  %10868 = vmatprep.mubr.f32.mxu0 %v7147
  %10869 = vmatmul.mubr.f32.gmra.mxu0 %v7146
  %v10870 = vpop.f32.mrf.mxu0
  %v10871 = vadd.f32 %v10726, %v10870
  %v10872 = vpop.f32.mrf.mxu0
  %10873 = vmatprep.mubr.f32.mxu0 %v7156
  %10874 = vmatmul.mubr.f32.gmra.mxu0 %v7155
  %v10875 = vpop.f32.mrf.mxu0
  %v10876 = vadd.f32 %v10731, %v10875
  %v10877 = vpop.f32.mrf.mxu0
  %10878 = vmatprep.mubr.f32.mxu0 %v7165
  %10879 = vmatmul.mubr.f32.gmra.mxu0 %v7164
  %v10880 = vpop.f32.mrf.mxu0
  %v10881 = vadd.f32 %v10736, %v10880
  %v10882 = vpop.f32.mrf.mxu0
  %10883 = vdwg.mxu0
  %10884 = vmatprep.subr.mxu0 0.0
  %10885 = vmatpush1.msra.mxu0 %v7730
  %10886 = vmatprep.subr.mxu0 0.0
  %10887 = vmatpush1.msra.mxu0 %v7723
  %10888 = vmatprep.subr.mxu0 0.0
  %10889 = vmatpush1.msra.mxu0 %v7716
  %10890 = vmatprep.subr.mxu0 0.0
  %10891 = vmatpush1.msra.mxu0 %v7709
  %10892 = vmatprep.subr.mxu0 0.0
  %10893 = vmatpush1.msra.mxu0 %v7702
  %10894 = vmatprep.subr.mxu0 0.0
  %10895 = vmatpush1.msra.mxu0 %v7695
  %10896 = vmatprep.subr.mxu0 0.0
  %10897 = vmatpush1.msra.mxu0 %v7688
  %10898 = vmatprep.subr.mxu0 0.0
  %10899 = vmatpush1.msra.mxu0 %v7681
  %10900 = vmatprep.subr.mxu0 0.0
  %10901 = vmatpush1.msra.mxu0 %v7674
  %10902 = vmatprep.subr.mxu0 0.0
  %10903 = vmatpush1.msra.mxu0 %v7667
  %10904 = vmatprep.subr.mxu0 0.0
  %10905 = vmatpush1.msra.mxu0 %v7660
  %10906 = vmatprep.subr.mxu0 0.0
  %10907 = vmatpush1.msra.mxu0 %v7653
  %10908 = vmatprep.subr.mxu0 0.0
  %10909 = vmatpush1.msra.mxu0 %v7646
  %10910 = vmatprep.subr.mxu0 0.0
  %10911 = vmatpush1.msra.mxu0 %v7639
  %10912 = vmatprep.subr.mxu0 0.0
  %10913 = vmatpush1.msra.mxu0 %v7632
  %10914 = vmatprep.subr.mxu0 0.0
  %10915 = vmatpush1.msra.mxu0 %v7625
  %10916 = vmatprep.subr.mxu0 0.0
  %10917 = vmatpush2.msra.mxu0 %v7842
  %10918 = vmatprep.subr.mxu0 0.0
  %10919 = vmatpush2.msra.mxu0 %v7835
  %10920 = vmatprep.subr.mxu0 0.0
  %10921 = vmatpush2.msra.mxu0 %v7828
  %10922 = vmatprep.subr.mxu0 0.0
  %10923 = vmatpush2.msra.mxu0 %v7821
  %10924 = vmatprep.subr.mxu0 0.0
  %10925 = vmatpush2.msra.mxu0 %v7814
  %10926 = vmatprep.subr.mxu0 0.0
  %10927 = vmatpush2.msra.mxu0 %v7807
  %10928 = vmatprep.subr.mxu0 0.0
  %10929 = vmatpush2.msra.mxu0 %v7800
  %10930 = vmatprep.subr.mxu0 0.0
  %10931 = vmatpush2.msra.mxu0 %v7793
  %10932 = vmatprep.subr.mxu0 0.0
  %10933 = vmatpush2.msra.mxu0 %v7786
  %10934 = vmatprep.subr.mxu0 0.0
  %10935 = vmatpush2.msra.mxu0 %v7779
  %10936 = vmatprep.subr.mxu0 0.0
  %10937 = vmatpush2.msra.mxu0 %v7772
  %10938 = vmatprep.subr.mxu0 0.0
  %10939 = vmatpush2.msra.mxu0 %v7765
  %10940 = vmatprep.subr.mxu0 0.0
  %10941 = vmatpush2.msra.mxu0 %v7758
  %10942 = vmatprep.subr.mxu0 0.0
  %10943 = vmatpush2.msra.mxu0 %v7751
  %10944 = vmatprep.subr.mxu0 0.0
  %10945 = vmatpush2.msra.mxu0 %v7744
  %10946 = vmatprep.subr.mxu0 0.0
  %10947 = vmatpush2.msra.mxu0 %v7737
  %10948 = vmatprep.mubr.f32.mxu0 %v7032
  %10949 = vmatmul.mubr.f32.gmra.mxu0 %v7031
  %v10950 = vpop.f32.mrf.mxu0
  %v10951 = vadd.f32 %v10806, %v10950
  %v10952 = vpop.f32.mrf.mxu0
  %10953 = vmatprep.mubr.f32.mxu0 %v7041
  %10954 = vmatmul.mubr.f32.gmra.mxu0 %v7040
  %v10955 = vpop.f32.mrf.mxu0
  %v10956 = vadd.f32 %v10811, %v10955
  %v10957 = vpop.f32.mrf.mxu0
  %10958 = vmatprep.mubr.f32.mxu0 %v7050
  %10959 = vmatmul.mubr.f32.gmra.mxu0 %v7049
  %v10960 = vpop.f32.mrf.mxu0
  %v10961 = vadd.f32 %v10816, %v10960
  %v10962 = vpop.f32.mrf.mxu0
  %10963 = vmatprep.mubr.f32.mxu0 %v7059
  %10964 = vmatmul.mubr.f32.gmra.mxu0 %v7058
  %v10965 = vpop.f32.mrf.mxu0
  %v10966 = vadd.f32 %v10821, %v10965
  %v10967 = vpop.f32.mrf.mxu0
  %10968 = vmatprep.mubr.f32.mxu0 %v7068
  %10969 = vmatmul.mubr.f32.gmra.mxu0 %v7067
  %v10970 = vpop.f32.mrf.mxu0
  %v10971 = vadd.f32 %v10826, %v10970
  %v10972 = vpop.f32.mrf.mxu0
  %10973 = vmatprep.mubr.f32.mxu0 %v7077
  %10974 = vmatmul.mubr.f32.gmra.mxu0 %v7076
  %v10975 = vpop.f32.mrf.mxu0
  %v10976 = vadd.f32 %v10831, %v10975
  %v10977 = vpop.f32.mrf.mxu0
  %10978 = vmatprep.mubr.f32.mxu0 %v7086
  %10979 = vmatmul.mubr.f32.gmra.mxu0 %v7085
  %v10980 = vpop.f32.mrf.mxu0
  %v10981 = vadd.f32 %v10836, %v10980
  %v10982 = vpop.f32.mrf.mxu0
  %10983 = vmatprep.mubr.f32.mxu0 %v7095
  %10984 = vmatmul.mubr.f32.gmra.mxu0 %v7094
  %v10985 = vpop.f32.mrf.mxu0
  %v10986 = vadd.f32 %v10841, %v10985
  %v10987 = vpop.f32.mrf.mxu0
  %10988 = vmatprep.mubr.f32.mxu0 %v7104
  %10989 = vmatmul.mubr.f32.gmra.mxu0 %v7103
  %v10990 = vpop.f32.mrf.mxu0
  %v10991 = vadd.f32 %v10846, %v10990
  %v10992 = vpop.f32.mrf.mxu0
  %10993 = vmatprep.mubr.f32.mxu0 %v7113
  %10994 = vmatmul.mubr.f32.gmra.mxu0 %v7112
  %v10995 = vpop.f32.mrf.mxu0
  %v10996 = vadd.f32 %v10851, %v10995
  %v10997 = vpop.f32.mrf.mxu0
  %10998 = vmatprep.mubr.f32.mxu0 %v7122
  %10999 = vmatmul.mubr.f32.gmra.mxu0 %v7121
  %v11000 = vpop.f32.mrf.mxu0
  %v11001 = vadd.f32 %v10856, %v11000
  %v11002 = vpop.f32.mrf.mxu0
  %11003 = vmatprep.mubr.f32.mxu0 %v7131
  %11004 = vmatmul.mubr.f32.gmra.mxu0 %v7130
  %v11005 = vpop.f32.mrf.mxu0
  %v11006 = vadd.f32 %v10861, %v11005
  %v11007 = vpop.f32.mrf.mxu0
  %11008 = vmatprep.mubr.f32.mxu0 %v7140
  %11009 = vmatmul.mubr.f32.gmra.mxu0 %v7139
  %v11010 = vpop.f32.mrf.mxu0
  %v11011 = vadd.f32 %v10866, %v11010
  %v11012 = vpop.f32.mrf.mxu0
  %11013 = vmatprep.mubr.f32.mxu0 %v7149
  %11014 = vmatmul.mubr.f32.gmra.mxu0 %v7148
  %v11015 = vpop.f32.mrf.mxu0
  %v11016 = vadd.f32 %v10871, %v11015
  %v11017 = vpop.f32.mrf.mxu0
  %11018 = vmatprep.mubr.f32.mxu0 %v7158
  %11019 = vmatmul.mubr.f32.gmra.mxu0 %v7157
  %v11020 = vpop.f32.mrf.mxu0
  %v11021 = vadd.f32 %v10876, %v11020
  %v11022 = vpop.f32.mrf.mxu0
  %11023 = vmatprep.mubr.f32.mxu0 %v7167
  %11024 = vmatmul.mubr.f32.gmra.mxu0 %v7166
  %v11025 = vpop.f32.mrf.mxu0
  %v11026 = vadd.f32 %v10881, %v11025
  %v11027 = vpop.f32.mrf.mxu0
  %11028 = vdwg.mxu0
  %11029 = vmatprep.subr.mxu0 0.0
  %11030 = vmatpush1.msra.mxu0 %v7954
  %11031 = vmatprep.subr.mxu0 0.0
  %11032 = vmatpush1.msra.mxu0 %v7947
  %11033 = vmatprep.subr.mxu0 0.0
  %11034 = vmatpush1.msra.mxu0 %v7940
  %11035 = vmatprep.subr.mxu0 0.0
  %11036 = vmatpush1.msra.mxu0 %v7933
  %11037 = vmatprep.subr.mxu0 0.0
  %11038 = vmatpush1.msra.mxu0 %v7926
  %11039 = vmatprep.subr.mxu0 0.0
  %11040 = vmatpush1.msra.mxu0 %v7919
  %11041 = vmatprep.subr.mxu0 0.0
  %11042 = vmatpush1.msra.mxu0 %v7912
  %11043 = vmatprep.subr.mxu0 0.0
  %11044 = vmatpush1.msra.mxu0 %v7905
  %11045 = vmatprep.subr.mxu0 0.0
  %11046 = vmatpush1.msra.mxu0 %v7898
  %11047 = vmatprep.subr.mxu0 0.0
  %11048 = vmatpush1.msra.mxu0 %v7891
  %11049 = vmatprep.subr.mxu0 0.0
  %11050 = vmatpush1.msra.mxu0 %v7884
  %11051 = vmatprep.subr.mxu0 0.0
  %11052 = vmatpush1.msra.mxu0 %v7877
  %11053 = vmatprep.subr.mxu0 0.0
  %11054 = vmatpush1.msra.mxu0 %v7870
  %11055 = vmatprep.subr.mxu0 0.0
  %11056 = vmatpush1.msra.mxu0 %v7863
  %11057 = vmatprep.subr.mxu0 0.0
  %11058 = vmatpush1.msra.mxu0 %v7856
  %11059 = vmatprep.subr.mxu0 0.0
  %11060 = vmatpush1.msra.mxu0 %v7849
  %11061 = vmatprep.subr.mxu0 0.0
  %11062 = vmatpush2.msra.mxu0 %v8066
  %11063 = vmatprep.subr.mxu0 0.0
  %11064 = vmatpush2.msra.mxu0 %v8059
  %11065 = vmatprep.subr.mxu0 0.0
  %11066 = vmatpush2.msra.mxu0 %v8052
  %11067 = vmatprep.subr.mxu0 0.0
  %11068 = vmatpush2.msra.mxu0 %v8045
  %11069 = vmatprep.subr.mxu0 0.0
  %11070 = vmatpush2.msra.mxu0 %v8038
  %11071 = vmatprep.subr.mxu0 0.0
  %11072 = vmatpush2.msra.mxu0 %v8031
  %11073 = vmatprep.subr.mxu0 0.0
  %11074 = vmatpush2.msra.mxu0 %v8024
  %11075 = vmatprep.subr.mxu0 0.0
  %11076 = vmatpush2.msra.mxu0 %v8017
  %11077 = vmatprep.subr.mxu0 0.0
  %11078 = vmatpush2.msra.mxu0 %v8010
  %11079 = vmatprep.subr.mxu0 0.0
  %11080 = vmatpush2.msra.mxu0 %v8003
  %11081 = vmatprep.subr.mxu0 0.0
  %11082 = vmatpush2.msra.mxu0 %v7996
  %11083 = vmatprep.subr.mxu0 0.0
  %11084 = vmatpush2.msra.mxu0 %v7989
  %11085 = vmatprep.subr.mxu0 0.0
  %11086 = vmatpush2.msra.mxu0 %v7982
  %11087 = vmatprep.subr.mxu0 0.0
  %11088 = vmatpush2.msra.mxu0 %v7975
  %11089 = vmatprep.subr.mxu0 0.0
  %11090 = vmatpush2.msra.mxu0 %v7968
  %11091 = vmatprep.subr.mxu0 0.0
  %11092 = vmatpush2.msra.mxu0 %v7961
  %11093 = vmatprep.mubr.f32.mxu0 %v7034
  %11094 = vmatmul.mubr.f32.gmra.mxu0 %v7033
  %v11095 = vpop.f32.mrf.mxu0
  %v11096 = vadd.f32 %v10951, %v11095
  %v11097 = vpop.f32.mrf.mxu0
  %11098 = vmatprep.mubr.f32.mxu0 %v7043
  %11099 = vmatmul.mubr.f32.gmra.mxu0 %v7042
  %v11100 = vpop.f32.mrf.mxu0
  %v11101 = vadd.f32 %v10956, %v11100
  %v11102 = vpop.f32.mrf.mxu0
  %11103 = vmatprep.mubr.f32.mxu0 %v7052
  %11104 = vmatmul.mubr.f32.gmra.mxu0 %v7051
  %v11105 = vpop.f32.mrf.mxu0
  %v11106 = vadd.f32 %v10961, %v11105
  %v11107 = vpop.f32.mrf.mxu0
  %11108 = vmatprep.mubr.f32.mxu0 %v7061
  %11109 = vmatmul.mubr.f32.gmra.mxu0 %v7060
  %v11110 = vpop.f32.mrf.mxu0
  %v11111 = vadd.f32 %v10966, %v11110
  %v11112 = vpop.f32.mrf.mxu0
  %11113 = vmatprep.mubr.f32.mxu0 %v7070
  %11114 = vmatmul.mubr.f32.gmra.mxu0 %v7069
  %v11115 = vpop.f32.mrf.mxu0
  %v11116 = vadd.f32 %v10971, %v11115
  %v11117 = vpop.f32.mrf.mxu0
  %11118 = vmatprep.mubr.f32.mxu0 %v7079
  %11119 = vmatmul.mubr.f32.gmra.mxu0 %v7078
  %v11120 = vpop.f32.mrf.mxu0
  %v11121 = vadd.f32 %v10976, %v11120
  %v11122 = vpop.f32.mrf.mxu0
  %11123 = vmatprep.mubr.f32.mxu0 %v7088
  %11124 = vmatmul.mubr.f32.gmra.mxu0 %v7087
  %v11125 = vpop.f32.mrf.mxu0
  %v11126 = vadd.f32 %v10981, %v11125
  %v11127 = vpop.f32.mrf.mxu0
  %11128 = vmatprep.mubr.f32.mxu0 %v7097
  %11129 = vmatmul.mubr.f32.gmra.mxu0 %v7096
  %v11130 = vpop.f32.mrf.mxu0
  %v11131 = vadd.f32 %v10986, %v11130
  %v11132 = vpop.f32.mrf.mxu0
  %11133 = vmatprep.mubr.f32.mxu0 %v7106
  %11134 = vmatmul.mubr.f32.gmra.mxu0 %v7105
  %v11135 = vpop.f32.mrf.mxu0
  %v11136 = vadd.f32 %v10991, %v11135
  %v11137 = vpop.f32.mrf.mxu0
  %11138 = vmatprep.mubr.f32.mxu0 %v7115
  %11139 = vmatmul.mubr.f32.gmra.mxu0 %v7114
  %v11140 = vpop.f32.mrf.mxu0
  %v11141 = vadd.f32 %v10996, %v11140
  %v11142 = vpop.f32.mrf.mxu0
  %11143 = vmatprep.mubr.f32.mxu0 %v7124
  %11144 = vmatmul.mubr.f32.gmra.mxu0 %v7123
  %v11145 = vpop.f32.mrf.mxu0
  %v11146 = vadd.f32 %v11001, %v11145
  %v11147 = vpop.f32.mrf.mxu0
  %11148 = vmatprep.mubr.f32.mxu0 %v7133
  %11149 = vmatmul.mubr.f32.gmra.mxu0 %v7132
  %v11150 = vpop.f32.mrf.mxu0
  %v11151 = vadd.f32 %v11006, %v11150
  %v11152 = vpop.f32.mrf.mxu0
  %11153 = vmatprep.mubr.f32.mxu0 %v7142
  %11154 = vmatmul.mubr.f32.gmra.mxu0 %v7141
  %v11155 = vpop.f32.mrf.mxu0
  %v11156 = vadd.f32 %v11011, %v11155
  %v11157 = vpop.f32.mrf.mxu0
  %11158 = vmatprep.mubr.f32.mxu0 %v7151
  %11159 = vmatmul.mubr.f32.gmra.mxu0 %v7150
  %v11160 = vpop.f32.mrf.mxu0
  %v11161 = vadd.f32 %v11016, %v11160
  %v11162 = vpop.f32.mrf.mxu0
  %11163 = vmatprep.mubr.f32.mxu0 %v7160
  %11164 = vmatmul.mubr.f32.gmra.mxu0 %v7159
  %v11165 = vpop.f32.mrf.mxu0
  %v11166 = vadd.f32 %v11021, %v11165
  %v11167 = vpop.f32.mrf.mxu0
  %11168 = vmatprep.mubr.f32.mxu0 %v7169
  %11169 = vmatmul.mubr.f32.gmra.mxu0 %v7168
  %v11170 = vpop.f32.mrf.mxu0
  %v11171 = vadd.f32 %v11026, %v11170
  %v11172 = vpop.f32.mrf.mxu0
  %11173 = vdwg.mxu0
  %11174 = vmatprep.subr.mxu0 0.0
  %11175 = vmatpush1.msra.mxu0 %v8178
  %11176 = vmatprep.subr.mxu0 0.0
  %11177 = vmatpush1.msra.mxu0 %v8171
  %11178 = vmatprep.subr.mxu0 0.0
  %11179 = vmatpush1.msra.mxu0 %v8164
  %11180 = vmatprep.subr.mxu0 0.0
  %11181 = vmatpush1.msra.mxu0 %v8157
  %11182 = vmatprep.subr.mxu0 0.0
  %11183 = vmatpush1.msra.mxu0 %v8150
  %11184 = vmatprep.subr.mxu0 0.0
  %11185 = vmatpush1.msra.mxu0 %v8143
  %11186 = vmatprep.subr.mxu0 0.0
  %11187 = vmatpush1.msra.mxu0 %v8136
  %11188 = vmatprep.subr.mxu0 0.0
  %11189 = vmatpush1.msra.mxu0 %v8129
  %11190 = vmatprep.subr.mxu0 0.0
  %11191 = vmatpush1.msra.mxu0 %v8122
  %11192 = vmatprep.subr.mxu0 0.0
  %11193 = vmatpush1.msra.mxu0 %v8115
  %11194 = vmatprep.subr.mxu0 0.0
  %11195 = vmatpush1.msra.mxu0 %v8108
  %11196 = vmatprep.subr.mxu0 0.0
  %11197 = vmatpush1.msra.mxu0 %v8101
  %11198 = vmatprep.subr.mxu0 0.0
  %11199 = vmatpush1.msra.mxu0 %v8094
  %11200 = vmatprep.subr.mxu0 0.0
  %11201 = vmatpush1.msra.mxu0 %v8087
  %11202 = vmatprep.subr.mxu0 0.0
  %11203 = vmatpush1.msra.mxu0 %v8080
  %11204 = vmatprep.subr.mxu0 0.0
  %11205 = vmatpush1.msra.mxu0 %v8073
  %11206 = vmatprep.subr.mxu0 0.0
  %11207 = vmatpush2.msra.mxu0 0.0
  %11208 = vmatprep.subr.mxu0 0.0
  %11209 = vmatpush2.msra.mxu0 0.0
  %11210 = vmatprep.subr.mxu0 0.0
  %11211 = vmatpush2.msra.mxu0 0.0
  %11212 = vmatprep.subr.mxu0 0.0
  %11213 = vmatpush2.msra.mxu0 0.0
  %11214 = vmatprep.subr.mxu0 0.0
  %11215 = vmatpush2.msra.mxu0 0.0
  %11216 = vmatprep.subr.mxu0 0.0
  %11217 = vmatpush2.msra.mxu0 0.0
  %11218 = vmatprep.subr.mxu0 0.0
  %11219 = vmatpush2.msra.mxu0 0.0
  %11220 = vmatprep.subr.mxu0 0.0
  %11221 = vmatpush2.msra.mxu0 0.0
  %11222 = vmatprep.subr.mxu0 0.0
  %11223 = vmatpush2.msra.mxu0 0.0
  %11224 = vmatprep.subr.mxu0 0.0
  %11225 = vmatpush2.msra.mxu0 0.0
  %11226 = vmatprep.subr.mxu0 0.0
  %11227 = vmatpush2.msra.mxu0 0.0
  %11228 = vmatprep.subr.mxu0 0.0
  %11229 = vmatpush2.msra.mxu0 0.0
  %11230 = vmatprep.subr.mxu0 0.0
  %11231 = vmatpush2.msra.mxu0 0.0
  %11232 = vmatprep.subr.mxu0 0.0
  %11233 = vmatpush2.msra.mxu0 0.0
  %11234 = vmatprep.subr.mxu0 0.0
  %11235 = vmatpush2.msra.mxu0 0.0
  %11236 = vmatprep.subr.mxu0 0.0
  %11237 = vmatpush2.msra.mxu0 0.0
  %11238 = vmatprep.mubr.f32.mxu0 0.0
  %11239 = vmatmul.mubr.f32.gmra.mxu0 %v7035
  %v11240 = vpop.f32.mrf.mxu0
  %v11241 = vadd.f32 %v11096, %v11240
  %v11242 = vpop.f32.mrf.mxu0
  %11243 = vmatprep.mubr.f32.mxu0 0.0
  %11244 = vmatmul.mubr.f32.gmra.mxu0 %v7044
  %v11245 = vpop.f32.mrf.mxu0
  %v11246 = vadd.f32 %v11101, %v11245
  %v11247 = vpop.f32.mrf.mxu0
  %11248 = vmatprep.mubr.f32.mxu0 0.0
  %11249 = vmatmul.mubr.f32.gmra.mxu0 %v7053
  %v11250 = vpop.f32.mrf.mxu0
  %v11251 = vadd.f32 %v11106, %v11250
  %v11252 = vpop.f32.mrf.mxu0
  %11253 = vmatprep.mubr.f32.mxu0 0.0
  %11254 = vmatmul.mubr.f32.gmra.mxu0 %v7062
  %v11255 = vpop.f32.mrf.mxu0
  %v11256 = vadd.f32 %v11111, %v11255
  %v11257 = vpop.f32.mrf.mxu0
  %11258 = vmatprep.mubr.f32.mxu0 0.0
  %11259 = vmatmul.mubr.f32.gmra.mxu0 %v7071
  %v11260 = vpop.f32.mrf.mxu0
  %v11261 = vadd.f32 %v11116, %v11260
  %v11262 = vpop.f32.mrf.mxu0
  %11263 = vmatprep.mubr.f32.mxu0 0.0
  %11264 = vmatmul.mubr.f32.gmra.mxu0 %v7080
  %v11265 = vpop.f32.mrf.mxu0
  %v11266 = vadd.f32 %v11121, %v11265
  %v11267 = vpop.f32.mrf.mxu0
  %11268 = vmatprep.mubr.f32.mxu0 0.0
  %11269 = vmatmul.mubr.f32.gmra.mxu0 %v7089
  %v11270 = vpop.f32.mrf.mxu0
  %v11271 = vadd.f32 %v11126, %v11270
  %v11272 = vpop.f32.mrf.mxu0
  %11273 = vmatprep.mubr.f32.mxu0 0.0
  %11274 = vmatmul.mubr.f32.gmra.mxu0 %v7098
  %v11275 = vpop.f32.mrf.mxu0
  %v11276 = vadd.f32 %v11131, %v11275
  %v11277 = vpop.f32.mrf.mxu0
  %11278 = vmatprep.mubr.f32.mxu0 0.0
  %11279 = vmatmul.mubr.f32.gmra.mxu0 %v7107
  %v11280 = vpop.f32.mrf.mxu0
  %v11281 = vadd.f32 %v11136, %v11280
  %v11282 = vpop.f32.mrf.mxu0
  %11283 = vmatprep.mubr.f32.mxu0 0.0
  %11284 = vmatmul.mubr.f32.gmra.mxu0 %v7116
  %v11285 = vpop.f32.mrf.mxu0
  %v11286 = vadd.f32 %v11141, %v11285
  %v11287 = vpop.f32.mrf.mxu0
  %11288 = vmatprep.mubr.f32.mxu0 0.0
  %11289 = vmatmul.mubr.f32.gmra.mxu0 %v7125
  %v11290 = vpop.f32.mrf.mxu0
  %v11291 = vadd.f32 %v11146, %v11290
  %v11292 = vpop.f32.mrf.mxu0
  %11293 = vmatprep.mubr.f32.mxu0 0.0
  %11294 = vmatmul.mubr.f32.gmra.mxu0 %v7134
  %v11295 = vpop.f32.mrf.mxu0
  %v11296 = vadd.f32 %v11151, %v11295
  %v11297 = vpop.f32.mrf.mxu0
  %11298 = vmatprep.mubr.f32.mxu0 0.0
  %11299 = vmatmul.mubr.f32.gmra.mxu0 %v7143
  %v11300 = vpop.f32.mrf.mxu0
  %v11301 = vadd.f32 %v11156, %v11300
  %v11302 = vpop.f32.mrf.mxu0
  %11303 = vmatprep.mubr.f32.mxu0 0.0
  %11304 = vmatmul.mubr.f32.gmra.mxu0 %v7152
  %v11305 = vpop.f32.mrf.mxu0
  %v11306 = vadd.f32 %v11161, %v11305
  %v11307 = vpop.f32.mrf.mxu0
  %11308 = vmatprep.mubr.f32.mxu0 0.0
  %11309 = vmatmul.mubr.f32.gmra.mxu0 %v7161
  %v11310 = vpop.f32.mrf.mxu0
  %v11311 = vadd.f32 %v11166, %v11310
  %v11312 = vpop.f32.mrf.mxu0
  %11313 = vmatprep.mubr.f32.mxu0 0.0
  %11314 = vmatmul.mubr.f32.gmra.mxu0 %v7170
  %v11315 = vpop.f32.mrf.mxu0
  %v11316 = vadd.f32 %v11171, %v11315
  %v11317 = vpop.f32.mrf.mxu0
  %11318 = vdwg.mxu0
  %11319 = vst [vmem:[%s2] sm:$0xff] %v8890
  %11320 = vst [vmem:[%s2 + $0x8] sm:$0xff] %v8892
  %11321 = vst [vmem:[%s2 + $0x10] sm:$0xff] %v9695
  %11322 = vst [vmem:[%s2 + $0x18] sm:$0xff] %v9697
  %11323 = vst [vmem:[%s2 + $0x20] sm:$0xff] %v10500
  %11324 = vst [vmem:[%s2 + $0x28] sm:$0xff] %v10502
  %11325 = vst [vmem:[%s2 + $0x30] sm:$0xff] %v11241
  %11326 = vst [vmem:[%s2 + $0x38] sm:$0xff] %v8896
  %11327 = vst [vmem:[%s2 + $0x40] sm:$0xff] %v8898
  %11328 = vst [vmem:[%s2 + $0x48] sm:$0xff] %v9701
  %11329 = vst [vmem:[%s2 + $0x50] sm:$0xff] %v9703
  %11330 = vst [vmem:[%s2 + $0x58] sm:$0xff] %v10506
  %11331 = vst [vmem:[%s2 + $0x60] sm:$0xff] %v10508
  %11332 = vst [vmem:[%s2 + $0x68] sm:$0xff] %v11246
  %11333 = vst [vmem:[%s2 + $0x70] sm:$0xff] %v8902
  %11334 = vst [vmem:[%s2 + $0x78] sm:$0xff] %v8904
  %11335 = vst [vmem:[%s2 + $0x80] sm:$0xff] %v9707
  %11336 = vst [vmem:[%s2 + $0x88] sm:$0xff] %v9709
  %11337 = vst [vmem:[%s2 + $0x90] sm:$0xff] %v10512
  %11338 = vst [vmem:[%s2 + $0x98] sm:$0xff] %v10514
  %11339 = vst [vmem:[%s2 + $0xa0] sm:$0xff] %v11251
  %11340 = vst [vmem:[%s2 + $0xa8] sm:$0xff] %v8908
  %11341 = vst [vmem:[%s2 + $0xb0] sm:$0xff] %v8910
  %11342 = vst [vmem:[%s2 + $0xb8] sm:$0xff] %v9713
  %11343 = vst [vmem:[%s2 + $0xc0] sm:$0xff] %v9715
  %11344 = vst [vmem:[%s2 + $0xc8] sm:$0xff] %v10518
  %11345 = vst [vmem:[%s2 + $0xd0] sm:$0xff] %v10520
  %11346 = vst [vmem:[%s2 + $0xd8] sm:$0xff] %v11256
  %11347 = vst [vmem:[%s2 + $0xe0] sm:$0xff] %v8914
  %11348 = vst [vmem:[%s2 + $0xe8] sm:$0xff] %v8916
  %11349 = vst [vmem:[%s2 + $0xf0] sm:$0xff] %v9719
  %11350 = vst [vmem:[%s2 + $0xf8] sm:$0xff] %v9721
  %11351 = vst [vmem:[%s2 + $0x100] sm:$0xff] %v10524
  %11352 = vst [vmem:[%s2 + $0x108] sm:$0xff] %v10526
  %11353 = vst [vmem:[%s2 + $0x110] sm:$0xff] %v11261
  %11354 = vst [vmem:[%s2 + $0x118] sm:$0xff] %v8920
  %11355 = vst [vmem:[%s2 + $0x120] sm:$0xff] %v8922
  %11356 = vst [vmem:[%s2 + $0x128] sm:$0xff] %v9725
  %11357 = vst [vmem:[%s2 + $0x130] sm:$0xff] %v9727
  %11358 = vst [vmem:[%s2 + $0x138] sm:$0xff] %v10530
  %11359 = vst [vmem:[%s2 + $0x140] sm:$0xff] %v10532
  %11360 = vst [vmem:[%s2 + $0x148] sm:$0xff] %v11266
  %11361 = vst [vmem:[%s2 + $0x150] sm:$0xff] %v8926
  %11362 = vst [vmem:[%s2 + $0x158] sm:$0xff] %v8928
  %11363 = vst [vmem:[%s2 + $0x160] sm:$0xff] %v9731
  %11364 = vst [vmem:[%s2 + $0x168] sm:$0xff] %v9733
  %11365 = vst [vmem:[%s2 + $0x170] sm:$0xff] %v10536
  %11366 = vst [vmem:[%s2 + $0x178] sm:$0xff] %v10538
  %11367 = vst [vmem:[%s2 + $0x180] sm:$0xff] %v11271
  %11368 = vst [vmem:[%s2 + $0x188] sm:$0xff] %v8932
  %11369 = vst [vmem:[%s2 + $0x190] sm:$0xff] %v8934
  %11370 = vst [vmem:[%s2 + $0x198] sm:$0xff] %v9737
  %11371 = vst [vmem:[%s2 + $0x1a0] sm:$0xff] %v9739
  %11372 = vst [vmem:[%s2 + $0x1a8] sm:$0xff] %v10542
  %11373 = vst [vmem:[%s2 + $0x1b0] sm:$0xff] %v10544
  %11374 = vst [vmem:[%s2 + $0x1b8] sm:$0xff] %v11276
  %11375 = vst [vmem:[%s2 + $0x1c0] sm:$0xff] %v8938
  %11376 = vst [vmem:[%s2 + $0x1c8] sm:$0xff] %v8940
  %11377 = vst [vmem:[%s2 + $0x1d0] sm:$0xff] %v9743
  %11378 = vst [vmem:[%s2 + $0x1d8] sm:$0xff] %v9745
  %11379 = vst [vmem:[%s2 + $0x1e0] sm:$0xff] %v10548
  %11380 = vst [vmem:[%s2 + $0x1e8] sm:$0xff] %v10550
  %11381 = vst [vmem:[%s2 + $0x1f0] sm:$0xff] %v11281
  %11382 = vst [vmem:[%s2 + $0x1f8] sm:$0xff] %v8944
  %11383 = vst [vmem:[%s2 + $0x200] sm:$0xff] %v8946
  %11384 = vst [vmem:[%s2 + $0x208] sm:$0xff] %v9749
  %11385 = vst [vmem:[%s2 + $0x210] sm:$0xff] %v9751
  %11386 = vst [vmem:[%s2 + $0x218] sm:$0xff] %v10554
  %11387 = vst [vmem:[%s2 + $0x220] sm:$0xff] %v10556
  %11388 = vst [vmem:[%s2 + $0x228] sm:$0xff] %v11286
  %11389 = vst [vmem:[%s2 + $0x230] sm:$0xff] %v8950
  %11390 = vst [vmem:[%s2 + $0x238] sm:$0xff] %v8952
  %11391 = vst [vmem:[%s2 + $0x240] sm:$0xff] %v9755
  %11392 = vst [vmem:[%s2 + $0x248] sm:$0xff] %v9757
  %11393 = vst [vmem:[%s2 + $0x250] sm:$0xff] %v10560
  %11394 = vst [vmem:[%s2 + $0x258] sm:$0xff] %v10562
  %11395 = vst [vmem:[%s2 + $0x260] sm:$0xff] %v11291
  %11396 = vst [vmem:[%s2 + $0x268] sm:$0xff] %v8956
  %11397 = vst [vmem:[%s2 + $0x270] sm:$0xff] %v8958
  %11398 = vst [vmem:[%s2 + $0x278] sm:$0xff] %v9761
  %11399 = vst [vmem:[%s2 + $0x280] sm:$0xff] %v9763
  %11400 = vst [vmem:[%s2 + $0x288] sm:$0xff] %v10566
  %11401 = vst [vmem:[%s2 + $0x290] sm:$0xff] %v10568
  %11402 = vst [vmem:[%s2 + $0x298] sm:$0xff] %v11296
  %11403 = vst [vmem:[%s2 + $0x2a0] sm:$0xff] %v8962
  %11404 = vst [vmem:[%s2 + $0x2a8] sm:$0xff] %v8964
  %11405 = vst [vmem:[%s2 + $0x2b0] sm:$0xff] %v9767
  %11406 = vst [vmem:[%s2 + $0x2b8] sm:$0xff] %v9769
  %11407 = vst [vmem:[%s2 + $0x2c0] sm:$0xff] %v10572
  %11408 = vst [vmem:[%s2 + $0x2c8] sm:$0xff] %v10574
  %11409 = vst [vmem:[%s2 + $0x2d0] sm:$0xff] %v11301
  %11410 = vst [vmem:[%s2 + $0x2d8] sm:$0xff] %v8968
  %11411 = vst [vmem:[%s2 + $0x2e0] sm:$0xff] %v8970
  %11412 = vst [vmem:[%s2 + $0x2e8] sm:$0xff] %v9773
  %11413 = vst [vmem:[%s2 + $0x2f0] sm:$0xff] %v9775
  %11414 = vst [vmem:[%s2 + $0x2f8] sm:$0xff] %v10578
  %11415 = vst [vmem:[%s2 + $0x300] sm:$0xff] %v10580
  %11416 = vst [vmem:[%s2 + $0x308] sm:$0xff] %v11306
  %11417 = vst [vmem:[%s2 + $0x310] sm:$0xff] %v8974
  %11418 = vst [vmem:[%s2 + $0x318] sm:$0xff] %v8976
  %11419 = vst [vmem:[%s2 + $0x320] sm:$0xff] %v9779
  %11420 = vst [vmem:[%s2 + $0x328] sm:$0xff] %v9781
  %11421 = vst [vmem:[%s2 + $0x330] sm:$0xff] %v10584
  %11422 = vst [vmem:[%s2 + $0x338] sm:$0xff] %v10586
  %11423 = vst [vmem:[%s2 + $0x340] sm:$0xff] %v11311
  %11424 = vst [vmem:[%s2 + $0x348] sm:$0xff] %v8980
  %11425 = vst [vmem:[%s2 + $0x350] sm:$0xff] %v8982
  %11426 = vst [vmem:[%s2 + $0x358] sm:$0xff] %v9785
  %11427 = vst [vmem:[%s2 + $0x360] sm:$0xff] %v9787
  %11428 = vst [vmem:[%s2 + $0x368] sm:$0xff] %v10590
  %11429 = vst [vmem:[%s2 + $0x370] sm:$0xff] %v10592
  %11430 = vst [vmem:[%s2 + $0x378] sm:$0xff] %v11316
  // Predicated region
  $region10: #{kernel_manual_2_forward.1} parent=0 // pred_check
    _
  $region11: #{kernel_manual_2_forward.1} parent=0 // pred_check_branch
    %11432 = sbr.rel (0) target = $region13
  $region12: #{kernel_manual_2_forward.1} parent=0 // pred_region
    _
  $region13: #{kernel_manual_2_forward.1} parent=0 // pred_fallthru
    _
  // Predicated region
  $region14: #{kernel_manual_2_forward.1} parent=0 // pred_check
    _
  $region15: #{kernel_manual_2_forward.1} parent=0 // pred_check_branch
    %11434 = sbr.rel (0) target = $region17
  $region16: #{kernel_manual_2_forward.1} parent=0 // pred_region
    _
  $region17: #{kernel_manual_2_forward.1} parent=0 // pred_fallthru
    _

</llo_original>
